<compile_context>
chip_gen: v7x
topology: tpu7x:2x2x1
jax: 0.10.0
libtpu: 0.0.40
codegen_flags: <defaults>
</compile_context>

<pallas_src>
import functools
import math

import jax
import jax.numpy as jnp
from jax.experimental import pallas as pl
from jax.experimental.pallas import tpu as pltpu


_VMEM = pl.BlockSpec(memory_space=pltpu.MemorySpace.VMEM)

_EDGE_ROWS = 2048     # row-tile target for the EdgeConv matmul grid (k on grid => tiny per-step VMEM)
_PDIST_ROWS = 512     # query row-tile target for the pairwise-distance grid
_ROW_TILE = 1024      # row-tile target for bn_act / conv5 grids


@functools.lru_cache(maxsize=None)
def _vmem_limit_bytes():
    # Generation-aware scoped-VMEM limit: ~3/4 of physical VMEM, capped at 100 MiB.
    # (v5e/v6e: 128 MiB physical -> 96 MiB; v7x: 64 MiB -> 48 MiB.)
    try:
        cap = pltpu.get_tpu_info().vmem_capacity_bytes
        return int(min(cap * 3 // 4, 100 * 1024 * 1024))
    except Exception:
        return 48 * 1024 * 1024


def _cparams(dim_sem):
    return pltpu.CompilerParams(dimension_semantics=dim_sem,
                                vmem_limit_bytes=_vmem_limit_bytes())


def _pick_tile(total, target, full_dim):
    """Largest divisor of `total` <= target that is a multiple of 8 (sublane) or == full_dim."""
    t = min(target, total)
    while t > 1:
        if total % t == 0 and (t % 8 == 0 or t == full_dim):
            return t
        t -= 1
    return total


# ---------------------------------------------------------------------------
# Kernel 1: pairwise (negative squared) distances used by knn
#   out[b, q, m] = 2 <x_q, x_m> - ||x_m||^2   (per-query constant -||x_q||^2 dropped:
#   it never changes the per-row top_k indices that are the only thing consumed)
# ---------------------------------------------------------------------------
def _pdist_kernel(xq_ref, xf_ref, xx_ref, o_ref):
    gram = jax.lax.dot_general(xq_ref[0], xf_ref[0], (((1,), (1,)), ((), ())),
                               preferred_element_type=jnp.float32)   # (tq, N) f32
    o_ref[0] = 2.0 * gram - xx_ref[0]


def pairwise_dist(x_bnc, xx_b1n):
    """x_bnc: (B, N, C) bf16; xx_b1n: (B, 1, N) f32 precomputed squared norms."""
    B, N, C = x_bnc.shape
    tq = _pick_tile(N, _PDIST_ROWS, N)
    return pl.pallas_call(
        _pdist_kernel,
        grid=(B, N // tq),
        in_specs=[pl.BlockSpec((1, tq, C), lambda b, q: (b, q, 0)),
                  pl.BlockSpec((1, N, C), lambda b, q: (b, 0, 0)),
                  pl.BlockSpec((1, 1, N), lambda b, q: (b, 0, 0))],
        out_specs=pl.BlockSpec((1, tq, N), lambda b, q: (b, q, 0)),
        out_shape=jax.ShapeDtypeStruct((B, N, N), jnp.float32),
        compiler_params=_cparams(("parallel", "parallel")),
    )(x_bnc, x_bnc, xx_b1n)


# ---------------------------------------------------------------------------
# Kernel 2: EdgeConv matmul, k streamed on the grid.
#   Per (tile i, neighbour j) step: y = neigh_j @ W_top + cached(cent @ W_delta),
#   streaming max over k into VMEM scratch and per-channel BN2d sum / sum-sq
#   into tiny (1, cout) accumulators.  Outputs written at j == k-1.
# ---------------------------------------------------------------------------
def _edge_conv_kernel(neigh_ref, cent_ref, wt_ref, wd_ref, m_ref, stats_ref,
                      yc_sc, m_sc, s_sc, sq_sc):
    j = pl.program_id(1)

    @pl.when(j == 0)
    def _init():
        # centre term is k-independent: compute once per row tile and cache.
        yc_sc[...] = jnp.dot(cent_ref[...], wd_ref[...],
                             preferred_element_type=jnp.float32)
        m_sc[...] = jnp.full_like(m_sc, -jnp.inf)
        s_sc[...] = jnp.zeros_like(s_sc)
        sq_sc[...] = jnp.zeros_like(sq_sc)

    y = jnp.dot(neigh_ref[0], wt_ref[...],
                preferred_element_type=jnp.float32) + yc_sc[...]
    m_sc[...] = jnp.maximum(m_sc[...], y)
    # BN2d statistics reduced per channel on the fly (tiny accumulators, no
    # (tm, cout) f32 sum / sum-sq streams in the hot loop).
    s_sc[...] = s_sc[...] + jnp.sum(y, axis=0, keepdims=True)
    sq_sc[...] = sq_sc[...] + jnp.sum(y * y, axis=0, keepdims=True)

    @pl.when(j == pl.num_programs(1) - 1)
    def _finalize():
        m_ref[...] = m_sc[...]
        stats_ref[0, 0:1, :] = s_sc[...]
        stats_ref[0, 1:2, :] = sq_sc[...]


# ---------------------------------------------------------------------------
# Kernel 3: BatchNorm(train stats) apply + LeakyReLU(0.2) on the per-row maxima.
#   Emits bf16 so downstream gathers / grams / conv5 move half the bytes.
# ---------------------------------------------------------------------------
def _bn_act_kernel(m_ref, sc_ref, bi_ref, o_ref):
    yn = m_ref[...] * sc_ref[...] + bi_ref[...]
    o_ref[...] = jnp.where(yn > 0.0, yn, 0.2 * yn).astype(o_ref.dtype)


def bn_act(m, scale, bias):
    M, C = m.shape
    tm = _pick_tile(M, _ROW_TILE, M)
    return pl.pallas_call(
        _bn_act_kernel,
        grid=(M // tm,),
        in_specs=[pl.BlockSpec((tm, C), lambda i: (i, 0)),
                  pl.BlockSpec((1, C), lambda i: (0, 0)),
                  pl.BlockSpec((1, C), lambda i: (0, 0))],
        out_specs=pl.BlockSpec((tm, C), lambda i: (i, 0)),
        out_shape=jax.ShapeDtypeStruct((M, C), jnp.bfloat16),
        compiler_params=_cparams(("parallel",)),
    )(m, scale, bias)


def _bn_scale_bias(sums, count):
    mean = sums[0] / count
    # biased variance (BN train mode); clamp guards E[y^2]-mean^2 cancellation.
    var = jnp.maximum(sums[1] / count - mean * mean, 0.0)
    scale = jax.lax.rsqrt(var + 1e-5)
    return scale, -mean * scale


def edge_conv_layer(x_bnc, w, k):
    """One EdgeConv block: knn graph feature -> 1x1 conv -> BN2d -> LeakyReLU -> max over k.

    x_bnc: (B, N, C) bf16.  Returns (B, N, cout) bf16.
    """
    B, N, C = x_bnc.shape
    M = B * N
    cout = w.shape[1]

    # ---- knn neighbour selection + gather (stays in XLA) --------------------
    # TODO(synk): top_k + the data-dependent row gather stay in XLA; a fused
    # in-kernel gather would need per-point manual DMA (pl.ANY + make_async_copy).
    xx = jnp.sum(x_bnc.astype(jnp.float32) ** 2, axis=-1).reshape(B, 1, N)
    pd = pairwise_dist(x_bnc, xx)                                    # Pallas
    _, idx = jax.lax.top_k(pd, k)                                    # (B, N, k)

    # Gather straight into (k, B, N, C) slab order on bf16 activations:
    # no post-gather transpose pass, half the gather bytes vs f32.
    idx_kbn = jnp.transpose(idx, (2, 0, 1))                          # (k, B, N) int32 (tiny)
    gather_b = jax.vmap(lambda pts, ind: pts[ind])                   # per-cloud row gather
    neigh = jax.vmap(lambda ind: gather_b(x_bnc, ind))(idx_kbn)      # (k, B, N, C) bf16
    neigh = neigh.reshape(k, M, C)
    cent = x_bnc.reshape(M, C)

    # concat split:  cat(n - c, c) @ W  ==  n @ W_top + c @ (W_bot - W_top)
    w_top = w[:C].astype(jnp.bfloat16)
    w_delta = (w[C:] - w[:C]).astype(jnp.bfloat16)

    tm = _pick_tile(M, _EDGE_ROWS, M)
    n_tiles = M // tm
    m, pstats = pl.pallas_call(
        _edge_conv_kernel,
        grid=(n_tiles, k),
        in_specs=[pl.BlockSpec((1, tm, C), lambda i, j: (j, i, 0)),
                  pl.BlockSpec((tm, C), lambda i, j: (i, 0)),
                  pl.BlockSpec((C, cout), lambda i, j: (0, 0)),
                  pl.BlockSpec((C, cout), lambda i, j: (0, 0))],
        out_specs=[pl.BlockSpec((tm, cout), lambda i, j: (i, 0)),
                   pl.BlockSpec((1, 2, cout), lambda i, j: (i, 0, 0))],
        out_shape=[jax.ShapeDtypeStruct((M, cout), jnp.float32),
                   jax.ShapeDtypeStruct((n_tiles, 2, cout), jnp.float32)],
        scratch_shapes=[pltpu.VMEM((tm, cout), jnp.float32),   # cached centre term
                        pltpu.VMEM((tm, cout), jnp.float32),   # running max
                        pltpu.VMEM((1, cout), jnp.float32),    # BN sum
                        pltpu.VMEM((1, cout), jnp.float32)],   # BN sum of squares
        compiler_params=_cparams(("parallel", "arbitrary")),
    )(neigh, cent, w_top, w_delta)

    # Global BN2d stats over B*N*k elements from per-tile partials (tiny XLA
    # reduce), then normalize + LeakyReLU the per-row maxima (monotone fusion).
    scale, bias = _bn_scale_bias(jnp.sum(pstats, axis=0), float(M * k))
    x_out = bn_act(m, scale[None, :], bias[None, :])                 # bf16
    return x_out.reshape(B, N, cout)


# ---------------------------------------------------------------------------
# Kernel 4: conv5 (1x1 Conv1d on the 4-way concat, expressed as 4 split matmuls)
#           + per-tile max over points + per-tile BN1d partial sums.
#           Gridded per (cloud, point-tile) so tiles never cross a cloud boundary.
# ---------------------------------------------------------------------------
def _conv5_kernel(x1_ref, x2_ref, x3_ref, x4_ref,
                  w1_ref, w2_ref, w3_ref, w4_ref, pmax_ref, stats_ref):
    y = jnp.dot(x1_ref[0], w1_ref[...], preferred_element_type=jnp.float32)
    y = y + jnp.dot(x2_ref[0], w2_ref[...], preferred_element_type=jnp.float32)
    y = y + jnp.dot(x3_ref[0], w3_ref[...], preferred_element_type=jnp.float32)
    y = y + jnp.dot(x4_ref[0], w4_ref[...], preferred_element_type=jnp.float32)
    pmax_ref[0, 0] = jnp.max(y, axis=0, keepdims=True)
    stats_ref[0, 0, 0:1, :] = jnp.sum(y, axis=0, keepdims=True)
    stats_ref[0, 0, 1:2, :] = jnp.sum(y * y, axis=0, keepdims=True)


def conv5_reduce(x1, x2, x3, x4, w5):
    """x1..x4: (B, N, c_i) bf16.  Returns per-cloud maxima (B, D) f32 + BN1d scale/bias."""
    B, N, _ = x1.shape
    D = w5.shape[1]
    cs = [x1.shape[2], x2.shape[2], x3.shape[2], x4.shape[2]]
    offs = [0, cs[0], cs[0] + cs[1], cs[0] + cs[1] + cs[2], sum(cs)]
    ws = [w5[offs[i]:offs[i + 1]].astype(jnp.bfloat16) for i in range(4)]

    tn = _pick_tile(N, _ROW_TILE, N)          # divisor of N: never crosses a cloud boundary
    nt = N // tn
    pmax, pstats = pl.pallas_call(
        _conv5_kernel,
        grid=(B, nt),
        in_specs=[pl.BlockSpec((1, tn, c), lambda b, n: (b, n, 0)) for c in cs]
                + [pl.BlockSpec((c, D), lambda b, n: (0, 0)) for c in cs],
        out_specs=[pl.BlockSpec((1, 1, 1, D), lambda b, n: (b, n, 0, 0)),
                   pl.BlockSpec((1, 1, 2, D), lambda b, n: (b, n, 0, 0))],
        out_shape=[jax.ShapeDtypeStruct((B, nt, 1, D), jnp.float32),
                   jax.ShapeDtypeStruct((B, nt, 2, D), jnp.float32)],
        compiler_params=_cparams(("parallel", "parallel")),
    )(x1, x2, x3, x4, *ws)

    mx = pmax.reshape(B, nt, D).max(axis=1)                          # per-cloud max over N
    scale, bias = _bn_scale_bias(jnp.sum(pstats, axis=(0, 1)), float(B * N))
    return mx, scale[None, :], bias[None, :]


# ---------------------------------------------------------------------------
# Kernel 5: conv5's BN apply + LeakyReLU on the (B, D) maxima fused with the
#           MLP head  fc1+ReLU -> fc2+ReLU -> fc3  (bf16 matmuls, f32 accumulate).
# ---------------------------------------------------------------------------
def _head_kernel(mx_ref, sc_ref, bi_ref,
                 w1_ref, b1_ref, w2_ref, b2_ref, w3_ref, b3_ref, out_ref):
    f = mx_ref[...] * sc_ref[...] + bi_ref[...]             # BN1d (train stats)
    f = jnp.where(f > 0.0, f, 0.2 * f)                      # LeakyReLU(0.2)
    h = jnp.dot(f.astype(jnp.bfloat16), w1_ref[...],
                preferred_element_type=jnp.float32) + b1_ref[...]
    h = jnp.maximum(h, 0.0)
    h = jnp.dot(h.astype(jnp.bfloat16), w2_ref[...],
                preferred_element_type=jnp.float32) + b2_ref[...]
    h = jnp.maximum(h, 0.0)
    out_ref[...] = jnp.dot(h.astype(jnp.bfloat16), w3_ref[...],
                           preferred_element_type=jnp.float32) + b3_ref[...]


def mlp_head(mx, scale, bias, p):
    B = mx.shape[0]
    num_points = p["fc3_w"].shape[1]
    return pl.pallas_call(
        _head_kernel,
        out_shape=jax.ShapeDtypeStruct((B, num_points), jnp.float32),
        in_specs=[_VMEM] * 9,
        out_specs=_VMEM,
    )(mx, scale, bias,
      p["fc1_w"].astype(jnp.bfloat16), p["fc1_b"],
      p["fc2_w"].astype(jnp.bfloat16), p["fc2_b"],
      p["fc3_w"].astype(jnp.bfloat16), p["fc3_b"])


# ---------------------------------------------------------------------------
# Full PointGen forward
# ---------------------------------------------------------------------------
def point_gen_forward(params, x, *, k):
    # x: (B, 3, N) channels-first, as in PyTorch.
    x_t = jnp.transpose(x, (0, 2, 1)).astype(jnp.bfloat16)  # (B, N, 3) channels-last, bf16

    x1 = edge_conv_layer(x_t, params["conv1"], k)           # (B, N, 64)  bf16
    x2 = edge_conv_layer(x1, params["conv2"], k)            # (B, N, 64)  bf16
    x3 = edge_conv_layer(x2, params["conv3"], k)            # (B, N, 128) bf16
    x4 = edge_conv_layer(x3, params["conv4"], k)            # (B, N, 256) bf16

    mx, scale, bias = conv5_reduce(x1, x2, x3, x4, params["conv5"])
    out = mlp_head(mx, scale, bias, params)                 # (B, num_points) f32
    return out[:, None, :]                                  # (B, 1, num_points)


# ---------------------------------------------------------------------------
# Deterministic parameter initialization (synthetic)
# ---------------------------------------------------------------------------
def init_params(key, feat_dim, num_points):
    keys = jax.random.split(key, 8)

    def w(kk, cin, cout):
        return (jax.random.normal(kk, (cin, cout), dtype=jnp.float32)
                * (1.0 / math.sqrt(cin)))

    return {
        "conv1": w(keys[0], 6, 64),
        "conv2": w(keys[1], 128, 64),
        "conv3": w(keys[2], 128, 128),
        "conv4": w(keys[3], 256, 256),
        "conv5": w(keys[4], 512, feat_dim),
        "fc1_w": w(keys[5], feat_dim, 256),
        "fc1_b": jnp.zeros((1, 256), jnp.float32),
        "fc2_w": w(keys[6], 256, 512),
        "fc2_b": jnp.zeros((1, 512), jnp.float32),
        "fc3_w": w(keys[7], 512, num_points),
        "fc3_b": jnp.zeros((1, num_points), jnp.float32),
    }


if __name__ == "__main__":
    # Small shapes consistent with the module: B point clouds of N 3-D points,
    # k nearest neighbours, feat_dim-dim global feature, fc3 -> num_points.
    B, N, K = 2, 16, 4
    FEAT_DIM = 32
    NUM_POINTS = 16

    key = jax.random.PRNGKey(0)
    k_params, k_x = jax.random.split(key)
    params = init_params(k_params, FEAT_DIM, NUM_POINTS)
    x = jax.random.normal(k_x, (B, 3, N), dtype=jnp.float32)

    fwd = jax.jit(functools.partial(point_gen_forward, k=K))
    out = fwd(params, x)
    out = jax.block_until_ready(out)

    assert out.shape == (B, 1, NUM_POINTS), out.shape
    assert out.dtype == jnp.float32
    assert bool(jnp.all(jnp.isfinite(out)))
    print("KERNEL_OK")
</pallas_src>

<mosaic_0001>
module attributes {stable_mosaic.version = 11 : i64} {
  func.func @_pdist_kernel(%arg0: i32, %arg1: i32, %arg2: memref<1x16x3xbf16, #tpu.memory_space<vmem>>, %arg3: memref<1x16x3xbf16, #tpu.memory_space<vmem>>, %arg4: memref<1x1x16xf32, #tpu.memory_space<vmem>>, %arg5: memref<1x16x16xf32, #tpu.memory_space<vmem>>) attributes {dimension_semantics = [#tpu.dimension_semantics<parallel>, #tpu.dimension_semantics<parallel>], iteration_bounds = array<i64: 2, 1>, scalar_prefetch = 0 : i64, scratch_operands = 0 : i64, tpu.core_type = #tpu.core_type<tc>, window_params = [{transform_indices = @transform_0, window_bounds = array<i64: 1, 16, 3>}, {transform_indices = @transform_1, window_bounds = array<i64: 1, 16, 3>}, {transform_indices = @transform_2, window_bounds = array<i64: 1, 1, 16>}, {transform_indices = @transform_3, window_bounds = array<i64: 1, 16, 16>}]} {
    %c0 = arith.constant 0 : index
    %c0_0 = arith.constant 0 : index
    %c0_1 = arith.constant 0 : index
    %0 = vector.load %arg2[%c0, %c0_0, %c0_1] : memref<1x16x3xbf16, #tpu.memory_space<vmem>>, vector<1x16x3xbf16>
    %1 = vector.shape_cast %0 : vector<1x16x3xbf16> to vector<16x3xbf16>
    %c0_2 = arith.constant 0 : index
    %c0_3 = arith.constant 0 : index
    %c0_4 = arith.constant 0 : index
    %2 = vector.load %arg3[%c0_2, %c0_3, %c0_4] : memref<1x16x3xbf16, #tpu.memory_space<vmem>>, vector<1x16x3xbf16>
    %3 = vector.shape_cast %2 : vector<1x16x3xbf16> to vector<16x3xbf16>
    %cst = arith.constant dense<0.000000e+00> : vector<16x16xf32>
    %4 = tpu.matmul %1, %3, %cst {dimension_numbers = #tpu.dot_dimension_numbers<[1], [1], [0], [0], [0, 0, 1, 0], [], []>} : vector<16x3xbf16>, vector<16x3xbf16>, vector<16x16xf32> -> vector<16x16xf32>
    %cst_5 = arith.constant 2.000000e+00 : f32
    %5 = vector.broadcast %cst_5 : f32 to vector<16x16xf32>
    %6 = arith.mulf %5, %4 : vector<16x16xf32>
    %c0_6 = arith.constant 0 : index
    %c0_7 = arith.constant 0 : index
    %c0_8 = arith.constant 0 : index
    %7 = vector.load %arg4[%c0_6, %c0_7, %c0_8] : memref<1x1x16xf32, #tpu.memory_space<vmem>>, vector<1x1x16xf32>
    %8 = vector.shape_cast %7 : vector<1x1x16xf32> to vector<1x16xf32>
    %9 = vector.broadcast %8 : vector<1x16xf32> to vector<16x16xf32>
    %10 = arith.subf %6, %9 : vector<16x16xf32>
    %c0_9 = arith.constant 0 : index
    %c0_10 = arith.constant 0 : index
    %c0_11 = arith.constant 0 : index
    %11 = vector.load %arg5[%c0_9, %c0_10, %c0_11] : memref<1x16x16xf32, #tpu.memory_space<vmem>>, vector<1x16x16xf32>
    %12 = vector.shape_cast %11 : vector<1x16x16xf32> to vector<16x16xf32>
    %13 = vector.shape_cast %10 : vector<16x16xf32> to vector<1x16x16xf32>
    tpu.vector_store %arg5[%c0_9, %c0_10, %c0_11], %13 {strides = array<i32>} : memref<1x16x16xf32, #tpu.memory_space<vmem>>, vector<1x16x16xf32>,
    return
  }
  func.func @transform_0(%arg0: i32, %arg1: i32) -> (i32, i32, i32) {
    %c0_i32 = arith.constant 0 : i32
    %c0_i32_0 = arith.constant 0 : i32
    return %arg0, %arg1, %c0_i32 : i32, i32, i32
  }
  func.func @transform_1(%arg0: i32, %arg1: i32) -> (i32, i32, i32) {
    %c0_i32 = arith.constant 0 : i32
    %c0_i32_0 = arith.constant 0 : i32
    %c0_i32_1 = arith.constant 0 : i32
    return %arg0, %c0_i32, %c0_i32_0 : i32, i32, i32
  }
  func.func @transform_2(%arg0: i32, %arg1: i32) -> (i32, i32, i32) {
    %c0_i32 = arith.constant 0 : i32
    %c0_i32_0 = arith.constant 0 : i32
    %c0_i32_1 = arith.constant 0 : i32
    return %arg0, %c0_i32, %c0_i32_0 : i32, i32, i32
  }
  func.func @transform_3(%arg0: i32, %arg1: i32) -> (i32, i32, i32) {
    %c0_i32 = arith.constant 0 : i32
    %c0_i32_0 = arith.constant 0 : i32
    return %arg0, %arg1, %c0_i32 : i32, i32, i32
  }
}

module attributes {stable_mosaic.version = 11 : i64} {
  func.func @_edge_conv_kernel(%arg0: i32, %arg1: i32, %arg2: memref<1x32x3xbf16, #tpu.memory_space<vmem>>, %arg3: memref<32x3xbf16, #tpu.memory_space<vmem>>, %arg4: memref<3x64xbf16, #tpu.memory_space<vmem>>, %arg5: memref<3x64xbf16, #tpu.memory_space<vmem>>, %arg6: memref<32x64xf32, #tpu.memory_space<vmem>>, %arg7: memref<1x2x64xf32, #tpu.memory_space<vmem>>, %arg8: memref<32x64xf32, #tpu.memory_space<vmem>>, %arg9: memref<32x64xf32, #tpu.memory_space<vmem>>, %arg10: memref<1x64xf32, #tpu.memory_space<vmem>>, %arg11: memref<1x64xf32, #tpu.memory_space<vmem>>) attributes {dimension_semantics = [#tpu.dimension_semantics<parallel>, #tpu.dimension_semantics<arbitrary>], iteration_bounds = array<i64: 1, 4>, scalar_prefetch = 0 : i64, scratch_operands = 4 : i64, tpu.core_type = #tpu.core_type<tc>, window_params = [{transform_indices = @transform_0, window_bounds = array<i64: 1, 32, 3>}, {transform_indices = @transform_1, window_bounds = array<i64: 32, 3>}, {pipeline_mode = #tpu.pipeline_mode<synchronous>, transform_indices = @transform_2, window_bounds = array<i64: 3, 64>}, {pipeline_mode = #tpu.pipeline_mode<synchronous>, transform_indices = @transform_3, window_bounds = array<i64: 3, 64>}, {transform_indices = @transform_4, window_bounds = array<i64: 32, 64>}, {transform_indices = @transform_5, window_bounds = array<i64: 1, 2, 64>}]} {
    %c0_i32 = arith.constant 0 : i32
    %0 = arith.cmpi eq, %arg1, %c0_i32 : i32
    %1 = arith.extui %0 : i1 to i32
    %c0_i32_0 = arith.constant 0 : i32
    %2 = arith.cmpi ne, %1, %c0_i32_0 : i32
    scf.if %2 {
      %c0_22 = arith.constant 0 : index
      %c0_23 = arith.constant 0 : index
      %26 = vector.load %arg3[%c0_22, %c0_23] : memref<32x3xbf16, #tpu.memory_space<vmem>>, vector<32x3xbf16>
      %c0_24 = arith.constant 0 : index
      %c0_25 = arith.constant 0 : index
      %27 = vector.load %arg5[%c0_24, %c0_25] : memref<3x64xbf16, #tpu.memory_space<vmem>>, vector<3x64xbf16>
      %cst_26 = arith.constant dense<0.000000e+00> : vector<32x64xf32>
      %28 = tpu.matmul %26, %27, %cst_26 {dimension_numbers = #tpu.dot_dimension_numbers<[1], [0], [0], [1], [0, 0, 1, 1], [], []>} : vector<32x3xbf16>, vector<3x64xbf16>, vector<32x64xf32> -> vector<32x64xf32>
      %c0_27 = arith.constant 0 : index
      %c0_28 = arith.constant 0 : index
      %29 = vector.load %arg8[%c0_27, %c0_28] : memref<32x64xf32, #tpu.memory_space<vmem>>, vector<32x64xf32>
      tpu.vector_store %arg8[%c0_27, %c0_28], %28 {strides = array<i32>} : memref<32x64xf32, #tpu.memory_space<vmem>>, vector<32x64xf32>,
      %cst_29 = arith.constant 0xFF800000 : f32
      %30 = vector.broadcast %cst_29 : f32 to vector<32x64xf32>
      %c0_30 = arith.constant 0 : index
      %c0_31 = arith.constant 0 : index
      %31 = vector.load %arg9[%c0_30, %c0_31] : memref<32x64xf32, #tpu.memory_space<vmem>>, vector<32x64xf32>
      tpu.vector_store %arg9[%c0_30, %c0_31], %30 {strides = array<i32>} : memref<32x64xf32, #tpu.memory_space<vmem>>, vector<32x64xf32>,
      %cst_32 = arith.constant 0.000000e+00 : f32
      %32 = vector.broadcast %cst_32 : f32 to vector<1x64xf32>
      %c0_33 = arith.constant 0 : index
      %c0_34 = arith.constant 0 : index
      %33 = vector.load %arg10[%c0_33, %c0_34] : memref<1x64xf32, #tpu.memory_space<vmem>>, vector<1x64xf32>
      tpu.vector_store %arg10[%c0_33, %c0_34], %32 {strides = array<i32>} : memref<1x64xf32, #tpu.memory_space<vmem>>, vector<1x64xf32>,
      %cst_35 = arith.constant 0.000000e+00 : f32
      %34 = vector.broadcast %cst_35 : f32 to vector<1x64xf32>
      %c0_36 = arith.constant 0 : index
      %c0_37 = arith.constant 0 : index
      %35 = vector.load %arg11[%c0_36, %c0_37] : memref<1x64xf32, #tpu.memory_space<vmem>>, vector<1x64xf32>
      tpu.vector_store %arg11[%c0_36, %c0_37], %34 {strides = array<i32>} : memref<1x64xf32, #tpu.memory_space<vmem>>, vector<1x64xf32>,
    } else {
    }
    %c0 = arith.constant 0 : index
    %c0_1 = arith.constant 0 : index
    %c0_2 = arith.constant 0 : index
    %3 = vector.load %arg2[%c0, %c0_1, %c0_2] : memref<1x32x3xbf16, #tpu.memory_space<vmem>>, vector<1x32x3xbf16>
    %4 = vector.shape_cast %3 : vector<1x32x3xbf16> to vector<32x3xbf16>
    %c0_3 = arith.constant 0 : index
    %c0_4 = arith.constant 0 : index
    %5 = vector.load %arg4[%c0_3, %c0_4] : memref<3x64xbf16, #tpu.memory_space<vmem>>, vector<3x64xbf16>
    %cst = arith.constant dense<0.000000e+00> : vector<32x64xf32>
    %6 = tpu.matmul %4, %5, %cst {dimension_numbers = #tpu.dot_dimension_numbers<[1], [0], [0], [1], [0, 0, 1, 1], [], []>} : vector<32x3xbf16>, vector<3x64xbf16>, vector<32x64xf32> -> vector<32x64xf32>
    %c0_5 = arith.constant 0 : index
    %c0_6 = arith.constant 0 : index
    %7 = vector.load %arg8[%c0_5, %c0_6] : memref<32x64xf32, #tpu.memory_space<vmem>>, vector<32x64xf32>
    %8 = arith.addf %6, %7 : vector<32x64xf32>
    %c0_7 = arith.constant 0 : index
    %c0_8 = arith.constant 0 : index
    %9 = vector.load %arg9[%c0_7, %c0_8] : memref<32x64xf32, #tpu.memory_space<vmem>>, vector<32x64xf32>
    %10 = arith.maximumf %9, %8 : vector<32x64xf32>
    %c0_9 = arith.constant 0 : index
    %c0_10 = arith.constant 0 : index
    %11 = vector.load %arg9[%c0_9, %c0_10] : memref<32x64xf32, #tpu.memory_space<vmem>>, vector<32x64xf32>
    tpu.vector_store %arg9[%c0_9, %c0_10], %10 {strides = array<i32>} : memref<32x64xf32, #tpu.memory_space<vmem>>, vector<32x64xf32>,
    %c0_11 = arith.constant 0 : index
    %c0_12 = arith.constant 0 : index
    %12 = vector.load %arg10[%c0_11, %c0_12] : memref<1x64xf32, #tpu.memory_space<vmem>>, vector<1x64xf32>
    %cst_13 = arith.constant dense<0.000000e+00> : vector<64xf32>
    %13 = vector.multi_reduction <add>, %8, %cst_13 [0] : vector<32x64xf32> to vector<64xf32>
    %14 = vector.shape_cast %13 : vector<64xf32> to vector<1x64xf32>
    %15 = arith.addf %12, %14 : vector<1x64xf32>
    %c0_14 = arith.constant 0 : index
    %c0_15 = arith.constant 0 : index
    %16 = vector.load %arg10[%c0_14, %c0_15] : memref<1x64xf32, #tpu.memory_space<vmem>>, vector<1x64xf32>
    tpu.vector_store %arg10[%c0_14, %c0_15], %15 {strides = array<i32>} : memref<1x64xf32, #tpu.memory_space<vmem>>, vector<1x64xf32>,
    %c0_16 = arith.constant 0 : index
    %c0_17 = arith.constant 0 : index
    %17 = vector.load %arg11[%c0_16, %c0_17] : memref<1x64xf32, #tpu.memory_space<vmem>>, vector<1x64xf32>
    %18 = arith.mulf %8, %8 : vector<32x64xf32>
    %cst_18 = arith.constant dense<0.000000e+00> : vector<64xf32>
    %19 = vector.multi_reduction <add>, %18, %cst_18 [0] : vector<32x64xf32> to vector<64xf32>
    %20 = vector.shape_cast %19 : vector<64xf32> to vector<1x64xf32>
    %21 = arith.addf %17, %20 : vector<1x64xf32>
    %c0_19 = arith.constant 0 : index
    %c0_20 = arith.constant 0 : index
    %22 = vector.load %arg11[%c0_19, %c0_20] : memref<1x64xf32, #tpu.memory_space<vmem>>, vector<1x64xf32>
    tpu.vector_store %arg11[%c0_19, %c0_20], %21 {strides = array<i32>} : memref<1x64xf32, #tpu.memory_space<vmem>>, vector<1x64xf32>,
    %c3_i32 = arith.constant 3 : i32
    %23 = arith.cmpi eq, %arg1, %c3_i32 : i32
    %24 = arith.extui %23 : i1 to i32
    %c0_i32_21 = arith.constant 0 : i32
    %25 = arith.cmpi ne, %24, %c0_i32_21 : i32
    scf.if %25 {
      %c0_22 = arith.constant 0 : index
      %c0_23 = arith.constant 0 : index
      %26 = vector.load %arg9[%c0_22, %c0_23] : memref<32x64xf32, #tpu.memory_space<vmem>>, vector<32x64xf32>
      %c0_24 = arith.constant 0 : index
      %c0_25 = arith.constant 0 : index
      %27 = vector.load %arg6[%c0_24, %c0_25] : memref<32x64xf32, #tpu.memory_space<vmem>>, vector<32x64xf32>
      tpu.vector_store %arg6[%c0_24, %c0_25], %26 {strides = array<i32>} : memref<32x64xf32, #tpu.memory_space<vmem>>, vector<32x64xf32>,
      %c0_26 = arith.constant 0 : index
      %c0_27 = arith.constant 0 : index
      %28 = vector.load %arg10[%c0_26, %c0_27] : memref<1x64xf32, #tpu.memory_space<vmem>>, vector<1x64xf32>
      %c0_28 = arith.constant 0 : index
      %c0_29 = arith.constant 0 : index
      %c0_30 = arith.constant 0 : index
      %29 = vector.load %arg7[%c0_28, %c0_29, %c0_30] : memref<1x2x64xf32, #tpu.memory_space<vmem>>, vector<1x1x64xf32>
      %30 = vector.shape_cast %29 : vector<1x1x64xf32> to vector<1x64xf32>
      %31 = vector.shape_cast %28 : vector<1x64xf32> to vector<1x1x64xf32>
      tpu.vector_store %arg7[%c0_28, %c0_29, %c0_30], %31 {strides = array<i32>} : memref<1x2x64xf32, #tpu.memory_space<vmem>>, vector<1x1x64xf32>,
      %c0_31 = arith.constant 0 : index
      %c0_32 = arith.constant 0 : index
      %32 = vector.load %arg11[%c0_31, %c0_32] : memref<1x64xf32, #tpu.memory_space<vmem>>, vector<1x64xf32>
      %c0_33 = arith.constant 0 : index
      %c1 = arith.constant 1 : index
      %c0_34 = arith.constant 0 : index
      %33 = vector.load %arg7[%c0_33, %c1, %c0_34] : memref<1x2x64xf32, #tpu.memory_space<vmem>>, vector<1x1x64xf32>
      %34 = vector.shape_cast %33 : vector<1x1x64xf32> to vector<1x64xf32>
      %35 = vector.shape_cast %32 : vector<1x64xf32> to vector<1x1x64xf32>
      tpu.vector_store %arg7[%c0_33, %c1, %c0_34], %35 {strides = array<i32>} : memref<1x2x64xf32, #tpu.memory_space<vmem>>, vector<1x1x64xf32>,
    } else {
    }
    return
  }
  func.func @transform_0(%arg0: i32, %arg1: i32) -> (i32, i32, i32) {
    %c0_i32 = arith.constant 0 : i32
    %c0_i32_0 = arith.constant 0 : i32
    return %arg1, %arg0, %c0_i32 : i32, i32, i32
  }
  func.func @transform_1(%arg0: i32, %arg1: i32) -> (i32, i32) {
    %c0_i32 = arith.constant 0 : i32
    %c0_i32_0 = arith.constant 0 : i32
    return %arg0, %c0_i32 : i32, i32
  }
  func.func @transform_2(%arg0: i32, %arg1: i32) -> (i32, i32) {
    %c0_i32 = arith.constant 0 : i32
    %c0_i32_0 = arith.constant 0 : i32
    %c0_i32_1 = arith.constant 0 : i32
    return %c0_i32, %c0_i32_0 : i32, i32
  }
  func.func @transform_3(%arg0: i32, %arg1: i32) -> (i32, i32) {
    %c0_i32 = arith.constant 0 : i32
    %c0_i32_0 = arith.constant 0 : i32
    %c0_i32_1 = arith.constant 0 : i32
    return %c0_i32, %c0_i32_0 : i32, i32
  }
  func.func @transform_4(%arg0: i32, %arg1: i32) -> (i32, i32) {
    %c0_i32 = arith.constant 0 : i32
    %c0_i32_0 = arith.constant 0 : i32
    return %arg0, %c0_i32 : i32, i32
  }
  func.func @transform_5(%arg0: i32, %arg1: i32) -> (i32, i32, i32) {
    %c0_i32 = arith.constant 0 : i32
    %c0_i32_0 = arith.constant 0 : i32
    %c0_i32_1 = arith.constant 0 : i32
    return %arg0, %c0_i32, %c0_i32_0 : i32, i32, i32
  }
}

module attributes {stable_mosaic.version = 11 : i64} {
  func.func @_bn_act_kernel(%arg0: i32, %arg1: memref<32x64xf32, #tpu.memory_space<vmem>>, %arg2: memref<1x64xf32, #tpu.memory_space<vmem>>, %arg3: memref<1x64xf32, #tpu.memory_space<vmem>>, %arg4: memref<32x64xbf16, #tpu.memory_space<vmem>>) attributes {dimension_semantics = [#tpu.dimension_semantics<parallel>], iteration_bounds = array<i64: 1>, scalar_prefetch = 0 : i64, scratch_operands = 0 : i64, tpu.core_type = #tpu.core_type<tc>, window_params = [{transform_indices = @transform_0, window_bounds = array<i64: 32, 64>}, {pipeline_mode = #tpu.pipeline_mode<synchronous>, transform_indices = @transform_1, window_bounds = array<i64: 1, 64>}, {pipeline_mode = #tpu.pipeline_mode<synchronous>, transform_indices = @transform_2, window_bounds = array<i64: 1, 64>}, {transform_indices = @transform_3, window_bounds = array<i64: 32, 64>}]} {
    %c0 = arith.constant 0 : index
    %c0_0 = arith.constant 0 : index
    %0 = vector.load %arg1[%c0, %c0_0] : memref<32x64xf32, #tpu.memory_space<vmem>>, vector<32x64xf32>
    %c0_1 = arith.constant 0 : index
    %c0_2 = arith.constant 0 : index
    %1 = vector.load %arg2[%c0_1, %c0_2] : memref<1x64xf32, #tpu.memory_space<vmem>>, vector<1x64xf32>
    %2 = vector.broadcast %1 : vector<1x64xf32> to vector<32x64xf32>
    %3 = arith.mulf %0, %2 : vector<32x64xf32>
    %c0_3 = arith.constant 0 : index
    %c0_4 = arith.constant 0 : index
    %4 = vector.load %arg3[%c0_3, %c0_4] : memref<1x64xf32, #tpu.memory_space<vmem>>, vector<1x64xf32>
    %5 = vector.broadcast %4 : vector<1x64xf32> to vector<32x64xf32>
    %6 = arith.addf %3, %5 : vector<32x64xf32>
    %cst = arith.constant 0.000000e+00 : f32
    %7 = vector.broadcast %cst : f32 to vector<32x64xf32>
    %8 = arith.cmpf ogt, %6, %7 : vector<32x64xf32>
    %cst_5 = arith.constant 2.000000e-01 : f32
    %9 = vector.broadcast %cst_5 : f32 to vector<32x64xf32>
    %10 = arith.mulf %9, %6 : vector<32x64xf32>
    %11 = arith.select %8, %6, %10 : vector<32x64xi1>, vector<32x64xf32>
    %12 = arith.truncf %11 : vector<32x64xf32> to vector<32x64xbf16>
    %c0_6 = arith.constant 0 : index
    %c0_7 = arith.constant 0 : index
    %13 = vector.load %arg4[%c0_6, %c0_7] : memref<32x64xbf16, #tpu.memory_space<vmem>>, vector<32x64xbf16>
    tpu.vector_store %arg4[%c0_6, %c0_7], %12 {strides = array<i32>} : memref<32x64xbf16, #tpu.memory_space<vmem>>, vector<32x64xbf16>,
    return
  }
  func.func @transform_0(%arg0: i32) -> (i32, i32) {
    %c0_i32 = arith.constant 0 : i32
    %c0_i32_0 = arith.constant 0 : i32
    return %arg0, %c0_i32 : i32, i32
  }
  func.func @transform_1(%arg0: i32) -> (i32, i32) {
    %c0_i32 = arith.constant 0 : i32
    %c0_i32_0 = arith.constant 0 : i32
    %c0_i32_1 = arith.constant 0 : i32
    return %c0_i32, %c0_i32_0 : i32, i32
  }
  func.func @transform_2(%arg0: i32) -> (i32, i32) {
    %c0_i32 = arith.constant 0 : i32
    %c0_i32_0 = arith.constant 0 : i32
    %c0_i32_1 = arith.constant 0 : i32
    return %c0_i32, %c0_i32_0 : i32, i32
  }
  func.func @transform_3(%arg0: i32) -> (i32, i32) {
    %c0_i32 = arith.constant 0 : i32
    %c0_i32_0 = arith.constant 0 : i32
    return %arg0, %c0_i32 : i32, i32
  }
}

module attributes {stable_mosaic.version = 11 : i64} {
  func.func @_pdist_kernel(%arg0: i32, %arg1: i32, %arg2: memref<1x16x64xbf16, #tpu.memory_space<vmem>>, %arg3: memref<1x16x64xbf16, #tpu.memory_space<vmem>>, %arg4: memref<1x1x16xf32, #tpu.memory_space<vmem>>, %arg5: memref<1x16x16xf32, #tpu.memory_space<vmem>>) attributes {dimension_semantics = [#tpu.dimension_semantics<parallel>, #tpu.dimension_semantics<parallel>], iteration_bounds = array<i64: 2, 1>, scalar_prefetch = 0 : i64, scratch_operands = 0 : i64, tpu.core_type = #tpu.core_type<tc>, window_params = [{transform_indices = @transform_0, window_bounds = array<i64: 1, 16, 64>}, {transform_indices = @transform_1, window_bounds = array<i64: 1, 16, 64>}, {transform_indices = @transform_2, window_bounds = array<i64: 1, 1, 16>}, {transform_indices = @transform_3, window_bounds = array<i64: 1, 16, 16>}]} {
    %c0 = arith.constant 0 : index
    %c0_0 = arith.constant 0 : index
    %c0_1 = arith.constant 0 : index
    %0 = vector.load %arg2[%c0, %c0_0, %c0_1] : memref<1x16x64xbf16, #tpu.memory_space<vmem>>, vector<1x16x64xbf16>
    %1 = vector.shape_cast %0 : vector<1x16x64xbf16> to vector<16x64xbf16>
    %c0_2 = arith.constant 0 : index
    %c0_3 = arith.constant 0 : index
    %c0_4 = arith.constant 0 : index
    %2 = vector.load %arg3[%c0_2, %c0_3, %c0_4] : memref<1x16x64xbf16, #tpu.memory_space<vmem>>, vector<1x16x64xbf16>
    %3 = vector.shape_cast %2 : vector<1x16x64xbf16> to vector<16x64xbf16>
    %cst = arith.constant dense<0.000000e+00> : vector<16x16xf32>
    %4 = tpu.matmul %1, %3, %cst {dimension_numbers = #tpu.dot_dimension_numbers<[1], [1], [0], [0], [0, 0, 1, 0], [], []>} : vector<16x64xbf16>, vector<16x64xbf16>, vector<16x16xf32> -> vector<16x16xf32>
    %cst_5 = arith.constant 2.000000e+00 : f32
    %5 = vector.broadcast %cst_5 : f32 to vector<16x16xf32>
    %6 = arith.mulf %5, %4 : vector<16x16xf32>
    %c0_6 = arith.constant 0 : index
    %c0_7 = arith.constant 0 : index
    %c0_8 = arith.constant 0 : index
    %7 = vector.load %arg4[%c0_6, %c0_7, %c0_8] : memref<1x1x16xf32, #tpu.memory_space<vmem>>, vector<1x1x16xf32>
    %8 = vector.shape_cast %7 : vector<1x1x16xf32> to vector<1x16xf32>
    %9 = vector.broadcast %8 : vector<1x16xf32> to vector<16x16xf32>
    %10 = arith.subf %6, %9 : vector<16x16xf32>
    %c0_9 = arith.constant 0 : index
    %c0_10 = arith.constant 0 : index
    %c0_11 = arith.constant 0 : index
    %11 = vector.load %arg5[%c0_9, %c0_10, %c0_11] : memref<1x16x16xf32, #tpu.memory_space<vmem>>, vector<1x16x16xf32>
    %12 = vector.shape_cast %11 : vector<1x16x16xf32> to vector<16x16xf32>
    %13 = vector.shape_cast %10 : vector<16x16xf32> to vector<1x16x16xf32>
    tpu.vector_store %arg5[%c0_9, %c0_10, %c0_11], %13 {strides = array<i32>} : memref<1x16x16xf32, #tpu.memory_space<vmem>>, vector<1x16x16xf32>,
    return
  }
  func.func @transform_0(%arg0: i32, %arg1: i32) -> (i32, i32, i32) {
    %c0_i32 = arith.constant 0 : i32
    %c0_i32_0 = arith.constant 0 : i32
    return %arg0, %arg1, %c0_i32 : i32, i32, i32
  }
  func.func @transform_1(%arg0: i32, %arg1: i32) -> (i32, i32, i32) {
    %c0_i32 = arith.constant 0 : i32
    %c0_i32_0 = arith.constant 0 : i32
    %c0_i32_1 = arith.constant 0 : i32
    return %arg0, %c0_i32, %c0_i32_0 : i32, i32, i32
  }
  func.func @transform_2(%arg0: i32, %arg1: i32) -> (i32, i32, i32) {
    %c0_i32 = arith.constant 0 : i32
    %c0_i32_0 = arith.constant 0 : i32
    %c0_i32_1 = arith.constant 0 : i32
    return %arg0, %c0_i32, %c0_i32_0 : i32, i32, i32
  }
  func.func @transform_3(%arg0: i32, %arg1: i32) -> (i32, i32, i32) {
    %c0_i32 = arith.constant 0 : i32
    %c0_i32_0 = arith.constant 0 : i32
    return %arg0, %arg1, %c0_i32 : i32, i32, i32
  }
}

module attributes {stable_mosaic.version = 11 : i64} {
  func.func @_edge_conv_kernel(%arg0: i32, %arg1: i32, %arg2: memref<1x32x64xbf16, #tpu.memory_space<vmem>>, %arg3: memref<32x64xbf16, #tpu.memory_space<vmem>>, %arg4: memref<64x64xbf16, #tpu.memory_space<vmem>>, %arg5: memref<64x64xbf16, #tpu.memory_space<vmem>>, %arg6: memref<32x64xf32, #tpu.memory_space<vmem>>, %arg7: memref<1x2x64xf32, #tpu.memory_space<vmem>>, %arg8: memref<32x64xf32, #tpu.memory_space<vmem>>, %arg9: memref<32x64xf32, #tpu.memory_space<vmem>>, %arg10: memref<1x64xf32, #tpu.memory_space<vmem>>, %arg11: memref<1x64xf32, #tpu.memory_space<vmem>>) attributes {dimension_semantics = [#tpu.dimension_semantics<parallel>, #tpu.dimension_semantics<arbitrary>], iteration_bounds = array<i64: 1, 4>, scalar_prefetch = 0 : i64, scratch_operands = 4 : i64, tpu.core_type = #tpu.core_type<tc>, window_params = [{transform_indices = @transform_0, window_bounds = array<i64: 1, 32, 64>}, {transform_indices = @transform_1, window_bounds = array<i64: 32, 64>}, {pipeline_mode = #tpu.pipeline_mode<synchronous>, transform_indices = @transform_2, window_bounds = array<i64: 64, 64>}, {pipeline_mode = #tpu.pipeline_mode<synchronous>, transform_indices = @transform_3, window_bounds = array<i64: 64, 64>}, {transform_indices = @transform_4, window_bounds = array<i64: 32, 64>}, {transform_indices = @transform_5, window_bounds = array<i64: 1, 2, 64>}]} {
    %c0_i32 = arith.constant 0 : i32
    %0 = arith.cmpi eq, %arg1, %c0_i32 : i32
    %1 = arith.extui %0 : i1 to i32
    %c0_i32_0 = arith.constant 0 : i32
    %2 = arith.cmpi ne, %1, %c0_i32_0 : i32
    scf.if %2 {
      %c0_22 = arith.constant 0 : index
      %c0_23 = arith.constant 0 : index
      %26 = vector.load %arg3[%c0_22, %c0_23] : memref<32x64xbf16, #tpu.memory_space<vmem>>, vector<32x64xbf16>
      %c0_24 = arith.constant 0 : index
      %c0_25 = arith.constant 0 : index
      %27 = vector.load %arg5[%c0_24, %c0_25] : memref<64x64xbf16, #tpu.memory_space<vmem>>, vector<64x64xbf16>
      %cst_26 = arith.constant dense<0.000000e+00> : vector<32x64xf32>
      %28 = tpu.matmul %26, %27, %cst_26 {dimension_numbers = #tpu.dot_dimension_numbers<[1], [0], [0], [1], [0, 0, 1, 1], [], []>} : vector<32x64xbf16>, vector<64x64xbf16>, vector<32x64xf32> -> vector<32x64xf32>
      %c0_27 = arith.constant 0 : index
      %c0_28 = arith.constant 0 : index
      %29 = vector.load %arg8[%c0_27, %c0_28] : memref<32x64xf32, #tpu.memory_space<vmem>>, vector<32x64xf32>
      tpu.vector_store %arg8[%c0_27, %c0_28], %28 {strides = array<i32>} : memref<32x64xf32, #tpu.memory_space<vmem>>, vector<32x64xf32>,
      %cst_29 = arith.constant 0xFF800000 : f32
      %30 = vector.broadcast %cst_29 : f32 to vector<32x64xf32>
      %c0_30 = arith.constant 0 : index
      %c0_31 = arith.constant 0 : index
      %31 = vector.load %arg9[%c0_30, %c0_31] : memref<32x64xf32, #tpu.memory_space<vmem>>, vector<32x64xf32>
      tpu.vector_store %arg9[%c0_30, %c0_31], %30 {strides = array<i32>} : memref<32x64xf32, #tpu.memory_space<vmem>>, vector<32x64xf32>,
      %cst_32 = arith.constant 0.000000e+00 : f32
      %32 = vector.broadcast %cst_32 : f32 to vector<1x64xf32>
      %c0_33 = arith.constant 0 : index
      %c0_34 = arith.constant 0 : index
      %33 = vector.load %arg10[%c0_33, %c0_34] : memref<1x64xf32, #tpu.memory_space<vmem>>, vector<1x64xf32>
      tpu.vector_store %arg10[%c0_33, %c0_34], %32 {strides = array<i32>} : memref<1x64xf32, #tpu.memory_space<vmem>>, vector<1x64xf32>,
      %cst_35 = arith.constant 0.000000e+00 : f32
      %34 = vector.broadcast %cst_35 : f32 to vector<1x64xf32>
      %c0_36 = arith.constant 0 : index
      %c0_37 = arith.constant 0 : index
      %35 = vector.load %arg11[%c0_36, %c0_37] : memref<1x64xf32, #tpu.memory_space<vmem>>, vector<1x64xf32>
      tpu.vector_store %arg11[%c0_36, %c0_37], %34 {strides = array<i32>} : memref<1x64xf32, #tpu.memory_space<vmem>>, vector<1x64xf32>,
    } else {
    }
    %c0 = arith.constant 0 : index
    %c0_1 = arith.constant 0 : index
    %c0_2 = arith.constant 0 : index
    %3 = vector.load %arg2[%c0, %c0_1, %c0_2] : memref<1x32x64xbf16, #tpu.memory_space<vmem>>, vector<1x32x64xbf16>
    %4 = vector.shape_cast %3 : vector<1x32x64xbf16> to vector<32x64xbf16>
    %c0_3 = arith.constant 0 : index
    %c0_4 = arith.constant 0 : index
    %5 = vector.load %arg4[%c0_3, %c0_4] : memref<64x64xbf16, #tpu.memory_space<vmem>>, vector<64x64xbf16>
    %cst = arith.constant dense<0.000000e+00> : vector<32x64xf32>
    %6 = tpu.matmul %4, %5, %cst {dimension_numbers = #tpu.dot_dimension_numbers<[1], [0], [0], [1], [0, 0, 1, 1], [], []>} : vector<32x64xbf16>, vector<64x64xbf16>, vector<32x64xf32> -> vector<32x64xf32>
    %c0_5 = arith.constant 0 : index
    %c0_6 = arith.constant 0 : index
    %7 = vector.load %arg8[%c0_5, %c0_6] : memref<32x64xf32, #tpu.memory_space<vmem>>, vector<32x64xf32>
    %8 = arith.addf %6, %7 : vector<32x64xf32>
    %c0_7 = arith.constant 0 : index
    %c0_8 = arith.constant 0 : index
    %9 = vector.load %arg9[%c0_7, %c0_8] : memref<32x64xf32, #tpu.memory_space<vmem>>, vector<32x64xf32>
    %10 = arith.maximumf %9, %8 : vector<32x64xf32>
    %c0_9 = arith.constant 0 : index
    %c0_10 = arith.constant 0 : index
    %11 = vector.load %arg9[%c0_9, %c0_10] : memref<32x64xf32, #tpu.memory_space<vmem>>, vector<32x64xf32>
    tpu.vector_store %arg9[%c0_9, %c0_10], %10 {strides = array<i32>} : memref<32x64xf32, #tpu.memory_space<vmem>>, vector<32x64xf32>,
    %c0_11 = arith.constant 0 : index
    %c0_12 = arith.constant 0 : index
    %12 = vector.load %arg10[%c0_11, %c0_12] : memref<1x64xf32, #tpu.memory_space<vmem>>, vector<1x64xf32>
    %cst_13 = arith.constant dense<0.000000e+00> : vector<64xf32>
    %13 = vector.multi_reduction <add>, %8, %cst_13 [0] : vector<32x64xf32> to vector<64xf32>
    %14 = vector.shape_cast %13 : vector<64xf32> to vector<1x64xf32>
    %15 = arith.addf %12, %14 : vector<1x64xf32>
    %c0_14 = arith.constant 0 : index
    %c0_15 = arith.constant 0 : index
    %16 = vector.load %arg10[%c0_14, %c0_15] : memref<1x64xf32, #tpu.memory_space<vmem>>, vector<1x64xf32>
    tpu.vector_store %arg10[%c0_14, %c0_15], %15 {strides = array<i32>} : memref<1x64xf32, #tpu.memory_space<vmem>>, vector<1x64xf32>,
    %c0_16 = arith.constant 0 : index
    %c0_17 = arith.constant 0 : index
    %17 = vector.load %arg11[%c0_16, %c0_17] : memref<1x64xf32, #tpu.memory_space<vmem>>, vector<1x64xf32>
    %18 = arith.mulf %8, %8 : vector<32x64xf32>
    %cst_18 = arith.constant dense<0.000000e+00> : vector<64xf32>
    %19 = vector.multi_reduction <add>, %18, %cst_18 [0] : vector<32x64xf32> to vector<64xf32>
    %20 = vector.shape_cast %19 : vector<64xf32> to vector<1x64xf32>
    %21 = arith.addf %17, %20 : vector<1x64xf32>
    %c0_19 = arith.constant 0 : index
    %c0_20 = arith.constant 0 : index
    %22 = vector.load %arg11[%c0_19, %c0_20] : memref<1x64xf32, #tpu.memory_space<vmem>>, vector<1x64xf32>
    tpu.vector_store %arg11[%c0_19, %c0_20], %21 {strides = array<i32>} : memref<1x64xf32, #tpu.memory_space<vmem>>, vector<1x64xf32>,
    %c3_i32 = arith.constant 3 : i32
    %23 = arith.cmpi eq, %arg1, %c3_i32 : i32
    %24 = arith.extui %23 : i1 to i32
    %c0_i32_21 = arith.constant 0 : i32
    %25 = arith.cmpi ne, %24, %c0_i32_21 : i32
    scf.if %25 {
      %c0_22 = arith.constant 0 : index
      %c0_23 = arith.constant 0 : index
      %26 = vector.load %arg9[%c0_22, %c0_23] : memref<32x64xf32, #tpu.memory_space<vmem>>, vector<32x64xf32>
      %c0_24 = arith.constant 0 : index
      %c0_25 = arith.constant 0 : index
      %27 = vector.load %arg6[%c0_24, %c0_25] : memref<32x64xf32, #tpu.memory_space<vmem>>, vector<32x64xf32>
      tpu.vector_store %arg6[%c0_24, %c0_25], %26 {strides = array<i32>} : memref<32x64xf32, #tpu.memory_space<vmem>>, vector<32x64xf32>,
      %c0_26 = arith.constant 0 : index
      %c0_27 = arith.constant 0 : index
      %28 = vector.load %arg10[%c0_26, %c0_27] : memref<1x64xf32, #tpu.memory_space<vmem>>, vector<1x64xf32>
      %c0_28 = arith.constant 0 : index
      %c0_29 = arith.constant 0 : index
      %c0_30 = arith.constant 0 : index
      %29 = vector.load %arg7[%c0_28, %c0_29, %c0_30] : memref<1x2x64xf32, #tpu.memory_space<vmem>>, vector<1x1x64xf32>
      %30 = vector.shape_cast %29 : vector<1x1x64xf32> to vector<1x64xf32>
      %31 = vector.shape_cast %28 : vector<1x64xf32> to vector<1x1x64xf32>
      tpu.vector_store %arg7[%c0_28, %c0_29, %c0_30], %31 {strides = array<i32>} : memref<1x2x64xf32, #tpu.memory_space<vmem>>, vector<1x1x64xf32>,
      %c0_31 = arith.constant 0 : index
      %c0_32 = arith.constant 0 : index
      %32 = vector.load %arg11[%c0_31, %c0_32] : memref<1x64xf32, #tpu.memory_space<vmem>>, vector<1x64xf32>
      %c0_33 = arith.constant 0 : index
      %c1 = arith.constant 1 : index
      %c0_34 = arith.constant 0 : index
      %33 = vector.load %arg7[%c0_33, %c1, %c0_34] : memref<1x2x64xf32, #tpu.memory_space<vmem>>, vector<1x1x64xf32>
      %34 = vector.shape_cast %33 : vector<1x1x64xf32> to vector<1x64xf32>
      %35 = vector.shape_cast %32 : vector<1x64xf32> to vector<1x1x64xf32>
      tpu.vector_store %arg7[%c0_33, %c1, %c0_34], %35 {strides = array<i32>} : memref<1x2x64xf32, #tpu.memory_space<vmem>>, vector<1x1x64xf32>,
    } else {
    }
    return
  }
  func.func @transform_0(%arg0: i32, %arg1: i32) -> (i32, i32, i32) {
    %c0_i32 = arith.constant 0 : i32
    %c0_i32_0 = arith.constant 0 : i32
    return %arg1, %arg0, %c0_i32 : i32, i32, i32
  }
  func.func @transform_1(%arg0: i32, %arg1: i32) -> (i32, i32) {
    %c0_i32 = arith.constant 0 : i32
    %c0_i32_0 = arith.constant 0 : i32
    return %arg0, %c0_i32 : i32, i32
  }
  func.func @transform_2(%arg0: i32, %arg1: i32) -> (i32, i32) {
    %c0_i32 = arith.constant 0 : i32
    %c0_i32_0 = arith.constant 0 : i32
    %c0_i32_1 = arith.constant 0 : i32
    return %c0_i32, %c0_i32_0 : i32, i32
  }
  func.func @transform_3(%arg0: i32, %arg1: i32) -> (i32, i32) {
    %c0_i32 = arith.constant 0 : i32
    %c0_i32_0 = arith.constant 0 : i32
    %c0_i32_1 = arith.constant 0 : i32
    return %c0_i32, %c0_i32_0 : i32, i32
  }
  func.func @transform_4(%arg0: i32, %arg1: i32) -> (i32, i32) {
    %c0_i32 = arith.constant 0 : i32
    %c0_i32_0 = arith.constant 0 : i32
    return %arg0, %c0_i32 : i32, i32
  }
  func.func @transform_5(%arg0: i32, %arg1: i32) -> (i32, i32, i32) {
    %c0_i32 = arith.constant 0 : i32
    %c0_i32_0 = arith.constant 0 : i32
    %c0_i32_1 = arith.constant 0 : i32
    return %arg0, %c0_i32, %c0_i32_0 : i32, i32, i32
  }
}

module attributes {stable_mosaic.version = 11 : i64} {
  func.func @_edge_conv_kernel(%arg0: i32, %arg1: i32, %arg2: memref<1x32x64xbf16, #tpu.memory_space<vmem>>, %arg3: memref<32x64xbf16, #tpu.memory_space<vmem>>, %arg4: memref<64x128xbf16, #tpu.memory_space<vmem>>, %arg5: memref<64x128xbf16, #tpu.memory_space<vmem>>, %arg6: memref<32x128xf32, #tpu.memory_space<vmem>>, %arg7: memref<1x2x128xf32, #tpu.memory_space<vmem>>, %arg8: memref<32x128xf32, #tpu.memory_space<vmem>>, %arg9: memref<32x128xf32, #tpu.memory_space<vmem>>, %arg10: memref<1x128xf32, #tpu.memory_space<vmem>>, %arg11: memref<1x128xf32, #tpu.memory_space<vmem>>) attributes {dimension_semantics = [#tpu.dimension_semantics<parallel>, #tpu.dimension_semantics<arbitrary>], iteration_bounds = array<i64: 1, 4>, scalar_prefetch = 0 : i64, scratch_operands = 4 : i64, tpu.core_type = #tpu.core_type<tc>, window_params = [{transform_indices = @transform_0, window_bounds = array<i64: 1, 32, 64>}, {transform_indices = @transform_1, window_bounds = array<i64: 32, 64>}, {pipeline_mode = #tpu.pipeline_mode<synchronous>, transform_indices = @transform_2, window_bounds = array<i64: 64, 128>}, {pipeline_mode = #tpu.pipeline_mode<synchronous>, transform_indices = @transform_3, window_bounds = array<i64: 64, 128>}, {transform_indices = @transform_4, window_bounds = array<i64: 32, 128>}, {transform_indices = @transform_5, window_bounds = array<i64: 1, 2, 128>}]} {
    %c0_i32 = arith.constant 0 : i32
    %0 = arith.cmpi eq, %arg1, %c0_i32 : i32
    %1 = arith.extui %0 : i1 to i32
    %c0_i32_0 = arith.constant 0 : i32
    %2 = arith.cmpi ne, %1, %c0_i32_0 : i32
    scf.if %2 {
      %c0_22 = arith.constant 0 : index
      %c0_23 = arith.constant 0 : index
      %26 = vector.load %arg3[%c0_22, %c0_23] : memref<32x64xbf16, #tpu.memory_space<vmem>>, vector<32x64xbf16>
      %c0_24 = arith.constant 0 : index
      %c0_25 = arith.constant 0 : index
      %27 = vector.load %arg5[%c0_24, %c0_25] : memref<64x128xbf16, #tpu.memory_space<vmem>>, vector<64x128xbf16>
      %cst_26 = arith.constant dense<0.000000e+00> : vector<32x128xf32>
      %28 = tpu.matmul %26, %27, %cst_26 {dimension_numbers = #tpu.dot_dimension_numbers<[1], [0], [0], [1], [0, 0, 1, 1], [], []>} : vector<32x64xbf16>, vector<64x128xbf16>, vector<32x128xf32> -> vector<32x128xf32>
      %c0_27 = arith.constant 0 : index
      %c0_28 = arith.constant 0 : index
      %29 = vector.load %arg8[%c0_27, %c0_28] : memref<32x128xf32, #tpu.memory_space<vmem>>, vector<32x128xf32>
      tpu.vector_store %arg8[%c0_27, %c0_28], %28 {strides = array<i32>} : memref<32x128xf32, #tpu.memory_space<vmem>>, vector<32x128xf32>,
      %cst_29 = arith.constant 0xFF800000 : f32
      %30 = vector.broadcast %cst_29 : f32 to vector<32x128xf32>
      %c0_30 = arith.constant 0 : index
      %c0_31 = arith.constant 0 : index
      %31 = vector.load %arg9[%c0_30, %c0_31] : memref<32x128xf32, #tpu.memory_space<vmem>>, vector<32x128xf32>
      tpu.vector_store %arg9[%c0_30, %c0_31], %30 {strides = array<i32>} : memref<32x128xf32, #tpu.memory_space<vmem>>, vector<32x128xf32>,
      %cst_32 = arith.constant 0.000000e+00 : f32
      %32 = vector.broadcast %cst_32 : f32 to vector<1x128xf32>
      %c0_33 = arith.constant 0 : index
      %c0_34 = arith.constant 0 : index
      %33 = vector.load %arg10[%c0_33, %c0_34] : memref<1x128xf32, #tpu.memory_space<vmem>>, vector<1x128xf32>
      tpu.vector_store %arg10[%c0_33, %c0_34], %32 {strides = array<i32>} : memref<1x128xf32, #tpu.memory_space<vmem>>, vector<1x128xf32>,
      %cst_35 = arith.constant 0.000000e+00 : f32
      %34 = vector.broadcast %cst_35 : f32 to vector<1x128xf32>
      %c0_36 = arith.constant 0 : index
      %c0_37 = arith.constant 0 : index
      %35 = vector.load %arg11[%c0_36, %c0_37] : memref<1x128xf32, #tpu.memory_space<vmem>>, vector<1x128xf32>
      tpu.vector_store %arg11[%c0_36, %c0_37], %34 {strides = array<i32>} : memref<1x128xf32, #tpu.memory_space<vmem>>, vector<1x128xf32>,
    } else {
    }
    %c0 = arith.constant 0 : index
    %c0_1 = arith.constant 0 : index
    %c0_2 = arith.constant 0 : index
    %3 = vector.load %arg2[%c0, %c0_1, %c0_2] : memref<1x32x64xbf16, #tpu.memory_space<vmem>>, vector<1x32x64xbf16>
    %4 = vector.shape_cast %3 : vector<1x32x64xbf16> to vector<32x64xbf16>
    %c0_3 = arith.constant 0 : index
    %c0_4 = arith.constant 0 : index
    %5 = vector.load %arg4[%c0_3, %c0_4] : memref<64x128xbf16, #tpu.memory_space<vmem>>, vector<64x128xbf16>
    %cst = arith.constant dense<0.000000e+00> : vector<32x128xf32>
    %6 = tpu.matmul %4, %5, %cst {dimension_numbers = #tpu.dot_dimension_numbers<[1], [0], [0], [1], [0, 0, 1, 1], [], []>} : vector<32x64xbf16>, vector<64x128xbf16>, vector<32x128xf32> -> vector<32x128xf32>
    %c0_5 = arith.constant 0 : index
    %c0_6 = arith.constant 0 : index
    %7 = vector.load %arg8[%c0_5, %c0_6] : memref<32x128xf32, #tpu.memory_space<vmem>>, vector<32x128xf32>
    %8 = arith.addf %6, %7 : vector<32x128xf32>
    %c0_7 = arith.constant 0 : index
    %c0_8 = arith.constant 0 : index
    %9 = vector.load %arg9[%c0_7, %c0_8] : memref<32x128xf32, #tpu.memory_space<vmem>>, vector<32x128xf32>
    %10 = arith.maximumf %9, %8 : vector<32x128xf32>
    %c0_9 = arith.constant 0 : index
    %c0_10 = arith.constant 0 : index
    %11 = vector.load %arg9[%c0_9, %c0_10] : memref<32x128xf32, #tpu.memory_space<vmem>>, vector<32x128xf32>
    tpu.vector_store %arg9[%c0_9, %c0_10], %10 {strides = array<i32>} : memref<32x128xf32, #tpu.memory_space<vmem>>, vector<32x128xf32>,
    %c0_11 = arith.constant 0 : index
    %c0_12 = arith.constant 0 : index
    %12 = vector.load %arg10[%c0_11, %c0_12] : memref<1x128xf32, #tpu.memory_space<vmem>>, vector<1x128xf32>
    %cst_13 = arith.constant dense<0.000000e+00> : vector<128xf32>
    %13 = vector.multi_reduction <add>, %8, %cst_13 [0] : vector<32x128xf32> to vector<128xf32>
    %14 = vector.shape_cast %13 : vector<128xf32> to vector<1x128xf32>
    %15 = arith.addf %12, %14 : vector<1x128xf32>
    %c0_14 = arith.constant 0 : index
    %c0_15 = arith.constant 0 : index
    %16 = vector.load %arg10[%c0_14, %c0_15] : memref<1x128xf32, #tpu.memory_space<vmem>>, vector<1x128xf32>
    tpu.vector_store %arg10[%c0_14, %c0_15], %15 {strides = array<i32>} : memref<1x128xf32, #tpu.memory_space<vmem>>, vector<1x128xf32>,
    %c0_16 = arith.constant 0 : index
    %c0_17 = arith.constant 0 : index
    %17 = vector.load %arg11[%c0_16, %c0_17] : memref<1x128xf32, #tpu.memory_space<vmem>>, vector<1x128xf32>
    %18 = arith.mulf %8, %8 : vector<32x128xf32>
    %cst_18 = arith.constant dense<0.000000e+00> : vector<128xf32>
    %19 = vector.multi_reduction <add>, %18, %cst_18 [0] : vector<32x128xf32> to vector<128xf32>
    %20 = vector.shape_cast %19 : vector<128xf32> to vector<1x128xf32>
    %21 = arith.addf %17, %20 : vector<1x128xf32>
    %c0_19 = arith.constant 0 : index
    %c0_20 = arith.constant 0 : index
    %22 = vector.load %arg11[%c0_19, %c0_20] : memref<1x128xf32, #tpu.memory_space<vmem>>, vector<1x128xf32>
    tpu.vector_store %arg11[%c0_19, %c0_20], %21 {strides = array<i32>} : memref<1x128xf32, #tpu.memory_space<vmem>>, vector<1x128xf32>,
    %c3_i32 = arith.constant 3 : i32
    %23 = arith.cmpi eq, %arg1, %c3_i32 : i32
    %24 = arith.extui %23 : i1 to i32
    %c0_i32_21 = arith.constant 0 : i32
    %25 = arith.cmpi ne, %24, %c0_i32_21 : i32
    scf.if %25 {
      %c0_22 = arith.constant 0 : index
      %c0_23 = arith.constant 0 : index
      %26 = vector.load %arg9[%c0_22, %c0_23] : memref<32x128xf32, #tpu.memory_space<vmem>>, vector<32x128xf32>
      %c0_24 = arith.constant 0 : index
      %c0_25 = arith.constant 0 : index
      %27 = vector.load %arg6[%c0_24, %c0_25] : memref<32x128xf32, #tpu.memory_space<vmem>>, vector<32x128xf32>
      tpu.vector_store %arg6[%c0_24, %c0_25], %26 {strides = array<i32>} : memref<32x128xf32, #tpu.memory_space<vmem>>, vector<32x128xf32>,
      %c0_26 = arith.constant 0 : index
      %c0_27 = arith.constant 0 : index
      %28 = vector.load %arg10[%c0_26, %c0_27] : memref<1x128xf32, #tpu.memory_space<vmem>>, vector<1x128xf32>
      %c0_28 = arith.constant 0 : index
      %c0_29 = arith.constant 0 : index
      %c0_30 = arith.constant 0 : index
      %29 = vector.load %arg7[%c0_28, %c0_29, %c0_30] : memref<1x2x128xf32, #tpu.memory_space<vmem>>, vector<1x1x128xf32>
      %30 = vector.shape_cast %29 : vector<1x1x128xf32> to vector<1x128xf32>
      %31 = vector.shape_cast %28 : vector<1x128xf32> to vector<1x1x128xf32>
      tpu.vector_store %arg7[%c0_28, %c0_29, %c0_30], %31 {strides = array<i32>} : memref<1x2x128xf32, #tpu.memory_space<vmem>>, vector<1x1x128xf32>,
      %c0_31 = arith.constant 0 : index
      %c0_32 = arith.constant 0 : index
      %32 = vector.load %arg11[%c0_31, %c0_32] : memref<1x128xf32, #tpu.memory_space<vmem>>, vector<1x128xf32>
      %c0_33 = arith.constant 0 : index
      %c1 = arith.constant 1 : index
      %c0_34 = arith.constant 0 : index
      %33 = vector.load %arg7[%c0_33, %c1, %c0_34] : memref<1x2x128xf32, #tpu.memory_space<vmem>>, vector<1x1x128xf32>
      %34 = vector.shape_cast %33 : vector<1x1x128xf32> to vector<1x128xf32>
      %35 = vector.shape_cast %32 : vector<1x128xf32> to vector<1x1x128xf32>
      tpu.vector_store %arg7[%c0_33, %c1, %c0_34], %35 {strides = array<i32>} : memref<1x2x128xf32, #tpu.memory_space<vmem>>, vector<1x1x128xf32>,
    } else {
    }
    return
  }
  func.func @transform_0(%arg0: i32, %arg1: i32) -> (i32, i32, i32) {
    %c0_i32 = arith.constant 0 : i32
    %c0_i32_0 = arith.constant 0 : i32
    return %arg1, %arg0, %c0_i32 : i32, i32, i32
  }
  func.func @transform_1(%arg0: i32, %arg1: i32) -> (i32, i32) {
    %c0_i32 = arith.constant 0 : i32
    %c0_i32_0 = arith.constant 0 : i32
    return %arg0, %c0_i32 : i32, i32
  }
  func.func @transform_2(%arg0: i32, %arg1: i32) -> (i32, i32) {
    %c0_i32 = arith.constant 0 : i32
    %c0_i32_0 = arith.constant 0 : i32
    %c0_i32_1 = arith.constant 0 : i32
    return %c0_i32, %c0_i32_0 : i32, i32
  }
  func.func @transform_3(%arg0: i32, %arg1: i32) -> (i32, i32) {
    %c0_i32 = arith.constant 0 : i32
    %c0_i32_0 = arith.constant 0 : i32
    %c0_i32_1 = arith.constant 0 : i32
    return %c0_i32, %c0_i32_0 : i32, i32
  }
  func.func @transform_4(%arg0: i32, %arg1: i32) -> (i32, i32) {
    %c0_i32 = arith.constant 0 : i32
    %c0_i32_0 = arith.constant 0 : i32
    return %arg0, %c0_i32 : i32, i32
  }
  func.func @transform_5(%arg0: i32, %arg1: i32) -> (i32, i32, i32) {
    %c0_i32 = arith.constant 0 : i32
    %c0_i32_0 = arith.constant 0 : i32
    %c0_i32_1 = arith.constant 0 : i32
    return %arg0, %c0_i32, %c0_i32_0 : i32, i32, i32
  }
}

module attributes {stable_mosaic.version = 11 : i64} {
  func.func @_bn_act_kernel(%arg0: i32, %arg1: memref<32x128xf32, #tpu.memory_space<vmem>>, %arg2: memref<1x128xf32, #tpu.memory_space<vmem>>, %arg3: memref<1x128xf32, #tpu.memory_space<vmem>>, %arg4: memref<32x128xbf16, #tpu.memory_space<vmem>>) attributes {dimension_semantics = [#tpu.dimension_semantics<parallel>], iteration_bounds = array<i64: 1>, scalar_prefetch = 0 : i64, scratch_operands = 0 : i64, tpu.core_type = #tpu.core_type<tc>, window_params = [{transform_indices = @transform_0, window_bounds = array<i64: 32, 128>}, {pipeline_mode = #tpu.pipeline_mode<synchronous>, transform_indices = @transform_1, window_bounds = array<i64: 1, 128>}, {pipeline_mode = #tpu.pipeline_mode<synchronous>, transform_indices = @transform_2, window_bounds = array<i64: 1, 128>}, {transform_indices = @transform_3, window_bounds = array<i64: 32, 128>}]} {
    %c0 = arith.constant 0 : index
    %c0_0 = arith.constant 0 : index
    %0 = vector.load %arg1[%c0, %c0_0] : memref<32x128xf32, #tpu.memory_space<vmem>>, vector<32x128xf32>
    %c0_1 = arith.constant 0 : index
    %c0_2 = arith.constant 0 : index
    %1 = vector.load %arg2[%c0_1, %c0_2] : memref<1x128xf32, #tpu.memory_space<vmem>>, vector<1x128xf32>
    %2 = vector.broadcast %1 : vector<1x128xf32> to vector<32x128xf32>
    %3 = arith.mulf %0, %2 : vector<32x128xf32>
    %c0_3 = arith.constant 0 : index
    %c0_4 = arith.constant 0 : index
    %4 = vector.load %arg3[%c0_3, %c0_4] : memref<1x128xf32, #tpu.memory_space<vmem>>, vector<1x128xf32>
    %5 = vector.broadcast %4 : vector<1x128xf32> to vector<32x128xf32>
    %6 = arith.addf %3, %5 : vector<32x128xf32>
    %cst = arith.constant 0.000000e+00 : f32
    %7 = vector.broadcast %cst : f32 to vector<32x128xf32>
    %8 = arith.cmpf ogt, %6, %7 : vector<32x128xf32>
    %cst_5 = arith.constant 2.000000e-01 : f32
    %9 = vector.broadcast %cst_5 : f32 to vector<32x128xf32>
    %10 = arith.mulf %9, %6 : vector<32x128xf32>
    %11 = arith.select %8, %6, %10 : vector<32x128xi1>, vector<32x128xf32>
    %12 = arith.truncf %11 : vector<32x128xf32> to vector<32x128xbf16>
    %c0_6 = arith.constant 0 : index
    %c0_7 = arith.constant 0 : index
    %13 = vector.load %arg4[%c0_6, %c0_7] : memref<32x128xbf16, #tpu.memory_space<vmem>>, vector<32x128xbf16>
    tpu.vector_store %arg4[%c0_6, %c0_7], %12 {strides = array<i32>} : memref<32x128xbf16, #tpu.memory_space<vmem>>, vector<32x128xbf16>,
    return
  }
  func.func @transform_0(%arg0: i32) -> (i32, i32) {
    %c0_i32 = arith.constant 0 : i32
    %c0_i32_0 = arith.constant 0 : i32
    return %arg0, %c0_i32 : i32, i32
  }
  func.func @transform_1(%arg0: i32) -> (i32, i32) {
    %c0_i32 = arith.constant 0 : i32
    %c0_i32_0 = arith.constant 0 : i32
    %c0_i32_1 = arith.constant 0 : i32
    return %c0_i32, %c0_i32_0 : i32, i32
  }
  func.func @transform_2(%arg0: i32) -> (i32, i32) {
    %c0_i32 = arith.constant 0 : i32
    %c0_i32_0 = arith.constant 0 : i32
    %c0_i32_1 = arith.constant 0 : i32
    return %c0_i32, %c0_i32_0 : i32, i32
  }
  func.func @transform_3(%arg0: i32) -> (i32, i32) {
    %c0_i32 = arith.constant 0 : i32
    %c0_i32_0 = arith.constant 0 : i32
    return %arg0, %c0_i32 : i32, i32
  }
}

module attributes {stable_mosaic.version = 11 : i64} {
  func.func @_pdist_kernel(%arg0: i32, %arg1: i32, %arg2: memref<1x16x128xbf16, #tpu.memory_space<vmem>>, %arg3: memref<1x16x128xbf16, #tpu.memory_space<vmem>>, %arg4: memref<1x1x16xf32, #tpu.memory_space<vmem>>, %arg5: memref<1x16x16xf32, #tpu.memory_space<vmem>>) attributes {dimension_semantics = [#tpu.dimension_semantics<parallel>, #tpu.dimension_semantics<parallel>], iteration_bounds = array<i64: 2, 1>, scalar_prefetch = 0 : i64, scratch_operands = 0 : i64, tpu.core_type = #tpu.core_type<tc>, window_params = [{transform_indices = @transform_0, window_bounds = array<i64: 1, 16, 128>}, {transform_indices = @transform_1, window_bounds = array<i64: 1, 16, 128>}, {transform_indices = @transform_2, window_bounds = array<i64: 1, 1, 16>}, {transform_indices = @transform_3, window_bounds = array<i64: 1, 16, 16>}]} {
    %c0 = arith.constant 0 : index
    %c0_0 = arith.constant 0 : index
    %c0_1 = arith.constant 0 : index
    %0 = vector.load %arg2[%c0, %c0_0, %c0_1] : memref<1x16x128xbf16, #tpu.memory_space<vmem>>, vector<1x16x128xbf16>
    %1 = vector.shape_cast %0 : vector<1x16x128xbf16> to vector<16x128xbf16>
    %c0_2 = arith.constant 0 : index
    %c0_3 = arith.constant 0 : index
    %c0_4 = arith.constant 0 : index
    %2 = vector.load %arg3[%c0_2, %c0_3, %c0_4] : memref<1x16x128xbf16, #tpu.memory_space<vmem>>, vector<1x16x128xbf16>
    %3 = vector.shape_cast %2 : vector<1x16x128xbf16> to vector<16x128xbf16>
    %cst = arith.constant dense<0.000000e+00> : vector<16x16xf32>
    %4 = tpu.matmul %1, %3, %cst {dimension_numbers = #tpu.dot_dimension_numbers<[1], [1], [0], [0], [0, 0, 1, 0], [], []>} : vector<16x128xbf16>, vector<16x128xbf16>, vector<16x16xf32> -> vector<16x16xf32>
    %cst_5 = arith.constant 2.000000e+00 : f32
    %5 = vector.broadcast %cst_5 : f32 to vector<16x16xf32>
    %6 = arith.mulf %5, %4 : vector<16x16xf32>
    %c0_6 = arith.constant 0 : index
    %c0_7 = arith.constant 0 : index
    %c0_8 = arith.constant 0 : index
    %7 = vector.load %arg4[%c0_6, %c0_7, %c0_8] : memref<1x1x16xf32, #tpu.memory_space<vmem>>, vector<1x1x16xf32>
    %8 = vector.shape_cast %7 : vector<1x1x16xf32> to vector<1x16xf32>
    %9 = vector.broadcast %8 : vector<1x16xf32> to vector<16x16xf32>
    %10 = arith.subf %6, %9 : vector<16x16xf32>
    %c0_9 = arith.constant 0 : index
    %c0_10 = arith.constant 0 : index
    %c0_11 = arith.constant 0 : index
    %11 = vector.load %arg5[%c0_9, %c0_10, %c0_11] : memref<1x16x16xf32, #tpu.memory_space<vmem>>, vector<1x16x16xf32>
    %12 = vector.shape_cast %11 : vector<1x16x16xf32> to vector<16x16xf32>
    %13 = vector.shape_cast %10 : vector<16x16xf32> to vector<1x16x16xf32>
    tpu.vector_store %arg5[%c0_9, %c0_10, %c0_11], %13 {strides = array<i32>} : memref<1x16x16xf32, #tpu.memory_space<vmem>>, vector<1x16x16xf32>,
    return
  }
  func.func @transform_0(%arg0: i32, %arg1: i32) -> (i32, i32, i32) {
    %c0_i32 = arith.constant 0 : i32
    %c0_i32_0 = arith.constant 0 : i32
    return %arg0, %arg1, %c0_i32 : i32, i32, i32
  }
  func.func @transform_1(%arg0: i32, %arg1: i32) -> (i32, i32, i32) {
    %c0_i32 = arith.constant 0 : i32
    %c0_i32_0 = arith.constant 0 : i32
    %c0_i32_1 = arith.constant 0 : i32
    return %arg0, %c0_i32, %c0_i32_0 : i32, i32, i32
  }
  func.func @transform_2(%arg0: i32, %arg1: i32) -> (i32, i32, i32) {
    %c0_i32 = arith.constant 0 : i32
    %c0_i32_0 = arith.constant 0 : i32
    %c0_i32_1 = arith.constant 0 : i32
    return %arg0, %c0_i32, %c0_i32_0 : i32, i32, i32
  }
  func.func @transform_3(%arg0: i32, %arg1: i32) -> (i32, i32, i32) {
    %c0_i32 = arith.constant 0 : i32
    %c0_i32_0 = arith.constant 0 : i32
    return %arg0, %arg1, %c0_i32 : i32, i32, i32
  }
}

module attributes {stable_mosaic.version = 11 : i64} {
  func.func @_bn_act_kernel(%arg0: i32, %arg1: memref<32x256xf32, #tpu.memory_space<vmem>>, %arg2: memref<1x256xf32, #tpu.memory_space<vmem>>, %arg3: memref<1x256xf32, #tpu.memory_space<vmem>>, %arg4: memref<32x256xbf16, #tpu.memory_space<vmem>>) attributes {dimension_semantics = [#tpu.dimension_semantics<parallel>], iteration_bounds = array<i64: 1>, scalar_prefetch = 0 : i64, scratch_operands = 0 : i64, tpu.core_type = #tpu.core_type<tc>, window_params = [{transform_indices = @transform_0, window_bounds = array<i64: 32, 256>}, {pipeline_mode = #tpu.pipeline_mode<synchronous>, transform_indices = @transform_1, window_bounds = array<i64: 1, 256>}, {pipeline_mode = #tpu.pipeline_mode<synchronous>, transform_indices = @transform_2, window_bounds = array<i64: 1, 256>}, {transform_indices = @transform_3, window_bounds = array<i64: 32, 256>}]} {
    %c0 = arith.constant 0 : index
    %c0_0 = arith.constant 0 : index
    %0 = vector.load %arg1[%c0, %c0_0] : memref<32x256xf32, #tpu.memory_space<vmem>>, vector<32x256xf32>
    %c0_1 = arith.constant 0 : index
    %c0_2 = arith.constant 0 : index
    %1 = vector.load %arg2[%c0_1, %c0_2] : memref<1x256xf32, #tpu.memory_space<vmem>>, vector<1x256xf32>
    %2 = vector.broadcast %1 : vector<1x256xf32> to vector<32x256xf32>
    %3 = arith.mulf %0, %2 : vector<32x256xf32>
    %c0_3 = arith.constant 0 : index
    %c0_4 = arith.constant 0 : index
    %4 = vector.load %arg3[%c0_3, %c0_4] : memref<1x256xf32, #tpu.memory_space<vmem>>, vector<1x256xf32>
    %5 = vector.broadcast %4 : vector<1x256xf32> to vector<32x256xf32>
    %6 = arith.addf %3, %5 : vector<32x256xf32>
    %cst = arith.constant 0.000000e+00 : f32
    %7 = vector.broadcast %cst : f32 to vector<32x256xf32>
    %8 = arith.cmpf ogt, %6, %7 : vector<32x256xf32>
    %cst_5 = arith.constant 2.000000e-01 : f32
    %9 = vector.broadcast %cst_5 : f32 to vector<32x256xf32>
    %10 = arith.mulf %9, %6 : vector<32x256xf32>
    %11 = arith.select %8, %6, %10 : vector<32x256xi1>, vector<32x256xf32>
    %12 = arith.truncf %11 : vector<32x256xf32> to vector<32x256xbf16>
    %c0_6 = arith.constant 0 : index
    %c0_7 = arith.constant 0 : index
    %13 = vector.load %arg4[%c0_6, %c0_7] : memref<32x256xbf16, #tpu.memory_space<vmem>>, vector<32x256xbf16>
    tpu.vector_store %arg4[%c0_6, %c0_7], %12 {strides = array<i32>} : memref<32x256xbf16, #tpu.memory_space<vmem>>, vector<32x256xbf16>,
    return
  }
  func.func @transform_0(%arg0: i32) -> (i32, i32) {
    %c0_i32 = arith.constant 0 : i32
    %c0_i32_0 = arith.constant 0 : i32
    return %arg0, %c0_i32 : i32, i32
  }
  func.func @transform_1(%arg0: i32) -> (i32, i32) {
    %c0_i32 = arith.constant 0 : i32
    %c0_i32_0 = arith.constant 0 : i32
    %c0_i32_1 = arith.constant 0 : i32
    return %c0_i32, %c0_i32_0 : i32, i32
  }
  func.func @transform_2(%arg0: i32) -> (i32, i32) {
    %c0_i32 = arith.constant 0 : i32
    %c0_i32_0 = arith.constant 0 : i32
    %c0_i32_1 = arith.constant 0 : i32
    return %c0_i32, %c0_i32_0 : i32, i32
  }
  func.func @transform_3(%arg0: i32) -> (i32, i32) {
    %c0_i32 = arith.constant 0 : i32
    %c0_i32_0 = arith.constant 0 : i32
    return %arg0, %c0_i32 : i32, i32
  }
}

module attributes {stable_mosaic.version = 11 : i64} {
  func.func @_edge_conv_kernel(%arg0: i32, %arg1: i32, %arg2: memref<1x32x128xbf16, #tpu.memory_space<vmem>>, %arg3: memref<32x128xbf16, #tpu.memory_space<vmem>>, %arg4: memref<128x256xbf16, #tpu.memory_space<vmem>>, %arg5: memref<128x256xbf16, #tpu.memory_space<vmem>>, %arg6: memref<32x256xf32, #tpu.memory_space<vmem>>, %arg7: memref<1x2x256xf32, #tpu.memory_space<vmem>>, %arg8: memref<32x256xf32, #tpu.memory_space<vmem>>, %arg9: memref<32x256xf32, #tpu.memory_space<vmem>>, %arg10: memref<1x256xf32, #tpu.memory_space<vmem>>, %arg11: memref<1x256xf32, #tpu.memory_space<vmem>>) attributes {dimension_semantics = [#tpu.dimension_semantics<parallel>, #tpu.dimension_semantics<arbitrary>], iteration_bounds = array<i64: 1, 4>, scalar_prefetch = 0 : i64, scratch_operands = 4 : i64, tpu.core_type = #tpu.core_type<tc>, window_params = [{transform_indices = @transform_0, window_bounds = array<i64: 1, 32, 128>}, {transform_indices = @transform_1, window_bounds = array<i64: 32, 128>}, {pipeline_mode = #tpu.pipeline_mode<synchronous>, transform_indices = @transform_2, window_bounds = array<i64: 128, 256>}, {pipeline_mode = #tpu.pipeline_mode<synchronous>, transform_indices = @transform_3, window_bounds = array<i64: 128, 256>}, {transform_indices = @transform_4, window_bounds = array<i64: 32, 256>}, {transform_indices = @transform_5, window_bounds = array<i64: 1, 2, 256>}]} {
    %c0_i32 = arith.constant 0 : i32
    %0 = arith.cmpi eq, %arg1, %c0_i32 : i32
    %1 = arith.extui %0 : i1 to i32
    %c0_i32_0 = arith.constant 0 : i32
    %2 = arith.cmpi ne, %1, %c0_i32_0 : i32
    scf.if %2 {
      %c0_22 = arith.constant 0 : index
      %c0_23 = arith.constant 0 : index
      %26 = vector.load %arg3[%c0_22, %c0_23] : memref<32x128xbf16, #tpu.memory_space<vmem>>, vector<32x128xbf16>
      %c0_24 = arith.constant 0 : index
      %c0_25 = arith.constant 0 : index
      %27 = vector.load %arg5[%c0_24, %c0_25] : memref<128x256xbf16, #tpu.memory_space<vmem>>, vector<128x256xbf16>
      %cst_26 = arith.constant dense<0.000000e+00> : vector<32x256xf32>
      %28 = tpu.matmul %26, %27, %cst_26 {dimension_numbers = #tpu.dot_dimension_numbers<[1], [0], [0], [1], [0, 0, 1, 1], [], []>} : vector<32x128xbf16>, vector<128x256xbf16>, vector<32x256xf32> -> vector<32x256xf32>
      %c0_27 = arith.constant 0 : index
      %c0_28 = arith.constant 0 : index
      %29 = vector.load %arg8[%c0_27, %c0_28] : memref<32x256xf32, #tpu.memory_space<vmem>>, vector<32x256xf32>
      tpu.vector_store %arg8[%c0_27, %c0_28], %28 {strides = array<i32>} : memref<32x256xf32, #tpu.memory_space<vmem>>, vector<32x256xf32>,
      %cst_29 = arith.constant 0xFF800000 : f32
      %30 = vector.broadcast %cst_29 : f32 to vector<32x256xf32>
      %c0_30 = arith.constant 0 : index
      %c0_31 = arith.constant 0 : index
      %31 = vector.load %arg9[%c0_30, %c0_31] : memref<32x256xf32, #tpu.memory_space<vmem>>, vector<32x256xf32>
      tpu.vector_store %arg9[%c0_30, %c0_31], %30 {strides = array<i32>} : memref<32x256xf32, #tpu.memory_space<vmem>>, vector<32x256xf32>,
      %cst_32 = arith.constant 0.000000e+00 : f32
      %32 = vector.broadcast %cst_32 : f32 to vector<1x256xf32>
      %c0_33 = arith.constant 0 : index
      %c0_34 = arith.constant 0 : index
      %33 = vector.load %arg10[%c0_33, %c0_34] : memref<1x256xf32, #tpu.memory_space<vmem>>, vector<1x256xf32>
      tpu.vector_store %arg10[%c0_33, %c0_34], %32 {strides = array<i32>} : memref<1x256xf32, #tpu.memory_space<vmem>>, vector<1x256xf32>,
      %cst_35 = arith.constant 0.000000e+00 : f32
      %34 = vector.broadcast %cst_35 : f32 to vector<1x256xf32>
      %c0_36 = arith.constant 0 : index
      %c0_37 = arith.constant 0 : index
      %35 = vector.load %arg11[%c0_36, %c0_37] : memref<1x256xf32, #tpu.memory_space<vmem>>, vector<1x256xf32>
      tpu.vector_store %arg11[%c0_36, %c0_37], %34 {strides = array<i32>} : memref<1x256xf32, #tpu.memory_space<vmem>>, vector<1x256xf32>,
    } else {
    }
    %c0 = arith.constant 0 : index
    %c0_1 = arith.constant 0 : index
    %c0_2 = arith.constant 0 : index
    %3 = vector.load %arg2[%c0, %c0_1, %c0_2] : memref<1x32x128xbf16, #tpu.memory_space<vmem>>, vector<1x32x128xbf16>
    %4 = vector.shape_cast %3 : vector<1x32x128xbf16> to vector<32x128xbf16>
    %c0_3 = arith.constant 0 : index
    %c0_4 = arith.constant 0 : index
    %5 = vector.load %arg4[%c0_3, %c0_4] : memref<128x256xbf16, #tpu.memory_space<vmem>>, vector<128x256xbf16>
    %cst = arith.constant dense<0.000000e+00> : vector<32x256xf32>
    %6 = tpu.matmul %4, %5, %cst {dimension_numbers = #tpu.dot_dimension_numbers<[1], [0], [0], [1], [0, 0, 1, 1], [], []>} : vector<32x128xbf16>, vector<128x256xbf16>, vector<32x256xf32> -> vector<32x256xf32>
    %c0_5 = arith.constant 0 : index
    %c0_6 = arith.constant 0 : index
    %7 = vector.load %arg8[%c0_5, %c0_6] : memref<32x256xf32, #tpu.memory_space<vmem>>, vector<32x256xf32>
    %8 = arith.addf %6, %7 : vector<32x256xf32>
    %c0_7 = arith.constant 0 : index
    %c0_8 = arith.constant 0 : index
    %9 = vector.load %arg9[%c0_7, %c0_8] : memref<32x256xf32, #tpu.memory_space<vmem>>, vector<32x256xf32>
    %10 = arith.maximumf %9, %8 : vector<32x256xf32>
    %c0_9 = arith.constant 0 : index
    %c0_10 = arith.constant 0 : index
    %11 = vector.load %arg9[%c0_9, %c0_10] : memref<32x256xf32, #tpu.memory_space<vmem>>, vector<32x256xf32>
    tpu.vector_store %arg9[%c0_9, %c0_10], %10 {strides = array<i32>} : memref<32x256xf32, #tpu.memory_space<vmem>>, vector<32x256xf32>,
    %c0_11 = arith.constant 0 : index
    %c0_12 = arith.constant 0 : index
    %12 = vector.load %arg10[%c0_11, %c0_12] : memref<1x256xf32, #tpu.memory_space<vmem>>, vector<1x256xf32>
    %cst_13 = arith.constant dense<0.000000e+00> : vector<256xf32>
    %13 = vector.multi_reduction <add>, %8, %cst_13 [0] : vector<32x256xf32> to vector<256xf32>
    %14 = vector.shape_cast %13 : vector<256xf32> to vector<1x256xf32>
    %15 = arith.addf %12, %14 : vector<1x256xf32>
    %c0_14 = arith.constant 0 : index
    %c0_15 = arith.constant 0 : index
    %16 = vector.load %arg10[%c0_14, %c0_15] : memref<1x256xf32, #tpu.memory_space<vmem>>, vector<1x256xf32>
    tpu.vector_store %arg10[%c0_14, %c0_15], %15 {strides = array<i32>} : memref<1x256xf32, #tpu.memory_space<vmem>>, vector<1x256xf32>,
    %c0_16 = arith.constant 0 : index
    %c0_17 = arith.constant 0 : index
    %17 = vector.load %arg11[%c0_16, %c0_17] : memref<1x256xf32, #tpu.memory_space<vmem>>, vector<1x256xf32>
    %18 = arith.mulf %8, %8 : vector<32x256xf32>
    %cst_18 = arith.constant dense<0.000000e+00> : vector<256xf32>
    %19 = vector.multi_reduction <add>, %18, %cst_18 [0] : vector<32x256xf32> to vector<256xf32>
    %20 = vector.shape_cast %19 : vector<256xf32> to vector<1x256xf32>
    %21 = arith.addf %17, %20 : vector<1x256xf32>
    %c0_19 = arith.constant 0 : index
    %c0_20 = arith.constant 0 : index
    %22 = vector.load %arg11[%c0_19, %c0_20] : memref<1x256xf32, #tpu.memory_space<vmem>>, vector<1x256xf32>
    tpu.vector_store %arg11[%c0_19, %c0_20], %21 {strides = array<i32>} : memref<1x256xf32, #tpu.memory_space<vmem>>, vector<1x256xf32>,
    %c3_i32 = arith.constant 3 : i32
    %23 = arith.cmpi eq, %arg1, %c3_i32 : i32
    %24 = arith.extui %23 : i1 to i32
    %c0_i32_21 = arith.constant 0 : i32
    %25 = arith.cmpi ne, %24, %c0_i32_21 : i32
    scf.if %25 {
      %c0_22 = arith.constant 0 : index
      %c0_23 = arith.constant 0 : index
      %26 = vector.load %arg9[%c0_22, %c0_23] : memref<32x256xf32, #tpu.memory_space<vmem>>, vector<32x256xf32>
      %c0_24 = arith.constant 0 : index
      %c0_25 = arith.constant 0 : index
      %27 = vector.load %arg6[%c0_24, %c0_25] : memref<32x256xf32, #tpu.memory_space<vmem>>, vector<32x256xf32>
      tpu.vector_store %arg6[%c0_24, %c0_25], %26 {strides = array<i32>} : memref<32x256xf32, #tpu.memory_space<vmem>>, vector<32x256xf32>,
      %c0_26 = arith.constant 0 : index
      %c0_27 = arith.constant 0 : index
      %28 = vector.load %arg10[%c0_26, %c0_27] : memref<1x256xf32, #tpu.memory_space<vmem>>, vector<1x256xf32>
      %c0_28 = arith.constant 0 : index
      %c0_29 = arith.constant 0 : index
      %c0_30 = arith.constant 0 : index
      %29 = vector.load %arg7[%c0_28, %c0_29, %c0_30] : memref<1x2x256xf32, #tpu.memory_space<vmem>>, vector<1x1x256xf32>
      %30 = vector.shape_cast %29 : vector<1x1x256xf32> to vector<1x256xf32>
      %31 = vector.shape_cast %28 : vector<1x256xf32> to vector<1x1x256xf32>
      tpu.vector_store %arg7[%c0_28, %c0_29, %c0_30], %31 {strides = array<i32>} : memref<1x2x256xf32, #tpu.memory_space<vmem>>, vector<1x1x256xf32>,
      %c0_31 = arith.constant 0 : index
      %c0_32 = arith.constant 0 : index
      %32 = vector.load %arg11[%c0_31, %c0_32] : memref<1x256xf32, #tpu.memory_space<vmem>>, vector<1x256xf32>
      %c0_33 = arith.constant 0 : index
      %c1 = arith.constant 1 : index
      %c0_34 = arith.constant 0 : index
      %33 = vector.load %arg7[%c0_33, %c1, %c0_34] : memref<1x2x256xf32, #tpu.memory_space<vmem>>, vector<1x1x256xf32>
      %34 = vector.shape_cast %33 : vector<1x1x256xf32> to vector<1x256xf32>
      %35 = vector.shape_cast %32 : vector<1x256xf32> to vector<1x1x256xf32>
      tpu.vector_store %arg7[%c0_33, %c1, %c0_34], %35 {strides = array<i32>} : memref<1x2x256xf32, #tpu.memory_space<vmem>>, vector<1x1x256xf32>,
    } else {
    }
    return
  }
  func.func @transform_0(%arg0: i32, %arg1: i32) -> (i32, i32, i32) {
    %c0_i32 = arith.constant 0 : i32
    %c0_i32_0 = arith.constant 0 : i32
    return %arg1, %arg0, %c0_i32 : i32, i32, i32
  }
  func.func @transform_1(%arg0: i32, %arg1: i32) -> (i32, i32) {
    %c0_i32 = arith.constant 0 : i32
    %c0_i32_0 = arith.constant 0 : i32
    return %arg0, %c0_i32 : i32, i32
  }
  func.func @transform_2(%arg0: i32, %arg1: i32) -> (i32, i32) {
    %c0_i32 = arith.constant 0 : i32
    %c0_i32_0 = arith.constant 0 : i32
    %c0_i32_1 = arith.constant 0 : i32
    return %c0_i32, %c0_i32_0 : i32, i32
  }
  func.func @transform_3(%arg0: i32, %arg1: i32) -> (i32, i32) {
    %c0_i32 = arith.constant 0 : i32
    %c0_i32_0 = arith.constant 0 : i32
    %c0_i32_1 = arith.constant 0 : i32
    return %c0_i32, %c0_i32_0 : i32, i32
  }
  func.func @transform_4(%arg0: i32, %arg1: i32) -> (i32, i32) {
    %c0_i32 = arith.constant 0 : i32
    %c0_i32_0 = arith.constant 0 : i32
    return %arg0, %c0_i32 : i32, i32
  }
  func.func @transform_5(%arg0: i32, %arg1: i32) -> (i32, i32, i32) {
    %c0_i32 = arith.constant 0 : i32
    %c0_i32_0 = arith.constant 0 : i32
    %c0_i32_1 = arith.constant 0 : i32
    return %arg0, %c0_i32, %c0_i32_0 : i32, i32, i32
  }
}

module attributes {stable_mosaic.version = 11 : i64} {
  func.func @_conv5_kernel(%arg0: i32, %arg1: i32, %arg2: memref<1x16x64xbf16, #tpu.memory_space<vmem>>, %arg3: memref<1x16x64xbf16, #tpu.memory_space<vmem>>, %arg4: memref<1x16x128xbf16, #tpu.memory_space<vmem>>, %arg5: memref<1x16x256xbf16, #tpu.memory_space<vmem>>, %arg6: memref<64x32xbf16, #tpu.memory_space<vmem>>, %arg7: memref<64x32xbf16, #tpu.memory_space<vmem>>, %arg8: memref<128x32xbf16, #tpu.memory_space<vmem>>, %arg9: memref<256x32xbf16, #tpu.memory_space<vmem>>, %arg10: memref<1x1x1x32xf32, #tpu.memory_space<vmem>>, %arg11: memref<1x1x2x32xf32, #tpu.memory_space<vmem>>) attributes {dimension_semantics = [#tpu.dimension_semantics<parallel>, #tpu.dimension_semantics<parallel>], iteration_bounds = array<i64: 2, 1>, scalar_prefetch = 0 : i64, scratch_operands = 0 : i64, tpu.core_type = #tpu.core_type<tc>, window_params = [{transform_indices = @transform_0, window_bounds = array<i64: 1, 16, 64>}, {transform_indices = @transform_1, window_bounds = array<i64: 1, 16, 64>}, {transform_indices = @transform_2, window_bounds = array<i64: 1, 16, 128>}, {transform_indices = @transform_3, window_bounds = array<i64: 1, 16, 256>}, {pipeline_mode = #tpu.pipeline_mode<synchronous>, transform_indices = @transform_4, window_bounds = array<i64: 64, 32>}, {pipeline_mode = #tpu.pipeline_mode<synchronous>, transform_indices = @transform_5, window_bounds = array<i64: 64, 32>}, {pipeline_mode = #tpu.pipeline_mode<synchronous>, transform_indices = @transform_6, window_bounds = array<i64: 128, 32>}, {pipeline_mode = #tpu.pipeline_mode<synchronous>, transform_indices = @transform_7, window_bounds = array<i64: 256, 32>}, {transform_indices = @transform_8, window_bounds = array<i64: 1, 1, 1, 32>}, {transform_indices = @transform_9, window_bounds = array<i64: 1, 1, 2, 32>}]} {
    %c0 = arith.constant 0 : index
    %c0_0 = arith.constant 0 : index
    %c0_1 = arith.constant 0 : index
    %0 = vector.load %arg2[%c0, %c0_0, %c0_1] : memref<1x16x64xbf16, #tpu.memory_space<vmem>>, vector<1x16x64xbf16>
    %1 = vector.shape_cast %0 : vector<1x16x64xbf16> to vector<16x64xbf16>
    %c0_2 = arith.constant 0 : index
    %c0_3 = arith.constant 0 : index
    %2 = vector.load %arg6[%c0_2, %c0_3] : memref<64x32xbf16, #tpu.memory_space<vmem>>, vector<64x32xbf16>
    %cst = arith.constant dense<0.000000e+00> : vector<16x32xf32>
    %3 = tpu.matmul %1, %2, %cst {dimension_numbers = #tpu.dot_dimension_numbers<[1], [0], [0], [1], [0, 0, 1, 1], [], []>} : vector<16x64xbf16>, vector<64x32xbf16>, vector<16x32xf32> -> vector<16x32xf32>
    %c0_4 = arith.constant 0 : index
    %c0_5 = arith.constant 0 : index
    %c0_6 = arith.constant 0 : index
    %4 = vector.load %arg3[%c0_4, %c0_5, %c0_6] : memref<1x16x64xbf16, #tpu.memory_space<vmem>>, vector<1x16x64xbf16>
    %5 = vector.shape_cast %4 : vector<1x16x64xbf16> to vector<16x64xbf16>
    %c0_7 = arith.constant 0 : index
    %c0_8 = arith.constant 0 : index
    %6 = vector.load %arg7[%c0_7, %c0_8] : memref<64x32xbf16, #tpu.memory_space<vmem>>, vector<64x32xbf16>
    %cst_9 = arith.constant dense<0.000000e+00> : vector<16x32xf32>
    %7 = tpu.matmul %5, %6, %cst_9 {dimension_numbers = #tpu.dot_dimension_numbers<[1], [0], [0], [1], [0, 0, 1, 1], [], []>} : vector<16x64xbf16>, vector<64x32xbf16>, vector<16x32xf32> -> vector<16x32xf32>
    %8 = arith.addf %3, %7 : vector<16x32xf32>
    %c0_10 = arith.constant 0 : index
    %c0_11 = arith.constant 0 : index
    %c0_12 = arith.constant 0 : index
    %9 = vector.load %arg4[%c0_10, %c0_11, %c0_12] : memref<1x16x128xbf16, #tpu.memory_space<vmem>>, vector<1x16x128xbf16>
    %10 = vector.shape_cast %9 : vector<1x16x128xbf16> to vector<16x128xbf16>
    %c0_13 = arith.constant 0 : index
    %c0_14 = arith.constant 0 : index
    %11 = vector.load %arg8[%c0_13, %c0_14] : memref<128x32xbf16, #tpu.memory_space<vmem>>, vector<128x32xbf16>
    %cst_15 = arith.constant dense<0.000000e+00> : vector<16x32xf32>
    %12 = tpu.matmul %10, %11, %cst_15 {dimension_numbers = #tpu.dot_dimension_numbers<[1], [0], [0], [1], [0, 0, 1, 1], [], []>} : vector<16x128xbf16>, vector<128x32xbf16>, vector<16x32xf32> -> vector<16x32xf32>
    %13 = arith.addf %8, %12 : vector<16x32xf32>
    %c0_16 = arith.constant 0 : index
    %c0_17 = arith.constant 0 : index
    %c0_18 = arith.constant 0 : index
    %14 = vector.load %arg5[%c0_16, %c0_17, %c0_18] : memref<1x16x256xbf16, #tpu.memory_space<vmem>>, vector<1x16x256xbf16>
    %15 = vector.shape_cast %14 : vector<1x16x256xbf16> to vector<16x256xbf16>
    %c0_19 = arith.constant 0 : index
    %c0_20 = arith.constant 0 : index
    %16 = vector.load %arg9[%c0_19, %c0_20] : memref<256x32xbf16, #tpu.memory_space<vmem>>, vector<256x32xbf16>
    %cst_21 = arith.constant dense<0.000000e+00> : vector<16x32xf32>
    %17 = tpu.matmul %15, %16, %cst_21 {dimension_numbers = #tpu.dot_dimension_numbers<[1], [0], [0], [1], [0, 0, 1, 1], [], []>} : vector<16x256xbf16>, vector<256x32xbf16>, vector<16x32xf32> -> vector<16x32xf32>
    %18 = arith.addf %13, %17 : vector<16x32xf32>
    %cst_22 = arith.constant dense<0xFF800000> : vector<32xf32>
    %19 = vector.multi_reduction <maximumf>, %18, %cst_22 [0] : vector<16x32xf32> to vector<32xf32>
    %20 = vector.shape_cast %19 : vector<32xf32> to vector<1x32xf32>
    %c0_23 = arith.constant 0 : index
    %c0_24 = arith.constant 0 : index
    %c0_25 = arith.constant 0 : index
    %c0_26 = arith.constant 0 : index
    %21 = vector.load %arg10[%c0_23, %c0_24, %c0_25, %c0_26] : memref<1x1x1x32xf32, #tpu.memory_space<vmem>>, vector<1x1x1x32xf32>
    %22 = vector.shape_cast %21 : vector<1x1x1x32xf32> to vector<1x32xf32>
    %23 = vector.shape_cast %20 : vector<1x32xf32> to vector<1x1x1x32xf32>
    tpu.vector_store %arg10[%c0_23, %c0_24, %c0_25, %c0_26], %23 {strides = array<i32>} : memref<1x1x1x32xf32, #tpu.memory_space<vmem>>, vector<1x1x1x32xf32>,
    %cst_27 = arith.constant dense<0.000000e+00> : vector<32xf32>
    %24 = vector.multi_reduction <add>, %18, %cst_27 [0] : vector<16x32xf32> to vector<32xf32>
    %25 = vector.shape_cast %24 : vector<32xf32> to vector<1x32xf32>
    %c0_28 = arith.constant 0 : index
    %c0_29 = arith.constant 0 : index
    %c0_30 = arith.constant 0 : index
    %c0_31 = arith.constant 0 : index
    %26 = vector.load %arg11[%c0_28, %c0_29, %c0_30, %c0_31] : memref<1x1x2x32xf32, #tpu.memory_space<vmem>>, vector<1x1x1x32xf32>
    %27 = vector.shape_cast %26 : vector<1x1x1x32xf32> to vector<1x32xf32>
    %28 = vector.shape_cast %25 : vector<1x32xf32> to vector<1x1x1x32xf32>
    tpu.vector_store %arg11[%c0_28, %c0_29, %c0_30, %c0_31], %28 {strides = array<i32>} : memref<1x1x2x32xf32, #tpu.memory_space<vmem>>, vector<1x1x1x32xf32>,
    %29 = arith.mulf %18, %18 : vector<16x32xf32>
    %cst_32 = arith.constant dense<0.000000e+00> : vector<32xf32>
    %30 = vector.multi_reduction <add>, %29, %cst_32 [0] : vector<16x32xf32> to vector<32xf32>
    %31 = vector.shape_cast %30 : vector<32xf32> to vector<1x32xf32>
    %c0_33 = arith.constant 0 : index
    %c0_34 = arith.constant 0 : index
    %c1 = arith.constant 1 : index
    %c0_35 = arith.constant 0 : index
    %32 = vector.load %arg11[%c0_33, %c0_34, %c1, %c0_35] : memref<1x1x2x32xf32, #tpu.memory_space<vmem>>, vector<1x1x1x32xf32>
    %33 = vector.shape_cast %32 : vector<1x1x1x32xf32> to vector<1x32xf32>
    %34 = vector.shape_cast %31 : vector<1x32xf32> to vector<1x1x1x32xf32>
    tpu.vector_store %arg11[%c0_33, %c0_34, %c1, %c0_35], %34 {strides = array<i32>} : memref<1x1x2x32xf32, #tpu.memory_space<vmem>>, vector<1x1x1x32xf32>,
    return
  }
  func.func @transform_0(%arg0: i32, %arg1: i32) -> (i32, i32, i32) {
    %c0_i32 = arith.constant 0 : i32
    %c0_i32_0 = arith.constant 0 : i32
    return %arg0, %arg1, %c0_i32 : i32, i32, i32
  }
  func.func @transform_1(%arg0: i32, %arg1: i32) -> (i32, i32, i32) {
    %c0_i32 = arith.constant 0 : i32
    %c0_i32_0 = arith.constant 0 : i32
    return %arg0, %arg1, %c0_i32 : i32, i32, i32
  }
  func.func @transform_2(%arg0: i32, %arg1: i32) -> (i32, i32, i32) {
    %c0_i32 = arith.constant 0 : i32
    %c0_i32_0 = arith.constant 0 : i32
    return %arg0, %arg1, %c0_i32 : i32, i32, i32
  }
  func.func @transform_3(%arg0: i32, %arg1: i32) -> (i32, i32, i32) {
    %c0_i32 = arith.constant 0 : i32
    %c0_i32_0 = arith.constant 0 : i32
    return %arg0, %arg1, %c0_i32 : i32, i32, i32
  }
  func.func @transform_4(%arg0: i32, %arg1: i32) -> (i32, i32) {
    %c0_i32 = arith.constant 0 : i32
    %c0_i32_0 = arith.constant 0 : i32
    %c0_i32_1 = arith.constant 0 : i32
    return %c0_i32, %c0_i32_0 : i32, i32
  }
  func.func @transform_5(%arg0: i32, %arg1: i32) -> (i32, i32) {
    %c0_i32 = arith.constant 0 : i32
    %c0_i32_0 = arith.constant 0 : i32
    %c0_i32_1 = arith.constant 0 : i32
    return %c0_i32, %c0_i32_0 : i32, i32
  }
  func.func @transform_6(%arg0: i32, %arg1: i32) -> (i32, i32) {
    %c0_i32 = arith.constant 0 : i32
    %c0_i32_0 = arith.constant 0 : i32
    %c0_i32_1 = arith.constant 0 : i32
    return %c0_i32, %c0_i32_0 : i32, i32
  }
  func.func @transform_7(%arg0: i32, %arg1: i32) -> (i32, i32) {
    %c0_i32 = arith.constant 0 : i32
    %c0_i32_0 = arith.constant 0 : i32
    %c0_i32_1 = arith.constant 0 : i32
    return %c0_i32, %c0_i32_0 : i32, i32
  }
  func.func @transform_8(%arg0: i32, %arg1: i32) -> (i32, i32, i32, i32) {
    %c0_i32 = arith.constant 0 : i32
    %c0_i32_0 = arith.constant 0 : i32
    %c0_i32_1 = arith.constant 0 : i32
    return %arg0, %arg1, %c0_i32, %c0_i32_0 : i32, i32, i32, i32
  }
  func.func @transform_9(%arg0: i32, %arg1: i32) -> (i32, i32, i32, i32) {
    %c0_i32 = arith.constant 0 : i32
    %c0_i32_0 = arith.constant 0 : i32
    %c0_i32_1 = arith.constant 0 : i32
    return %arg0, %arg1, %c0_i32, %c0_i32_0 : i32, i32, i32, i32
  }
}

module attributes {stable_mosaic.version = 11 : i64} {
  func.func @_head_kernel(%arg0: memref<2x32xf32, #tpu.memory_space<vmem>>, %arg1: memref<1x32xf32, #tpu.memory_space<vmem>>, %arg2: memref<1x32xf32, #tpu.memory_space<vmem>>, %arg3: memref<32x256xbf16, #tpu.memory_space<vmem>>, %arg4: memref<1x256xf32, #tpu.memory_space<vmem>>, %arg5: memref<256x512xbf16, #tpu.memory_space<vmem>>, %arg6: memref<1x512xf32, #tpu.memory_space<vmem>>, %arg7: memref<512x16xbf16, #tpu.memory_space<vmem>>, %arg8: memref<1x16xf32, #tpu.memory_space<vmem>>, %arg9: memref<2x16xf32, #tpu.memory_space<vmem>>) attributes {dimension_semantics = [], scalar_prefetch = 0 : i64, scratch_operands = 0 : i64, tpu.core_type = #tpu.core_type<tc>} {
    %c0 = arith.constant 0 : index
    %c0_0 = arith.constant 0 : index
    %0 = vector.load %arg0[%c0, %c0_0] : memref<2x32xf32, #tpu.memory_space<vmem>>, vector<2x32xf32>
    %c0_1 = arith.constant 0 : index
    %c0_2 = arith.constant 0 : index
    %1 = vector.load %arg1[%c0_1, %c0_2] : memref<1x32xf32, #tpu.memory_space<vmem>>, vector<1x32xf32>
    %2 = vector.broadcast %1 : vector<1x32xf32> to vector<2x32xf32>
    %3 = arith.mulf %0, %2 : vector<2x32xf32>
    %c0_3 = arith.constant 0 : index
    %c0_4 = arith.constant 0 : index
    %4 = vector.load %arg2[%c0_3, %c0_4] : memref<1x32xf32, #tpu.memory_space<vmem>>, vector<1x32xf32>
    %5 = vector.broadcast %4 : vector<1x32xf32> to vector<2x32xf32>
    %6 = arith.addf %3, %5 : vector<2x32xf32>
    %cst = arith.constant 0.000000e+00 : f32
    %7 = vector.broadcast %cst : f32 to vector<2x32xf32>
    %8 = arith.cmpf ogt, %6, %7 : vector<2x32xf32>
    %cst_5 = arith.constant 2.000000e-01 : f32
    %9 = vector.broadcast %cst_5 : f32 to vector<2x32xf32>
    %10 = arith.mulf %9, %6 : vector<2x32xf32>
    %11 = arith.select %8, %6, %10 : vector<2x32xi1>, vector<2x32xf32>
    %12 = arith.truncf %11 : vector<2x32xf32> to vector<2x32xbf16>
    %c0_6 = arith.constant 0 : index
    %c0_7 = arith.constant 0 : index
    %13 = vector.load %arg3[%c0_6, %c0_7] : memref<32x256xbf16, #tpu.memory_space<vmem>>, vector<32x256xbf16>
    %cst_8 = arith.constant dense<0.000000e+00> : vector<2x256xf32>
    %14 = tpu.matmul %12, %13, %cst_8 {dimension_numbers = #tpu.dot_dimension_numbers<[1], [0], [0], [1], [0, 0, 1, 1], [], []>} : vector<2x32xbf16>, vector<32x256xbf16>, vector<2x256xf32> -> vector<2x256xf32>
    %c0_9 = arith.constant 0 : index
    %c0_10 = arith.constant 0 : index
    %15 = vector.load %arg4[%c0_9, %c0_10] : memref<1x256xf32, #tpu.memory_space<vmem>>, vector<1x256xf32>
    %16 = vector.broadcast %15 : vector<1x256xf32> to vector<2x256xf32>
    %17 = arith.addf %14, %16 : vector<2x256xf32>
    %cst_11 = arith.constant 0.000000e+00 : f32
    %18 = vector.broadcast %cst_11 : f32 to vector<2x256xf32>
    %19 = arith.maximumf %17, %18 : vector<2x256xf32>
    %20 = arith.truncf %19 : vector<2x256xf32> to vector<2x256xbf16>
    %c0_12 = arith.constant 0 : index
    %c0_13 = arith.constant 0 : index
    %21 = vector.load %arg5[%c0_12, %c0_13] : memref<256x512xbf16, #tpu.memory_space<vmem>>, vector<256x512xbf16>
    %cst_14 = arith.constant dense<0.000000e+00> : vector<2x512xf32>
    %22 = tpu.matmul %20, %21, %cst_14 {dimension_numbers = #tpu.dot_dimension_numbers<[1], [0], [0], [1], [0, 0, 1, 1], [], []>} : vector<2x256xbf16>, vector<256x512xbf16>, vector<2x512xf32> -> vector<2x512xf32>
    %c0_15 = arith.constant 0 : index
    %c0_16 = arith.constant 0 : index
    %23 = vector.load %arg6[%c0_15, %c0_16] : memref<1x512xf32, #tpu.memory_space<vmem>>, vector<1x512xf32>
    %24 = vector.broadcast %23 : vector<1x512xf32> to vector<2x512xf32>
    %25 = arith.addf %22, %24 : vector<2x512xf32>
    %cst_17 = arith.constant 0.000000e+00 : f32
    %26 = vector.broadcast %cst_17 : f32 to vector<2x512xf32>
    %27 = arith.maximumf %25, %26 : vector<2x512xf32>
    %28 = arith.truncf %27 : vector<2x512xf32> to vector<2x512xbf16>
    %c0_18 = arith.constant 0 : index
    %c0_19 = arith.constant 0 : index
    %29 = vector.load %arg7[%c0_18, %c0_19] : memref<512x16xbf16, #tpu.memory_space<vmem>>, vector<512x16xbf16>
    %cst_20 = arith.constant dense<0.000000e+00> : vector<2x16xf32>
    %30 = tpu.matmul %28, %29, %cst_20 {dimension_numbers = #tpu.dot_dimension_numbers<[1], [0], [0], [1], [0, 0, 1, 1], [], []>} : vector<2x512xbf16>, vector<512x16xbf16>, vector<2x16xf32> -> vector<2x16xf32>
    %c0_21 = arith.constant 0 : index
    %c0_22 = arith.constant 0 : index
    %31 = vector.load %arg8[%c0_21, %c0_22] : memref<1x16xf32, #tpu.memory_space<vmem>>, vector<1x16xf32>
    %32 = vector.broadcast %31 : vector<1x16xf32> to vector<2x16xf32>
    %33 = arith.addf %30, %32 : vector<2x16xf32>
    %c0_23 = arith.constant 0 : index
    %c0_24 = arith.constant 0 : index
    %34 = vector.load %arg9[%c0_23, %c0_24] : memref<2x16xf32, #tpu.memory_space<vmem>>, vector<2x16xf32>
    tpu.vector_store %arg9[%c0_23, %c0_24], %33 {strides = array<i32>} : memref<2x16xf32, #tpu.memory_space<vmem>>, vector<2x16xf32>,
    return
  }
}

</mosaic_0001>

<llo_original>
// kernel: point_gen_forward.14
$region0: #{point_gen_forward.14}
  #allocation0 [shape = 'u32[]', space=smem, size = 0x4, offset = 0x4, fixed_abs, tag = 'smem constant byte address 0x4 - core index']
  #allocation1 [shape = 'u32[144,128]{1,0:T(1,128)}', space=vmem, size = 0x12000, scoped, tag = 'internal scratch']
  %s0 = inlined_call_operand.vmem [shape: bf16[2,16,3], index: 0, kind: input, shape index: {}, may-alias: {0,1}]
  %s1 = inlined_call_operand.vmem [shape: bf16[2,16,3], index: 1, kind: input, shape index: {}, may-alias: {0,1}]
  %s2 = inlined_call_operand.vmem [shape: f32[2,1,16], index: 2, kind: input, shape index: {}]
  %s3 = inlined_call_operand.vmem [shape: f32[2,16,16], index: 3, kind: output, shape index: {}]
  %s4 = sld [smem:[#allocation0]]
  $region45: #{point_gen_forward.14} parent=0
    _
  %s6 = ssub.s32 1, %s4
  %s7 = scalar_select 0, %s6, %s4
  loop: start=0, step=1, limit=4
  $region2: #{point_gen_forward.14} parent=0 // loop_pre_header
    _
  $region3: #{point_gen_forward.14} parent=0 // loop_header
    %s9 = sphi 0, %s13
    %p10 = scmp.ge.s32.totalorder %s9, 4
    %s16 = sphi 0, %s28
    %s17 = sphi 0, %s24
    %s18 = sphi 0, %s16
    %s19 = sphi 0, %s17
    %s20 = sphi 0, %s18
    %s21 = sphi 0, %s19
    %s33 = sphi 0, %s35
    %s36 = sphi 0, %s33
    %s37 = sphi 0, %s36
    %s53 = sphi 0, %s37
    %s59 = sphi 0, %s61
    %s62 = sphi 0, %s59
    %s63 = sphi 0, %s62
    %s79 = sphi 0, %s63
    %s85 = sphi 0, %s87
    %s88 = sphi 0, %s85
    %s89 = sphi 0, %s88
    %s105 = sphi 0, %s89
    %s113 = sphi 0, %s115
    %s116 = sphi 0, %s113
    %s117 = sphi 0, %s116
    %s133 = sphi 0, %s117
  $region4: #{point_gen_forward.14} parent=0 // loop_header_branch
    %12 = sbr.rel (%p10) target = $region8
  $region5: #{point_gen_forward.14} parent=0 // loop_body
    %s14 = ssub.s32 %s9, 1
    %s15 = ssub.s32 %s9, 2
    %s22 = sadd.s32 1, %s17
    %p23 = scmp.ge.s32.totalorder %s22, 1
    %s24 = scalar_select %p23, 0, %s22
    %s25 = sadd.s32 1, %s16
    %s26 = scalar_select %p23, %s25, %s16
    %p27 = scmp.ge.s32.totalorder %s26, 2
    %s28 = scalar_select %p27, 0, %s26
    %s29 = ssub.s32 %s16, %s28
    %s30 = ssub.s32 %s17, %s24
    %s31 = sor.u32 %s29, %s30
    %p32 = scmp.eq.s32.totalorder %s31, 0
    %s34 = sadd.s32 %s33, 1
    %s35 = scalar_select %p32, %s33, %s34
    %p38 = pneg %p32
    %p39 = scmp.eq.s32.totalorder %s9, 1
    %p40 = por %p38, %p39
    %p41 = scmp.ne.s32.totalorder %s33, %s36
    %p42 = scmp.eq.s32.totalorder %s9, 0
    %p43 = por %p41, %p42
    %p44 = scmp.ne.s32.totalorder %s33, %s36
    %p45 = scmp.eq.s32.totalorder %s14, 1
    %p46 = por %p44, %p45
    %p47 = scmp.ne.s32.totalorder %s36, %s37
    %p48 = scmp.eq.s32.totalorder %s14, 0
    %p49 = por %p47, %p48
    %p50 = scmp.ne.s32.totalorder %s36, %s37
    %p51 = scmp.eq.s32.totalorder %s15, 1
    %p52 = por %p50, %p51
    %p54 = scmp.ne.s32.totalorder %s37, %s53
    %p55 = scmp.eq.s32.totalorder %s15, 0
    %p56 = por %p54, %p55
    %s57 = ssub.s32 %s16, %s28
    %p58 = scmp.eq.s32.totalorder %s57, 0
    %s60 = sadd.s32 %s59, 1
    %s61 = scalar_select %p58, %s59, %s60
    %p64 = pneg %p58
    %p65 = scmp.eq.s32.totalorder %s9, 1
    %p66 = por %p64, %p65
    %p67 = scmp.ne.s32.totalorder %s59, %s62
    %p68 = scmp.eq.s32.totalorder %s9, 0
    %p69 = por %p67, %p68
    %p70 = scmp.ne.s32.totalorder %s59, %s62
    %p71 = scmp.eq.s32.totalorder %s14, 1
    %p72 = por %p70, %p71
    %p73 = scmp.ne.s32.totalorder %s62, %s63
    %p74 = scmp.eq.s32.totalorder %s14, 0
    %p75 = por %p73, %p74
    %p76 = scmp.ne.s32.totalorder %s62, %s63
    %p77 = scmp.eq.s32.totalorder %s15, 1
    %p78 = por %p76, %p77
    %p80 = scmp.ne.s32.totalorder %s63, %s79
    %p81 = scmp.eq.s32.totalorder %s15, 0
    %p82 = por %p80, %p81
    %s83 = ssub.s32 %s16, %s28
    %p84 = scmp.eq.s32.totalorder %s83, 0
    %s86 = sadd.s32 %s85, 1
    %s87 = scalar_select %p84, %s85, %s86
    %p90 = pneg %p84
    %p91 = scmp.eq.s32.totalorder %s9, 1
    %p92 = por %p90, %p91
    %p93 = scmp.ne.s32.totalorder %s85, %s88
    %p94 = scmp.eq.s32.totalorder %s9, 0
    %p95 = por %p93, %p94
    %p96 = scmp.ne.s32.totalorder %s85, %s88
    %p97 = scmp.eq.s32.totalorder %s14, 1
    %p98 = por %p96, %p97
    %p99 = scmp.ne.s32.totalorder %s88, %s89
    %p100 = scmp.eq.s32.totalorder %s14, 0
    %p101 = por %p99, %p100
    %p102 = scmp.ne.s32.totalorder %s88, %s89
    %p103 = scmp.eq.s32.totalorder %s15, 1
    %p104 = por %p102, %p103
    %p106 = scmp.ne.s32.totalorder %s89, %s105
    %p107 = scmp.eq.s32.totalorder %s15, 0
    %p108 = por %p106, %p107
    %s109 = ssub.s32 %s16, %s28
    %s110 = ssub.s32 %s17, %s24
    %s111 = sor.u32 %s109, %s110
    %p112 = scmp.eq.s32.totalorder %s111, 0
    %s114 = sadd.s32 %s113, 1
    %s115 = scalar_select %p112, %s113, %s114
    %p118 = pneg %p112
    %p119 = scmp.eq.s32.totalorder %s9, 1
    %p120 = por %p118, %p119
    %p121 = scmp.ne.s32.totalorder %s113, %s116
    %p122 = scmp.eq.s32.totalorder %s9, 0
    %p123 = por %p121, %p122
    %p124 = scmp.ne.s32.totalorder %s113, %s116
    %p125 = scmp.eq.s32.totalorder %s14, 1
    %p126 = por %p124, %p125
    %p127 = scmp.ne.s32.totalorder %s116, %s117
    %p128 = scmp.eq.s32.totalorder %s14, 0
    %p129 = por %p127, %p128
    %p130 = scmp.ne.s32.totalorder %s116, %s117
    %p131 = scmp.eq.s32.totalorder %s15, 1
    %p132 = por %p130, %p131
    %p134 = scmp.ne.s32.totalorder %s117, %s133
    %p135 = scmp.eq.s32.totalorder %s15, 0
    %p136 = por %p134, %p135
    %p137 = scmp.le.s32.totalorder 1, %s9
    %p138 = scmp.lt.s32.totalorder %s9, 3
    %p139 = pnand %p137, %p138
    %p140 = pneg %p139
    // Predicated region
    $region9: #{point_gen_forward.14} parent=5 // pred_check
      _
    $region10: #{point_gen_forward.14} parent=5 // pred_check_branch
      %142 = sbr.rel (%p139) target = $region12
    $region11: #{point_gen_forward.14} parent=5 // pred_region
      %s143 = ssub.s32 %s9, 1
    $region12: #{point_gen_forward.14} parent=5 // pred_fallthru
      _
    %p144 = scmp.lt.s32.totalorder %s9, 2
    // Predicated region
    $region13: #{point_gen_forward.14} parent=5 // pred_check
      %p145 = pneg %p144
    $region14: #{point_gen_forward.14} parent=5 // pred_check_branch
      %147 = sbr.rel (%p145) target = $region16
    $region15: #{point_gen_forward.14} parent=5 // pred_region
      // Predicated region
      $region17: #{point_gen_forward.14} parent=15 // pred_check
        %p148 = pneg %p43
      $region18: #{point_gen_forward.14} parent=15 // pred_check_branch
        %150 = sbr.rel (%p148) target = $region20
      $region19: #{point_gen_forward.14} parent=15 // pred_region
        %s151 = smul.u32 2, %s17
        %p152 = scmp.lt.s32.totalorder %s16, 1
        %s153 = scalar_select %p152, %s16, 1
        %p154 = scmp.lt.s32.totalorder %s151, 1
        %s155 = scalar_select %p154, %s151, 1
        %s156 = smul.addr %s153, 2
        %s157 = sadd.s32 %s155, %s156
        %s158 = smul.addr %s157, 4
        %s159 = scalar_lea.vmem %s0, %s158
        %s160 = smul.u32 2, %s17
      $region20: #{point_gen_forward.14} parent=15 // pred_fallthru
        _
      // Predicated region
      $region21: #{point_gen_forward.14} parent=15 // pred_check
        %p161 = pneg %p69
      $region22: #{point_gen_forward.14} parent=15 // pred_check_branch
        %163 = sbr.rel (%p161) target = $region24
      $region23: #{point_gen_forward.14} parent=15 // pred_region
        %p164 = scmp.lt.s32.totalorder %s16, 1
        %s165 = scalar_select %p164, %s16, 1
        %s166 = smul.addr %s165, 2
        %s167 = smul.addr %s166, 4
        %s168 = scalar_lea.vmem %s1, %s167
      $region24: #{point_gen_forward.14} parent=15 // pred_fallthru
        _
      // Predicated region
      $region25: #{point_gen_forward.14} parent=15 // pred_check
        %p169 = pneg %p95
      $region26: #{point_gen_forward.14} parent=15 // pred_check_branch
        %171 = sbr.rel (%p169) target = $region28
      $region27: #{point_gen_forward.14} parent=15 // pred_region
        %p172 = scmp.lt.s32.totalorder %s16, 1
        %s173 = scalar_select %p172, %s16, 1
        %s174 = scalar_lea.vmem %s2, %s173
      $region28: #{point_gen_forward.14} parent=15 // pred_fallthru
        _
    $region16: #{point_gen_forward.14} parent=5 // pred_fallthru
      _
    %p175 = scmp.le.s32.totalorder 1, %s9
    %p176 = scmp.lt.s32.totalorder %s9, 3
    %p177 = pnand %p175, %p176
    %p178 = pneg %p177
    // Predicated region
    $region29: #{point_gen_forward.14} parent=5 // pred_check
      _
    $region30: #{point_gen_forward.14} parent=5 // pred_check_branch
      %180 = sbr.rel (%p177) target = $region32
    $region31: #{point_gen_forward.14} parent=5 // pred_region
      %s181 = ssub.s32 %s9, 1
      %s182 = smul.u32 2, %s19
      %p183 = scmp.lt.s32.totalorder %s18, 1
      %s184 = scalar_select %p183, %s18, 1
      %p185 = scmp.lt.s32.totalorder %s182, 1
      %s186 = scalar_select %p185, %s182, 1
      %s187 = smul.addr %s184, 2
      %s188 = sadd.s32 %s186, %s187
      %s189 = smul.addr %s188, 4
      %s190 = scalar_lea.vmem %s0, %s189
      %p191 = pneg %p49
      %p192 = pneg %p46
      %p193 = scmp.lt.s32.totalorder %s18, 1
      %s194 = scalar_select %p193, %s18, 1
      %s195 = smul.addr %s194, 2
      %s196 = smul.addr %s195, 4
      %s197 = scalar_lea.vmem %s1, %s196
      %p198 = pneg %p75
      %p199 = pneg %p72
      %p200 = scmp.lt.s32.totalorder %s18, 1
      %s201 = scalar_select %p200, %s18, 1
      %s202 = scalar_lea.vmem %s2, %s201
      %p203 = pneg %p101
      %p204 = pneg %p98
      %p205 = pneg %p129
      %p206 = pneg %p126
      %s207 = smul.u32 2, %s19
      %p208 = scmp.lt.s32.totalorder %s18, 1
      %s209 = scalar_select %p208, %s18, 1
      %p210 = scmp.lt.s32.totalorder %s207, 1
      %s211 = scalar_select %p210, %s207, 1
      %s212 = smul.addr %s209, 2
      %s213 = sadd.s32 %s211, %s212
      %s214 = smul.addr %s213, 8
      %s215 = scalar_lea.vmem %s3, %s214
      %s216 = smul.u32 2, %s19
      %p217 = scmp.lt.s32.totalorder %s18, 1
      %s218 = scalar_select %p217, %s18, 1
      %p219 = scmp.lt.s32.totalorder %s216, 1
      %s220 = scalar_select %p219, %s216, 1
      %s221 = smul.addr %s218, 2
      %s222 = sadd.s32 %s220, %s221
      %s223 = smul.addr %s222, 4
      %s224 = scalar_lea.vmem %s0, %s223
      %s225 = smul.u32 2, %s19
      %p226 = scmp.lt.s32.totalorder %s18, 1
      %s227 = scalar_select %p226, %s18, 1
      %s228 = smul.addr %s227, 2
      %s229 = smul.addr %s228, 4
      %s230 = scalar_lea.vmem %s1, %s229
      %p231 = scmp.lt.s32.totalorder %s18, 1
      %s232 = scalar_select %p231, %s18, 1
      %s233 = scalar_lea.vmem %s2, %s232
      %s234 = smul.u32 2, %s19
      %p235 = scmp.lt.s32.totalorder %s18, 1
      %s236 = scalar_select %p235, %s18, 1
      %p237 = scmp.lt.s32.totalorder %s234, 1
      %s238 = scalar_select %p237, %s234, 1
      %s239 = smul.addr %s236, 2
      %s240 = sadd.s32 %s238, %s239
      %s241 = smul.addr %s240, 8
      %s242 = scalar_lea.vmem %s3, %s241
      %s243 = smul.u32 2, %s19
      %v245 = vld [vmem:[%s224] sm:$0xf]
      %v246 = vld [vmem:[%s224 + $0x4] sm:$0xf]
      %v247 = vld [vmem:[%s230] sm:$0xf]
      %v248 = vld [vmem:[%s230 + $0x4] sm:$0xf]
      %v251 = vunpack.c.l.b16 %v245
      %v252 = vunpack.c.l.b16 %v246
      %v253 = vpack.c.b16 %v252, %v251
      %v256 = vunpack.c.l.b16 %v247
      %v257 = vunpack.c.l.b16 %v248
      %v258 = vpack.c.b16 %v257, %v256
      %vm259 = vcmask 23552
      %v261 = vsel %vm259, %v253, 0
      %v264 = vsel %vm259, %v258, 0
      %266 = vmatprep.subr.bf16.mxu0 0
      %267 = vmatpush1.bf16.xpose.msra.mxu0 %v264
      %268 = vmatprep.subr.bf16.mxu0 0
      %269 = vmatpush1.bf16.xpose.msra.mxu0 0
      %270 = vmatprep.subr.bf16.mxu0 0
      %271 = vmatpush1.bf16.xpose.msra.mxu0 0
      %272 = vmatprep.subr.bf16.mxu0 0
      %273 = vmatpush1.bf16.xpose.msra.mxu0 0
      %274 = vmatprep.subr.bf16.mxu0 0
      %275 = vmatpush1.bf16.xpose.msra.mxu0 0
      %276 = vmatprep.subr.bf16.mxu0 0
      %277 = vmatpush1.bf16.xpose.msra.mxu0 0
      %278 = vmatprep.subr.bf16.mxu0 0
      %279 = vmatpush1.bf16.xpose.msra.mxu0 0
      %280 = vmatprep.subr.bf16.mxu0 0
      %281 = vmatpush1.bf16.xpose.msra.mxu0 0
      %282 = vmatprep.subr.bf16.mxu0 0
      %283 = vmatpush1.bf16.xpose.msra.mxu0 0
      %284 = vmatprep.subr.bf16.mxu0 0
      %285 = vmatpush1.bf16.xpose.msra.mxu0 0
      %286 = vmatprep.subr.bf16.mxu0 0
      %287 = vmatpush1.bf16.xpose.msra.mxu0 0
      %288 = vmatprep.subr.bf16.mxu0 0
      %289 = vmatpush1.bf16.xpose.msra.mxu0 0
      %290 = vmatprep.subr.bf16.mxu0 0
      %291 = vmatpush1.bf16.xpose.msra.mxu0 0
      %292 = vmatprep.subr.bf16.mxu0 0
      %293 = vmatpush1.bf16.xpose.msra.mxu0 0
      %294 = vmatprep.subr.bf16.mxu0 0
      %295 = vmatpush1.bf16.xpose.msra.mxu0 0
      %296 = vmatprep.subr.bf16.mxu0 0
      %297 = vmatpush1.bf16.xpose.msra.mxu0 0
      %298 = vmatprep.mubr.bf16.mxu0 0
      %299 = vmatmul.mubr.bf16.gmra.mrb[0].mxu0 %v261
      %v300 = vpop.f32.mrb[0].mxu0
      %v301 = vadd.f32 0.0, %v300
      %v302 = vpop.f32.mrb[0].mxu0
      %v303 = vpop.f32.mrb[0].mxu0
      %v304 = vadd.f32 0.0, %v303
      %v305 = vpop.f32.mrb[0].mxu0
      %306 = vdwg.mxu0
      %v307 = vmul.f32 %v301, 2.0
      %v308 = vmul.f32 %v304, 2.0
      %v309 = vld [vmem:[%s233] sm:$0x1]
      %v311 = vlaneseq
      %v312 = vshrl.u32 %v311, 7
      %v313 = vsub.s32 0, %v312
      %v314 = vrot.slane %v309, %v313
      %v316 = vsub.f32 %v307, %v314
      %v317 = vsub.f32 %v308, %v314
      %vm318 = vcmask 130048
      %319 = vst.msk [vmem:[%s242] sm:$0xff] %vm318, %v316
      %320 = vst.msk [vmem:[%s242 + $0x8] sm:$0xff] %vm318, %v317
      %s321 = smul.u32 2, %s19
      %p322 = scmp.lt.s32.totalorder %s18, 1
      %s323 = scalar_select %p322, %s18, 1
      %p324 = scmp.lt.s32.totalorder %s321, 1
      %s325 = scalar_select %p324, %s321, 1
      %s326 = smul.addr %s323, 2
      %s327 = sadd.s32 %s325, %s326
      %s328 = smul.addr %s327, 8
      %s329 = scalar_lea.vmem %s3, %s328
      // Predicated region
      $region33: #{point_gen_forward.14} parent=31 // pred_check
        %p330 = pneg %p126
      $region34: #{point_gen_forward.14} parent=31 // pred_check_branch
        %332 = sbr.rel (%p330) target = $region36
      $region35: #{point_gen_forward.14} parent=31 // pred_region
        %s333 = smul.u32 2, %s19
      $region36: #{point_gen_forward.14} parent=31 // pred_fallthru
        _
    $region32: #{point_gen_forward.14} parent=5 // pred_fallthru
      _
    %p334 = scmp.le.s32.totalorder 2, %s9
    // Predicated region
    $region37: #{point_gen_forward.14} parent=5 // pred_check
      %p335 = pneg %p334
    $region38: #{point_gen_forward.14} parent=5 // pred_check_branch
      %337 = sbr.rel (%p335) target = $region40
    $region39: #{point_gen_forward.14} parent=5 // pred_region
      %s338 = ssub.s32 %s9, 2
      // Predicated region
      $region41: #{point_gen_forward.14} parent=39 // pred_check
        %p339 = pneg %p132
      $region42: #{point_gen_forward.14} parent=39 // pred_check_branch
        %341 = sbr.rel (%p339) target = $region44
      $region43: #{point_gen_forward.14} parent=39 // pred_region
        %s342 = smul.u32 2, %s21
        %p343 = scmp.lt.s32.totalorder %s20, 1
        %s344 = scalar_select %p343, %s20, 1
        %p345 = scmp.lt.s32.totalorder %s342, 1
        %s346 = scalar_select %p345, %s342, 1
        %s347 = smul.addr %s344, 2
        %s348 = sadd.s32 %s346, %s347
        %s349 = smul.addr %s348, 8
        %s350 = scalar_lea.vmem %s3, %s349
      $region44: #{point_gen_forward.14} parent=39 // pred_fallthru
        _
    $region40: #{point_gen_forward.14} parent=5 // pred_fallthru
      _
  $region6: #{point_gen_forward.14} parent=0 // loop_footer
    %s13 = sadd.s32 1, %s9
  $region7: #{point_gen_forward.14} parent=0 // loop_footer_branch
    %8 = sbr.rel target = $region3
  $region8: #{point_gen_forward.14} parent=0 // loop_exit
    _

// kernel: point_gen_forward.15
$region0: #{point_gen_forward.15}
  #allocation0 [shape = 'u32[]', space=smem, size = 0x4, offset = 0x4, fixed_abs, tag = 'smem constant byte address 0x4 - core index']
  #allocation1 [shape = 'u32[144,128]{1,0:T(1,128)}', space=vmem, size = 0x12000, scoped, tag = 'internal scratch']
  #allocation2 [shape = 'f32[32,64]{1,0:T(8,128)}', space=vmem, size = 0x4000, scoped, tag = 'scratch operand']
  #allocation3 [shape = 'f32[32,64]{1,0:T(8,128)}', space=vmem, size = 0x4000, scoped, tag = 'scratch operand']
  #allocation4 [shape = 'f32[1,64]{1,0:T(1,128)}', space=vmem, size = 0x200, scoped, tag = 'scratch operand']
  #allocation5 [shape = 'f32[1,64]{1,0:T(1,128)}', space=vmem, size = 0x200, scoped, tag = 'scratch operand']
  %s0 = inlined_call_operand.vmem [shape: bf16[4,32,3], index: 0, kind: input, shape index: {}]
  %s1 = inlined_call_operand.vmem [shape: bf16[32,3], index: 1, kind: input, shape index: {}]
  %s2 = inlined_call_operand.vmem [shape: bf16[3,64], index: 2, kind: input, shape index: {}]
  %s3 = inlined_call_operand.vmem [shape: bf16[3,64], index: 3, kind: input, shape index: {}]
  %s4 = inlined_call_operand.vmem [shape: f32[32,64], index: 4, kind: output, shape index: {0}]
  %s5 = inlined_call_operand.vmem [shape: f32[1,2,64], index: 5, kind: output, shape index: {1}]
  %6 = xla_tuple %s4, %s5
  %s7 = sld [smem:[#allocation0]]
  $region65: #{point_gen_forward.15} parent=0
    _
  %s9 = ssub.s32 1, %s7
  %s10 = scalar_select 0, %s9, %s7
  loop: start=0, step=1, limit=6
  $region2: #{point_gen_forward.15} parent=0 // loop_pre_header
    _
  $region3: #{point_gen_forward.15} parent=0 // loop_header
    %s12 = sphi 0, %s16
    %p13 = scmp.ge.s32.totalorder %s12, 6
    %s19 = sphi 0, %s31
    %s20 = sphi 0, %s27
    %s21 = sphi 0, %s19
    %s22 = sphi 0, %s20
    %s23 = sphi 0, %s21
    %s24 = sphi 0, %s22
    %s36 = sphi 0, %s38
    %s39 = sphi 0, %s36
    %s40 = sphi 0, %s39
    %s56 = sphi 0, %s40
    %s62 = sphi 0, %s64
    %s65 = sphi 0, %s62
    %s66 = sphi 0, %s65
    %s82 = sphi 0, %s66
    %s86 = sphi 0, %s86
    %s88 = sphi 0, %s86
    %s89 = sphi 0, %s88
    %s103 = sphi 0, %s89
    %s107 = sphi 0, %s107
    %s109 = sphi 0, %s107
    %s110 = sphi 0, %s109
    %s124 = sphi 0, %s110
    %s130 = sphi 0, %s132
    %s133 = sphi 0, %s130
    %s134 = sphi 0, %s133
    %s150 = sphi 0, %s134
    %s156 = sphi 0, %s158
    %s159 = sphi 0, %s156
    %s160 = sphi 0, %s159
    %s176 = sphi 0, %s160
  $region4: #{point_gen_forward.15} parent=0 // loop_header_branch
    %15 = sbr.rel (%p13) target = $region8
  $region5: #{point_gen_forward.15} parent=0 // loop_body
    %s17 = ssub.s32 %s12, 1
    %s18 = ssub.s32 %s12, 2
    %s25 = sadd.s32 1, %s20
    %p26 = scmp.ge.s32.totalorder %s25, 4
    %s27 = scalar_select %p26, 0, %s25
    %s28 = sadd.s32 1, %s19
    %s29 = scalar_select %p26, %s28, %s19
    %p30 = scmp.ge.s32.totalorder %s29, 1
    %s31 = scalar_select %p30, 0, %s29
    %s32 = ssub.s32 %s20, %s27
    %s33 = ssub.s32 %s19, %s31
    %s34 = sor.u32 %s32, %s33
    %p35 = scmp.eq.s32.totalorder %s34, 0
    %s37 = sadd.s32 %s36, 1
    %s38 = scalar_select %p35, %s36, %s37
    %p41 = pneg %p35
    %p42 = scmp.eq.s32.totalorder %s12, 3
    %p43 = por %p41, %p42
    %p44 = scmp.ne.s32.totalorder %s36, %s39
    %p45 = scmp.eq.s32.totalorder %s12, 0
    %p46 = por %p44, %p45
    %p47 = scmp.ne.s32.totalorder %s36, %s39
    %p48 = scmp.eq.s32.totalorder %s17, 3
    %p49 = por %p47, %p48
    %p50 = scmp.ne.s32.totalorder %s39, %s40
    %p51 = scmp.eq.s32.totalorder %s17, 0
    %p52 = por %p50, %p51
    %p53 = scmp.ne.s32.totalorder %s39, %s40
    %p54 = scmp.eq.s32.totalorder %s18, 3
    %p55 = por %p53, %p54
    %p57 = scmp.ne.s32.totalorder %s40, %s56
    %p58 = scmp.eq.s32.totalorder %s18, 0
    %p59 = por %p57, %p58
    %s60 = ssub.s32 %s19, %s31
    %p61 = scmp.eq.s32.totalorder %s60, 0
    %s63 = sadd.s32 %s62, 1
    %s64 = scalar_select %p61, %s62, %s63
    %p67 = pneg %p61
    %p68 = scmp.eq.s32.totalorder %s12, 3
    %p69 = por %p67, %p68
    %p70 = scmp.ne.s32.totalorder %s62, %s65
    %p71 = scmp.eq.s32.totalorder %s12, 0
    %p72 = por %p70, %p71
    %p73 = scmp.ne.s32.totalorder %s62, %s65
    %p74 = scmp.eq.s32.totalorder %s17, 3
    %p75 = por %p73, %p74
    %p76 = scmp.ne.s32.totalorder %s65, %s66
    %p77 = scmp.eq.s32.totalorder %s17, 0
    %p78 = por %p76, %p77
    %p79 = scmp.ne.s32.totalorder %s65, %s66
    %p80 = scmp.eq.s32.totalorder %s18, 3
    %p81 = por %p79, %p80
    %p83 = scmp.ne.s32.totalorder %s66, %s82
    %p84 = scmp.eq.s32.totalorder %s18, 0
    %p85 = por %p83, %p84
    %s87 = sadd.s32 %s86, 1
    %p90 = scmp.eq.s32.totalorder %s12, 3
    %p91 = scmp.ne.s32.totalorder %s86, %s88
    %p92 = scmp.eq.s32.totalorder %s12, 0
    %p93 = por %p91, %p92
    %p94 = scmp.ne.s32.totalorder %s86, %s88
    %p95 = scmp.eq.s32.totalorder %s17, 3
    %p96 = por %p94, %p95
    %p97 = scmp.ne.s32.totalorder %s88, %s89
    %p98 = scmp.eq.s32.totalorder %s17, 0
    %p99 = por %p97, %p98
    %p100 = scmp.ne.s32.totalorder %s88, %s89
    %p101 = scmp.eq.s32.totalorder %s18, 3
    %p102 = por %p100, %p101
    %p104 = scmp.ne.s32.totalorder %s89, %s103
    %p105 = scmp.eq.s32.totalorder %s18, 0
    %p106 = por %p104, %p105
    %s108 = sadd.s32 %s107, 1
    %p111 = scmp.eq.s32.totalorder %s12, 3
    %p112 = scmp.ne.s32.totalorder %s107, %s109
    %p113 = scmp.eq.s32.totalorder %s12, 0
    %p114 = por %p112, %p113
    %p115 = scmp.ne.s32.totalorder %s107, %s109
    %p116 = scmp.eq.s32.totalorder %s17, 3
    %p117 = por %p115, %p116
    %p118 = scmp.ne.s32.totalorder %s109, %s110
    %p119 = scmp.eq.s32.totalorder %s17, 0
    %p120 = por %p118, %p119
    %p121 = scmp.ne.s32.totalorder %s109, %s110
    %p122 = scmp.eq.s32.totalorder %s18, 3
    %p123 = por %p121, %p122
    %p125 = scmp.ne.s32.totalorder %s110, %s124
    %p126 = scmp.eq.s32.totalorder %s18, 0
    %p127 = por %p125, %p126
    %s128 = ssub.s32 %s19, %s31
    %p129 = scmp.eq.s32.totalorder %s128, 0
    %s131 = sadd.s32 %s130, 1
    %s132 = scalar_select %p129, %s130, %s131
    %p135 = pneg %p129
    %p136 = scmp.eq.s32.totalorder %s12, 3
    %p137 = por %p135, %p136
    %p138 = scmp.ne.s32.totalorder %s130, %s133
    %p139 = scmp.eq.s32.totalorder %s12, 0
    %p140 = por %p138, %p139
    %p141 = scmp.ne.s32.totalorder %s130, %s133
    %p142 = scmp.eq.s32.totalorder %s17, 3
    %p143 = por %p141, %p142
    %p144 = scmp.ne.s32.totalorder %s133, %s134
    %p145 = scmp.eq.s32.totalorder %s17, 0
    %p146 = por %p144, %p145
    %p147 = scmp.ne.s32.totalorder %s133, %s134
    %p148 = scmp.eq.s32.totalorder %s18, 3
    %p149 = por %p147, %p148
    %p151 = scmp.ne.s32.totalorder %s134, %s150
    %p152 = scmp.eq.s32.totalorder %s18, 0
    %p153 = por %p151, %p152
    %s154 = ssub.s32 %s19, %s31
    %p155 = scmp.eq.s32.totalorder %s154, 0
    %s157 = sadd.s32 %s156, 1
    %s158 = scalar_select %p155, %s156, %s157
    %p161 = pneg %p155
    %p162 = scmp.eq.s32.totalorder %s12, 3
    %p163 = por %p161, %p162
    %p164 = scmp.ne.s32.totalorder %s156, %s159
    %p165 = scmp.eq.s32.totalorder %s12, 0
    %p166 = por %p164, %p165
    %p167 = scmp.ne.s32.totalorder %s156, %s159
    %p168 = scmp.eq.s32.totalorder %s17, 3
    %p169 = por %p167, %p168
    %p170 = scmp.ne.s32.totalorder %s159, %s160
    %p171 = scmp.eq.s32.totalorder %s17, 0
    %p172 = por %p170, %p171
    %p173 = scmp.ne.s32.totalorder %s159, %s160
    %p174 = scmp.eq.s32.totalorder %s18, 3
    %p175 = por %p173, %p174
    %p177 = scmp.ne.s32.totalorder %s160, %s176
    %p178 = scmp.eq.s32.totalorder %s18, 0
    %p179 = por %p177, %p178
    %p180 = scmp.le.s32.totalorder 1, %s12
    %p181 = scmp.lt.s32.totalorder %s12, 5
    %p182 = pnand %p180, %p181
    %p183 = pneg %p182
    // Predicated region
    $region9: #{point_gen_forward.15} parent=5 // pred_check
      _
    $region10: #{point_gen_forward.15} parent=5 // pred_check_branch
      %185 = sbr.rel (%p182) target = $region12
    $region11: #{point_gen_forward.15} parent=5 // pred_region
      %s186 = ssub.s32 %s12, 1
      // Predicated region
      $region13: #{point_gen_forward.15} parent=11 // pred_check
        %p187 = pneg %p78
      $region14: #{point_gen_forward.15} parent=11 // pred_check_branch
        %189 = sbr.rel (%p187) target = $region16
      $region15: #{point_gen_forward.15} parent=11 // pred_region
        %s190 = smul.u32 4, %s21
        %p191 = scmp.lt.s32.totalorder %s190, 3
        %s192 = scalar_select %p191, %s190, 3
        %s193 = smul.addr %s192, 4
        %s194 = scalar_lea.vmem %s1, %s193
        %s195 = smul.u32 4, %s21
      $region16: #{point_gen_forward.15} parent=11 // pred_fallthru
        _
      // Predicated region
      $region17: #{point_gen_forward.15} parent=11 // pred_check
        %p196 = pneg %p99
      $region18: #{point_gen_forward.15} parent=11 // pred_check_branch
        %198 = sbr.rel (%p196) target = $region20
      $region19: #{point_gen_forward.15} parent=11 // pred_region
        _
      $region20: #{point_gen_forward.15} parent=11 // pred_fallthru
        _
      // Predicated region
      $region21: #{point_gen_forward.15} parent=11 // pred_check
        %p199 = pneg %p120
      $region22: #{point_gen_forward.15} parent=11 // pred_check_branch
        %201 = sbr.rel (%p199) target = $region24
      $region23: #{point_gen_forward.15} parent=11 // pred_region
        _
      $region24: #{point_gen_forward.15} parent=11 // pred_fallthru
        _
    $region12: #{point_gen_forward.15} parent=5 // pred_fallthru
      _
    %p202 = scmp.lt.s32.totalorder %s12, 4
    // Predicated region
    $region25: #{point_gen_forward.15} parent=5 // pred_check
      %p203 = pneg %p202
    $region26: #{point_gen_forward.15} parent=5 // pred_check_branch
      %205 = sbr.rel (%p203) target = $region28
    $region27: #{point_gen_forward.15} parent=5 // pred_region
      // Predicated region
      $region29: #{point_gen_forward.15} parent=27 // pred_check
        %p206 = pneg %p46
      $region30: #{point_gen_forward.15} parent=27 // pred_check_branch
        %208 = sbr.rel (%p206) target = $region32
      $region31: #{point_gen_forward.15} parent=27 // pred_region
        %s209 = smul.u32 4, %s19
        %p210 = scmp.lt.s32.totalorder %s20, 3
        %s211 = scalar_select %p210, %s20, 3
        %p212 = scmp.lt.s32.totalorder %s209, 3
        %s213 = scalar_select %p212, %s209, 3
        %s214 = smul.addr %s211, 4
        %s215 = sadd.s32 %s213, %s214
        %s216 = smul.addr %s215, 4
        %s217 = scalar_lea.vmem %s0, %s216
        %s218 = smul.u32 4, %s19
      $region32: #{point_gen_forward.15} parent=27 // pred_fallthru
        _
    $region28: #{point_gen_forward.15} parent=5 // pred_fallthru
      _
    %p219 = scmp.le.s32.totalorder 1, %s12
    %p220 = scmp.lt.s32.totalorder %s12, 5
    %p221 = pnand %p219, %p220
    %p222 = pneg %p221
    // Predicated region
    $region33: #{point_gen_forward.15} parent=5 // pred_check
      _
    $region34: #{point_gen_forward.15} parent=5 // pred_check_branch
      %224 = sbr.rel (%p221) target = $region36
    $region35: #{point_gen_forward.15} parent=5 // pred_region
      %s225 = ssub.s32 %s12, 1
      %s226 = smul.u32 4, %s21
      %p227 = scmp.lt.s32.totalorder %s22, 3
      %s228 = scalar_select %p227, %s22, 3
      %p229 = scmp.lt.s32.totalorder %s226, 3
      %s230 = scalar_select %p229, %s226, 3
      %s231 = smul.addr %s228, 4
      %s232 = sadd.s32 %s230, %s231
      %s233 = smul.addr %s232, 4
      %s234 = scalar_lea.vmem %s0, %s233
      %p235 = pneg %p52
      %p236 = pneg %p49
      %s237 = smul.u32 4, %s21
      %p238 = scmp.lt.s32.totalorder %s237, 3
      %s239 = scalar_select %p238, %s237, 3
      %s240 = smul.addr %s239, 4
      %s241 = scalar_lea.vmem %s1, %s240
      %p242 = pneg %p78
      %p243 = pneg %p75
      %p244 = pneg %p99
      %p245 = pneg %p96
      %p246 = pneg %p120
      %p247 = pneg %p117
      %p248 = pneg %p146
      %p249 = pneg %p143
      %s250 = smul.u32 4, %s21
      %p251 = scmp.lt.s32.totalorder %s250, 3
      %s252 = scalar_select %p251, %s250, 3
      %s253 = smul.addr %s252, 8
      %s254 = scalar_lea.vmem %s4, %s253
      %p255 = pneg %p172
      %p256 = pneg %p169
      %p257 = scmp.lt.s32.totalorder %s21, 0
      %s258 = scalar_select %p257, %s21, 0
      %s259 = smul.addr %s258, 2
      %s260 = scalar_lea.vmem %s5, %s259
      %s261 = smul.u32 4, %s21
      %p262 = scmp.lt.s32.totalorder %s22, 3
      %s263 = scalar_select %p262, %s22, 3
      %p264 = scmp.lt.s32.totalorder %s261, 3
      %s265 = scalar_select %p264, %s261, 3
      %s266 = smul.addr %s263, 4
      %s267 = sadd.s32 %s265, %s266
      %s268 = smul.addr %s267, 4
      %s269 = scalar_lea.vmem %s0, %s268
      %s270 = smul.u32 4, %s21
      %s271 = smul.u32 4, %s21
      %p272 = scmp.lt.s32.totalorder %s271, 3
      %s273 = scalar_select %p272, %s271, 3
      %s274 = smul.addr %s273, 4
      %s275 = scalar_lea.vmem %s1, %s274
      %s276 = smul.u32 4, %s21
      %s277 = smul.u32 4, %s21
      %p278 = scmp.lt.s32.totalorder %s277, 3
      %s279 = scalar_select %p278, %s277, 3
      %s280 = smul.addr %s279, 8
      %s281 = scalar_lea.vmem %s4, %s280
      %s282 = smul.u32 4, %s21
      %p283 = scmp.lt.s32.totalorder %s21, 0
      %s284 = scalar_select %p283, %s21, 0
      %s285 = smul.addr %s284, 2
      %s286 = scalar_lea.vmem %s5, %s285
      %p288 = scmp.eq.s32.totalorder %s22, 0
      // Predicated region
      $region37: #{point_gen_forward.15} parent=35 // pred_check
        %p289 = pneg %p288
      $region38: #{point_gen_forward.15} parent=35 // pred_check_branch
        %291 = sbr.rel (%p289) target = $region40
      $region39: #{point_gen_forward.15} parent=35 // pred_region
        %v292 = vld [vmem:[%s275] sm:$0xf]
        %v293 = vld [vmem:[%s275 + $0x4] sm:$0xf]
        %v294 = vld [vmem:[%s275 + $0x8] sm:$0xf]
        %v295 = vld [vmem:[%s275 + $0xc] sm:$0xf]
        %v296 = vld [vmem:[%s3] sm:$0x3]
        %v301 = vunpack.c.l.b16 %v292
        %v302 = vunpack.c.l.b16 %v293
        %v303 = vunpack.c.l.b16 %v294
        %v304 = vunpack.c.l.b16 %v295
        %v305 = vpack.c.b16 %v302, %v301
        %v306 = vpack.c.b16 %v304, %v303
        %vm307 = vcmask 23552
        %v309 = vsel %vm307, %v305, 0
        %v312 = vsel %vm307, %v306, 0
        %vm314 = vcmask 1040384
        %vm315 = vcmask 1041408
        %v316 = vsel %vm314, 4294967295, 65535
        %v317 = vsel %vm315, %v316, 0
        %v319 = vand.u32 %v296, %v317
        %321 = vmatprep.subr.bf16.mxu0 0
        %322 = vmatpush1.bf16.msra.mxu0 %v319
        %323 = vmatprep.subr.bf16.mxu0 0
        %324 = vmatpush1.bf16.msra.mxu0 0
        %325 = vmatprep.subr.bf16.mxu0 0
        %326 = vmatpush1.bf16.msra.mxu0 0
        %327 = vmatprep.subr.bf16.mxu0 0
        %328 = vmatpush1.bf16.msra.mxu0 0
        %329 = vmatprep.subr.bf16.mxu0 0
        %330 = vmatpush1.bf16.msra.mxu0 0
        %331 = vmatprep.subr.bf16.mxu0 0
        %332 = vmatpush1.bf16.msra.mxu0 0
        %333 = vmatprep.subr.bf16.mxu0 0
        %334 = vmatpush1.bf16.msra.mxu0 0
        %335 = vmatprep.subr.bf16.mxu0 0
        %336 = vmatpush1.bf16.msra.mxu0 0
        %337 = vmatprep.subr.bf16.mxu0 0
        %338 = vmatpush1.bf16.msra.mxu0 0
        %339 = vmatprep.subr.bf16.mxu0 0
        %340 = vmatpush1.bf16.msra.mxu0 0
        %341 = vmatprep.subr.bf16.mxu0 0
        %342 = vmatpush1.bf16.msra.mxu0 0
        %343 = vmatprep.subr.bf16.mxu0 0
        %344 = vmatpush1.bf16.msra.mxu0 0
        %345 = vmatprep.subr.bf16.mxu0 0
        %346 = vmatpush1.bf16.msra.mxu0 0
        %347 = vmatprep.subr.bf16.mxu0 0
        %348 = vmatpush1.bf16.msra.mxu0 0
        %349 = vmatprep.subr.bf16.mxu0 0
        %350 = vmatpush1.bf16.msra.mxu0 0
        %351 = vmatprep.subr.bf16.mxu0 0
        %352 = vmatpush1.bf16.msra.mxu0 0
        %353 = vmatprep.mubr.bf16.mxu0 0
        %354 = vmatmul.mubr.bf16.gmra.mrb[0].mxu0 %v309
        %v355 = vpop.f32.mrb[0].mxu0
        %v356 = vadd.f32 0.0, %v355
        %v357 = vpop.f32.mrb[0].mxu0
        %v358 = vpop.f32.mrb[0].mxu0
        %v359 = vadd.f32 0.0, %v358
        %v360 = vpop.f32.mrb[0].mxu0
        %361 = vmatprep.mubr.bf16.mxu0 0
        %362 = vmatmul.mubr.bf16.gmra.mrb[0].mxu0 %v312
        %v363 = vpop.f32.mrb[0].mxu0
        %v364 = vadd.f32 0.0, %v363
        %v365 = vpop.f32.mrb[0].mxu0
        %v366 = vpop.f32.mrb[0].mxu0
        %v367 = vadd.f32 0.0, %v366
        %v368 = vpop.f32.mrb[0].mxu0
        %369 = vdwg.mxu0
        %vm370 = vcmask 523264
        %371 = vst.msk [vmem:[#allocation2] sm:$0xff] %vm370, %v356
        %372 = vst.msk [vmem:[#allocation2 + $0x8] sm:$0xff] %vm370, %v359
        %373 = vst.msk [vmem:[#allocation2 + $0x10] sm:$0xff] %vm370, %v364
        %374 = vst.msk [vmem:[#allocation2 + $0x18] sm:$0xff] %vm370, %v367
        %375 = vst.msk [vmem:[#allocation3] sm:$0xff] %vm370, -inf
        %376 = vst.msk [vmem:[#allocation3 + $0x8] sm:$0xff] %vm370, -inf
        %377 = vst.msk [vmem:[#allocation3 + $0x10] sm:$0xff] %vm370, -inf
        %378 = vst.msk [vmem:[#allocation3 + $0x18] sm:$0xff] %vm370, -inf
        %vm379 = vcmask 516096
        %380 = vst.msk [vmem:[#allocation4] sm:$0x1] %vm379, 0.0
        %381 = vst.msk [vmem:[#allocation5] sm:$0x1] %vm379, 0.0
      $region40: #{point_gen_forward.15} parent=35 // pred_fallthru
        _
      %v382 = vld [vmem:[%s269] sm:$0xf]
      %v383 = vld [vmem:[%s269 + $0x4] sm:$0xf]
      %v384 = vld [vmem:[%s269 + $0x8] sm:$0xf]
      %v385 = vld [vmem:[%s269 + $0xc] sm:$0xf]
      %v386 = vld [vmem:[%s2] sm:$0x3]
      %v387 = vld [vmem:[#allocation2] sm:$0xff]
      %v388 = vld [vmem:[#allocation2 + $0x8] sm:$0xff]
      %v389 = vld [vmem:[#allocation2 + $0x10] sm:$0xff]
      %v390 = vld [vmem:[#allocation2 + $0x18] sm:$0xff]
      %v395 = vunpack.c.l.b16 %v382
      %v396 = vunpack.c.l.b16 %v383
      %v397 = vunpack.c.l.b16 %v384
      %v398 = vunpack.c.l.b16 %v385
      %v399 = vpack.c.b16 %v396, %v395
      %v400 = vpack.c.b16 %v398, %v397
      %vm401 = vcmask 23552
      %v403 = vsel %vm401, %v399, 0
      %v406 = vsel %vm401, %v400, 0
      %vm408 = vcmask 1040384
      %vm409 = vcmask 1041408
      %v410 = vsel %vm408, 4294967295, 65535
      %v411 = vsel %vm409, %v410, 0
      %v413 = vand.u32 %v386, %v411
      %415 = vmatprep.subr.bf16.mxu0 0
      %416 = vmatpush1.bf16.msra.mxu0 %v413
      %417 = vmatprep.subr.bf16.mxu0 0
      %418 = vmatpush1.bf16.msra.mxu0 0
      %419 = vmatprep.subr.bf16.mxu0 0
      %420 = vmatpush1.bf16.msra.mxu0 0
      %421 = vmatprep.subr.bf16.mxu0 0
      %422 = vmatpush1.bf16.msra.mxu0 0
      %423 = vmatprep.subr.bf16.mxu0 0
      %424 = vmatpush1.bf16.msra.mxu0 0
      %425 = vmatprep.subr.bf16.mxu0 0
      %426 = vmatpush1.bf16.msra.mxu0 0
      %427 = vmatprep.subr.bf16.mxu0 0
      %428 = vmatpush1.bf16.msra.mxu0 0
      %429 = vmatprep.subr.bf16.mxu0 0
      %430 = vmatpush1.bf16.msra.mxu0 0
      %431 = vmatprep.subr.bf16.mxu0 0
      %432 = vmatpush1.bf16.msra.mxu0 0
      %433 = vmatprep.subr.bf16.mxu0 0
      %434 = vmatpush1.bf16.msra.mxu0 0
      %435 = vmatprep.subr.bf16.mxu0 0
      %436 = vmatpush1.bf16.msra.mxu0 0
      %437 = vmatprep.subr.bf16.mxu0 0
      %438 = vmatpush1.bf16.msra.mxu0 0
      %439 = vmatprep.subr.bf16.mxu0 0
      %440 = vmatpush1.bf16.msra.mxu0 0
      %441 = vmatprep.subr.bf16.mxu0 0
      %442 = vmatpush1.bf16.msra.mxu0 0
      %443 = vmatprep.subr.bf16.mxu0 0
      %444 = vmatpush1.bf16.msra.mxu0 0
      %445 = vmatprep.subr.bf16.mxu0 0
      %446 = vmatpush1.bf16.msra.mxu0 0
      %447 = vmatprep.mubr.bf16.mxu0 0
      %448 = vmatmul.mubr.bf16.gmra.mrb[0].mxu0 %v403
      %v449 = vpop.f32.mrb[0].mxu0
      %v450 = vadd.f32 %v387, %v449
      %v451 = vpop.f32.mrb[0].mxu0
      %v452 = vpop.f32.mrb[0].mxu0
      %v453 = vadd.f32 %v388, %v452
      %v454 = vpop.f32.mrb[0].mxu0
      %455 = vmatprep.mubr.bf16.mxu0 0
      %456 = vmatmul.mubr.bf16.gmra.mrb[0].mxu0 %v406
      %v457 = vpop.f32.mrb[0].mxu0
      %v458 = vadd.f32 %v389, %v457
      %v459 = vpop.f32.mrb[0].mxu0
      %v460 = vpop.f32.mrb[0].mxu0
      %v461 = vadd.f32 %v390, %v460
      %v462 = vpop.f32.mrb[0].mxu0
      %463 = vdwg.mxu0
      %v464 = vld [vmem:[#allocation3] sm:$0xff]
      %v465 = vld [vmem:[#allocation3 + $0x8] sm:$0xff]
      %v466 = vld [vmem:[#allocation3 + $0x10] sm:$0xff]
      %v467 = vld [vmem:[#allocation3 + $0x18] sm:$0xff]
      %v468 = vmax.f32 %v464, %v450
      %v469 = vmax.f32 %v465, %v453
      %v470 = vmax.f32 %v466, %v458
      %v471 = vmax.f32 %v467, %v461
      %vm472 = vcmask 523264
      %473 = vst.msk [vmem:[#allocation3] sm:$0xff] %vm472, %v468
      %474 = vst.msk [vmem:[#allocation3 + $0x8] sm:$0xff] %vm472, %v469
      %475 = vst.msk [vmem:[#allocation3 + $0x10] sm:$0xff] %vm472, %v470
      %476 = vst.msk [vmem:[#allocation3 + $0x18] sm:$0xff] %vm472, %v471
      %v477 = vld [vmem:[#allocation4] sm:$0x1]
      %v478 = vsel %vm472, %v450, 0.0
      %v479 = vsel %vm472, %v453, 0.0
      %v480 = vadd.f32 %v478, %v479
      %v481 = vsel %vm472, %v458, 0.0
      %v482 = vadd.f32 %v480, %v481
      %v483 = vsel %vm472, %v461, 0.0
      %v484 = vadd.f32 %v482, %v483
      %v485 = vrot.slane %v484, 4
      %v486 = vadd.f32 %v484, %v485
      %v487 = vrot.slane %v486, 2
      %v488 = vadd.f32 %v486, %v487
      %v489 = vrot.slane %v488, 1
      %v490 = vadd.f32 %v488, %v489
      %v491 = vadd.f32 %v477, %v490
      %vm492 = vcmask 516096
      %493 = vst.msk [vmem:[#allocation4] sm:$0x1] %vm492, %v491
      %v494 = vld [vmem:[#allocation5] sm:$0x1]
      %v495 = vmul.f32 %v450, %v450
      %v496 = vmul.f32 %v453, %v453
      %v497 = vmul.f32 %v458, %v458
      %v498 = vmul.f32 %v461, %v461
      %v499 = vsel %vm472, %v495, 0.0
      %v500 = vsel %vm472, %v496, 0.0
      %v501 = vadd.f32 %v499, %v500
      %v502 = vsel %vm472, %v497, 0.0
      %v503 = vadd.f32 %v501, %v502
      %v504 = vsel %vm472, %v498, 0.0
      %v505 = vadd.f32 %v503, %v504
      %v506 = vrot.slane %v505, 4
      %v507 = vadd.f32 %v505, %v506
      %v508 = vrot.slane %v507, 2
      %v509 = vadd.f32 %v507, %v508
      %v510 = vrot.slane %v509, 1
      %v511 = vadd.f32 %v509, %v510
      %v512 = vadd.f32 %v494, %v511
      %513 = vst.msk [vmem:[#allocation5] sm:$0x1] %vm492, %v512
      %p514 = scmp.eq.s32.totalorder %s22, 3
      // Predicated region
      $region41: #{point_gen_forward.15} parent=35 // pred_check
        %p515 = pneg %p514
      $region42: #{point_gen_forward.15} parent=35 // pred_check_branch
        %517 = sbr.rel (%p515) target = $region44
      $region43: #{point_gen_forward.15} parent=35 // pred_region
        %v518 = vld [vmem:[#allocation3] sm:$0xff]
        %v519 = vld [vmem:[#allocation3 + $0x8] sm:$0xff]
        %v520 = vld [vmem:[#allocation3 + $0x10] sm:$0xff]
        %v521 = vld [vmem:[#allocation3 + $0x18] sm:$0xff]
        %522 = vst.msk [vmem:[%s281] sm:$0xff] %vm472, %v518
        %523 = vst.msk [vmem:[%s281 + $0x8] sm:$0xff] %vm472, %v519
        %524 = vst.msk [vmem:[%s281 + $0x10] sm:$0xff] %vm472, %v520
        %525 = vst.msk [vmem:[%s281 + $0x18] sm:$0xff] %vm472, %v521
        %v526 = vld [vmem:[#allocation4] sm:$0x1]
        %527 = vst.msk [vmem:[%s286] sm:$0x1] %vm492, %v526
        %v528 = vld [vmem:[#allocation5] sm:$0x1]
        %529 = vst.msk [vmem:[%s286 + $0x1] sm:$0x1] %vm492, %v528
      $region44: #{point_gen_forward.15} parent=35 // pred_fallthru
        _
      %s530 = smul.u32 4, %s21
      %p531 = scmp.lt.s32.totalorder %s530, 3
      %s532 = scalar_select %p531, %s530, 3
      %s533 = smul.addr %s532, 8
      %s534 = scalar_lea.vmem %s4, %s533
      %p535 = scmp.lt.s32.totalorder %s21, 0
      %s536 = scalar_select %p535, %s21, 0
      %s537 = smul.addr %s536, 2
      %s538 = scalar_lea.vmem %s5, %s537
      // Predicated region
      $region45: #{point_gen_forward.15} parent=35 // pred_check
        %p539 = pneg %p143
      $region46: #{point_gen_forward.15} parent=35 // pred_check_branch
        %541 = sbr.rel (%p539) target = $region48
      $region47: #{point_gen_forward.15} parent=35 // pred_region
        %s542 = smul.u32 4, %s21
      $region48: #{point_gen_forward.15} parent=35 // pred_fallthru
        _
      // Predicated region
      $region49: #{point_gen_forward.15} parent=35 // pred_check
        %p543 = pneg %p169
      $region50: #{point_gen_forward.15} parent=35 // pred_check_branch
        %545 = sbr.rel (%p543) target = $region52
      $region51: #{point_gen_forward.15} parent=35 // pred_region
        _
      $region52: #{point_gen_forward.15} parent=35 // pred_fallthru
        _
      // Predicated region
      $region53: #{point_gen_forward.15} parent=35 // pred_check
        %p546 = pneg %p143
      $region54: #{point_gen_forward.15} parent=35 // pred_check_branch
        %548 = sbr.rel (%p546) target = $region56
      $region55: #{point_gen_forward.15} parent=35 // pred_region
        %s549 = smul.u32 4, %s21
        %p550 = scmp.lt.s32.totalorder %s549, 3
        %s551 = scalar_select %p550, %s549, 3
        %s552 = smul.addr %s551, 8
        %s553 = scalar_lea.vmem %s4, %s552
      $region56: #{point_gen_forward.15} parent=35 // pred_fallthru
        _
      // Predicated region
      $region57: #{point_gen_forward.15} parent=35 // pred_check
        %p554 = pneg %p169
      $region58: #{point_gen_forward.15} parent=35 // pred_check_branch
        %556 = sbr.rel (%p554) target = $region60
      $region59: #{point_gen_forward.15} parent=35 // pred_region
        %p557 = scmp.lt.s32.totalorder %s21, 0
        %s558 = scalar_select %p557, %s21, 0
        %s559 = smul.addr %s558, 2
        %s560 = scalar_lea.vmem %s5, %s559
      $region60: #{point_gen_forward.15} parent=35 // pred_fallthru
        _
    $region36: #{point_gen_forward.15} parent=5 // pred_fallthru
      _
    %p561 = scmp.le.s32.totalorder 2, %s12
    // Predicated region
    $region61: #{point_gen_forward.15} parent=5 // pred_check
      %p562 = pneg %p561
    $region62: #{point_gen_forward.15} parent=5 // pred_check_branch
      %564 = sbr.rel (%p562) target = $region64
    $region63: #{point_gen_forward.15} parent=5 // pred_region
      %s565 = ssub.s32 %s12, 2
    $region64: #{point_gen_forward.15} parent=5 // pred_fallthru
      _
  $region6: #{point_gen_forward.15} parent=0 // loop_footer
    %s16 = sadd.s32 1, %s12
  $region7: #{point_gen_forward.15} parent=0 // loop_footer_branch
    %11 = sbr.rel target = $region3
  $region8: #{point_gen_forward.15} parent=0 // loop_exit
    _

// kernel: point_gen_forward.16
$region0: #{point_gen_forward.16}
  #allocation0 [shape = 'u32[]', space=smem, size = 0x4, offset = 0x4, fixed_abs, tag = 'smem constant byte address 0x4 - core index']
  #allocation1 [shape = 'u32[144,128]{1,0:T(1,128)}', space=vmem, size = 0x12000, scoped, tag = 'internal scratch']
  %s0 = inlined_call_operand.vmem [shape: f32[32,64], index: 0, kind: input, shape index: {}]
  %s1 = inlined_call_operand.vmem [shape: f32[1,64], index: 1, kind: input, shape index: {}]
  %s2 = inlined_call_operand.vmem [shape: f32[1,64], index: 2, kind: input, shape index: {}]
  %s3 = inlined_call_operand.vmem [shape: bf16[32,64], index: 3, kind: output, shape index: {}]
  %s4 = sld [smem:[#allocation0]]
  $region22: #{point_gen_forward.16} parent=0
    _
  %s6 = ssub.s32 1, %s4
  %s7 = scalar_select 0, %s6, %s4
  // Predicated region
  $region2: #{point_gen_forward.16} parent=0 // pred_check
    _
  $region3: #{point_gen_forward.16} parent=0 // pred_check_branch
    %9 = sbr.rel (0) target = $region5
  $region4: #{point_gen_forward.16} parent=0 // pred_region
    _
  $region5: #{point_gen_forward.16} parent=0 // pred_fallthru
    _
  // Predicated region
  $region6: #{point_gen_forward.16} parent=0 // pred_check
    _
  $region7: #{point_gen_forward.16} parent=0 // pred_check_branch
    %11 = sbr.rel (0) target = $region9
  $region8: #{point_gen_forward.16} parent=0 // pred_region
    _
  $region9: #{point_gen_forward.16} parent=0 // pred_fallthru
    _
  // Predicated region
  $region10: #{point_gen_forward.16} parent=0 // pred_check
    _
  $region11: #{point_gen_forward.16} parent=0 // pred_check_branch
    %13 = sbr.rel (0) target = $region13
  $region12: #{point_gen_forward.16} parent=0 // pred_region
    _
  $region13: #{point_gen_forward.16} parent=0 // pred_fallthru
    _
  %v14 = vld [vmem:[%s0] sm:$0xff]
  %v15 = vld [vmem:[%s0 + $0x8] sm:$0xff]
  %v16 = vld [vmem:[%s0 + $0x10] sm:$0xff]
  %v17 = vld [vmem:[%s0 + $0x18] sm:$0xff]
  %v18 = vld [vmem:[%s1] sm:$0x1]
  %v20 = vlaneseq
  %v21 = vshrl.u32 %v20, 7
  %v22 = vsub.s32 0, %v21
  %v23 = vrot.slane %v18, %v22
  %v25 = vmul.f32 %v14, %v23
  %v26 = vmul.f32 %v15, %v23
  %v27 = vmul.f32 %v16, %v23
  %v28 = vmul.f32 %v17, %v23
  %v29 = vld [vmem:[%s2] sm:$0x1]
  %v31 = vlaneseq
  %v32 = vshrl.u32 %v31, 7
  %v33 = vsub.s32 0, %v32
  %v34 = vrot.slane %v29, %v33
  %v36 = vadd.f32 %v25, %v34
  %v37 = vadd.f32 %v26, %v34
  %v38 = vadd.f32 %v27, %v34
  %v39 = vadd.f32 %v28, %v34
  %vm40 = vcmp.gt.f32.partialorder %v36, 0.0
  %vm41 = vcmp.gt.f32.partialorder %v37, 0.0
  %vm42 = vcmp.gt.f32.partialorder %v38, 0.0
  %vm43 = vcmp.gt.f32.partialorder %v39, 0.0
  %v44 = vmul.f32 %v36, 0.2
  %v45 = vmul.f32 %v37, 0.2
  %v46 = vmul.f32 %v38, 0.2
  %v47 = vmul.f32 %v39, 0.2
  %v48 = vsel %vm40, %v36, %v44
  %v49 = vsel %vm41, %v37, %v45
  %v50 = vsel %vm42, %v38, %v46
  %v51 = vsel %vm43, %v39, %v47
  %v52 = vpack.c.bf16 %v49, %v48
  %v53 = vpack.c.bf16 %v51, %v50
  %v56 = vunpack.c.l.b16 %v52
  %v57 = vunpack.c.h.b16 %v52
  %v58 = vunpack.c.l.b16 %v53
  %v59 = vunpack.c.h.b16 %v53
  %v60 = vpack.c.b16 %v56, %v56
  %v61 = vpack.c.b16 %v57, %v57
  %v62 = vpack.c.b16 %v58, %v58
  %v63 = vpack.c.b16 %v59, %v59
  %vm68 = vcmask 519168
  %69 = vst.msk [vmem:[%s3] sm:$0xf] %vm68, %v60
  %70 = vst.msk [vmem:[%s3 + $0x4] sm:$0xf] %vm68, %v61
  %71 = vst.msk [vmem:[%s3 + $0x8] sm:$0xf] %vm68, %v62
  %72 = vst.msk [vmem:[%s3 + $0xc] sm:$0xf] %vm68, %v63
  // Predicated region
  $region14: #{point_gen_forward.16} parent=0 // pred_check
    _
  $region15: #{point_gen_forward.16} parent=0 // pred_check_branch
    %74 = sbr.rel (0) target = $region17
  $region16: #{point_gen_forward.16} parent=0 // pred_region
    _
  $region17: #{point_gen_forward.16} parent=0 // pred_fallthru
    _
  // Predicated region
  $region18: #{point_gen_forward.16} parent=0 // pred_check
    _
  $region19: #{point_gen_forward.16} parent=0 // pred_check_branch
    %76 = sbr.rel (0) target = $region21
  $region20: #{point_gen_forward.16} parent=0 // pred_region
    _
  $region21: #{point_gen_forward.16} parent=0 // pred_fallthru
    _

// kernel: point_gen_forward.17
$region0: #{point_gen_forward.17}
  #allocation0 [shape = 'u32[]', space=smem, size = 0x4, offset = 0x4, fixed_abs, tag = 'smem constant byte address 0x4 - core index']
  #allocation1 [shape = 'u32[144,128]{1,0:T(1,128)}', space=vmem, size = 0x12000, scoped, tag = 'internal scratch']
  %s0 = inlined_call_operand.vmem [shape: bf16[2,16,64], index: 0, kind: input, shape index: {}, may-alias: {0,1}]
  %s1 = inlined_call_operand.vmem [shape: bf16[2,16,64], index: 1, kind: input, shape index: {}, may-alias: {0,1}]
  %s2 = inlined_call_operand.vmem [shape: f32[2,1,16], index: 2, kind: input, shape index: {}]
  %s3 = inlined_call_operand.vmem [shape: f32[2,16,16], index: 3, kind: output, shape index: {}]
  %s4 = sld [smem:[#allocation0]]
  $region45: #{point_gen_forward.17} parent=0
    _
  %s6 = ssub.s32 1, %s4
  %s7 = scalar_select 0, %s6, %s4
  loop: start=0, step=1, limit=4
  $region2: #{point_gen_forward.17} parent=0 // loop_pre_header
    _
  $region3: #{point_gen_forward.17} parent=0 // loop_header
    %s9 = sphi 0, %s13
    %p10 = scmp.ge.s32.totalorder %s9, 4
    %s16 = sphi 0, %s28
    %s17 = sphi 0, %s24
    %s18 = sphi 0, %s16
    %s19 = sphi 0, %s17
    %s20 = sphi 0, %s18
    %s21 = sphi 0, %s19
    %s33 = sphi 0, %s35
    %s36 = sphi 0, %s33
    %s37 = sphi 0, %s36
    %s53 = sphi 0, %s37
    %s59 = sphi 0, %s61
    %s62 = sphi 0, %s59
    %s63 = sphi 0, %s62
    %s79 = sphi 0, %s63
    %s85 = sphi 0, %s87
    %s88 = sphi 0, %s85
    %s89 = sphi 0, %s88
    %s105 = sphi 0, %s89
    %s113 = sphi 0, %s115
    %s116 = sphi 0, %s113
    %s117 = sphi 0, %s116
    %s133 = sphi 0, %s117
  $region4: #{point_gen_forward.17} parent=0 // loop_header_branch
    %12 = sbr.rel (%p10) target = $region8
  $region5: #{point_gen_forward.17} parent=0 // loop_body
    %s14 = ssub.s32 %s9, 1
    %s15 = ssub.s32 %s9, 2
    %s22 = sadd.s32 1, %s17
    %p23 = scmp.ge.s32.totalorder %s22, 1
    %s24 = scalar_select %p23, 0, %s22
    %s25 = sadd.s32 1, %s16
    %s26 = scalar_select %p23, %s25, %s16
    %p27 = scmp.ge.s32.totalorder %s26, 2
    %s28 = scalar_select %p27, 0, %s26
    %s29 = ssub.s32 %s16, %s28
    %s30 = ssub.s32 %s17, %s24
    %s31 = sor.u32 %s29, %s30
    %p32 = scmp.eq.s32.totalorder %s31, 0
    %s34 = sadd.s32 %s33, 1
    %s35 = scalar_select %p32, %s33, %s34
    %p38 = pneg %p32
    %p39 = scmp.eq.s32.totalorder %s9, 1
    %p40 = por %p38, %p39
    %p41 = scmp.ne.s32.totalorder %s33, %s36
    %p42 = scmp.eq.s32.totalorder %s9, 0
    %p43 = por %p41, %p42
    %p44 = scmp.ne.s32.totalorder %s33, %s36
    %p45 = scmp.eq.s32.totalorder %s14, 1
    %p46 = por %p44, %p45
    %p47 = scmp.ne.s32.totalorder %s36, %s37
    %p48 = scmp.eq.s32.totalorder %s14, 0
    %p49 = por %p47, %p48
    %p50 = scmp.ne.s32.totalorder %s36, %s37
    %p51 = scmp.eq.s32.totalorder %s15, 1
    %p52 = por %p50, %p51
    %p54 = scmp.ne.s32.totalorder %s37, %s53
    %p55 = scmp.eq.s32.totalorder %s15, 0
    %p56 = por %p54, %p55
    %s57 = ssub.s32 %s16, %s28
    %p58 = scmp.eq.s32.totalorder %s57, 0
    %s60 = sadd.s32 %s59, 1
    %s61 = scalar_select %p58, %s59, %s60
    %p64 = pneg %p58
    %p65 = scmp.eq.s32.totalorder %s9, 1
    %p66 = por %p64, %p65
    %p67 = scmp.ne.s32.totalorder %s59, %s62
    %p68 = scmp.eq.s32.totalorder %s9, 0
    %p69 = por %p67, %p68
    %p70 = scmp.ne.s32.totalorder %s59, %s62
    %p71 = scmp.eq.s32.totalorder %s14, 1
    %p72 = por %p70, %p71
    %p73 = scmp.ne.s32.totalorder %s62, %s63
    %p74 = scmp.eq.s32.totalorder %s14, 0
    %p75 = por %p73, %p74
    %p76 = scmp.ne.s32.totalorder %s62, %s63
    %p77 = scmp.eq.s32.totalorder %s15, 1
    %p78 = por %p76, %p77
    %p80 = scmp.ne.s32.totalorder %s63, %s79
    %p81 = scmp.eq.s32.totalorder %s15, 0
    %p82 = por %p80, %p81
    %s83 = ssub.s32 %s16, %s28
    %p84 = scmp.eq.s32.totalorder %s83, 0
    %s86 = sadd.s32 %s85, 1
    %s87 = scalar_select %p84, %s85, %s86
    %p90 = pneg %p84
    %p91 = scmp.eq.s32.totalorder %s9, 1
    %p92 = por %p90, %p91
    %p93 = scmp.ne.s32.totalorder %s85, %s88
    %p94 = scmp.eq.s32.totalorder %s9, 0
    %p95 = por %p93, %p94
    %p96 = scmp.ne.s32.totalorder %s85, %s88
    %p97 = scmp.eq.s32.totalorder %s14, 1
    %p98 = por %p96, %p97
    %p99 = scmp.ne.s32.totalorder %s88, %s89
    %p100 = scmp.eq.s32.totalorder %s14, 0
    %p101 = por %p99, %p100
    %p102 = scmp.ne.s32.totalorder %s88, %s89
    %p103 = scmp.eq.s32.totalorder %s15, 1
    %p104 = por %p102, %p103
    %p106 = scmp.ne.s32.totalorder %s89, %s105
    %p107 = scmp.eq.s32.totalorder %s15, 0
    %p108 = por %p106, %p107
    %s109 = ssub.s32 %s16, %s28
    %s110 = ssub.s32 %s17, %s24
    %s111 = sor.u32 %s109, %s110
    %p112 = scmp.eq.s32.totalorder %s111, 0
    %s114 = sadd.s32 %s113, 1
    %s115 = scalar_select %p112, %s113, %s114
    %p118 = pneg %p112
    %p119 = scmp.eq.s32.totalorder %s9, 1
    %p120 = por %p118, %p119
    %p121 = scmp.ne.s32.totalorder %s113, %s116
    %p122 = scmp.eq.s32.totalorder %s9, 0
    %p123 = por %p121, %p122
    %p124 = scmp.ne.s32.totalorder %s113, %s116
    %p125 = scmp.eq.s32.totalorder %s14, 1
    %p126 = por %p124, %p125
    %p127 = scmp.ne.s32.totalorder %s116, %s117
    %p128 = scmp.eq.s32.totalorder %s14, 0
    %p129 = por %p127, %p128
    %p130 = scmp.ne.s32.totalorder %s116, %s117
    %p131 = scmp.eq.s32.totalorder %s15, 1
    %p132 = por %p130, %p131
    %p134 = scmp.ne.s32.totalorder %s117, %s133
    %p135 = scmp.eq.s32.totalorder %s15, 0
    %p136 = por %p134, %p135
    %p137 = scmp.le.s32.totalorder 1, %s9
    %p138 = scmp.lt.s32.totalorder %s9, 3
    %p139 = pnand %p137, %p138
    %p140 = pneg %p139
    // Predicated region
    $region9: #{point_gen_forward.17} parent=5 // pred_check
      _
    $region10: #{point_gen_forward.17} parent=5 // pred_check_branch
      %142 = sbr.rel (%p139) target = $region12
    $region11: #{point_gen_forward.17} parent=5 // pred_region
      %s143 = ssub.s32 %s9, 1
    $region12: #{point_gen_forward.17} parent=5 // pred_fallthru
      _
    %p144 = scmp.lt.s32.totalorder %s9, 2
    // Predicated region
    $region13: #{point_gen_forward.17} parent=5 // pred_check
      %p145 = pneg %p144
    $region14: #{point_gen_forward.17} parent=5 // pred_check_branch
      %147 = sbr.rel (%p145) target = $region16
    $region15: #{point_gen_forward.17} parent=5 // pred_region
      // Predicated region
      $region17: #{point_gen_forward.17} parent=15 // pred_check
        %p148 = pneg %p43
      $region18: #{point_gen_forward.17} parent=15 // pred_check_branch
        %150 = sbr.rel (%p148) target = $region20
      $region19: #{point_gen_forward.17} parent=15 // pred_region
        %s151 = smul.u32 2, %s17
        %p152 = scmp.lt.s32.totalorder %s16, 1
        %s153 = scalar_select %p152, %s16, 1
        %p154 = scmp.lt.s32.totalorder %s151, 1
        %s155 = scalar_select %p154, %s151, 1
        %s156 = smul.addr %s153, 2
        %s157 = sadd.s32 %s155, %s156
        %s158 = smul.addr %s157, 4
        %s159 = scalar_lea.vmem %s0, %s158
        %s160 = smul.u32 2, %s17
      $region20: #{point_gen_forward.17} parent=15 // pred_fallthru
        _
      // Predicated region
      $region21: #{point_gen_forward.17} parent=15 // pred_check
        %p161 = pneg %p69
      $region22: #{point_gen_forward.17} parent=15 // pred_check_branch
        %163 = sbr.rel (%p161) target = $region24
      $region23: #{point_gen_forward.17} parent=15 // pred_region
        %p164 = scmp.lt.s32.totalorder %s16, 1
        %s165 = scalar_select %p164, %s16, 1
        %s166 = smul.addr %s165, 2
        %s167 = smul.addr %s166, 4
        %s168 = scalar_lea.vmem %s1, %s167
      $region24: #{point_gen_forward.17} parent=15 // pred_fallthru
        _
      // Predicated region
      $region25: #{point_gen_forward.17} parent=15 // pred_check
        %p169 = pneg %p95
      $region26: #{point_gen_forward.17} parent=15 // pred_check_branch
        %171 = sbr.rel (%p169) target = $region28
      $region27: #{point_gen_forward.17} parent=15 // pred_region
        %p172 = scmp.lt.s32.totalorder %s16, 1
        %s173 = scalar_select %p172, %s16, 1
        %s174 = scalar_lea.vmem %s2, %s173
      $region28: #{point_gen_forward.17} parent=15 // pred_fallthru
        _
    $region16: #{point_gen_forward.17} parent=5 // pred_fallthru
      _
    %p175 = scmp.le.s32.totalorder 1, %s9
    %p176 = scmp.lt.s32.totalorder %s9, 3
    %p177 = pnand %p175, %p176
    %p178 = pneg %p177
    // Predicated region
    $region29: #{point_gen_forward.17} parent=5 // pred_check
      _
    $region30: #{point_gen_forward.17} parent=5 // pred_check_branch
      %180 = sbr.rel (%p177) target = $region32
    $region31: #{point_gen_forward.17} parent=5 // pred_region
      %s181 = ssub.s32 %s9, 1
      %s182 = smul.u32 2, %s19
      %p183 = scmp.lt.s32.totalorder %s18, 1
      %s184 = scalar_select %p183, %s18, 1
      %p185 = scmp.lt.s32.totalorder %s182, 1
      %s186 = scalar_select %p185, %s182, 1
      %s187 = smul.addr %s184, 2
      %s188 = sadd.s32 %s186, %s187
      %s189 = smul.addr %s188, 4
      %s190 = scalar_lea.vmem %s0, %s189
      %p191 = pneg %p49
      %p192 = pneg %p46
      %p193 = scmp.lt.s32.totalorder %s18, 1
      %s194 = scalar_select %p193, %s18, 1
      %s195 = smul.addr %s194, 2
      %s196 = smul.addr %s195, 4
      %s197 = scalar_lea.vmem %s1, %s196
      %p198 = pneg %p75
      %p199 = pneg %p72
      %p200 = scmp.lt.s32.totalorder %s18, 1
      %s201 = scalar_select %p200, %s18, 1
      %s202 = scalar_lea.vmem %s2, %s201
      %p203 = pneg %p101
      %p204 = pneg %p98
      %p205 = pneg %p129
      %p206 = pneg %p126
      %s207 = smul.u32 2, %s19
      %p208 = scmp.lt.s32.totalorder %s18, 1
      %s209 = scalar_select %p208, %s18, 1
      %p210 = scmp.lt.s32.totalorder %s207, 1
      %s211 = scalar_select %p210, %s207, 1
      %s212 = smul.addr %s209, 2
      %s213 = sadd.s32 %s211, %s212
      %s214 = smul.addr %s213, 8
      %s215 = scalar_lea.vmem %s3, %s214
      %s216 = smul.u32 2, %s19
      %p217 = scmp.lt.s32.totalorder %s18, 1
      %s218 = scalar_select %p217, %s18, 1
      %p219 = scmp.lt.s32.totalorder %s216, 1
      %s220 = scalar_select %p219, %s216, 1
      %s221 = smul.addr %s218, 2
      %s222 = sadd.s32 %s220, %s221
      %s223 = smul.addr %s222, 4
      %s224 = scalar_lea.vmem %s0, %s223
      %s225 = smul.u32 2, %s19
      %p226 = scmp.lt.s32.totalorder %s18, 1
      %s227 = scalar_select %p226, %s18, 1
      %s228 = smul.addr %s227, 2
      %s229 = smul.addr %s228, 4
      %s230 = scalar_lea.vmem %s1, %s229
      %p231 = scmp.lt.s32.totalorder %s18, 1
      %s232 = scalar_select %p231, %s18, 1
      %s233 = scalar_lea.vmem %s2, %s232
      %s234 = smul.u32 2, %s19
      %p235 = scmp.lt.s32.totalorder %s18, 1
      %s236 = scalar_select %p235, %s18, 1
      %p237 = scmp.lt.s32.totalorder %s234, 1
      %s238 = scalar_select %p237, %s234, 1
      %s239 = smul.addr %s236, 2
      %s240 = sadd.s32 %s238, %s239
      %s241 = smul.addr %s240, 8
      %s242 = scalar_lea.vmem %s3, %s241
      %s243 = smul.u32 2, %s19
      %v245 = vld [vmem:[%s224] sm:$0xf]
      %v246 = vld [vmem:[%s224 + $0x4] sm:$0xf]
      %v247 = vld [vmem:[%s230] sm:$0xf]
      %v248 = vld [vmem:[%s230 + $0x4] sm:$0xf]
      %v251 = vunpack.c.l.b16 %v245
      %v252 = vunpack.c.l.b16 %v246
      %v253 = vpack.c.b16 %v252, %v251
      %v256 = vunpack.c.l.b16 %v247
      %v257 = vunpack.c.l.b16 %v248
      %v258 = vpack.c.b16 %v257, %v256
      %vm259 = vcmask 523264
      %v261 = vsel %vm259, %v253, 0
      %v264 = vsel %vm259, %v258, 0
      %266 = vmatprep.subr.bf16.mxu0 0
      %267 = vmatpush1.bf16.xpose.msra.mxu0 %v264
      %268 = vmatprep.subr.bf16.mxu0 0
      %269 = vmatpush1.bf16.xpose.msra.mxu0 0
      %270 = vmatprep.subr.bf16.mxu0 0
      %271 = vmatpush1.bf16.xpose.msra.mxu0 0
      %272 = vmatprep.subr.bf16.mxu0 0
      %273 = vmatpush1.bf16.xpose.msra.mxu0 0
      %274 = vmatprep.subr.bf16.mxu0 0
      %275 = vmatpush1.bf16.xpose.msra.mxu0 0
      %276 = vmatprep.subr.bf16.mxu0 0
      %277 = vmatpush1.bf16.xpose.msra.mxu0 0
      %278 = vmatprep.subr.bf16.mxu0 0
      %279 = vmatpush1.bf16.xpose.msra.mxu0 0
      %280 = vmatprep.subr.bf16.mxu0 0
      %281 = vmatpush1.bf16.xpose.msra.mxu0 0
      %282 = vmatprep.subr.bf16.mxu0 0
      %283 = vmatpush1.bf16.xpose.msra.mxu0 0
      %284 = vmatprep.subr.bf16.mxu0 0
      %285 = vmatpush1.bf16.xpose.msra.mxu0 0
      %286 = vmatprep.subr.bf16.mxu0 0
      %287 = vmatpush1.bf16.xpose.msra.mxu0 0
      %288 = vmatprep.subr.bf16.mxu0 0
      %289 = vmatpush1.bf16.xpose.msra.mxu0 0
      %290 = vmatprep.subr.bf16.mxu0 0
      %291 = vmatpush1.bf16.xpose.msra.mxu0 0
      %292 = vmatprep.subr.bf16.mxu0 0
      %293 = vmatpush1.bf16.xpose.msra.mxu0 0
      %294 = vmatprep.subr.bf16.mxu0 0
      %295 = vmatpush1.bf16.xpose.msra.mxu0 0
      %296 = vmatprep.subr.bf16.mxu0 0
      %297 = vmatpush1.bf16.xpose.msra.mxu0 0
      %298 = vmatprep.mubr.bf16.mxu0 0
      %299 = vmatmul.mubr.bf16.gmra.mrb[0].mxu0 %v261
      %v300 = vpop.f32.mrb[0].mxu0
      %v301 = vadd.f32 0.0, %v300
      %v302 = vpop.f32.mrb[0].mxu0
      %v303 = vpop.f32.mrb[0].mxu0
      %v304 = vadd.f32 0.0, %v303
      %v305 = vpop.f32.mrb[0].mxu0
      %306 = vdwg.mxu0
      %v307 = vmul.f32 %v301, 2.0
      %v308 = vmul.f32 %v304, 2.0
      %v309 = vld [vmem:[%s233] sm:$0x1]
      %v311 = vlaneseq
      %v312 = vshrl.u32 %v311, 7
      %v313 = vsub.s32 0, %v312
      %v314 = vrot.slane %v309, %v313
      %v316 = vsub.f32 %v307, %v314
      %v317 = vsub.f32 %v308, %v314
      %vm318 = vcmask 130048
      %319 = vst.msk [vmem:[%s242] sm:$0xff] %vm318, %v316
      %320 = vst.msk [vmem:[%s242 + $0x8] sm:$0xff] %vm318, %v317
      %s321 = smul.u32 2, %s19
      %p322 = scmp.lt.s32.totalorder %s18, 1
      %s323 = scalar_select %p322, %s18, 1
      %p324 = scmp.lt.s32.totalorder %s321, 1
      %s325 = scalar_select %p324, %s321, 1
      %s326 = smul.addr %s323, 2
      %s327 = sadd.s32 %s325, %s326
      %s328 = smul.addr %s327, 8
      %s329 = scalar_lea.vmem %s3, %s328
      // Predicated region
      $region33: #{point_gen_forward.17} parent=31 // pred_check
        %p330 = pneg %p126
      $region34: #{point_gen_forward.17} parent=31 // pred_check_branch
        %332 = sbr.rel (%p330) target = $region36
      $region35: #{point_gen_forward.17} parent=31 // pred_region
        %s333 = smul.u32 2, %s19
      $region36: #{point_gen_forward.17} parent=31 // pred_fallthru
        _
    $region32: #{point_gen_forward.17} parent=5 // pred_fallthru
      _
    %p334 = scmp.le.s32.totalorder 2, %s9
    // Predicated region
    $region37: #{point_gen_forward.17} parent=5 // pred_check
      %p335 = pneg %p334
    $region38: #{point_gen_forward.17} parent=5 // pred_check_branch
      %337 = sbr.rel (%p335) target = $region40
    $region39: #{point_gen_forward.17} parent=5 // pred_region
      %s338 = ssub.s32 %s9, 2
      // Predicated region
      $region41: #{point_gen_forward.17} parent=39 // pred_check
        %p339 = pneg %p132
      $region42: #{point_gen_forward.17} parent=39 // pred_check_branch
        %341 = sbr.rel (%p339) target = $region44
      $region43: #{point_gen_forward.17} parent=39 // pred_region
        %s342 = smul.u32 2, %s21
        %p343 = scmp.lt.s32.totalorder %s20, 1
        %s344 = scalar_select %p343, %s20, 1
        %p345 = scmp.lt.s32.totalorder %s342, 1
        %s346 = scalar_select %p345, %s342, 1
        %s347 = smul.addr %s344, 2
        %s348 = sadd.s32 %s346, %s347
        %s349 = smul.addr %s348, 8
        %s350 = scalar_lea.vmem %s3, %s349
      $region44: #{point_gen_forward.17} parent=39 // pred_fallthru
        _
    $region40: #{point_gen_forward.17} parent=5 // pred_fallthru
      _
  $region6: #{point_gen_forward.17} parent=0 // loop_footer
    %s13 = sadd.s32 1, %s9
  $region7: #{point_gen_forward.17} parent=0 // loop_footer_branch
    %8 = sbr.rel target = $region3
  $region8: #{point_gen_forward.17} parent=0 // loop_exit
    _

// kernel: point_gen_forward.18
$region0: #{point_gen_forward.18}
  #allocation0 [shape = 'u32[]', space=smem, size = 0x4, offset = 0x4, fixed_abs, tag = 'smem constant byte address 0x4 - core index']
  #allocation1 [shape = 'u32[144,128]{1,0:T(1,128)}', space=vmem, size = 0x12000, scoped, tag = 'internal scratch']
  #allocation2 [shape = 'f32[32,64]{1,0:T(8,128)}', space=vmem, size = 0x4000, scoped, tag = 'scratch operand']
  #allocation3 [shape = 'f32[32,64]{1,0:T(8,128)}', space=vmem, size = 0x4000, scoped, tag = 'scratch operand']
  #allocation4 [shape = 'f32[1,64]{1,0:T(1,128)}', space=vmem, size = 0x200, scoped, tag = 'scratch operand']
  #allocation5 [shape = 'f32[1,64]{1,0:T(1,128)}', space=vmem, size = 0x200, scoped, tag = 'scratch operand']
  %s0 = inlined_call_operand.vmem [shape: bf16[4,32,64], index: 0, kind: input, shape index: {}]
  %s1 = inlined_call_operand.vmem [shape: bf16[32,64], index: 1, kind: input, shape index: {}]
  %s2 = inlined_call_operand.vmem [shape: bf16[64,64], index: 2, kind: input, shape index: {}]
  %s3 = inlined_call_operand.vmem [shape: bf16[64,64], index: 3, kind: input, shape index: {}]
  %s4 = inlined_call_operand.vmem [shape: f32[32,64], index: 4, kind: output, shape index: {0}]
  %s5 = inlined_call_operand.vmem [shape: f32[1,2,64], index: 5, kind: output, shape index: {1}]
  %6 = xla_tuple %s4, %s5
  %s7 = sld [smem:[#allocation0]]
  $region65: #{point_gen_forward.18} parent=0
    _
  %s9 = ssub.s32 1, %s7
  %s10 = scalar_select 0, %s9, %s7
  loop: start=0, step=1, limit=6
  $region2: #{point_gen_forward.18} parent=0 // loop_pre_header
    _
  $region3: #{point_gen_forward.18} parent=0 // loop_header
    %s12 = sphi 0, %s16
    %p13 = scmp.ge.s32.totalorder %s12, 6
    %s19 = sphi 0, %s31
    %s20 = sphi 0, %s27
    %s21 = sphi 0, %s19
    %s22 = sphi 0, %s20
    %s23 = sphi 0, %s21
    %s24 = sphi 0, %s22
    %s36 = sphi 0, %s38
    %s39 = sphi 0, %s36
    %s40 = sphi 0, %s39
    %s56 = sphi 0, %s40
    %s62 = sphi 0, %s64
    %s65 = sphi 0, %s62
    %s66 = sphi 0, %s65
    %s82 = sphi 0, %s66
    %s86 = sphi 0, %s86
    %s88 = sphi 0, %s86
    %s89 = sphi 0, %s88
    %s103 = sphi 0, %s89
    %s107 = sphi 0, %s107
    %s109 = sphi 0, %s107
    %s110 = sphi 0, %s109
    %s124 = sphi 0, %s110
    %s130 = sphi 0, %s132
    %s133 = sphi 0, %s130
    %s134 = sphi 0, %s133
    %s150 = sphi 0, %s134
    %s156 = sphi 0, %s158
    %s159 = sphi 0, %s156
    %s160 = sphi 0, %s159
    %s176 = sphi 0, %s160
  $region4: #{point_gen_forward.18} parent=0 // loop_header_branch
    %15 = sbr.rel (%p13) target = $region8
  $region5: #{point_gen_forward.18} parent=0 // loop_body
    %s17 = ssub.s32 %s12, 1
    %s18 = ssub.s32 %s12, 2
    %s25 = sadd.s32 1, %s20
    %p26 = scmp.ge.s32.totalorder %s25, 4
    %s27 = scalar_select %p26, 0, %s25
    %s28 = sadd.s32 1, %s19
    %s29 = scalar_select %p26, %s28, %s19
    %p30 = scmp.ge.s32.totalorder %s29, 1
    %s31 = scalar_select %p30, 0, %s29
    %s32 = ssub.s32 %s20, %s27
    %s33 = ssub.s32 %s19, %s31
    %s34 = sor.u32 %s32, %s33
    %p35 = scmp.eq.s32.totalorder %s34, 0
    %s37 = sadd.s32 %s36, 1
    %s38 = scalar_select %p35, %s36, %s37
    %p41 = pneg %p35
    %p42 = scmp.eq.s32.totalorder %s12, 3
    %p43 = por %p41, %p42
    %p44 = scmp.ne.s32.totalorder %s36, %s39
    %p45 = scmp.eq.s32.totalorder %s12, 0
    %p46 = por %p44, %p45
    %p47 = scmp.ne.s32.totalorder %s36, %s39
    %p48 = scmp.eq.s32.totalorder %s17, 3
    %p49 = por %p47, %p48
    %p50 = scmp.ne.s32.totalorder %s39, %s40
    %p51 = scmp.eq.s32.totalorder %s17, 0
    %p52 = por %p50, %p51
    %p53 = scmp.ne.s32.totalorder %s39, %s40
    %p54 = scmp.eq.s32.totalorder %s18, 3
    %p55 = por %p53, %p54
    %p57 = scmp.ne.s32.totalorder %s40, %s56
    %p58 = scmp.eq.s32.totalorder %s18, 0
    %p59 = por %p57, %p58
    %s60 = ssub.s32 %s19, %s31
    %p61 = scmp.eq.s32.totalorder %s60, 0
    %s63 = sadd.s32 %s62, 1
    %s64 = scalar_select %p61, %s62, %s63
    %p67 = pneg %p61
    %p68 = scmp.eq.s32.totalorder %s12, 3
    %p69 = por %p67, %p68
    %p70 = scmp.ne.s32.totalorder %s62, %s65
    %p71 = scmp.eq.s32.totalorder %s12, 0
    %p72 = por %p70, %p71
    %p73 = scmp.ne.s32.totalorder %s62, %s65
    %p74 = scmp.eq.s32.totalorder %s17, 3
    %p75 = por %p73, %p74
    %p76 = scmp.ne.s32.totalorder %s65, %s66
    %p77 = scmp.eq.s32.totalorder %s17, 0
    %p78 = por %p76, %p77
    %p79 = scmp.ne.s32.totalorder %s65, %s66
    %p80 = scmp.eq.s32.totalorder %s18, 3
    %p81 = por %p79, %p80
    %p83 = scmp.ne.s32.totalorder %s66, %s82
    %p84 = scmp.eq.s32.totalorder %s18, 0
    %p85 = por %p83, %p84
    %s87 = sadd.s32 %s86, 1
    %p90 = scmp.eq.s32.totalorder %s12, 3
    %p91 = scmp.ne.s32.totalorder %s86, %s88
    %p92 = scmp.eq.s32.totalorder %s12, 0
    %p93 = por %p91, %p92
    %p94 = scmp.ne.s32.totalorder %s86, %s88
    %p95 = scmp.eq.s32.totalorder %s17, 3
    %p96 = por %p94, %p95
    %p97 = scmp.ne.s32.totalorder %s88, %s89
    %p98 = scmp.eq.s32.totalorder %s17, 0
    %p99 = por %p97, %p98
    %p100 = scmp.ne.s32.totalorder %s88, %s89
    %p101 = scmp.eq.s32.totalorder %s18, 3
    %p102 = por %p100, %p101
    %p104 = scmp.ne.s32.totalorder %s89, %s103
    %p105 = scmp.eq.s32.totalorder %s18, 0
    %p106 = por %p104, %p105
    %s108 = sadd.s32 %s107, 1
    %p111 = scmp.eq.s32.totalorder %s12, 3
    %p112 = scmp.ne.s32.totalorder %s107, %s109
    %p113 = scmp.eq.s32.totalorder %s12, 0
    %p114 = por %p112, %p113
    %p115 = scmp.ne.s32.totalorder %s107, %s109
    %p116 = scmp.eq.s32.totalorder %s17, 3
    %p117 = por %p115, %p116
    %p118 = scmp.ne.s32.totalorder %s109, %s110
    %p119 = scmp.eq.s32.totalorder %s17, 0
    %p120 = por %p118, %p119
    %p121 = scmp.ne.s32.totalorder %s109, %s110
    %p122 = scmp.eq.s32.totalorder %s18, 3
    %p123 = por %p121, %p122
    %p125 = scmp.ne.s32.totalorder %s110, %s124
    %p126 = scmp.eq.s32.totalorder %s18, 0
    %p127 = por %p125, %p126
    %s128 = ssub.s32 %s19, %s31
    %p129 = scmp.eq.s32.totalorder %s128, 0
    %s131 = sadd.s32 %s130, 1
    %s132 = scalar_select %p129, %s130, %s131
    %p135 = pneg %p129
    %p136 = scmp.eq.s32.totalorder %s12, 3
    %p137 = por %p135, %p136
    %p138 = scmp.ne.s32.totalorder %s130, %s133
    %p139 = scmp.eq.s32.totalorder %s12, 0
    %p140 = por %p138, %p139
    %p141 = scmp.ne.s32.totalorder %s130, %s133
    %p142 = scmp.eq.s32.totalorder %s17, 3
    %p143 = por %p141, %p142
    %p144 = scmp.ne.s32.totalorder %s133, %s134
    %p145 = scmp.eq.s32.totalorder %s17, 0
    %p146 = por %p144, %p145
    %p147 = scmp.ne.s32.totalorder %s133, %s134
    %p148 = scmp.eq.s32.totalorder %s18, 3
    %p149 = por %p147, %p148
    %p151 = scmp.ne.s32.totalorder %s134, %s150
    %p152 = scmp.eq.s32.totalorder %s18, 0
    %p153 = por %p151, %p152
    %s154 = ssub.s32 %s19, %s31
    %p155 = scmp.eq.s32.totalorder %s154, 0
    %s157 = sadd.s32 %s156, 1
    %s158 = scalar_select %p155, %s156, %s157
    %p161 = pneg %p155
    %p162 = scmp.eq.s32.totalorder %s12, 3
    %p163 = por %p161, %p162
    %p164 = scmp.ne.s32.totalorder %s156, %s159
    %p165 = scmp.eq.s32.totalorder %s12, 0
    %p166 = por %p164, %p165
    %p167 = scmp.ne.s32.totalorder %s156, %s159
    %p168 = scmp.eq.s32.totalorder %s17, 3
    %p169 = por %p167, %p168
    %p170 = scmp.ne.s32.totalorder %s159, %s160
    %p171 = scmp.eq.s32.totalorder %s17, 0
    %p172 = por %p170, %p171
    %p173 = scmp.ne.s32.totalorder %s159, %s160
    %p174 = scmp.eq.s32.totalorder %s18, 3
    %p175 = por %p173, %p174
    %p177 = scmp.ne.s32.totalorder %s160, %s176
    %p178 = scmp.eq.s32.totalorder %s18, 0
    %p179 = por %p177, %p178
    %p180 = scmp.le.s32.totalorder 1, %s12
    %p181 = scmp.lt.s32.totalorder %s12, 5
    %p182 = pnand %p180, %p181
    %p183 = pneg %p182
    // Predicated region
    $region9: #{point_gen_forward.18} parent=5 // pred_check
      _
    $region10: #{point_gen_forward.18} parent=5 // pred_check_branch
      %185 = sbr.rel (%p182) target = $region12
    $region11: #{point_gen_forward.18} parent=5 // pred_region
      %s186 = ssub.s32 %s12, 1
      // Predicated region
      $region13: #{point_gen_forward.18} parent=11 // pred_check
        %p187 = pneg %p78
      $region14: #{point_gen_forward.18} parent=11 // pred_check_branch
        %189 = sbr.rel (%p187) target = $region16
      $region15: #{point_gen_forward.18} parent=11 // pred_region
        %s190 = smul.u32 4, %s21
        %p191 = scmp.lt.s32.totalorder %s190, 3
        %s192 = scalar_select %p191, %s190, 3
        %s193 = smul.addr %s192, 4
        %s194 = scalar_lea.vmem %s1, %s193
        %s195 = smul.u32 4, %s21
      $region16: #{point_gen_forward.18} parent=11 // pred_fallthru
        _
      // Predicated region
      $region17: #{point_gen_forward.18} parent=11 // pred_check
        %p196 = pneg %p99
      $region18: #{point_gen_forward.18} parent=11 // pred_check_branch
        %198 = sbr.rel (%p196) target = $region20
      $region19: #{point_gen_forward.18} parent=11 // pred_region
        _
      $region20: #{point_gen_forward.18} parent=11 // pred_fallthru
        _
      // Predicated region
      $region21: #{point_gen_forward.18} parent=11 // pred_check
        %p199 = pneg %p120
      $region22: #{point_gen_forward.18} parent=11 // pred_check_branch
        %201 = sbr.rel (%p199) target = $region24
      $region23: #{point_gen_forward.18} parent=11 // pred_region
        _
      $region24: #{point_gen_forward.18} parent=11 // pred_fallthru
        _
    $region12: #{point_gen_forward.18} parent=5 // pred_fallthru
      _
    %p202 = scmp.lt.s32.totalorder %s12, 4
    // Predicated region
    $region25: #{point_gen_forward.18} parent=5 // pred_check
      %p203 = pneg %p202
    $region26: #{point_gen_forward.18} parent=5 // pred_check_branch
      %205 = sbr.rel (%p203) target = $region28
    $region27: #{point_gen_forward.18} parent=5 // pred_region
      // Predicated region
      $region29: #{point_gen_forward.18} parent=27 // pred_check
        %p206 = pneg %p46
      $region30: #{point_gen_forward.18} parent=27 // pred_check_branch
        %208 = sbr.rel (%p206) target = $region32
      $region31: #{point_gen_forward.18} parent=27 // pred_region
        %s209 = smul.u32 4, %s19
        %p210 = scmp.lt.s32.totalorder %s20, 3
        %s211 = scalar_select %p210, %s20, 3
        %p212 = scmp.lt.s32.totalorder %s209, 3
        %s213 = scalar_select %p212, %s209, 3
        %s214 = smul.addr %s211, 4
        %s215 = sadd.s32 %s213, %s214
        %s216 = smul.addr %s215, 4
        %s217 = scalar_lea.vmem %s0, %s216
        %s218 = smul.u32 4, %s19
      $region32: #{point_gen_forward.18} parent=27 // pred_fallthru
        _
    $region28: #{point_gen_forward.18} parent=5 // pred_fallthru
      _
    %p219 = scmp.le.s32.totalorder 1, %s12
    %p220 = scmp.lt.s32.totalorder %s12, 5
    %p221 = pnand %p219, %p220
    %p222 = pneg %p221
    // Predicated region
    $region33: #{point_gen_forward.18} parent=5 // pred_check
      _
    $region34: #{point_gen_forward.18} parent=5 // pred_check_branch
      %224 = sbr.rel (%p221) target = $region36
    $region35: #{point_gen_forward.18} parent=5 // pred_region
      %s225 = ssub.s32 %s12, 1
      %s226 = smul.u32 4, %s21
      %p227 = scmp.lt.s32.totalorder %s22, 3
      %s228 = scalar_select %p227, %s22, 3
      %p229 = scmp.lt.s32.totalorder %s226, 3
      %s230 = scalar_select %p229, %s226, 3
      %s231 = smul.addr %s228, 4
      %s232 = sadd.s32 %s230, %s231
      %s233 = smul.addr %s232, 4
      %s234 = scalar_lea.vmem %s0, %s233
      %p235 = pneg %p52
      %p236 = pneg %p49
      %s237 = smul.u32 4, %s21
      %p238 = scmp.lt.s32.totalorder %s237, 3
      %s239 = scalar_select %p238, %s237, 3
      %s240 = smul.addr %s239, 4
      %s241 = scalar_lea.vmem %s1, %s240
      %p242 = pneg %p78
      %p243 = pneg %p75
      %p244 = pneg %p99
      %p245 = pneg %p96
      %p246 = pneg %p120
      %p247 = pneg %p117
      %p248 = pneg %p146
      %p249 = pneg %p143
      %s250 = smul.u32 4, %s21
      %p251 = scmp.lt.s32.totalorder %s250, 3
      %s252 = scalar_select %p251, %s250, 3
      %s253 = smul.addr %s252, 8
      %s254 = scalar_lea.vmem %s4, %s253
      %p255 = pneg %p172
      %p256 = pneg %p169
      %p257 = scmp.lt.s32.totalorder %s21, 0
      %s258 = scalar_select %p257, %s21, 0
      %s259 = smul.addr %s258, 2
      %s260 = scalar_lea.vmem %s5, %s259
      %s261 = smul.u32 4, %s21
      %p262 = scmp.lt.s32.totalorder %s22, 3
      %s263 = scalar_select %p262, %s22, 3
      %p264 = scmp.lt.s32.totalorder %s261, 3
      %s265 = scalar_select %p264, %s261, 3
      %s266 = smul.addr %s263, 4
      %s267 = sadd.s32 %s265, %s266
      %s268 = smul.addr %s267, 4
      %s269 = scalar_lea.vmem %s0, %s268
      %s270 = smul.u32 4, %s21
      %s271 = smul.u32 4, %s21
      %p272 = scmp.lt.s32.totalorder %s271, 3
      %s273 = scalar_select %p272, %s271, 3
      %s274 = smul.addr %s273, 4
      %s275 = scalar_lea.vmem %s1, %s274
      %s276 = smul.u32 4, %s21
      %s277 = smul.u32 4, %s21
      %p278 = scmp.lt.s32.totalorder %s277, 3
      %s279 = scalar_select %p278, %s277, 3
      %s280 = smul.addr %s279, 8
      %s281 = scalar_lea.vmem %s4, %s280
      %s282 = smul.u32 4, %s21
      %p283 = scmp.lt.s32.totalorder %s21, 0
      %s284 = scalar_select %p283, %s21, 0
      %s285 = smul.addr %s284, 2
      %s286 = scalar_lea.vmem %s5, %s285
      %p288 = scmp.eq.s32.totalorder %s22, 0
      // Predicated region
      $region37: #{point_gen_forward.18} parent=35 // pred_check
        %p289 = pneg %p288
      $region38: #{point_gen_forward.18} parent=35 // pred_check_branch
        %291 = sbr.rel (%p289) target = $region40
      $region39: #{point_gen_forward.18} parent=35 // pred_region
        %v292 = vld [vmem:[%s275] sm:$0xf]
        %v293 = vld [vmem:[%s275 + $0x4] sm:$0xf]
        %v294 = vld [vmem:[%s275 + $0x8] sm:$0xf]
        %v295 = vld [vmem:[%s275 + $0xc] sm:$0xf]
        %v296 = vld [vmem:[%s3] sm:$0xf]
        %v297 = vld [vmem:[%s3 + $0x4] sm:$0xf]
        %v298 = vld [vmem:[%s3 + $0x8] sm:$0xf]
        %v299 = vld [vmem:[%s3 + $0xc] sm:$0xf]
        %v300 = vld [vmem:[%s3 + $0x10] sm:$0xf]
        %v301 = vld [vmem:[%s3 + $0x14] sm:$0xf]
        %v302 = vld [vmem:[%s3 + $0x18] sm:$0xf]
        %v303 = vld [vmem:[%s3 + $0x1c] sm:$0xf]
        %v308 = vunpack.c.l.b16 %v292
        %v309 = vunpack.c.l.b16 %v293
        %v310 = vunpack.c.l.b16 %v294
        %v311 = vunpack.c.l.b16 %v295
        %v312 = vpack.c.b16 %v309, %v308
        %v313 = vpack.c.b16 %v311, %v310
        %v322 = vunpack.c.l.b16 %v296
        %v323 = vunpack.c.l.b16 %v297
        %v324 = vunpack.c.l.b16 %v298
        %v325 = vunpack.c.l.b16 %v299
        %v326 = vunpack.c.l.b16 %v300
        %v327 = vunpack.c.l.b16 %v301
        %v328 = vunpack.c.l.b16 %v302
        %v329 = vunpack.c.l.b16 %v303
        %v330 = vpack.c.b16 %v323, %v322
        %v331 = vpack.c.b16 %v325, %v324
        %v332 = vpack.c.b16 %v327, %v326
        %v333 = vpack.c.b16 %v329, %v328
        %vm338 = vcmask 523264
        %v340 = vsel %vm338, %v312, 0
        %v343 = vsel %vm338, %v313, 0
        %345 = vmatprep.subr.bf16.mxu0 0
        %346 = vmatpush1.bf16.msra.mxu0 %v330
        %347 = vmatprep.subr.bf16.mxu0 0
        %348 = vmatpush1.bf16.msra.mxu0 %v331
        %349 = vmatprep.subr.bf16.mxu0 0
        %350 = vmatpush1.bf16.msra.mxu0 %v332
        %351 = vmatprep.subr.bf16.mxu0 0
        %352 = vmatpush1.bf16.msra.mxu0 %v333
        %353 = vmatprep.subr.bf16.mxu0 0
        %354 = vmatpush1.bf16.msra.mxu0 0
        %355 = vmatprep.subr.bf16.mxu0 0
        %356 = vmatpush1.bf16.msra.mxu0 0
        %357 = vmatprep.subr.bf16.mxu0 0
        %358 = vmatpush1.bf16.msra.mxu0 0
        %359 = vmatprep.subr.bf16.mxu0 0
        %360 = vmatpush1.bf16.msra.mxu0 0
        %361 = vmatprep.subr.bf16.mxu0 0
        %362 = vmatpush1.bf16.msra.mxu0 0
        %363 = vmatprep.subr.bf16.mxu0 0
        %364 = vmatpush1.bf16.msra.mxu0 0
        %365 = vmatprep.subr.bf16.mxu0 0
        %366 = vmatpush1.bf16.msra.mxu0 0
        %367 = vmatprep.subr.bf16.mxu0 0
        %368 = vmatpush1.bf16.msra.mxu0 0
        %369 = vmatprep.subr.bf16.mxu0 0
        %370 = vmatpush1.bf16.msra.mxu0 0
        %371 = vmatprep.subr.bf16.mxu0 0
        %372 = vmatpush1.bf16.msra.mxu0 0
        %373 = vmatprep.subr.bf16.mxu0 0
        %374 = vmatpush1.bf16.msra.mxu0 0
        %375 = vmatprep.subr.bf16.mxu0 0
        %376 = vmatpush1.bf16.msra.mxu0 0
        %377 = vmatprep.mubr.bf16.mxu0 0
        %378 = vmatmul.mubr.bf16.gmra.mrb[0].mxu0 %v340
        %v379 = vpop.f32.mrb[0].mxu0
        %v380 = vadd.f32 0.0, %v379
        %v381 = vpop.f32.mrb[0].mxu0
        %v382 = vpop.f32.mrb[0].mxu0
        %v383 = vadd.f32 0.0, %v382
        %v384 = vpop.f32.mrb[0].mxu0
        %385 = vmatprep.mubr.bf16.mxu0 0
        %386 = vmatmul.mubr.bf16.gmra.mrb[0].mxu0 %v343
        %v387 = vpop.f32.mrb[0].mxu0
        %v388 = vadd.f32 0.0, %v387
        %v389 = vpop.f32.mrb[0].mxu0
        %v390 = vpop.f32.mrb[0].mxu0
        %v391 = vadd.f32 0.0, %v390
        %v392 = vpop.f32.mrb[0].mxu0
        %393 = vdwg.mxu0
        %394 = vst.msk [vmem:[#allocation2] sm:$0xff] %vm338, %v380
        %395 = vst.msk [vmem:[#allocation2 + $0x8] sm:$0xff] %vm338, %v383
        %396 = vst.msk [vmem:[#allocation2 + $0x10] sm:$0xff] %vm338, %v388
        %397 = vst.msk [vmem:[#allocation2 + $0x18] sm:$0xff] %vm338, %v391
        %398 = vst.msk [vmem:[#allocation3] sm:$0xff] %vm338, -inf
        %399 = vst.msk [vmem:[#allocation3 + $0x8] sm:$0xff] %vm338, -inf
        %400 = vst.msk [vmem:[#allocation3 + $0x10] sm:$0xff] %vm338, -inf
        %401 = vst.msk [vmem:[#allocation3 + $0x18] sm:$0xff] %vm338, -inf
        %vm402 = vcmask 516096
        %403 = vst.msk [vmem:[#allocation4] sm:$0x1] %vm402, 0.0
        %404 = vst.msk [vmem:[#allocation5] sm:$0x1] %vm402, 0.0
      $region40: #{point_gen_forward.18} parent=35 // pred_fallthru
        _
      %v405 = vld [vmem:[%s269] sm:$0xf]
      %v406 = vld [vmem:[%s269 + $0x4] sm:$0xf]
      %v407 = vld [vmem:[%s269 + $0x8] sm:$0xf]
      %v408 = vld [vmem:[%s269 + $0xc] sm:$0xf]
      %v409 = vld [vmem:[%s2] sm:$0xf]
      %v410 = vld [vmem:[%s2 + $0x4] sm:$0xf]
      %v411 = vld [vmem:[%s2 + $0x8] sm:$0xf]
      %v412 = vld [vmem:[%s2 + $0xc] sm:$0xf]
      %v413 = vld [vmem:[%s2 + $0x10] sm:$0xf]
      %v414 = vld [vmem:[%s2 + $0x14] sm:$0xf]
      %v415 = vld [vmem:[%s2 + $0x18] sm:$0xf]
      %v416 = vld [vmem:[%s2 + $0x1c] sm:$0xf]
      %v417 = vld [vmem:[#allocation2] sm:$0xff]
      %v418 = vld [vmem:[#allocation2 + $0x8] sm:$0xff]
      %v419 = vld [vmem:[#allocation2 + $0x10] sm:$0xff]
      %v420 = vld [vmem:[#allocation2 + $0x18] sm:$0xff]
      %v425 = vunpack.c.l.b16 %v405
      %v426 = vunpack.c.l.b16 %v406
      %v427 = vunpack.c.l.b16 %v407
      %v428 = vunpack.c.l.b16 %v408
      %v429 = vpack.c.b16 %v426, %v425
      %v430 = vpack.c.b16 %v428, %v427
      %v439 = vunpack.c.l.b16 %v409
      %v440 = vunpack.c.l.b16 %v410
      %v441 = vunpack.c.l.b16 %v411
      %v442 = vunpack.c.l.b16 %v412
      %v443 = vunpack.c.l.b16 %v413
      %v444 = vunpack.c.l.b16 %v414
      %v445 = vunpack.c.l.b16 %v415
      %v446 = vunpack.c.l.b16 %v416
      %v447 = vpack.c.b16 %v440, %v439
      %v448 = vpack.c.b16 %v442, %v441
      %v449 = vpack.c.b16 %v444, %v443
      %v450 = vpack.c.b16 %v446, %v445
      %vm455 = vcmask 523264
      %v457 = vsel %vm455, %v429, 0
      %v460 = vsel %vm455, %v430, 0
      %462 = vmatprep.subr.bf16.mxu0 0
      %463 = vmatpush1.bf16.msra.mxu0 %v447
      %464 = vmatprep.subr.bf16.mxu0 0
      %465 = vmatpush1.bf16.msra.mxu0 %v448
      %466 = vmatprep.subr.bf16.mxu0 0
      %467 = vmatpush1.bf16.msra.mxu0 %v449
      %468 = vmatprep.subr.bf16.mxu0 0
      %469 = vmatpush1.bf16.msra.mxu0 %v450
      %470 = vmatprep.subr.bf16.mxu0 0
      %471 = vmatpush1.bf16.msra.mxu0 0
      %472 = vmatprep.subr.bf16.mxu0 0
      %473 = vmatpush1.bf16.msra.mxu0 0
      %474 = vmatprep.subr.bf16.mxu0 0
      %475 = vmatpush1.bf16.msra.mxu0 0
      %476 = vmatprep.subr.bf16.mxu0 0
      %477 = vmatpush1.bf16.msra.mxu0 0
      %478 = vmatprep.subr.bf16.mxu0 0
      %479 = vmatpush1.bf16.msra.mxu0 0
      %480 = vmatprep.subr.bf16.mxu0 0
      %481 = vmatpush1.bf16.msra.mxu0 0
      %482 = vmatprep.subr.bf16.mxu0 0
      %483 = vmatpush1.bf16.msra.mxu0 0
      %484 = vmatprep.subr.bf16.mxu0 0
      %485 = vmatpush1.bf16.msra.mxu0 0
      %486 = vmatprep.subr.bf16.mxu0 0
      %487 = vmatpush1.bf16.msra.mxu0 0
      %488 = vmatprep.subr.bf16.mxu0 0
      %489 = vmatpush1.bf16.msra.mxu0 0
      %490 = vmatprep.subr.bf16.mxu0 0
      %491 = vmatpush1.bf16.msra.mxu0 0
      %492 = vmatprep.subr.bf16.mxu0 0
      %493 = vmatpush1.bf16.msra.mxu0 0
      %494 = vmatprep.mubr.bf16.mxu0 0
      %495 = vmatmul.mubr.bf16.gmra.mrb[0].mxu0 %v457
      %v496 = vpop.f32.mrb[0].mxu0
      %v497 = vadd.f32 %v417, %v496
      %v498 = vpop.f32.mrb[0].mxu0
      %v499 = vpop.f32.mrb[0].mxu0
      %v500 = vadd.f32 %v418, %v499
      %v501 = vpop.f32.mrb[0].mxu0
      %502 = vmatprep.mubr.bf16.mxu0 0
      %503 = vmatmul.mubr.bf16.gmra.mrb[0].mxu0 %v460
      %v504 = vpop.f32.mrb[0].mxu0
      %v505 = vadd.f32 %v419, %v504
      %v506 = vpop.f32.mrb[0].mxu0
      %v507 = vpop.f32.mrb[0].mxu0
      %v508 = vadd.f32 %v420, %v507
      %v509 = vpop.f32.mrb[0].mxu0
      %510 = vdwg.mxu0
      %v511 = vld [vmem:[#allocation3] sm:$0xff]
      %v512 = vld [vmem:[#allocation3 + $0x8] sm:$0xff]
      %v513 = vld [vmem:[#allocation3 + $0x10] sm:$0xff]
      %v514 = vld [vmem:[#allocation3 + $0x18] sm:$0xff]
      %v515 = vmax.f32 %v511, %v497
      %v516 = vmax.f32 %v512, %v500
      %v517 = vmax.f32 %v513, %v505
      %v518 = vmax.f32 %v514, %v508
      %519 = vst.msk [vmem:[#allocation3] sm:$0xff] %vm455, %v515
      %520 = vst.msk [vmem:[#allocation3 + $0x8] sm:$0xff] %vm455, %v516
      %521 = vst.msk [vmem:[#allocation3 + $0x10] sm:$0xff] %vm455, %v517
      %522 = vst.msk [vmem:[#allocation3 + $0x18] sm:$0xff] %vm455, %v518
      %v523 = vld [vmem:[#allocation4] sm:$0x1]
      %v524 = vsel %vm455, %v497, 0.0
      %v525 = vsel %vm455, %v500, 0.0
      %v526 = vadd.f32 %v524, %v525
      %v527 = vsel %vm455, %v505, 0.0
      %v528 = vadd.f32 %v526, %v527
      %v529 = vsel %vm455, %v508, 0.0
      %v530 = vadd.f32 %v528, %v529
      %v531 = vrot.slane %v530, 4
      %v532 = vadd.f32 %v530, %v531
      %v533 = vrot.slane %v532, 2
      %v534 = vadd.f32 %v532, %v533
      %v535 = vrot.slane %v534, 1
      %v536 = vadd.f32 %v534, %v535
      %v537 = vadd.f32 %v523, %v536
      %vm538 = vcmask 516096
      %539 = vst.msk [vmem:[#allocation4] sm:$0x1] %vm538, %v537
      %v540 = vld [vmem:[#allocation5] sm:$0x1]
      %v541 = vmul.f32 %v497, %v497
      %v542 = vmul.f32 %v500, %v500
      %v543 = vmul.f32 %v505, %v505
      %v544 = vmul.f32 %v508, %v508
      %v545 = vsel %vm455, %v541, 0.0
      %v546 = vsel %vm455, %v542, 0.0
      %v547 = vadd.f32 %v545, %v546
      %v548 = vsel %vm455, %v543, 0.0
      %v549 = vadd.f32 %v547, %v548
      %v550 = vsel %vm455, %v544, 0.0
      %v551 = vadd.f32 %v549, %v550
      %v552 = vrot.slane %v551, 4
      %v553 = vadd.f32 %v551, %v552
      %v554 = vrot.slane %v553, 2
      %v555 = vadd.f32 %v553, %v554
      %v556 = vrot.slane %v555, 1
      %v557 = vadd.f32 %v555, %v556
      %v558 = vadd.f32 %v540, %v557
      %559 = vst.msk [vmem:[#allocation5] sm:$0x1] %vm538, %v558
      %p560 = scmp.eq.s32.totalorder %s22, 3
      // Predicated region
      $region41: #{point_gen_forward.18} parent=35 // pred_check
        %p561 = pneg %p560
      $region42: #{point_gen_forward.18} parent=35 // pred_check_branch
        %563 = sbr.rel (%p561) target = $region44
      $region43: #{point_gen_forward.18} parent=35 // pred_region
        %v564 = vld [vmem:[#allocation3] sm:$0xff]
        %v565 = vld [vmem:[#allocation3 + $0x8] sm:$0xff]
        %v566 = vld [vmem:[#allocation3 + $0x10] sm:$0xff]
        %v567 = vld [vmem:[#allocation3 + $0x18] sm:$0xff]
        %568 = vst.msk [vmem:[%s281] sm:$0xff] %vm455, %v564
        %569 = vst.msk [vmem:[%s281 + $0x8] sm:$0xff] %vm455, %v565
        %570 = vst.msk [vmem:[%s281 + $0x10] sm:$0xff] %vm455, %v566
        %571 = vst.msk [vmem:[%s281 + $0x18] sm:$0xff] %vm455, %v567
        %v572 = vld [vmem:[#allocation4] sm:$0x1]
        %573 = vst.msk [vmem:[%s286] sm:$0x1] %vm538, %v572
        %v574 = vld [vmem:[#allocation5] sm:$0x1]
        %575 = vst.msk [vmem:[%s286 + $0x1] sm:$0x1] %vm538, %v574
      $region44: #{point_gen_forward.18} parent=35 // pred_fallthru
        _
      %s576 = smul.u32 4, %s21
      %p577 = scmp.lt.s32.totalorder %s576, 3
      %s578 = scalar_select %p577, %s576, 3
      %s579 = smul.addr %s578, 8
      %s580 = scalar_lea.vmem %s4, %s579
      %p581 = scmp.lt.s32.totalorder %s21, 0
      %s582 = scalar_select %p581, %s21, 0
      %s583 = smul.addr %s582, 2
      %s584 = scalar_lea.vmem %s5, %s583
      // Predicated region
      $region45: #{point_gen_forward.18} parent=35 // pred_check
        %p585 = pneg %p143
      $region46: #{point_gen_forward.18} parent=35 // pred_check_branch
        %587 = sbr.rel (%p585) target = $region48
      $region47: #{point_gen_forward.18} parent=35 // pred_region
        %s588 = smul.u32 4, %s21
      $region48: #{point_gen_forward.18} parent=35 // pred_fallthru
        _
      // Predicated region
      $region49: #{point_gen_forward.18} parent=35 // pred_check
        %p589 = pneg %p169
      $region50: #{point_gen_forward.18} parent=35 // pred_check_branch
        %591 = sbr.rel (%p589) target = $region52
      $region51: #{point_gen_forward.18} parent=35 // pred_region
        _
      $region52: #{point_gen_forward.18} parent=35 // pred_fallthru
        _
      // Predicated region
      $region53: #{point_gen_forward.18} parent=35 // pred_check
        %p592 = pneg %p143
      $region54: #{point_gen_forward.18} parent=35 // pred_check_branch
        %594 = sbr.rel (%p592) target = $region56
      $region55: #{point_gen_forward.18} parent=35 // pred_region
        %s595 = smul.u32 4, %s21
        %p596 = scmp.lt.s32.totalorder %s595, 3
        %s597 = scalar_select %p596, %s595, 3
        %s598 = smul.addr %s597, 8
        %s599 = scalar_lea.vmem %s4, %s598
      $region56: #{point_gen_forward.18} parent=35 // pred_fallthru
        _
      // Predicated region
      $region57: #{point_gen_forward.18} parent=35 // pred_check
        %p600 = pneg %p169
      $region58: #{point_gen_forward.18} parent=35 // pred_check_branch
        %602 = sbr.rel (%p600) target = $region60
      $region59: #{point_gen_forward.18} parent=35 // pred_region
        %p603 = scmp.lt.s32.totalorder %s21, 0
        %s604 = scalar_select %p603, %s21, 0
        %s605 = smul.addr %s604, 2
        %s606 = scalar_lea.vmem %s5, %s605
      $region60: #{point_gen_forward.18} parent=35 // pred_fallthru
        _
    $region36: #{point_gen_forward.18} parent=5 // pred_fallthru
      _
    %p607 = scmp.le.s32.totalorder 2, %s12
    // Predicated region
    $region61: #{point_gen_forward.18} parent=5 // pred_check
      %p608 = pneg %p607
    $region62: #{point_gen_forward.18} parent=5 // pred_check_branch
      %610 = sbr.rel (%p608) target = $region64
    $region63: #{point_gen_forward.18} parent=5 // pred_region
      %s611 = ssub.s32 %s12, 2
    $region64: #{point_gen_forward.18} parent=5 // pred_fallthru
      _
  $region6: #{point_gen_forward.18} parent=0 // loop_footer
    %s16 = sadd.s32 1, %s12
  $region7: #{point_gen_forward.18} parent=0 // loop_footer_branch
    %11 = sbr.rel target = $region3
  $region8: #{point_gen_forward.18} parent=0 // loop_exit
    _

// kernel: point_gen_forward.21
$region0: #{point_gen_forward.21}
  #allocation0 [shape = 'u32[]', space=smem, size = 0x4, offset = 0x4, fixed_abs, tag = 'smem constant byte address 0x4 - core index']
  #allocation1 [shape = 'u32[144,128]{1,0:T(1,128)}', space=vmem, size = 0x12000, scoped, tag = 'internal scratch']
  #allocation2 [shape = 'f32[32,128]{1,0:T(8,128)}', space=vmem, size = 0x4000, scoped, tag = 'scratch operand']
  #allocation3 [shape = 'f32[32,128]{1,0:T(8,128)}', space=vmem, size = 0x4000, scoped, tag = 'scratch operand']
  #allocation4 [shape = 'f32[1,128]{1,0:T(1,128)}', space=vmem, size = 0x200, scoped, tag = 'scratch operand']
  #allocation5 [shape = 'f32[1,128]{1,0:T(1,128)}', space=vmem, size = 0x200, scoped, tag = 'scratch operand']
  %s0 = inlined_call_operand.vmem [shape: bf16[4,32,64], index: 0, kind: input, shape index: {}]
  %s1 = inlined_call_operand.vmem [shape: bf16[32,64], index: 1, kind: input, shape index: {}]
  %s2 = inlined_call_operand.vmem [shape: bf16[64,128], index: 2, kind: input, shape index: {}]
  %s3 = inlined_call_operand.vmem [shape: bf16[64,128], index: 3, kind: input, shape index: {}]
  %s4 = inlined_call_operand.vmem [shape: f32[32,128], index: 4, kind: output, shape index: {0}]
  %s5 = inlined_call_operand.vmem [shape: f32[1,2,128], index: 5, kind: output, shape index: {1}]
  %6 = xla_tuple %s4, %s5
  %s7 = sld [smem:[#allocation0]]
  $region65: #{point_gen_forward.21} parent=0
    _
  %s9 = ssub.s32 1, %s7
  %s10 = scalar_select 0, %s9, %s7
  loop: start=0, step=1, limit=6
  $region2: #{point_gen_forward.21} parent=0 // loop_pre_header
    _
  $region3: #{point_gen_forward.21} parent=0 // loop_header
    %s12 = sphi 0, %s16
    %p13 = scmp.ge.s32.totalorder %s12, 6
    %s19 = sphi 0, %s31
    %s20 = sphi 0, %s27
    %s21 = sphi 0, %s19
    %s22 = sphi 0, %s20
    %s23 = sphi 0, %s21
    %s24 = sphi 0, %s22
    %s36 = sphi 0, %s38
    %s39 = sphi 0, %s36
    %s40 = sphi 0, %s39
    %s56 = sphi 0, %s40
    %s62 = sphi 0, %s64
    %s65 = sphi 0, %s62
    %s66 = sphi 0, %s65
    %s82 = sphi 0, %s66
    %s86 = sphi 0, %s86
    %s88 = sphi 0, %s86
    %s89 = sphi 0, %s88
    %s103 = sphi 0, %s89
    %s107 = sphi 0, %s107
    %s109 = sphi 0, %s107
    %s110 = sphi 0, %s109
    %s124 = sphi 0, %s110
    %s130 = sphi 0, %s132
    %s133 = sphi 0, %s130
    %s134 = sphi 0, %s133
    %s150 = sphi 0, %s134
    %s156 = sphi 0, %s158
    %s159 = sphi 0, %s156
    %s160 = sphi 0, %s159
    %s176 = sphi 0, %s160
  $region4: #{point_gen_forward.21} parent=0 // loop_header_branch
    %15 = sbr.rel (%p13) target = $region8
  $region5: #{point_gen_forward.21} parent=0 // loop_body
    %s17 = ssub.s32 %s12, 1
    %s18 = ssub.s32 %s12, 2
    %s25 = sadd.s32 1, %s20
    %p26 = scmp.ge.s32.totalorder %s25, 4
    %s27 = scalar_select %p26, 0, %s25
    %s28 = sadd.s32 1, %s19
    %s29 = scalar_select %p26, %s28, %s19
    %p30 = scmp.ge.s32.totalorder %s29, 1
    %s31 = scalar_select %p30, 0, %s29
    %s32 = ssub.s32 %s20, %s27
    %s33 = ssub.s32 %s19, %s31
    %s34 = sor.u32 %s32, %s33
    %p35 = scmp.eq.s32.totalorder %s34, 0
    %s37 = sadd.s32 %s36, 1
    %s38 = scalar_select %p35, %s36, %s37
    %p41 = pneg %p35
    %p42 = scmp.eq.s32.totalorder %s12, 3
    %p43 = por %p41, %p42
    %p44 = scmp.ne.s32.totalorder %s36, %s39
    %p45 = scmp.eq.s32.totalorder %s12, 0
    %p46 = por %p44, %p45
    %p47 = scmp.ne.s32.totalorder %s36, %s39
    %p48 = scmp.eq.s32.totalorder %s17, 3
    %p49 = por %p47, %p48
    %p50 = scmp.ne.s32.totalorder %s39, %s40
    %p51 = scmp.eq.s32.totalorder %s17, 0
    %p52 = por %p50, %p51
    %p53 = scmp.ne.s32.totalorder %s39, %s40
    %p54 = scmp.eq.s32.totalorder %s18, 3
    %p55 = por %p53, %p54
    %p57 = scmp.ne.s32.totalorder %s40, %s56
    %p58 = scmp.eq.s32.totalorder %s18, 0
    %p59 = por %p57, %p58
    %s60 = ssub.s32 %s19, %s31
    %p61 = scmp.eq.s32.totalorder %s60, 0
    %s63 = sadd.s32 %s62, 1
    %s64 = scalar_select %p61, %s62, %s63
    %p67 = pneg %p61
    %p68 = scmp.eq.s32.totalorder %s12, 3
    %p69 = por %p67, %p68
    %p70 = scmp.ne.s32.totalorder %s62, %s65
    %p71 = scmp.eq.s32.totalorder %s12, 0
    %p72 = por %p70, %p71
    %p73 = scmp.ne.s32.totalorder %s62, %s65
    %p74 = scmp.eq.s32.totalorder %s17, 3
    %p75 = por %p73, %p74
    %p76 = scmp.ne.s32.totalorder %s65, %s66
    %p77 = scmp.eq.s32.totalorder %s17, 0
    %p78 = por %p76, %p77
    %p79 = scmp.ne.s32.totalorder %s65, %s66
    %p80 = scmp.eq.s32.totalorder %s18, 3
    %p81 = por %p79, %p80
    %p83 = scmp.ne.s32.totalorder %s66, %s82
    %p84 = scmp.eq.s32.totalorder %s18, 0
    %p85 = por %p83, %p84
    %s87 = sadd.s32 %s86, 1
    %p90 = scmp.eq.s32.totalorder %s12, 3
    %p91 = scmp.ne.s32.totalorder %s86, %s88
    %p92 = scmp.eq.s32.totalorder %s12, 0
    %p93 = por %p91, %p92
    %p94 = scmp.ne.s32.totalorder %s86, %s88
    %p95 = scmp.eq.s32.totalorder %s17, 3
    %p96 = por %p94, %p95
    %p97 = scmp.ne.s32.totalorder %s88, %s89
    %p98 = scmp.eq.s32.totalorder %s17, 0
    %p99 = por %p97, %p98
    %p100 = scmp.ne.s32.totalorder %s88, %s89
    %p101 = scmp.eq.s32.totalorder %s18, 3
    %p102 = por %p100, %p101
    %p104 = scmp.ne.s32.totalorder %s89, %s103
    %p105 = scmp.eq.s32.totalorder %s18, 0
    %p106 = por %p104, %p105
    %s108 = sadd.s32 %s107, 1
    %p111 = scmp.eq.s32.totalorder %s12, 3
    %p112 = scmp.ne.s32.totalorder %s107, %s109
    %p113 = scmp.eq.s32.totalorder %s12, 0
    %p114 = por %p112, %p113
    %p115 = scmp.ne.s32.totalorder %s107, %s109
    %p116 = scmp.eq.s32.totalorder %s17, 3
    %p117 = por %p115, %p116
    %p118 = scmp.ne.s32.totalorder %s109, %s110
    %p119 = scmp.eq.s32.totalorder %s17, 0
    %p120 = por %p118, %p119
    %p121 = scmp.ne.s32.totalorder %s109, %s110
    %p122 = scmp.eq.s32.totalorder %s18, 3
    %p123 = por %p121, %p122
    %p125 = scmp.ne.s32.totalorder %s110, %s124
    %p126 = scmp.eq.s32.totalorder %s18, 0
    %p127 = por %p125, %p126
    %s128 = ssub.s32 %s19, %s31
    %p129 = scmp.eq.s32.totalorder %s128, 0
    %s131 = sadd.s32 %s130, 1
    %s132 = scalar_select %p129, %s130, %s131
    %p135 = pneg %p129
    %p136 = scmp.eq.s32.totalorder %s12, 3
    %p137 = por %p135, %p136
    %p138 = scmp.ne.s32.totalorder %s130, %s133
    %p139 = scmp.eq.s32.totalorder %s12, 0
    %p140 = por %p138, %p139
    %p141 = scmp.ne.s32.totalorder %s130, %s133
    %p142 = scmp.eq.s32.totalorder %s17, 3
    %p143 = por %p141, %p142
    %p144 = scmp.ne.s32.totalorder %s133, %s134
    %p145 = scmp.eq.s32.totalorder %s17, 0
    %p146 = por %p144, %p145
    %p147 = scmp.ne.s32.totalorder %s133, %s134
    %p148 = scmp.eq.s32.totalorder %s18, 3
    %p149 = por %p147, %p148
    %p151 = scmp.ne.s32.totalorder %s134, %s150
    %p152 = scmp.eq.s32.totalorder %s18, 0
    %p153 = por %p151, %p152
    %s154 = ssub.s32 %s19, %s31
    %p155 = scmp.eq.s32.totalorder %s154, 0
    %s157 = sadd.s32 %s156, 1
    %s158 = scalar_select %p155, %s156, %s157
    %p161 = pneg %p155
    %p162 = scmp.eq.s32.totalorder %s12, 3
    %p163 = por %p161, %p162
    %p164 = scmp.ne.s32.totalorder %s156, %s159
    %p165 = scmp.eq.s32.totalorder %s12, 0
    %p166 = por %p164, %p165
    %p167 = scmp.ne.s32.totalorder %s156, %s159
    %p168 = scmp.eq.s32.totalorder %s17, 3
    %p169 = por %p167, %p168
    %p170 = scmp.ne.s32.totalorder %s159, %s160
    %p171 = scmp.eq.s32.totalorder %s17, 0
    %p172 = por %p170, %p171
    %p173 = scmp.ne.s32.totalorder %s159, %s160
    %p174 = scmp.eq.s32.totalorder %s18, 3
    %p175 = por %p173, %p174
    %p177 = scmp.ne.s32.totalorder %s160, %s176
    %p178 = scmp.eq.s32.totalorder %s18, 0
    %p179 = por %p177, %p178
    %p180 = scmp.le.s32.totalorder 1, %s12
    %p181 = scmp.lt.s32.totalorder %s12, 5
    %p182 = pnand %p180, %p181
    %p183 = pneg %p182
    // Predicated region
    $region9: #{point_gen_forward.21} parent=5 // pred_check
      _
    $region10: #{point_gen_forward.21} parent=5 // pred_check_branch
      %185 = sbr.rel (%p182) target = $region12
    $region11: #{point_gen_forward.21} parent=5 // pred_region
      %s186 = ssub.s32 %s12, 1
      // Predicated region
      $region13: #{point_gen_forward.21} parent=11 // pred_check
        %p187 = pneg %p78
      $region14: #{point_gen_forward.21} parent=11 // pred_check_branch
        %189 = sbr.rel (%p187) target = $region16
      $region15: #{point_gen_forward.21} parent=11 // pred_region
        %s190 = smul.u32 4, %s21
        %p191 = scmp.lt.s32.totalorder %s190, 3
        %s192 = scalar_select %p191, %s190, 3
        %s193 = smul.addr %s192, 4
        %s194 = scalar_lea.vmem %s1, %s193
        %s195 = smul.u32 4, %s21
      $region16: #{point_gen_forward.21} parent=11 // pred_fallthru
        _
      // Predicated region
      $region17: #{point_gen_forward.21} parent=11 // pred_check
        %p196 = pneg %p99
      $region18: #{point_gen_forward.21} parent=11 // pred_check_branch
        %198 = sbr.rel (%p196) target = $region20
      $region19: #{point_gen_forward.21} parent=11 // pred_region
        _
      $region20: #{point_gen_forward.21} parent=11 // pred_fallthru
        _
      // Predicated region
      $region21: #{point_gen_forward.21} parent=11 // pred_check
        %p199 = pneg %p120
      $region22: #{point_gen_forward.21} parent=11 // pred_check_branch
        %201 = sbr.rel (%p199) target = $region24
      $region23: #{point_gen_forward.21} parent=11 // pred_region
        _
      $region24: #{point_gen_forward.21} parent=11 // pred_fallthru
        _
    $region12: #{point_gen_forward.21} parent=5 // pred_fallthru
      _
    %p202 = scmp.lt.s32.totalorder %s12, 4
    // Predicated region
    $region25: #{point_gen_forward.21} parent=5 // pred_check
      %p203 = pneg %p202
    $region26: #{point_gen_forward.21} parent=5 // pred_check_branch
      %205 = sbr.rel (%p203) target = $region28
    $region27: #{point_gen_forward.21} parent=5 // pred_region
      // Predicated region
      $region29: #{point_gen_forward.21} parent=27 // pred_check
        %p206 = pneg %p46
      $region30: #{point_gen_forward.21} parent=27 // pred_check_branch
        %208 = sbr.rel (%p206) target = $region32
      $region31: #{point_gen_forward.21} parent=27 // pred_region
        %s209 = smul.u32 4, %s19
        %p210 = scmp.lt.s32.totalorder %s20, 3
        %s211 = scalar_select %p210, %s20, 3
        %p212 = scmp.lt.s32.totalorder %s209, 3
        %s213 = scalar_select %p212, %s209, 3
        %s214 = smul.addr %s211, 4
        %s215 = sadd.s32 %s213, %s214
        %s216 = smul.addr %s215, 4
        %s217 = scalar_lea.vmem %s0, %s216
        %s218 = smul.u32 4, %s19
      $region32: #{point_gen_forward.21} parent=27 // pred_fallthru
        _
    $region28: #{point_gen_forward.21} parent=5 // pred_fallthru
      _
    %p219 = scmp.le.s32.totalorder 1, %s12
    %p220 = scmp.lt.s32.totalorder %s12, 5
    %p221 = pnand %p219, %p220
    %p222 = pneg %p221
    // Predicated region
    $region33: #{point_gen_forward.21} parent=5 // pred_check
      _
    $region34: #{point_gen_forward.21} parent=5 // pred_check_branch
      %224 = sbr.rel (%p221) target = $region36
    $region35: #{point_gen_forward.21} parent=5 // pred_region
      %s225 = ssub.s32 %s12, 1
      %s226 = smul.u32 4, %s21
      %p227 = scmp.lt.s32.totalorder %s22, 3
      %s228 = scalar_select %p227, %s22, 3
      %p229 = scmp.lt.s32.totalorder %s226, 3
      %s230 = scalar_select %p229, %s226, 3
      %s231 = smul.addr %s228, 4
      %s232 = sadd.s32 %s230, %s231
      %s233 = smul.addr %s232, 4
      %s234 = scalar_lea.vmem %s0, %s233
      %p235 = pneg %p52
      %p236 = pneg %p49
      %s237 = smul.u32 4, %s21
      %p238 = scmp.lt.s32.totalorder %s237, 3
      %s239 = scalar_select %p238, %s237, 3
      %s240 = smul.addr %s239, 4
      %s241 = scalar_lea.vmem %s1, %s240
      %p242 = pneg %p78
      %p243 = pneg %p75
      %p244 = pneg %p99
      %p245 = pneg %p96
      %p246 = pneg %p120
      %p247 = pneg %p117
      %p248 = pneg %p146
      %p249 = pneg %p143
      %s250 = smul.u32 4, %s21
      %p251 = scmp.lt.s32.totalorder %s250, 3
      %s252 = scalar_select %p251, %s250, 3
      %s253 = smul.addr %s252, 8
      %s254 = scalar_lea.vmem %s4, %s253
      %p255 = pneg %p172
      %p256 = pneg %p169
      %p257 = scmp.lt.s32.totalorder %s21, 0
      %s258 = scalar_select %p257, %s21, 0
      %s259 = smul.addr %s258, 2
      %s260 = scalar_lea.vmem %s5, %s259
      %s261 = smul.u32 4, %s21
      %p262 = scmp.lt.s32.totalorder %s22, 3
      %s263 = scalar_select %p262, %s22, 3
      %p264 = scmp.lt.s32.totalorder %s261, 3
      %s265 = scalar_select %p264, %s261, 3
      %s266 = smul.addr %s263, 4
      %s267 = sadd.s32 %s265, %s266
      %s268 = smul.addr %s267, 4
      %s269 = scalar_lea.vmem %s0, %s268
      %s270 = smul.u32 4, %s21
      %s271 = smul.u32 4, %s21
      %p272 = scmp.lt.s32.totalorder %s271, 3
      %s273 = scalar_select %p272, %s271, 3
      %s274 = smul.addr %s273, 4
      %s275 = scalar_lea.vmem %s1, %s274
      %s276 = smul.u32 4, %s21
      %s277 = smul.u32 4, %s21
      %p278 = scmp.lt.s32.totalorder %s277, 3
      %s279 = scalar_select %p278, %s277, 3
      %s280 = smul.addr %s279, 8
      %s281 = scalar_lea.vmem %s4, %s280
      %s282 = smul.u32 4, %s21
      %p283 = scmp.lt.s32.totalorder %s21, 0
      %s284 = scalar_select %p283, %s21, 0
      %s285 = smul.addr %s284, 2
      %s286 = scalar_lea.vmem %s5, %s285
      %p288 = scmp.eq.s32.totalorder %s22, 0
      // Predicated region
      $region37: #{point_gen_forward.21} parent=35 // pred_check
        %p289 = pneg %p288
      $region38: #{point_gen_forward.21} parent=35 // pred_check_branch
        %291 = sbr.rel (%p289) target = $region40
      $region39: #{point_gen_forward.21} parent=35 // pred_region
        %v292 = vld [vmem:[%s275] sm:$0xf]
        %v293 = vld [vmem:[%s275 + $0x4] sm:$0xf]
        %v294 = vld [vmem:[%s275 + $0x8] sm:$0xf]
        %v295 = vld [vmem:[%s275 + $0xc] sm:$0xf]
        %v296 = vld [vmem:[%s3] sm:$0xf]
        %v297 = vld [vmem:[%s3 + $0x4] sm:$0xf]
        %v298 = vld [vmem:[%s3 + $0x8] sm:$0xf]
        %v299 = vld [vmem:[%s3 + $0xc] sm:$0xf]
        %v300 = vld [vmem:[%s3 + $0x10] sm:$0xf]
        %v301 = vld [vmem:[%s3 + $0x14] sm:$0xf]
        %v302 = vld [vmem:[%s3 + $0x18] sm:$0xf]
        %v303 = vld [vmem:[%s3 + $0x1c] sm:$0xf]
        %v308 = vunpack.c.l.b16 %v292
        %v309 = vunpack.c.l.b16 %v293
        %v310 = vunpack.c.l.b16 %v294
        %v311 = vunpack.c.l.b16 %v295
        %v312 = vpack.c.b16 %v309, %v308
        %v313 = vpack.c.b16 %v311, %v310
        %v322 = vunpack.c.l.b16 %v296
        %v323 = vunpack.c.l.b16 %v297
        %v324 = vunpack.c.l.b16 %v298
        %v325 = vunpack.c.l.b16 %v299
        %v326 = vunpack.c.l.b16 %v300
        %v327 = vunpack.c.l.b16 %v301
        %v328 = vunpack.c.l.b16 %v302
        %v329 = vunpack.c.l.b16 %v303
        %v330 = vpack.c.b16 %v323, %v322
        %v331 = vpack.c.b16 %v325, %v324
        %v332 = vpack.c.b16 %v327, %v326
        %v333 = vpack.c.b16 %v329, %v328
        %vm338 = vcmask 523264
        %v340 = vsel %vm338, %v312, 0
        %v343 = vsel %vm338, %v313, 0
        %345 = vmatprep.subr.bf16.mxu0 0
        %346 = vmatpush1.bf16.msra.mxu0 %v330
        %347 = vmatprep.subr.bf16.mxu0 0
        %348 = vmatpush1.bf16.msra.mxu0 %v331
        %349 = vmatprep.subr.bf16.mxu0 0
        %350 = vmatpush1.bf16.msra.mxu0 %v332
        %351 = vmatprep.subr.bf16.mxu0 0
        %352 = vmatpush1.bf16.msra.mxu0 %v333
        %353 = vmatprep.subr.bf16.mxu0 0
        %354 = vmatpush1.bf16.msra.mxu0 0
        %355 = vmatprep.subr.bf16.mxu0 0
        %356 = vmatpush1.bf16.msra.mxu0 0
        %357 = vmatprep.subr.bf16.mxu0 0
        %358 = vmatpush1.bf16.msra.mxu0 0
        %359 = vmatprep.subr.bf16.mxu0 0
        %360 = vmatpush1.bf16.msra.mxu0 0
        %361 = vmatprep.subr.bf16.mxu0 0
        %362 = vmatpush1.bf16.msra.mxu0 0
        %363 = vmatprep.subr.bf16.mxu0 0
        %364 = vmatpush1.bf16.msra.mxu0 0
        %365 = vmatprep.subr.bf16.mxu0 0
        %366 = vmatpush1.bf16.msra.mxu0 0
        %367 = vmatprep.subr.bf16.mxu0 0
        %368 = vmatpush1.bf16.msra.mxu0 0
        %369 = vmatprep.subr.bf16.mxu0 0
        %370 = vmatpush1.bf16.msra.mxu0 0
        %371 = vmatprep.subr.bf16.mxu0 0
        %372 = vmatpush1.bf16.msra.mxu0 0
        %373 = vmatprep.subr.bf16.mxu0 0
        %374 = vmatpush1.bf16.msra.mxu0 0
        %375 = vmatprep.subr.bf16.mxu0 0
        %376 = vmatpush1.bf16.msra.mxu0 0
        %377 = vmatprep.mubr.bf16.mxu0 0
        %378 = vmatmul.mubr.bf16.gmra.mrb[0].mxu0 %v340
        %v379 = vpop.f32.mrb[0].mxu0
        %v380 = vadd.f32 0.0, %v379
        %v381 = vpop.f32.mrb[0].mxu0
        %v382 = vpop.f32.mrb[0].mxu0
        %v383 = vadd.f32 0.0, %v382
        %v384 = vpop.f32.mrb[0].mxu0
        %385 = vmatprep.mubr.bf16.mxu0 0
        %386 = vmatmul.mubr.bf16.gmra.mrb[0].mxu0 %v343
        %v387 = vpop.f32.mrb[0].mxu0
        %v388 = vadd.f32 0.0, %v387
        %v389 = vpop.f32.mrb[0].mxu0
        %v390 = vpop.f32.mrb[0].mxu0
        %v391 = vadd.f32 0.0, %v390
        %v392 = vpop.f32.mrb[0].mxu0
        %393 = vdwg.mxu0
        %394 = vst [vmem:[#allocation2] sm:$0xff] %v380
        %395 = vst [vmem:[#allocation2 + $0x8] sm:$0xff] %v383
        %396 = vst [vmem:[#allocation2 + $0x10] sm:$0xff] %v388
        %397 = vst [vmem:[#allocation2 + $0x18] sm:$0xff] %v391
        %398 = vst [vmem:[#allocation3] sm:$0xff] -inf
        %399 = vst [vmem:[#allocation3 + $0x8] sm:$0xff] -inf
        %400 = vst [vmem:[#allocation3 + $0x10] sm:$0xff] -inf
        %401 = vst [vmem:[#allocation3 + $0x18] sm:$0xff] -inf
        %402 = vst [vmem:[#allocation4] sm:$0x1] 0.0
        %403 = vst [vmem:[#allocation5] sm:$0x1] 0.0
      $region40: #{point_gen_forward.21} parent=35 // pred_fallthru
        _
      %v404 = vld [vmem:[%s269] sm:$0xf]
      %v405 = vld [vmem:[%s269 + $0x4] sm:$0xf]
      %v406 = vld [vmem:[%s269 + $0x8] sm:$0xf]
      %v407 = vld [vmem:[%s269 + $0xc] sm:$0xf]
      %v408 = vld [vmem:[%s2] sm:$0xf]
      %v409 = vld [vmem:[%s2 + $0x4] sm:$0xf]
      %v410 = vld [vmem:[%s2 + $0x8] sm:$0xf]
      %v411 = vld [vmem:[%s2 + $0xc] sm:$0xf]
      %v412 = vld [vmem:[%s2 + $0x10] sm:$0xf]
      %v413 = vld [vmem:[%s2 + $0x14] sm:$0xf]
      %v414 = vld [vmem:[%s2 + $0x18] sm:$0xf]
      %v415 = vld [vmem:[%s2 + $0x1c] sm:$0xf]
      %v416 = vld [vmem:[#allocation2] sm:$0xff]
      %v417 = vld [vmem:[#allocation2 + $0x8] sm:$0xff]
      %v418 = vld [vmem:[#allocation2 + $0x10] sm:$0xff]
      %v419 = vld [vmem:[#allocation2 + $0x18] sm:$0xff]
      %v424 = vunpack.c.l.b16 %v404
      %v425 = vunpack.c.l.b16 %v405
      %v426 = vunpack.c.l.b16 %v406
      %v427 = vunpack.c.l.b16 %v407
      %v428 = vpack.c.b16 %v425, %v424
      %v429 = vpack.c.b16 %v427, %v426
      %v438 = vunpack.c.l.b16 %v408
      %v439 = vunpack.c.l.b16 %v409
      %v440 = vunpack.c.l.b16 %v410
      %v441 = vunpack.c.l.b16 %v411
      %v442 = vunpack.c.l.b16 %v412
      %v443 = vunpack.c.l.b16 %v413
      %v444 = vunpack.c.l.b16 %v414
      %v445 = vunpack.c.l.b16 %v415
      %v446 = vpack.c.b16 %v439, %v438
      %v447 = vpack.c.b16 %v441, %v440
      %v448 = vpack.c.b16 %v443, %v442
      %v449 = vpack.c.b16 %v445, %v444
      %vm454 = vcmask 523264
      %v456 = vsel %vm454, %v428, 0
      %v459 = vsel %vm454, %v429, 0
      %461 = vmatprep.subr.bf16.mxu0 0
      %462 = vmatpush1.bf16.msra.mxu0 %v446
      %463 = vmatprep.subr.bf16.mxu0 0
      %464 = vmatpush1.bf16.msra.mxu0 %v447
      %465 = vmatprep.subr.bf16.mxu0 0
      %466 = vmatpush1.bf16.msra.mxu0 %v448
      %467 = vmatprep.subr.bf16.mxu0 0
      %468 = vmatpush1.bf16.msra.mxu0 %v449
      %469 = vmatprep.subr.bf16.mxu0 0
      %470 = vmatpush1.bf16.msra.mxu0 0
      %471 = vmatprep.subr.bf16.mxu0 0
      %472 = vmatpush1.bf16.msra.mxu0 0
      %473 = vmatprep.subr.bf16.mxu0 0
      %474 = vmatpush1.bf16.msra.mxu0 0
      %475 = vmatprep.subr.bf16.mxu0 0
      %476 = vmatpush1.bf16.msra.mxu0 0
      %477 = vmatprep.subr.bf16.mxu0 0
      %478 = vmatpush1.bf16.msra.mxu0 0
      %479 = vmatprep.subr.bf16.mxu0 0
      %480 = vmatpush1.bf16.msra.mxu0 0
      %481 = vmatprep.subr.bf16.mxu0 0
      %482 = vmatpush1.bf16.msra.mxu0 0
      %483 = vmatprep.subr.bf16.mxu0 0
      %484 = vmatpush1.bf16.msra.mxu0 0
      %485 = vmatprep.subr.bf16.mxu0 0
      %486 = vmatpush1.bf16.msra.mxu0 0
      %487 = vmatprep.subr.bf16.mxu0 0
      %488 = vmatpush1.bf16.msra.mxu0 0
      %489 = vmatprep.subr.bf16.mxu0 0
      %490 = vmatpush1.bf16.msra.mxu0 0
      %491 = vmatprep.subr.bf16.mxu0 0
      %492 = vmatpush1.bf16.msra.mxu0 0
      %493 = vmatprep.mubr.bf16.mxu0 0
      %494 = vmatmul.mubr.bf16.gmra.mrb[0].mxu0 %v456
      %v495 = vpop.f32.mrb[0].mxu0
      %v496 = vadd.f32 %v416, %v495
      %v497 = vpop.f32.mrb[0].mxu0
      %v498 = vpop.f32.mrb[0].mxu0
      %v499 = vadd.f32 %v417, %v498
      %v500 = vpop.f32.mrb[0].mxu0
      %501 = vmatprep.mubr.bf16.mxu0 0
      %502 = vmatmul.mubr.bf16.gmra.mrb[0].mxu0 %v459
      %v503 = vpop.f32.mrb[0].mxu0
      %v504 = vadd.f32 %v418, %v503
      %v505 = vpop.f32.mrb[0].mxu0
      %v506 = vpop.f32.mrb[0].mxu0
      %v507 = vadd.f32 %v419, %v506
      %v508 = vpop.f32.mrb[0].mxu0
      %509 = vdwg.mxu0
      %v510 = vld [vmem:[#allocation3] sm:$0xff]
      %v511 = vld [vmem:[#allocation3 + $0x8] sm:$0xff]
      %v512 = vld [vmem:[#allocation3 + $0x10] sm:$0xff]
      %v513 = vld [vmem:[#allocation3 + $0x18] sm:$0xff]
      %v514 = vmax.f32 %v510, %v496
      %v515 = vmax.f32 %v511, %v499
      %v516 = vmax.f32 %v512, %v504
      %v517 = vmax.f32 %v513, %v507
      %518 = vst [vmem:[#allocation3] sm:$0xff] %v514
      %519 = vst [vmem:[#allocation3 + $0x8] sm:$0xff] %v515
      %520 = vst [vmem:[#allocation3 + $0x10] sm:$0xff] %v516
      %521 = vst [vmem:[#allocation3 + $0x18] sm:$0xff] %v517
      %v522 = vld [vmem:[#allocation4] sm:$0x1]
      %v523 = vadd.f32 %v496, %v499
      %v524 = vadd.f32 %v523, %v504
      %v525 = vadd.f32 %v524, %v507
      %v526 = vrot.slane %v525, 4
      %v527 = vadd.f32 %v525, %v526
      %v528 = vrot.slane %v527, 2
      %v529 = vadd.f32 %v527, %v528
      %v530 = vrot.slane %v529, 1
      %v531 = vadd.f32 %v529, %v530
      %v532 = vadd.f32 %v522, %v531
      %533 = vst [vmem:[#allocation4] sm:$0x1] %v532
      %v534 = vld [vmem:[#allocation5] sm:$0x1]
      %v535 = vmul.f32 %v496, %v496
      %v536 = vmul.f32 %v499, %v499
      %v537 = vmul.f32 %v504, %v504
      %v538 = vmul.f32 %v507, %v507
      %v539 = vadd.f32 %v535, %v536
      %v540 = vadd.f32 %v539, %v537
      %v541 = vadd.f32 %v540, %v538
      %v542 = vrot.slane %v541, 4
      %v543 = vadd.f32 %v541, %v542
      %v544 = vrot.slane %v543, 2
      %v545 = vadd.f32 %v543, %v544
      %v546 = vrot.slane %v545, 1
      %v547 = vadd.f32 %v545, %v546
      %v548 = vadd.f32 %v534, %v547
      %549 = vst [vmem:[#allocation5] sm:$0x1] %v548
      %p550 = scmp.eq.s32.totalorder %s22, 3
      // Predicated region
      $region41: #{point_gen_forward.21} parent=35 // pred_check
        %p551 = pneg %p550
      $region42: #{point_gen_forward.21} parent=35 // pred_check_branch
        %553 = sbr.rel (%p551) target = $region44
      $region43: #{point_gen_forward.21} parent=35 // pred_region
        %v554 = vld [vmem:[#allocation3] sm:$0xff]
        %v555 = vld [vmem:[#allocation3 + $0x8] sm:$0xff]
        %v556 = vld [vmem:[#allocation3 + $0x10] sm:$0xff]
        %v557 = vld [vmem:[#allocation3 + $0x18] sm:$0xff]
        %558 = vst [vmem:[%s281] sm:$0xff] %v554
        %559 = vst [vmem:[%s281 + $0x8] sm:$0xff] %v555
        %560 = vst [vmem:[%s281 + $0x10] sm:$0xff] %v556
        %561 = vst [vmem:[%s281 + $0x18] sm:$0xff] %v557
        %v562 = vld [vmem:[#allocation4] sm:$0x1]
        %563 = vst [vmem:[%s286] sm:$0x1] %v562
        %v564 = vld [vmem:[#allocation5] sm:$0x1]
        %565 = vst [vmem:[%s286 + $0x1] sm:$0x1] %v564
      $region44: #{point_gen_forward.21} parent=35 // pred_fallthru
        _
      %s566 = smul.u32 4, %s21
      %p567 = scmp.lt.s32.totalorder %s566, 3
      %s568 = scalar_select %p567, %s566, 3
      %s569 = smul.addr %s568, 8
      %s570 = scalar_lea.vmem %s4, %s569
      %p571 = scmp.lt.s32.totalorder %s21, 0
      %s572 = scalar_select %p571, %s21, 0
      %s573 = smul.addr %s572, 2
      %s574 = scalar_lea.vmem %s5, %s573
      // Predicated region
      $region45: #{point_gen_forward.21} parent=35 // pred_check
        %p575 = pneg %p143
      $region46: #{point_gen_forward.21} parent=35 // pred_check_branch
        %577 = sbr.rel (%p575) target = $region48
      $region47: #{point_gen_forward.21} parent=35 // pred_region
        %s578 = smul.u32 4, %s21
      $region48: #{point_gen_forward.21} parent=35 // pred_fallthru
        _
      // Predicated region
      $region49: #{point_gen_forward.21} parent=35 // pred_check
        %p579 = pneg %p169
      $region50: #{point_gen_forward.21} parent=35 // pred_check_branch
        %581 = sbr.rel (%p579) target = $region52
      $region51: #{point_gen_forward.21} parent=35 // pred_region
        _
      $region52: #{point_gen_forward.21} parent=35 // pred_fallthru
        _
      // Predicated region
      $region53: #{point_gen_forward.21} parent=35 // pred_check
        %p582 = pneg %p143
      $region54: #{point_gen_forward.21} parent=35 // pred_check_branch
        %584 = sbr.rel (%p582) target = $region56
      $region55: #{point_gen_forward.21} parent=35 // pred_region
        %s585 = smul.u32 4, %s21
        %p586 = scmp.lt.s32.totalorder %s585, 3
        %s587 = scalar_select %p586, %s585, 3
        %s588 = smul.addr %s587, 8
        %s589 = scalar_lea.vmem %s4, %s588
      $region56: #{point_gen_forward.21} parent=35 // pred_fallthru
        _
      // Predicated region
      $region57: #{point_gen_forward.21} parent=35 // pred_check
        %p590 = pneg %p169
      $region58: #{point_gen_forward.21} parent=35 // pred_check_branch
        %592 = sbr.rel (%p590) target = $region60
      $region59: #{point_gen_forward.21} parent=35 // pred_region
        %p593 = scmp.lt.s32.totalorder %s21, 0
        %s594 = scalar_select %p593, %s21, 0
        %s595 = smul.addr %s594, 2
        %s596 = scalar_lea.vmem %s5, %s595
      $region60: #{point_gen_forward.21} parent=35 // pred_fallthru
        _
    $region36: #{point_gen_forward.21} parent=5 // pred_fallthru
      _
    %p597 = scmp.le.s32.totalorder 2, %s12
    // Predicated region
    $region61: #{point_gen_forward.21} parent=5 // pred_check
      %p598 = pneg %p597
    $region62: #{point_gen_forward.21} parent=5 // pred_check_branch
      %600 = sbr.rel (%p598) target = $region64
    $region63: #{point_gen_forward.21} parent=5 // pred_region
      %s601 = ssub.s32 %s12, 2
    $region64: #{point_gen_forward.21} parent=5 // pred_fallthru
      _
  $region6: #{point_gen_forward.21} parent=0 // loop_footer
    %s16 = sadd.s32 1, %s12
  $region7: #{point_gen_forward.21} parent=0 // loop_footer_branch
    %11 = sbr.rel target = $region3
  $region8: #{point_gen_forward.21} parent=0 // loop_exit
    _

// kernel: point_gen_forward.22
$region0: #{point_gen_forward.22}
  #allocation0 [shape = 'u32[]', space=smem, size = 0x4, offset = 0x4, fixed_abs, tag = 'smem constant byte address 0x4 - core index']
  #allocation1 [shape = 'u32[144,128]{1,0:T(1,128)}', space=vmem, size = 0x12000, scoped, tag = 'internal scratch']
  %s0 = inlined_call_operand.vmem [shape: f32[32,128], index: 0, kind: input, shape index: {}]
  %s1 = inlined_call_operand.vmem [shape: f32[1,128], index: 1, kind: input, shape index: {}]
  %s2 = inlined_call_operand.vmem [shape: f32[1,128], index: 2, kind: input, shape index: {}]
  %s3 = inlined_call_operand.vmem [shape: bf16[32,128], index: 3, kind: output, shape index: {}]
  %s4 = sld [smem:[#allocation0]]
  $region22: #{point_gen_forward.22} parent=0
    _
  %s6 = ssub.s32 1, %s4
  %s7 = scalar_select 0, %s6, %s4
  // Predicated region
  $region2: #{point_gen_forward.22} parent=0 // pred_check
    _
  $region3: #{point_gen_forward.22} parent=0 // pred_check_branch
    %9 = sbr.rel (0) target = $region5
  $region4: #{point_gen_forward.22} parent=0 // pred_region
    _
  $region5: #{point_gen_forward.22} parent=0 // pred_fallthru
    _
  // Predicated region
  $region6: #{point_gen_forward.22} parent=0 // pred_check
    _
  $region7: #{point_gen_forward.22} parent=0 // pred_check_branch
    %11 = sbr.rel (0) target = $region9
  $region8: #{point_gen_forward.22} parent=0 // pred_region
    _
  $region9: #{point_gen_forward.22} parent=0 // pred_fallthru
    _
  // Predicated region
  $region10: #{point_gen_forward.22} parent=0 // pred_check
    _
  $region11: #{point_gen_forward.22} parent=0 // pred_check_branch
    %13 = sbr.rel (0) target = $region13
  $region12: #{point_gen_forward.22} parent=0 // pred_region
    _
  $region13: #{point_gen_forward.22} parent=0 // pred_fallthru
    _
  %v14 = vld [vmem:[%s0] sm:$0xff]
  %v15 = vld [vmem:[%s0 + $0x8] sm:$0xff]
  %v16 = vld [vmem:[%s0 + $0x10] sm:$0xff]
  %v17 = vld [vmem:[%s0 + $0x18] sm:$0xff]
  %v18 = vld [vmem:[%s1] sm:$0x1]
  %v20 = vlaneseq
  %v21 = vshrl.u32 %v20, 7
  %v22 = vsub.s32 0, %v21
  %v23 = vrot.slane %v18, %v22
  %v25 = vmul.f32 %v14, %v23
  %v26 = vmul.f32 %v15, %v23
  %v27 = vmul.f32 %v16, %v23
  %v28 = vmul.f32 %v17, %v23
  %v29 = vld [vmem:[%s2] sm:$0x1]
  %v31 = vlaneseq
  %v32 = vshrl.u32 %v31, 7
  %v33 = vsub.s32 0, %v32
  %v34 = vrot.slane %v29, %v33
  %v36 = vadd.f32 %v25, %v34
  %v37 = vadd.f32 %v26, %v34
  %v38 = vadd.f32 %v27, %v34
  %v39 = vadd.f32 %v28, %v34
  %vm40 = vcmp.gt.f32.partialorder %v36, 0.0
  %vm41 = vcmp.gt.f32.partialorder %v37, 0.0
  %vm42 = vcmp.gt.f32.partialorder %v38, 0.0
  %vm43 = vcmp.gt.f32.partialorder %v39, 0.0
  %v44 = vmul.f32 %v36, 0.2
  %v45 = vmul.f32 %v37, 0.2
  %v46 = vmul.f32 %v38, 0.2
  %v47 = vmul.f32 %v39, 0.2
  %v48 = vsel %vm40, %v36, %v44
  %v49 = vsel %vm41, %v37, %v45
  %v50 = vsel %vm42, %v38, %v46
  %v51 = vsel %vm43, %v39, %v47
  %v52 = vpack.c.bf16 %v49, %v48
  %v53 = vpack.c.bf16 %v51, %v50
  %v56 = vunpack.c.l.b16 %v52
  %v57 = vunpack.c.h.b16 %v52
  %v58 = vunpack.c.l.b16 %v53
  %v59 = vunpack.c.h.b16 %v53
  %v60 = vpack.c.b16 %v56, %v56
  %v61 = vpack.c.b16 %v57, %v57
  %v62 = vpack.c.b16 %v58, %v58
  %v63 = vpack.c.b16 %v59, %v59
  %68 = vst [vmem:[%s3] sm:$0xf] %v60
  %69 = vst [vmem:[%s3 + $0x4] sm:$0xf] %v61
  %70 = vst [vmem:[%s3 + $0x8] sm:$0xf] %v62
  %71 = vst [vmem:[%s3 + $0xc] sm:$0xf] %v63
  // Predicated region
  $region14: #{point_gen_forward.22} parent=0 // pred_check
    _
  $region15: #{point_gen_forward.22} parent=0 // pred_check_branch
    %73 = sbr.rel (0) target = $region17
  $region16: #{point_gen_forward.22} parent=0 // pred_region
    _
  $region17: #{point_gen_forward.22} parent=0 // pred_fallthru
    _
  // Predicated region
  $region18: #{point_gen_forward.22} parent=0 // pred_check
    _
  $region19: #{point_gen_forward.22} parent=0 // pred_check_branch
    %75 = sbr.rel (0) target = $region21
  $region20: #{point_gen_forward.22} parent=0 // pred_region
    _
  $region21: #{point_gen_forward.22} parent=0 // pred_fallthru
    _

// kernel: point_gen_forward.23
$region0: #{point_gen_forward.23}
  #allocation0 [shape = 'u32[]', space=smem, size = 0x4, offset = 0x4, fixed_abs, tag = 'smem constant byte address 0x4 - core index']
  #allocation1 [shape = 'u32[144,128]{1,0:T(1,128)}', space=vmem, size = 0x12000, scoped, tag = 'internal scratch']
  %s0 = inlined_call_operand.vmem [shape: bf16[2,16,128], index: 0, kind: input, shape index: {}, may-alias: {0,1}]
  %s1 = inlined_call_operand.vmem [shape: bf16[2,16,128], index: 1, kind: input, shape index: {}, may-alias: {0,1}]
  %s2 = inlined_call_operand.vmem [shape: f32[2,1,16], index: 2, kind: input, shape index: {}]
  %s3 = inlined_call_operand.vmem [shape: f32[2,16,16], index: 3, kind: output, shape index: {}]
  %s4 = sld [smem:[#allocation0]]
  $region45: #{point_gen_forward.23} parent=0
    _
  %s6 = ssub.s32 1, %s4
  %s7 = scalar_select 0, %s6, %s4
  loop: start=0, step=1, limit=4
  $region2: #{point_gen_forward.23} parent=0 // loop_pre_header
    _
  $region3: #{point_gen_forward.23} parent=0 // loop_header
    %s9 = sphi 0, %s13
    %p10 = scmp.ge.s32.totalorder %s9, 4
    %s16 = sphi 0, %s28
    %s17 = sphi 0, %s24
    %s18 = sphi 0, %s16
    %s19 = sphi 0, %s17
    %s20 = sphi 0, %s18
    %s21 = sphi 0, %s19
    %s33 = sphi 0, %s35
    %s36 = sphi 0, %s33
    %s37 = sphi 0, %s36
    %s53 = sphi 0, %s37
    %s59 = sphi 0, %s61
    %s62 = sphi 0, %s59
    %s63 = sphi 0, %s62
    %s79 = sphi 0, %s63
    %s85 = sphi 0, %s87
    %s88 = sphi 0, %s85
    %s89 = sphi 0, %s88
    %s105 = sphi 0, %s89
    %s113 = sphi 0, %s115
    %s116 = sphi 0, %s113
    %s117 = sphi 0, %s116
    %s133 = sphi 0, %s117
  $region4: #{point_gen_forward.23} parent=0 // loop_header_branch
    %12 = sbr.rel (%p10) target = $region8
  $region5: #{point_gen_forward.23} parent=0 // loop_body
    %s14 = ssub.s32 %s9, 1
    %s15 = ssub.s32 %s9, 2
    %s22 = sadd.s32 1, %s17
    %p23 = scmp.ge.s32.totalorder %s22, 1
    %s24 = scalar_select %p23, 0, %s22
    %s25 = sadd.s32 1, %s16
    %s26 = scalar_select %p23, %s25, %s16
    %p27 = scmp.ge.s32.totalorder %s26, 2
    %s28 = scalar_select %p27, 0, %s26
    %s29 = ssub.s32 %s16, %s28
    %s30 = ssub.s32 %s17, %s24
    %s31 = sor.u32 %s29, %s30
    %p32 = scmp.eq.s32.totalorder %s31, 0
    %s34 = sadd.s32 %s33, 1
    %s35 = scalar_select %p32, %s33, %s34
    %p38 = pneg %p32
    %p39 = scmp.eq.s32.totalorder %s9, 1
    %p40 = por %p38, %p39
    %p41 = scmp.ne.s32.totalorder %s33, %s36
    %p42 = scmp.eq.s32.totalorder %s9, 0
    %p43 = por %p41, %p42
    %p44 = scmp.ne.s32.totalorder %s33, %s36
    %p45 = scmp.eq.s32.totalorder %s14, 1
    %p46 = por %p44, %p45
    %p47 = scmp.ne.s32.totalorder %s36, %s37
    %p48 = scmp.eq.s32.totalorder %s14, 0
    %p49 = por %p47, %p48
    %p50 = scmp.ne.s32.totalorder %s36, %s37
    %p51 = scmp.eq.s32.totalorder %s15, 1
    %p52 = por %p50, %p51
    %p54 = scmp.ne.s32.totalorder %s37, %s53
    %p55 = scmp.eq.s32.totalorder %s15, 0
    %p56 = por %p54, %p55
    %s57 = ssub.s32 %s16, %s28
    %p58 = scmp.eq.s32.totalorder %s57, 0
    %s60 = sadd.s32 %s59, 1
    %s61 = scalar_select %p58, %s59, %s60
    %p64 = pneg %p58
    %p65 = scmp.eq.s32.totalorder %s9, 1
    %p66 = por %p64, %p65
    %p67 = scmp.ne.s32.totalorder %s59, %s62
    %p68 = scmp.eq.s32.totalorder %s9, 0
    %p69 = por %p67, %p68
    %p70 = scmp.ne.s32.totalorder %s59, %s62
    %p71 = scmp.eq.s32.totalorder %s14, 1
    %p72 = por %p70, %p71
    %p73 = scmp.ne.s32.totalorder %s62, %s63
    %p74 = scmp.eq.s32.totalorder %s14, 0
    %p75 = por %p73, %p74
    %p76 = scmp.ne.s32.totalorder %s62, %s63
    %p77 = scmp.eq.s32.totalorder %s15, 1
    %p78 = por %p76, %p77
    %p80 = scmp.ne.s32.totalorder %s63, %s79
    %p81 = scmp.eq.s32.totalorder %s15, 0
    %p82 = por %p80, %p81
    %s83 = ssub.s32 %s16, %s28
    %p84 = scmp.eq.s32.totalorder %s83, 0
    %s86 = sadd.s32 %s85, 1
    %s87 = scalar_select %p84, %s85, %s86
    %p90 = pneg %p84
    %p91 = scmp.eq.s32.totalorder %s9, 1
    %p92 = por %p90, %p91
    %p93 = scmp.ne.s32.totalorder %s85, %s88
    %p94 = scmp.eq.s32.totalorder %s9, 0
    %p95 = por %p93, %p94
    %p96 = scmp.ne.s32.totalorder %s85, %s88
    %p97 = scmp.eq.s32.totalorder %s14, 1
    %p98 = por %p96, %p97
    %p99 = scmp.ne.s32.totalorder %s88, %s89
    %p100 = scmp.eq.s32.totalorder %s14, 0
    %p101 = por %p99, %p100
    %p102 = scmp.ne.s32.totalorder %s88, %s89
    %p103 = scmp.eq.s32.totalorder %s15, 1
    %p104 = por %p102, %p103
    %p106 = scmp.ne.s32.totalorder %s89, %s105
    %p107 = scmp.eq.s32.totalorder %s15, 0
    %p108 = por %p106, %p107
    %s109 = ssub.s32 %s16, %s28
    %s110 = ssub.s32 %s17, %s24
    %s111 = sor.u32 %s109, %s110
    %p112 = scmp.eq.s32.totalorder %s111, 0
    %s114 = sadd.s32 %s113, 1
    %s115 = scalar_select %p112, %s113, %s114
    %p118 = pneg %p112
    %p119 = scmp.eq.s32.totalorder %s9, 1
    %p120 = por %p118, %p119
    %p121 = scmp.ne.s32.totalorder %s113, %s116
    %p122 = scmp.eq.s32.totalorder %s9, 0
    %p123 = por %p121, %p122
    %p124 = scmp.ne.s32.totalorder %s113, %s116
    %p125 = scmp.eq.s32.totalorder %s14, 1
    %p126 = por %p124, %p125
    %p127 = scmp.ne.s32.totalorder %s116, %s117
    %p128 = scmp.eq.s32.totalorder %s14, 0
    %p129 = por %p127, %p128
    %p130 = scmp.ne.s32.totalorder %s116, %s117
    %p131 = scmp.eq.s32.totalorder %s15, 1
    %p132 = por %p130, %p131
    %p134 = scmp.ne.s32.totalorder %s117, %s133
    %p135 = scmp.eq.s32.totalorder %s15, 0
    %p136 = por %p134, %p135
    %p137 = scmp.le.s32.totalorder 1, %s9
    %p138 = scmp.lt.s32.totalorder %s9, 3
    %p139 = pnand %p137, %p138
    %p140 = pneg %p139
    // Predicated region
    $region9: #{point_gen_forward.23} parent=5 // pred_check
      _
    $region10: #{point_gen_forward.23} parent=5 // pred_check_branch
      %142 = sbr.rel (%p139) target = $region12
    $region11: #{point_gen_forward.23} parent=5 // pred_region
      %s143 = ssub.s32 %s9, 1
    $region12: #{point_gen_forward.23} parent=5 // pred_fallthru
      _
    %p144 = scmp.lt.s32.totalorder %s9, 2
    // Predicated region
    $region13: #{point_gen_forward.23} parent=5 // pred_check
      %p145 = pneg %p144
    $region14: #{point_gen_forward.23} parent=5 // pred_check_branch
      %147 = sbr.rel (%p145) target = $region16
    $region15: #{point_gen_forward.23} parent=5 // pred_region
      // Predicated region
      $region17: #{point_gen_forward.23} parent=15 // pred_check
        %p148 = pneg %p43
      $region18: #{point_gen_forward.23} parent=15 // pred_check_branch
        %150 = sbr.rel (%p148) target = $region20
      $region19: #{point_gen_forward.23} parent=15 // pred_region
        %s151 = smul.u32 2, %s17
        %p152 = scmp.lt.s32.totalorder %s16, 1
        %s153 = scalar_select %p152, %s16, 1
        %p154 = scmp.lt.s32.totalorder %s151, 1
        %s155 = scalar_select %p154, %s151, 1
        %s156 = smul.addr %s153, 2
        %s157 = sadd.s32 %s155, %s156
        %s158 = smul.addr %s157, 4
        %s159 = scalar_lea.vmem %s0, %s158
        %s160 = smul.u32 2, %s17
      $region20: #{point_gen_forward.23} parent=15 // pred_fallthru
        _
      // Predicated region
      $region21: #{point_gen_forward.23} parent=15 // pred_check
        %p161 = pneg %p69
      $region22: #{point_gen_forward.23} parent=15 // pred_check_branch
        %163 = sbr.rel (%p161) target = $region24
      $region23: #{point_gen_forward.23} parent=15 // pred_region
        %p164 = scmp.lt.s32.totalorder %s16, 1
        %s165 = scalar_select %p164, %s16, 1
        %s166 = smul.addr %s165, 2
        %s167 = smul.addr %s166, 4
        %s168 = scalar_lea.vmem %s1, %s167
      $region24: #{point_gen_forward.23} parent=15 // pred_fallthru
        _
      // Predicated region
      $region25: #{point_gen_forward.23} parent=15 // pred_check
        %p169 = pneg %p95
      $region26: #{point_gen_forward.23} parent=15 // pred_check_branch
        %171 = sbr.rel (%p169) target = $region28
      $region27: #{point_gen_forward.23} parent=15 // pred_region
        %p172 = scmp.lt.s32.totalorder %s16, 1
        %s173 = scalar_select %p172, %s16, 1
        %s174 = scalar_lea.vmem %s2, %s173
      $region28: #{point_gen_forward.23} parent=15 // pred_fallthru
        _
    $region16: #{point_gen_forward.23} parent=5 // pred_fallthru
      _
    %p175 = scmp.le.s32.totalorder 1, %s9
    %p176 = scmp.lt.s32.totalorder %s9, 3
    %p177 = pnand %p175, %p176
    %p178 = pneg %p177
    // Predicated region
    $region29: #{point_gen_forward.23} parent=5 // pred_check
      _
    $region30: #{point_gen_forward.23} parent=5 // pred_check_branch
      %180 = sbr.rel (%p177) target = $region32
    $region31: #{point_gen_forward.23} parent=5 // pred_region
      %s181 = ssub.s32 %s9, 1
      %s182 = smul.u32 2, %s19
      %p183 = scmp.lt.s32.totalorder %s18, 1
      %s184 = scalar_select %p183, %s18, 1
      %p185 = scmp.lt.s32.totalorder %s182, 1
      %s186 = scalar_select %p185, %s182, 1
      %s187 = smul.addr %s184, 2
      %s188 = sadd.s32 %s186, %s187
      %s189 = smul.addr %s188, 4
      %s190 = scalar_lea.vmem %s0, %s189
      %p191 = pneg %p49
      %p192 = pneg %p46
      %p193 = scmp.lt.s32.totalorder %s18, 1
      %s194 = scalar_select %p193, %s18, 1
      %s195 = smul.addr %s194, 2
      %s196 = smul.addr %s195, 4
      %s197 = scalar_lea.vmem %s1, %s196
      %p198 = pneg %p75
      %p199 = pneg %p72
      %p200 = scmp.lt.s32.totalorder %s18, 1
      %s201 = scalar_select %p200, %s18, 1
      %s202 = scalar_lea.vmem %s2, %s201
      %p203 = pneg %p101
      %p204 = pneg %p98
      %p205 = pneg %p129
      %p206 = pneg %p126
      %s207 = smul.u32 2, %s19
      %p208 = scmp.lt.s32.totalorder %s18, 1
      %s209 = scalar_select %p208, %s18, 1
      %p210 = scmp.lt.s32.totalorder %s207, 1
      %s211 = scalar_select %p210, %s207, 1
      %s212 = smul.addr %s209, 2
      %s213 = sadd.s32 %s211, %s212
      %s214 = smul.addr %s213, 8
      %s215 = scalar_lea.vmem %s3, %s214
      %s216 = smul.u32 2, %s19
      %p217 = scmp.lt.s32.totalorder %s18, 1
      %s218 = scalar_select %p217, %s18, 1
      %p219 = scmp.lt.s32.totalorder %s216, 1
      %s220 = scalar_select %p219, %s216, 1
      %s221 = smul.addr %s218, 2
      %s222 = sadd.s32 %s220, %s221
      %s223 = smul.addr %s222, 4
      %s224 = scalar_lea.vmem %s0, %s223
      %s225 = smul.u32 2, %s19
      %p226 = scmp.lt.s32.totalorder %s18, 1
      %s227 = scalar_select %p226, %s18, 1
      %s228 = smul.addr %s227, 2
      %s229 = smul.addr %s228, 4
      %s230 = scalar_lea.vmem %s1, %s229
      %p231 = scmp.lt.s32.totalorder %s18, 1
      %s232 = scalar_select %p231, %s18, 1
      %s233 = scalar_lea.vmem %s2, %s232
      %s234 = smul.u32 2, %s19
      %p235 = scmp.lt.s32.totalorder %s18, 1
      %s236 = scalar_select %p235, %s18, 1
      %p237 = scmp.lt.s32.totalorder %s234, 1
      %s238 = scalar_select %p237, %s234, 1
      %s239 = smul.addr %s236, 2
      %s240 = sadd.s32 %s238, %s239
      %s241 = smul.addr %s240, 8
      %s242 = scalar_lea.vmem %s3, %s241
      %s243 = smul.u32 2, %s19
      %v245 = vld [vmem:[%s224] sm:$0xf]
      %v246 = vld [vmem:[%s224 + $0x4] sm:$0xf]
      %v247 = vld [vmem:[%s230] sm:$0xf]
      %v248 = vld [vmem:[%s230 + $0x4] sm:$0xf]
      %v251 = vunpack.c.l.b16 %v245
      %v252 = vunpack.c.l.b16 %v246
      %v253 = vpack.c.b16 %v252, %v251
      %v257 = vunpack.c.l.b16 %v247
      %v258 = vunpack.c.l.b16 %v248
      %v259 = vpack.c.b16 %v258, %v257
      %261 = vmatprep.subr.bf16.mxu0 0
      %262 = vmatpush1.bf16.xpose.msra.mxu0 %v259
      %263 = vmatprep.subr.bf16.mxu0 0
      %264 = vmatpush1.bf16.xpose.msra.mxu0 0
      %265 = vmatprep.subr.bf16.mxu0 0
      %266 = vmatpush1.bf16.xpose.msra.mxu0 0
      %267 = vmatprep.subr.bf16.mxu0 0
      %268 = vmatpush1.bf16.xpose.msra.mxu0 0
      %269 = vmatprep.subr.bf16.mxu0 0
      %270 = vmatpush1.bf16.xpose.msra.mxu0 0
      %271 = vmatprep.subr.bf16.mxu0 0
      %272 = vmatpush1.bf16.xpose.msra.mxu0 0
      %273 = vmatprep.subr.bf16.mxu0 0
      %274 = vmatpush1.bf16.xpose.msra.mxu0 0
      %275 = vmatprep.subr.bf16.mxu0 0
      %276 = vmatpush1.bf16.xpose.msra.mxu0 0
      %277 = vmatprep.subr.bf16.mxu0 0
      %278 = vmatpush1.bf16.xpose.msra.mxu0 0
      %279 = vmatprep.subr.bf16.mxu0 0
      %280 = vmatpush1.bf16.xpose.msra.mxu0 0
      %281 = vmatprep.subr.bf16.mxu0 0
      %282 = vmatpush1.bf16.xpose.msra.mxu0 0
      %283 = vmatprep.subr.bf16.mxu0 0
      %284 = vmatpush1.bf16.xpose.msra.mxu0 0
      %285 = vmatprep.subr.bf16.mxu0 0
      %286 = vmatpush1.bf16.xpose.msra.mxu0 0
      %287 = vmatprep.subr.bf16.mxu0 0
      %288 = vmatpush1.bf16.xpose.msra.mxu0 0
      %289 = vmatprep.subr.bf16.mxu0 0
      %290 = vmatpush1.bf16.xpose.msra.mxu0 0
      %291 = vmatprep.subr.bf16.mxu0 0
      %292 = vmatpush1.bf16.xpose.msra.mxu0 0
      %293 = vmatprep.mubr.bf16.mxu0 0
      %294 = vmatmul.mubr.bf16.gmra.mrb[0].mxu0 %v253
      %v295 = vpop.f32.mrb[0].mxu0
      %v296 = vadd.f32 0.0, %v295
      %v297 = vpop.f32.mrb[0].mxu0
      %v298 = vpop.f32.mrb[0].mxu0
      %v299 = vadd.f32 0.0, %v298
      %v300 = vpop.f32.mrb[0].mxu0
      %301 = vdwg.mxu0
      %v302 = vmul.f32 %v296, 2.0
      %v303 = vmul.f32 %v299, 2.0
      %v304 = vld [vmem:[%s233] sm:$0x1]
      %v306 = vlaneseq
      %v307 = vshrl.u32 %v306, 7
      %v308 = vsub.s32 0, %v307
      %v309 = vrot.slane %v304, %v308
      %v311 = vsub.f32 %v302, %v309
      %v312 = vsub.f32 %v303, %v309
      %vm313 = vcmask 130048
      %314 = vst.msk [vmem:[%s242] sm:$0xff] %vm313, %v311
      %315 = vst.msk [vmem:[%s242 + $0x8] sm:$0xff] %vm313, %v312
      %s316 = smul.u32 2, %s19
      %p317 = scmp.lt.s32.totalorder %s18, 1
      %s318 = scalar_select %p317, %s18, 1
      %p319 = scmp.lt.s32.totalorder %s316, 1
      %s320 = scalar_select %p319, %s316, 1
      %s321 = smul.addr %s318, 2
      %s322 = sadd.s32 %s320, %s321
      %s323 = smul.addr %s322, 8
      %s324 = scalar_lea.vmem %s3, %s323
      // Predicated region
      $region33: #{point_gen_forward.23} parent=31 // pred_check
        %p325 = pneg %p126
      $region34: #{point_gen_forward.23} parent=31 // pred_check_branch
        %327 = sbr.rel (%p325) target = $region36
      $region35: #{point_gen_forward.23} parent=31 // pred_region
        %s328 = smul.u32 2, %s19
      $region36: #{point_gen_forward.23} parent=31 // pred_fallthru
        _
    $region32: #{point_gen_forward.23} parent=5 // pred_fallthru
      _
    %p329 = scmp.le.s32.totalorder 2, %s9
    // Predicated region
    $region37: #{point_gen_forward.23} parent=5 // pred_check
      %p330 = pneg %p329
    $region38: #{point_gen_forward.23} parent=5 // pred_check_branch
      %332 = sbr.rel (%p330) target = $region40
    $region39: #{point_gen_forward.23} parent=5 // pred_region
      %s333 = ssub.s32 %s9, 2
      // Predicated region
      $region41: #{point_gen_forward.23} parent=39 // pred_check
        %p334 = pneg %p132
      $region42: #{point_gen_forward.23} parent=39 // pred_check_branch
        %336 = sbr.rel (%p334) target = $region44
      $region43: #{point_gen_forward.23} parent=39 // pred_region
        %s337 = smul.u32 2, %s21
        %p338 = scmp.lt.s32.totalorder %s20, 1
        %s339 = scalar_select %p338, %s20, 1
        %p340 = scmp.lt.s32.totalorder %s337, 1
        %s341 = scalar_select %p340, %s337, 1
        %s342 = smul.addr %s339, 2
        %s343 = sadd.s32 %s341, %s342
        %s344 = smul.addr %s343, 8
        %s345 = scalar_lea.vmem %s3, %s344
      $region44: #{point_gen_forward.23} parent=39 // pred_fallthru
        _
    $region40: #{point_gen_forward.23} parent=5 // pred_fallthru
      _
  $region6: #{point_gen_forward.23} parent=0 // loop_footer
    %s13 = sadd.s32 1, %s9
  $region7: #{point_gen_forward.23} parent=0 // loop_footer_branch
    %8 = sbr.rel target = $region3
  $region8: #{point_gen_forward.23} parent=0 // loop_exit
    _

// kernel: point_gen_forward.25
$region0: #{point_gen_forward.25}
  #allocation0 [shape = 'u32[]', space=smem, size = 0x4, offset = 0x4, fixed_abs, tag = 'smem constant byte address 0x4 - core index']
  #allocation1 [shape = 'u32[144,128]{1,0:T(1,128)}', space=vmem, size = 0x12000, scoped, tag = 'internal scratch']
  %s0 = inlined_call_operand.vmem [shape: f32[32,256], index: 0, kind: input, shape index: {}]
  %s1 = inlined_call_operand.vmem [shape: f32[1,256], index: 1, kind: input, shape index: {}]
  %s2 = inlined_call_operand.vmem [shape: f32[1,256], index: 2, kind: input, shape index: {}]
  %s3 = inlined_call_operand.vmem [shape: bf16[32,256], index: 3, kind: output, shape index: {}]
  %s4 = sld [smem:[#allocation0]]
  $region22: #{point_gen_forward.25} parent=0
    _
  %s6 = ssub.s32 1, %s4
  %s7 = scalar_select 0, %s6, %s4
  // Predicated region
  $region2: #{point_gen_forward.25} parent=0 // pred_check
    _
  $region3: #{point_gen_forward.25} parent=0 // pred_check_branch
    %9 = sbr.rel (0) target = $region5
  $region4: #{point_gen_forward.25} parent=0 // pred_region
    _
  $region5: #{point_gen_forward.25} parent=0 // pred_fallthru
    _
  // Predicated region
  $region6: #{point_gen_forward.25} parent=0 // pred_check
    _
  $region7: #{point_gen_forward.25} parent=0 // pred_check_branch
    %11 = sbr.rel (0) target = $region9
  $region8: #{point_gen_forward.25} parent=0 // pred_region
    _
  $region9: #{point_gen_forward.25} parent=0 // pred_fallthru
    _
  // Predicated region
  $region10: #{point_gen_forward.25} parent=0 // pred_check
    _
  $region11: #{point_gen_forward.25} parent=0 // pred_check_branch
    %13 = sbr.rel (0) target = $region13
  $region12: #{point_gen_forward.25} parent=0 // pred_region
    _
  $region13: #{point_gen_forward.25} parent=0 // pred_fallthru
    _
  %v14 = vld [vmem:[%s0] sm:$0xff]
  %v15 = vld [vmem:[%s0 + $0x8] sm:$0xff]
  %v16 = vld [vmem:[%s0 + $0x10] sm:$0xff]
  %v17 = vld [vmem:[%s0 + $0x18] sm:$0xff]
  %v18 = vld [vmem:[%s0 + $0x20] sm:$0xff]
  %v19 = vld [vmem:[%s0 + $0x28] sm:$0xff]
  %v20 = vld [vmem:[%s0 + $0x30] sm:$0xff]
  %v21 = vld [vmem:[%s0 + $0x38] sm:$0xff]
  %v22 = vld [vmem:[%s1] sm:$0x3]
  %v24 = vlaneseq
  %v25 = vshrl.u32 %v24, 7
  %v26 = vsub.s32 0, %v25
  %v27 = vrot.slane %v22, %v26
  %v28 = vlaneseq
  %v29 = vshrl.u32 %v28, 7
  %v30 = vsub.s32 1, %v29
  %v31 = vrot.slane %v22, %v30
  %v34 = vmul.f32 %v14, %v27
  %v35 = vmul.f32 %v15, %v31
  %v36 = vmul.f32 %v16, %v27
  %v37 = vmul.f32 %v17, %v31
  %v38 = vmul.f32 %v18, %v27
  %v39 = vmul.f32 %v19, %v31
  %v40 = vmul.f32 %v20, %v27
  %v41 = vmul.f32 %v21, %v31
  %v42 = vld [vmem:[%s2] sm:$0x3]
  %v44 = vlaneseq
  %v45 = vshrl.u32 %v44, 7
  %v46 = vsub.s32 0, %v45
  %v47 = vrot.slane %v42, %v46
  %v48 = vlaneseq
  %v49 = vshrl.u32 %v48, 7
  %v50 = vsub.s32 1, %v49
  %v51 = vrot.slane %v42, %v50
  %v54 = vadd.f32 %v34, %v47
  %v55 = vadd.f32 %v35, %v51
  %v56 = vadd.f32 %v36, %v47
  %v57 = vadd.f32 %v37, %v51
  %v58 = vadd.f32 %v38, %v47
  %v59 = vadd.f32 %v39, %v51
  %v60 = vadd.f32 %v40, %v47
  %v61 = vadd.f32 %v41, %v51
  %vm62 = vcmp.gt.f32.partialorder %v54, 0.0
  %vm63 = vcmp.gt.f32.partialorder %v55, 0.0
  %vm64 = vcmp.gt.f32.partialorder %v56, 0.0
  %vm65 = vcmp.gt.f32.partialorder %v57, 0.0
  %vm66 = vcmp.gt.f32.partialorder %v58, 0.0
  %vm67 = vcmp.gt.f32.partialorder %v59, 0.0
  %vm68 = vcmp.gt.f32.partialorder %v60, 0.0
  %vm69 = vcmp.gt.f32.partialorder %v61, 0.0
  %v70 = vmul.f32 %v54, 0.2
  %v71 = vmul.f32 %v55, 0.2
  %v72 = vmul.f32 %v56, 0.2
  %v73 = vmul.f32 %v57, 0.2
  %v74 = vmul.f32 %v58, 0.2
  %v75 = vmul.f32 %v59, 0.2
  %v76 = vmul.f32 %v60, 0.2
  %v77 = vmul.f32 %v61, 0.2
  %v78 = vsel %vm62, %v54, %v70
  %v79 = vsel %vm63, %v55, %v71
  %v80 = vsel %vm64, %v56, %v72
  %v81 = vsel %vm65, %v57, %v73
  %v82 = vsel %vm66, %v58, %v74
  %v83 = vsel %vm67, %v59, %v75
  %v84 = vsel %vm68, %v60, %v76
  %v85 = vsel %vm69, %v61, %v77
  %v86 = vpack.c.bf16 %v80, %v78
  %v87 = vpack.c.bf16 %v81, %v79
  %v88 = vpack.c.bf16 %v84, %v82
  %v89 = vpack.c.bf16 %v85, %v83
  %v94 = vunpack.c.l.b16 %v86
  %v95 = vunpack.c.l.b16 %v87
  %v96 = vunpack.c.h.b16 %v86
  %v97 = vunpack.c.h.b16 %v87
  %v98 = vunpack.c.l.b16 %v88
  %v99 = vunpack.c.l.b16 %v89
  %v100 = vunpack.c.h.b16 %v88
  %v101 = vunpack.c.h.b16 %v89
  %v102 = vpack.c.b16 %v95, %v94
  %v103 = vpack.c.b16 %v97, %v96
  %v104 = vpack.c.b16 %v99, %v98
  %v105 = vpack.c.b16 %v101, %v100
  %110 = vst [vmem:[%s3] sm:$0xff] %v102
  %111 = vst [vmem:[%s3 + $0x8] sm:$0xff] %v103
  %112 = vst [vmem:[%s3 + $0x10] sm:$0xff] %v104
  %113 = vst [vmem:[%s3 + $0x18] sm:$0xff] %v105
  // Predicated region
  $region14: #{point_gen_forward.25} parent=0 // pred_check
    _
  $region15: #{point_gen_forward.25} parent=0 // pred_check_branch
    %115 = sbr.rel (0) target = $region17
  $region16: #{point_gen_forward.25} parent=0 // pred_region
    _
  $region17: #{point_gen_forward.25} parent=0 // pred_fallthru
    _
  // Predicated region
  $region18: #{point_gen_forward.25} parent=0 // pred_check
    _
  $region19: #{point_gen_forward.25} parent=0 // pred_check_branch
    %117 = sbr.rel (0) target = $region21
  $region20: #{point_gen_forward.25} parent=0 // pred_region
    _
  $region21: #{point_gen_forward.25} parent=0 // pred_fallthru
    _

// kernel: point_gen_forward.24
$region0: #{point_gen_forward.24}
  #allocation0 [shape = 'u32[]', space=smem, size = 0x4, offset = 0x4, fixed_abs, tag = 'smem constant byte address 0x4 - core index']
  #allocation1 [shape = 'u32[144,128]{1,0:T(1,128)}', space=vmem, size = 0x12000, scoped, tag = 'internal scratch']
  #allocation2 [shape = 'f32[32,256]{1,0:T(8,128)}', space=vmem, size = 0x8000, scoped, tag = 'scratch operand']
  #allocation3 [shape = 'f32[32,256]{1,0:T(8,128)}', space=vmem, size = 0x8000, scoped, tag = 'scratch operand']
  #allocation4 [shape = 'f32[1,256]{1,0:T(1,128)}', space=vmem, size = 0x400, scoped, tag = 'scratch operand']
  #allocation5 [shape = 'f32[1,256]{1,0:T(1,128)}', space=vmem, size = 0x400, scoped, tag = 'scratch operand']
  %s0 = inlined_call_operand.vmem [shape: bf16[4,32,128], index: 0, kind: input, shape index: {}]
  %s1 = inlined_call_operand.vmem [shape: bf16[32,128], index: 1, kind: input, shape index: {}]
  %s2 = inlined_call_operand.vmem [shape: bf16[128,256], index: 2, kind: input, shape index: {}]
  %s3 = inlined_call_operand.vmem [shape: bf16[128,256], index: 3, kind: input, shape index: {}]
  %s4 = inlined_call_operand.vmem [shape: f32[32,256], index: 4, kind: output, shape index: {0}]
  %s5 = inlined_call_operand.vmem [shape: f32[1,2,256], index: 5, kind: output, shape index: {1}]
  %6 = xla_tuple %s4, %s5
  %s7 = sld [smem:[#allocation0]]
  $region65: #{point_gen_forward.24} parent=0
    _
  %s9 = ssub.s32 1, %s7
  %s10 = scalar_select 0, %s9, %s7
  loop: start=0, step=1, limit=6
  $region2: #{point_gen_forward.24} parent=0 // loop_pre_header
    _
  $region3: #{point_gen_forward.24} parent=0 // loop_header
    %s12 = sphi 0, %s16
    %p13 = scmp.ge.s32.totalorder %s12, 6
    %s19 = sphi 0, %s31
    %s20 = sphi 0, %s27
    %s21 = sphi 0, %s19
    %s22 = sphi 0, %s20
    %s23 = sphi 0, %s21
    %s24 = sphi 0, %s22
    %s36 = sphi 0, %s38
    %s39 = sphi 0, %s36
    %s40 = sphi 0, %s39
    %s56 = sphi 0, %s40
    %s62 = sphi 0, %s64
    %s65 = sphi 0, %s62
    %s66 = sphi 0, %s65
    %s82 = sphi 0, %s66
    %s86 = sphi 0, %s86
    %s88 = sphi 0, %s86
    %s89 = sphi 0, %s88
    %s103 = sphi 0, %s89
    %s107 = sphi 0, %s107
    %s109 = sphi 0, %s107
    %s110 = sphi 0, %s109
    %s124 = sphi 0, %s110
    %s130 = sphi 0, %s132
    %s133 = sphi 0, %s130
    %s134 = sphi 0, %s133
    %s150 = sphi 0, %s134
    %s156 = sphi 0, %s158
    %s159 = sphi 0, %s156
    %s160 = sphi 0, %s159
    %s176 = sphi 0, %s160
  $region4: #{point_gen_forward.24} parent=0 // loop_header_branch
    %15 = sbr.rel (%p13) target = $region8
  $region5: #{point_gen_forward.24} parent=0 // loop_body
    %s17 = ssub.s32 %s12, 1
    %s18 = ssub.s32 %s12, 2
    %s25 = sadd.s32 1, %s20
    %p26 = scmp.ge.s32.totalorder %s25, 4
    %s27 = scalar_select %p26, 0, %s25
    %s28 = sadd.s32 1, %s19
    %s29 = scalar_select %p26, %s28, %s19
    %p30 = scmp.ge.s32.totalorder %s29, 1
    %s31 = scalar_select %p30, 0, %s29
    %s32 = ssub.s32 %s20, %s27
    %s33 = ssub.s32 %s19, %s31
    %s34 = sor.u32 %s32, %s33
    %p35 = scmp.eq.s32.totalorder %s34, 0
    %s37 = sadd.s32 %s36, 1
    %s38 = scalar_select %p35, %s36, %s37
    %p41 = pneg %p35
    %p42 = scmp.eq.s32.totalorder %s12, 3
    %p43 = por %p41, %p42
    %p44 = scmp.ne.s32.totalorder %s36, %s39
    %p45 = scmp.eq.s32.totalorder %s12, 0
    %p46 = por %p44, %p45
    %p47 = scmp.ne.s32.totalorder %s36, %s39
    %p48 = scmp.eq.s32.totalorder %s17, 3
    %p49 = por %p47, %p48
    %p50 = scmp.ne.s32.totalorder %s39, %s40
    %p51 = scmp.eq.s32.totalorder %s17, 0
    %p52 = por %p50, %p51
    %p53 = scmp.ne.s32.totalorder %s39, %s40
    %p54 = scmp.eq.s32.totalorder %s18, 3
    %p55 = por %p53, %p54
    %p57 = scmp.ne.s32.totalorder %s40, %s56
    %p58 = scmp.eq.s32.totalorder %s18, 0
    %p59 = por %p57, %p58
    %s60 = ssub.s32 %s19, %s31
    %p61 = scmp.eq.s32.totalorder %s60, 0
    %s63 = sadd.s32 %s62, 1
    %s64 = scalar_select %p61, %s62, %s63
    %p67 = pneg %p61
    %p68 = scmp.eq.s32.totalorder %s12, 3
    %p69 = por %p67, %p68
    %p70 = scmp.ne.s32.totalorder %s62, %s65
    %p71 = scmp.eq.s32.totalorder %s12, 0
    %p72 = por %p70, %p71
    %p73 = scmp.ne.s32.totalorder %s62, %s65
    %p74 = scmp.eq.s32.totalorder %s17, 3
    %p75 = por %p73, %p74
    %p76 = scmp.ne.s32.totalorder %s65, %s66
    %p77 = scmp.eq.s32.totalorder %s17, 0
    %p78 = por %p76, %p77
    %p79 = scmp.ne.s32.totalorder %s65, %s66
    %p80 = scmp.eq.s32.totalorder %s18, 3
    %p81 = por %p79, %p80
    %p83 = scmp.ne.s32.totalorder %s66, %s82
    %p84 = scmp.eq.s32.totalorder %s18, 0
    %p85 = por %p83, %p84
    %s87 = sadd.s32 %s86, 1
    %p90 = scmp.eq.s32.totalorder %s12, 3
    %p91 = scmp.ne.s32.totalorder %s86, %s88
    %p92 = scmp.eq.s32.totalorder %s12, 0
    %p93 = por %p91, %p92
    %p94 = scmp.ne.s32.totalorder %s86, %s88
    %p95 = scmp.eq.s32.totalorder %s17, 3
    %p96 = por %p94, %p95
    %p97 = scmp.ne.s32.totalorder %s88, %s89
    %p98 = scmp.eq.s32.totalorder %s17, 0
    %p99 = por %p97, %p98
    %p100 = scmp.ne.s32.totalorder %s88, %s89
    %p101 = scmp.eq.s32.totalorder %s18, 3
    %p102 = por %p100, %p101
    %p104 = scmp.ne.s32.totalorder %s89, %s103
    %p105 = scmp.eq.s32.totalorder %s18, 0
    %p106 = por %p104, %p105
    %s108 = sadd.s32 %s107, 1
    %p111 = scmp.eq.s32.totalorder %s12, 3
    %p112 = scmp.ne.s32.totalorder %s107, %s109
    %p113 = scmp.eq.s32.totalorder %s12, 0
    %p114 = por %p112, %p113
    %p115 = scmp.ne.s32.totalorder %s107, %s109
    %p116 = scmp.eq.s32.totalorder %s17, 3
    %p117 = por %p115, %p116
    %p118 = scmp.ne.s32.totalorder %s109, %s110
    %p119 = scmp.eq.s32.totalorder %s17, 0
    %p120 = por %p118, %p119
    %p121 = scmp.ne.s32.totalorder %s109, %s110
    %p122 = scmp.eq.s32.totalorder %s18, 3
    %p123 = por %p121, %p122
    %p125 = scmp.ne.s32.totalorder %s110, %s124
    %p126 = scmp.eq.s32.totalorder %s18, 0
    %p127 = por %p125, %p126
    %s128 = ssub.s32 %s19, %s31
    %p129 = scmp.eq.s32.totalorder %s128, 0
    %s131 = sadd.s32 %s130, 1
    %s132 = scalar_select %p129, %s130, %s131
    %p135 = pneg %p129
    %p136 = scmp.eq.s32.totalorder %s12, 3
    %p137 = por %p135, %p136
    %p138 = scmp.ne.s32.totalorder %s130, %s133
    %p139 = scmp.eq.s32.totalorder %s12, 0
    %p140 = por %p138, %p139
    %p141 = scmp.ne.s32.totalorder %s130, %s133
    %p142 = scmp.eq.s32.totalorder %s17, 3
    %p143 = por %p141, %p142
    %p144 = scmp.ne.s32.totalorder %s133, %s134
    %p145 = scmp.eq.s32.totalorder %s17, 0
    %p146 = por %p144, %p145
    %p147 = scmp.ne.s32.totalorder %s133, %s134
    %p148 = scmp.eq.s32.totalorder %s18, 3
    %p149 = por %p147, %p148
    %p151 = scmp.ne.s32.totalorder %s134, %s150
    %p152 = scmp.eq.s32.totalorder %s18, 0
    %p153 = por %p151, %p152
    %s154 = ssub.s32 %s19, %s31
    %p155 = scmp.eq.s32.totalorder %s154, 0
    %s157 = sadd.s32 %s156, 1
    %s158 = scalar_select %p155, %s156, %s157
    %p161 = pneg %p155
    %p162 = scmp.eq.s32.totalorder %s12, 3
    %p163 = por %p161, %p162
    %p164 = scmp.ne.s32.totalorder %s156, %s159
    %p165 = scmp.eq.s32.totalorder %s12, 0
    %p166 = por %p164, %p165
    %p167 = scmp.ne.s32.totalorder %s156, %s159
    %p168 = scmp.eq.s32.totalorder %s17, 3
    %p169 = por %p167, %p168
    %p170 = scmp.ne.s32.totalorder %s159, %s160
    %p171 = scmp.eq.s32.totalorder %s17, 0
    %p172 = por %p170, %p171
    %p173 = scmp.ne.s32.totalorder %s159, %s160
    %p174 = scmp.eq.s32.totalorder %s18, 3
    %p175 = por %p173, %p174
    %p177 = scmp.ne.s32.totalorder %s160, %s176
    %p178 = scmp.eq.s32.totalorder %s18, 0
    %p179 = por %p177, %p178
    %p180 = scmp.le.s32.totalorder 1, %s12
    %p181 = scmp.lt.s32.totalorder %s12, 5
    %p182 = pnand %p180, %p181
    %p183 = pneg %p182
    // Predicated region
    $region9: #{point_gen_forward.24} parent=5 // pred_check
      _
    $region10: #{point_gen_forward.24} parent=5 // pred_check_branch
      %185 = sbr.rel (%p182) target = $region12
    $region11: #{point_gen_forward.24} parent=5 // pred_region
      %s186 = ssub.s32 %s12, 1
      // Predicated region
      $region13: #{point_gen_forward.24} parent=11 // pred_check
        %p187 = pneg %p78
      $region14: #{point_gen_forward.24} parent=11 // pred_check_branch
        %189 = sbr.rel (%p187) target = $region16
      $region15: #{point_gen_forward.24} parent=11 // pred_region
        %s190 = smul.u32 4, %s21
        %p191 = scmp.lt.s32.totalorder %s190, 3
        %s192 = scalar_select %p191, %s190, 3
        %s193 = smul.addr %s192, 4
        %s194 = scalar_lea.vmem %s1, %s193
        %s195 = smul.u32 4, %s21
      $region16: #{point_gen_forward.24} parent=11 // pred_fallthru
        _
      // Predicated region
      $region17: #{point_gen_forward.24} parent=11 // pred_check
        %p196 = pneg %p99
      $region18: #{point_gen_forward.24} parent=11 // pred_check_branch
        %198 = sbr.rel (%p196) target = $region20
      $region19: #{point_gen_forward.24} parent=11 // pred_region
        _
      $region20: #{point_gen_forward.24} parent=11 // pred_fallthru
        _
      // Predicated region
      $region21: #{point_gen_forward.24} parent=11 // pred_check
        %p199 = pneg %p120
      $region22: #{point_gen_forward.24} parent=11 // pred_check_branch
        %201 = sbr.rel (%p199) target = $region24
      $region23: #{point_gen_forward.24} parent=11 // pred_region
        _
      $region24: #{point_gen_forward.24} parent=11 // pred_fallthru
        _
    $region12: #{point_gen_forward.24} parent=5 // pred_fallthru
      _
    %p202 = scmp.lt.s32.totalorder %s12, 4
    // Predicated region
    $region25: #{point_gen_forward.24} parent=5 // pred_check
      %p203 = pneg %p202
    $region26: #{point_gen_forward.24} parent=5 // pred_check_branch
      %205 = sbr.rel (%p203) target = $region28
    $region27: #{point_gen_forward.24} parent=5 // pred_region
      // Predicated region
      $region29: #{point_gen_forward.24} parent=27 // pred_check
        %p206 = pneg %p46
      $region30: #{point_gen_forward.24} parent=27 // pred_check_branch
        %208 = sbr.rel (%p206) target = $region32
      $region31: #{point_gen_forward.24} parent=27 // pred_region
        %s209 = smul.u32 4, %s19
        %p210 = scmp.lt.s32.totalorder %s20, 3
        %s211 = scalar_select %p210, %s20, 3
        %p212 = scmp.lt.s32.totalorder %s209, 3
        %s213 = scalar_select %p212, %s209, 3
        %s214 = smul.addr %s211, 4
        %s215 = sadd.s32 %s213, %s214
        %s216 = smul.addr %s215, 4
        %s217 = scalar_lea.vmem %s0, %s216
        %s218 = smul.u32 4, %s19
      $region32: #{point_gen_forward.24} parent=27 // pred_fallthru
        _
    $region28: #{point_gen_forward.24} parent=5 // pred_fallthru
      _
    %p219 = scmp.le.s32.totalorder 1, %s12
    %p220 = scmp.lt.s32.totalorder %s12, 5
    %p221 = pnand %p219, %p220
    %p222 = pneg %p221
    // Predicated region
    $region33: #{point_gen_forward.24} parent=5 // pred_check
      _
    $region34: #{point_gen_forward.24} parent=5 // pred_check_branch
      %224 = sbr.rel (%p221) target = $region36
    $region35: #{point_gen_forward.24} parent=5 // pred_region
      %s225 = ssub.s32 %s12, 1
      %s226 = smul.u32 4, %s21
      %p227 = scmp.lt.s32.totalorder %s22, 3
      %s228 = scalar_select %p227, %s22, 3
      %p229 = scmp.lt.s32.totalorder %s226, 3
      %s230 = scalar_select %p229, %s226, 3
      %s231 = smul.addr %s228, 4
      %s232 = sadd.s32 %s230, %s231
      %s233 = smul.addr %s232, 4
      %s234 = scalar_lea.vmem %s0, %s233
      %p235 = pneg %p52
      %p236 = pneg %p49
      %s237 = smul.u32 4, %s21
      %p238 = scmp.lt.s32.totalorder %s237, 3
      %s239 = scalar_select %p238, %s237, 3
      %s240 = smul.addr %s239, 4
      %s241 = scalar_lea.vmem %s1, %s240
      %p242 = pneg %p78
      %p243 = pneg %p75
      %p244 = pneg %p99
      %p245 = pneg %p96
      %p246 = pneg %p120
      %p247 = pneg %p117
      %p248 = pneg %p146
      %p249 = pneg %p143
      %s250 = smul.u32 4, %s21
      %p251 = scmp.lt.s32.totalorder %s250, 3
      %s252 = scalar_select %p251, %s250, 3
      %s253 = smul.addr %s252, 2
      %s254 = smul.addr %s253, 8
      %s255 = scalar_lea.vmem %s4, %s254
      %p256 = pneg %p172
      %p257 = pneg %p169
      %p258 = scmp.lt.s32.totalorder %s21, 0
      %s259 = scalar_select %p258, %s21, 0
      %s260 = smul.addr %s259, 2
      %s261 = smul.addr %s260, 2
      %s262 = scalar_lea.vmem %s5, %s261
      %s263 = smul.u32 4, %s21
      %p264 = scmp.lt.s32.totalorder %s22, 3
      %s265 = scalar_select %p264, %s22, 3
      %p266 = scmp.lt.s32.totalorder %s263, 3
      %s267 = scalar_select %p266, %s263, 3
      %s268 = smul.addr %s265, 4
      %s269 = sadd.s32 %s267, %s268
      %s270 = smul.addr %s269, 4
      %s271 = scalar_lea.vmem %s0, %s270
      %s272 = smul.u32 4, %s21
      %s273 = smul.u32 4, %s21
      %p274 = scmp.lt.s32.totalorder %s273, 3
      %s275 = scalar_select %p274, %s273, 3
      %s276 = smul.addr %s275, 4
      %s277 = scalar_lea.vmem %s1, %s276
      %s278 = smul.u32 4, %s21
      %s279 = smul.u32 4, %s21
      %p280 = scmp.lt.s32.totalorder %s279, 3
      %s281 = scalar_select %p280, %s279, 3
      %s282 = smul.addr %s281, 2
      %s283 = smul.addr %s282, 8
      %s284 = scalar_lea.vmem %s4, %s283
      %s285 = smul.u32 4, %s21
      %p286 = scmp.lt.s32.totalorder %s21, 0
      %s287 = scalar_select %p286, %s21, 0
      %s288 = smul.addr %s287, 2
      %s289 = smul.addr %s288, 2
      %s290 = scalar_lea.vmem %s5, %s289
      %p292 = scmp.eq.s32.totalorder %s22, 0
      // Predicated region
      $region37: #{point_gen_forward.24} parent=35 // pred_check
        %p293 = pneg %p292
      $region38: #{point_gen_forward.24} parent=35 // pred_check_branch
        %295 = sbr.rel (%p293) target = $region40
      $region39: #{point_gen_forward.24} parent=35 // pred_region
        %v296 = vld [vmem:[%s277] sm:$0xf]
        %v297 = vld [vmem:[%s277 + $0x4] sm:$0xf]
        %v298 = vld [vmem:[%s277 + $0x8] sm:$0xf]
        %v299 = vld [vmem:[%s277 + $0xc] sm:$0xf]
        %v300 = vld [vmem:[%s3] sm:$0xff]
        %v301 = vld [vmem:[%s3 + $0x8] sm:$0xff]
        %v302 = vld [vmem:[%s3 + $0x10] sm:$0xff]
        %v303 = vld [vmem:[%s3 + $0x18] sm:$0xff]
        %v304 = vld [vmem:[%s3 + $0x20] sm:$0xff]
        %v305 = vld [vmem:[%s3 + $0x28] sm:$0xff]
        %v306 = vld [vmem:[%s3 + $0x30] sm:$0xff]
        %v307 = vld [vmem:[%s3 + $0x38] sm:$0xff]
        %v308 = vld [vmem:[%s3 + $0x40] sm:$0xff]
        %v309 = vld [vmem:[%s3 + $0x48] sm:$0xff]
        %v310 = vld [vmem:[%s3 + $0x50] sm:$0xff]
        %v311 = vld [vmem:[%s3 + $0x58] sm:$0xff]
        %v312 = vld [vmem:[%s3 + $0x60] sm:$0xff]
        %v313 = vld [vmem:[%s3 + $0x68] sm:$0xff]
        %v314 = vld [vmem:[%s3 + $0x70] sm:$0xff]
        %v315 = vld [vmem:[%s3 + $0x78] sm:$0xff]
        %v320 = vunpack.c.l.b16 %v296
        %v321 = vunpack.c.l.b16 %v297
        %v322 = vunpack.c.l.b16 %v298
        %v323 = vunpack.c.l.b16 %v299
        %v324 = vpack.c.b16 %v321, %v320
        %v325 = vpack.c.b16 %v323, %v322
        %v344 = vunpack.c.l.b16 %v300
        %v345 = vunpack.c.h.b16 %v300
        %v346 = vunpack.c.l.b16 %v301
        %v347 = vunpack.c.h.b16 %v301
        %v348 = vunpack.c.l.b16 %v302
        %v349 = vunpack.c.h.b16 %v302
        %v350 = vunpack.c.l.b16 %v303
        %v351 = vunpack.c.h.b16 %v303
        %v352 = vunpack.c.l.b16 %v304
        %v353 = vunpack.c.h.b16 %v304
        %v354 = vunpack.c.l.b16 %v305
        %v355 = vunpack.c.h.b16 %v305
        %v356 = vunpack.c.l.b16 %v306
        %v357 = vunpack.c.h.b16 %v306
        %v358 = vunpack.c.l.b16 %v307
        %v359 = vunpack.c.h.b16 %v307
        %v360 = vunpack.c.l.b16 %v308
        %v361 = vunpack.c.h.b16 %v308
        %v362 = vunpack.c.l.b16 %v309
        %v363 = vunpack.c.h.b16 %v309
        %v364 = vunpack.c.l.b16 %v310
        %v365 = vunpack.c.h.b16 %v310
        %v366 = vunpack.c.l.b16 %v311
        %v367 = vunpack.c.h.b16 %v311
        %v368 = vunpack.c.l.b16 %v312
        %v369 = vunpack.c.h.b16 %v312
        %v370 = vunpack.c.l.b16 %v313
        %v371 = vunpack.c.h.b16 %v313
        %v372 = vunpack.c.l.b16 %v314
        %v373 = vunpack.c.h.b16 %v314
        %v374 = vunpack.c.l.b16 %v315
        %v375 = vunpack.c.h.b16 %v315
        %v376 = vpack.c.b16 %v346, %v344
        %v377 = vpack.c.b16 %v347, %v345
        %v378 = vpack.c.b16 %v350, %v348
        %v379 = vpack.c.b16 %v351, %v349
        %v380 = vpack.c.b16 %v354, %v352
        %v381 = vpack.c.b16 %v355, %v353
        %v382 = vpack.c.b16 %v358, %v356
        %v383 = vpack.c.b16 %v359, %v357
        %v384 = vpack.c.b16 %v362, %v360
        %v385 = vpack.c.b16 %v363, %v361
        %v386 = vpack.c.b16 %v366, %v364
        %v387 = vpack.c.b16 %v367, %v365
        %v388 = vpack.c.b16 %v370, %v368
        %v389 = vpack.c.b16 %v371, %v369
        %v390 = vpack.c.b16 %v374, %v372
        %v391 = vpack.c.b16 %v375, %v373
        %408 = vmatprep.subr.bf16.mxu0 %v377
        %409 = vmatpush1.bf16.msra.mxu0 %v376
        %410 = vmatprep.subr.bf16.mxu0 %v379
        %411 = vmatpush1.bf16.msra.mxu0 %v378
        %412 = vmatprep.subr.bf16.mxu0 %v381
        %413 = vmatpush1.bf16.msra.mxu0 %v380
        %414 = vmatprep.subr.bf16.mxu0 %v383
        %415 = vmatpush1.bf16.msra.mxu0 %v382
        %416 = vmatprep.subr.bf16.mxu0 %v385
        %417 = vmatpush1.bf16.msra.mxu0 %v384
        %418 = vmatprep.subr.bf16.mxu0 %v387
        %419 = vmatpush1.bf16.msra.mxu0 %v386
        %420 = vmatprep.subr.bf16.mxu0 %v389
        %421 = vmatpush1.bf16.msra.mxu0 %v388
        %422 = vmatprep.subr.bf16.mxu0 %v391
        %423 = vmatpush1.bf16.msra.mxu0 %v390
        %424 = vmatprep.subr.bf16.mxu0 0
        %425 = vmatpush1.bf16.msra.mxu0 0
        %426 = vmatprep.subr.bf16.mxu0 0
        %427 = vmatpush1.bf16.msra.mxu0 0
        %428 = vmatprep.subr.bf16.mxu0 0
        %429 = vmatpush1.bf16.msra.mxu0 0
        %430 = vmatprep.subr.bf16.mxu0 0
        %431 = vmatpush1.bf16.msra.mxu0 0
        %432 = vmatprep.subr.bf16.mxu0 0
        %433 = vmatpush1.bf16.msra.mxu0 0
        %434 = vmatprep.subr.bf16.mxu0 0
        %435 = vmatpush1.bf16.msra.mxu0 0
        %436 = vmatprep.subr.bf16.mxu0 0
        %437 = vmatpush1.bf16.msra.mxu0 0
        %438 = vmatprep.subr.bf16.mxu0 0
        %439 = vmatpush1.bf16.msra.mxu0 0
        %440 = vmatprep.mubr.bf16.mxu0 0
        %441 = vmatmul.mubr.bf16.gmra.mrb[0].mxu0 %v324
        %v442 = vpop.f32.mrb[0].mxu0
        %v443 = vadd.f32 0.0, %v442
        %v444 = vpop.f32.mrb[0].mxu0
        %v445 = vadd.f32 0.0, %v444
        %v446 = vpop.f32.mrb[0].mxu0
        %v447 = vadd.f32 0.0, %v446
        %v448 = vpop.f32.mrb[0].mxu0
        %v449 = vadd.f32 0.0, %v448
        %450 = vmatprep.mubr.bf16.mxu0 0
        %451 = vmatmul.mubr.bf16.gmra.mrb[0].mxu0 %v325
        %v452 = vpop.f32.mrb[0].mxu0
        %v453 = vadd.f32 0.0, %v452
        %v454 = vpop.f32.mrb[0].mxu0
        %v455 = vadd.f32 0.0, %v454
        %v456 = vpop.f32.mrb[0].mxu0
        %v457 = vadd.f32 0.0, %v456
        %v458 = vpop.f32.mrb[0].mxu0
        %v459 = vadd.f32 0.0, %v458
        %460 = vdwg.mxu0
        %461 = vst [vmem:[#allocation2] sm:$0xff] %v443
        %462 = vst [vmem:[#allocation2 + $0x8] sm:$0xff] %v445
        %463 = vst [vmem:[#allocation2 + $0x10] sm:$0xff] %v447
        %464 = vst [vmem:[#allocation2 + $0x18] sm:$0xff] %v449
        %465 = vst [vmem:[#allocation2 + $0x20] sm:$0xff] %v453
        %466 = vst [vmem:[#allocation2 + $0x28] sm:$0xff] %v455
        %467 = vst [vmem:[#allocation2 + $0x30] sm:$0xff] %v457
        %468 = vst [vmem:[#allocation2 + $0x38] sm:$0xff] %v459
        %469 = vst [vmem:[#allocation3] sm:$0xff] -inf
        %470 = vst [vmem:[#allocation3 + $0x8] sm:$0xff] -inf
        %471 = vst [vmem:[#allocation3 + $0x10] sm:$0xff] -inf
        %472 = vst [vmem:[#allocation3 + $0x18] sm:$0xff] -inf
        %473 = vst [vmem:[#allocation3 + $0x20] sm:$0xff] -inf
        %474 = vst [vmem:[#allocation3 + $0x28] sm:$0xff] -inf
        %475 = vst [vmem:[#allocation3 + $0x30] sm:$0xff] -inf
        %476 = vst [vmem:[#allocation3 + $0x38] sm:$0xff] -inf
        %v477 = vlaneseq
        %vm478 = vcmp.ge.s32.totalorder %v477, 0
        %vm479 = vcmp.lt.s32.totalorder %v477, 256
        %vm480 = vmand %vm478, %vm479
        %481 = vst.msk [vmem:[#allocation4] sm:$0x3] %vm480, 0.0
        %482 = vst.msk [vmem:[#allocation5] sm:$0x3] %vm480, 0.0
      $region40: #{point_gen_forward.24} parent=35 // pred_fallthru
        _
      %v483 = vld [vmem:[%s271] sm:$0xf]
      %v484 = vld [vmem:[%s271 + $0x4] sm:$0xf]
      %v485 = vld [vmem:[%s271 + $0x8] sm:$0xf]
      %v486 = vld [vmem:[%s271 + $0xc] sm:$0xf]
      %v487 = vld [vmem:[%s2] sm:$0xff]
      %v488 = vld [vmem:[%s2 + $0x8] sm:$0xff]
      %v489 = vld [vmem:[%s2 + $0x10] sm:$0xff]
      %v490 = vld [vmem:[%s2 + $0x18] sm:$0xff]
      %v491 = vld [vmem:[%s2 + $0x20] sm:$0xff]
      %v492 = vld [vmem:[%s2 + $0x28] sm:$0xff]
      %v493 = vld [vmem:[%s2 + $0x30] sm:$0xff]
      %v494 = vld [vmem:[%s2 + $0x38] sm:$0xff]
      %v495 = vld [vmem:[%s2 + $0x40] sm:$0xff]
      %v496 = vld [vmem:[%s2 + $0x48] sm:$0xff]
      %v497 = vld [vmem:[%s2 + $0x50] sm:$0xff]
      %v498 = vld [vmem:[%s2 + $0x58] sm:$0xff]
      %v499 = vld [vmem:[%s2 + $0x60] sm:$0xff]
      %v500 = vld [vmem:[%s2 + $0x68] sm:$0xff]
      %v501 = vld [vmem:[%s2 + $0x70] sm:$0xff]
      %v502 = vld [vmem:[%s2 + $0x78] sm:$0xff]
      %v503 = vld [vmem:[#allocation2] sm:$0xff]
      %v504 = vld [vmem:[#allocation2 + $0x8] sm:$0xff]
      %v505 = vld [vmem:[#allocation2 + $0x10] sm:$0xff]
      %v506 = vld [vmem:[#allocation2 + $0x18] sm:$0xff]
      %v507 = vld [vmem:[#allocation2 + $0x20] sm:$0xff]
      %v508 = vld [vmem:[#allocation2 + $0x28] sm:$0xff]
      %v509 = vld [vmem:[#allocation2 + $0x30] sm:$0xff]
      %v510 = vld [vmem:[#allocation2 + $0x38] sm:$0xff]
      %v515 = vunpack.c.l.b16 %v483
      %v516 = vunpack.c.l.b16 %v484
      %v517 = vunpack.c.l.b16 %v485
      %v518 = vunpack.c.l.b16 %v486
      %v519 = vpack.c.b16 %v516, %v515
      %v520 = vpack.c.b16 %v518, %v517
      %v539 = vunpack.c.l.b16 %v487
      %v540 = vunpack.c.h.b16 %v487
      %v541 = vunpack.c.l.b16 %v488
      %v542 = vunpack.c.h.b16 %v488
      %v543 = vunpack.c.l.b16 %v489
      %v544 = vunpack.c.h.b16 %v489
      %v545 = vunpack.c.l.b16 %v490
      %v546 = vunpack.c.h.b16 %v490
      %v547 = vunpack.c.l.b16 %v491
      %v548 = vunpack.c.h.b16 %v491
      %v549 = vunpack.c.l.b16 %v492
      %v550 = vunpack.c.h.b16 %v492
      %v551 = vunpack.c.l.b16 %v493
      %v552 = vunpack.c.h.b16 %v493
      %v553 = vunpack.c.l.b16 %v494
      %v554 = vunpack.c.h.b16 %v494
      %v555 = vunpack.c.l.b16 %v495
      %v556 = vunpack.c.h.b16 %v495
      %v557 = vunpack.c.l.b16 %v496
      %v558 = vunpack.c.h.b16 %v496
      %v559 = vunpack.c.l.b16 %v497
      %v560 = vunpack.c.h.b16 %v497
      %v561 = vunpack.c.l.b16 %v498
      %v562 = vunpack.c.h.b16 %v498
      %v563 = vunpack.c.l.b16 %v499
      %v564 = vunpack.c.h.b16 %v499
      %v565 = vunpack.c.l.b16 %v500
      %v566 = vunpack.c.h.b16 %v500
      %v567 = vunpack.c.l.b16 %v501
      %v568 = vunpack.c.h.b16 %v501
      %v569 = vunpack.c.l.b16 %v502
      %v570 = vunpack.c.h.b16 %v502
      %v571 = vpack.c.b16 %v541, %v539
      %v572 = vpack.c.b16 %v542, %v540
      %v573 = vpack.c.b16 %v545, %v543
      %v574 = vpack.c.b16 %v546, %v544
      %v575 = vpack.c.b16 %v549, %v547
      %v576 = vpack.c.b16 %v550, %v548
      %v577 = vpack.c.b16 %v553, %v551
      %v578 = vpack.c.b16 %v554, %v552
      %v579 = vpack.c.b16 %v557, %v555
      %v580 = vpack.c.b16 %v558, %v556
      %v581 = vpack.c.b16 %v561, %v559
      %v582 = vpack.c.b16 %v562, %v560
      %v583 = vpack.c.b16 %v565, %v563
      %v584 = vpack.c.b16 %v566, %v564
      %v585 = vpack.c.b16 %v569, %v567
      %v586 = vpack.c.b16 %v570, %v568
      %603 = vmatprep.subr.bf16.mxu0 %v572
      %604 = vmatpush1.bf16.msra.mxu0 %v571
      %605 = vmatprep.subr.bf16.mxu0 %v574
      %606 = vmatpush1.bf16.msra.mxu0 %v573
      %607 = vmatprep.subr.bf16.mxu0 %v576
      %608 = vmatpush1.bf16.msra.mxu0 %v575
      %609 = vmatprep.subr.bf16.mxu0 %v578
      %610 = vmatpush1.bf16.msra.mxu0 %v577
      %611 = vmatprep.subr.bf16.mxu0 %v580
      %612 = vmatpush1.bf16.msra.mxu0 %v579
      %613 = vmatprep.subr.bf16.mxu0 %v582
      %614 = vmatpush1.bf16.msra.mxu0 %v581
      %615 = vmatprep.subr.bf16.mxu0 %v584
      %616 = vmatpush1.bf16.msra.mxu0 %v583
      %617 = vmatprep.subr.bf16.mxu0 %v586
      %618 = vmatpush1.bf16.msra.mxu0 %v585
      %619 = vmatprep.subr.bf16.mxu0 0
      %620 = vmatpush1.bf16.msra.mxu0 0
      %621 = vmatprep.subr.bf16.mxu0 0
      %622 = vmatpush1.bf16.msra.mxu0 0
      %623 = vmatprep.subr.bf16.mxu0 0
      %624 = vmatpush1.bf16.msra.mxu0 0
      %625 = vmatprep.subr.bf16.mxu0 0
      %626 = vmatpush1.bf16.msra.mxu0 0
      %627 = vmatprep.subr.bf16.mxu0 0
      %628 = vmatpush1.bf16.msra.mxu0 0
      %629 = vmatprep.subr.bf16.mxu0 0
      %630 = vmatpush1.bf16.msra.mxu0 0
      %631 = vmatprep.subr.bf16.mxu0 0
      %632 = vmatpush1.bf16.msra.mxu0 0
      %633 = vmatprep.subr.bf16.mxu0 0
      %634 = vmatpush1.bf16.msra.mxu0 0
      %635 = vmatprep.mubr.bf16.mxu0 0
      %636 = vmatmul.mubr.bf16.gmra.mrb[0].mxu0 %v519
      %v637 = vpop.f32.mrb[0].mxu0
      %v638 = vadd.f32 %v503, %v637
      %v639 = vpop.f32.mrb[0].mxu0
      %v640 = vadd.f32 %v504, %v639
      %v641 = vpop.f32.mrb[0].mxu0
      %v642 = vadd.f32 %v505, %v641
      %v643 = vpop.f32.mrb[0].mxu0
      %v644 = vadd.f32 %v506, %v643
      %645 = vmatprep.mubr.bf16.mxu0 0
      %646 = vmatmul.mubr.bf16.gmra.mrb[0].mxu0 %v520
      %v647 = vpop.f32.mrb[0].mxu0
      %v648 = vadd.f32 %v507, %v647
      %v649 = vpop.f32.mrb[0].mxu0
      %v650 = vadd.f32 %v508, %v649
      %v651 = vpop.f32.mrb[0].mxu0
      %v652 = vadd.f32 %v509, %v651
      %v653 = vpop.f32.mrb[0].mxu0
      %v654 = vadd.f32 %v510, %v653
      %655 = vdwg.mxu0
      %v656 = vld [vmem:[#allocation3] sm:$0xff]
      %v657 = vld [vmem:[#allocation3 + $0x8] sm:$0xff]
      %v658 = vld [vmem:[#allocation3 + $0x10] sm:$0xff]
      %v659 = vld [vmem:[#allocation3 + $0x18] sm:$0xff]
      %v660 = vld [vmem:[#allocation3 + $0x20] sm:$0xff]
      %v661 = vld [vmem:[#allocation3 + $0x28] sm:$0xff]
      %v662 = vld [vmem:[#allocation3 + $0x30] sm:$0xff]
      %v663 = vld [vmem:[#allocation3 + $0x38] sm:$0xff]
      %v664 = vmax.f32 %v656, %v638
      %v665 = vmax.f32 %v657, %v640
      %v666 = vmax.f32 %v658, %v642
      %v667 = vmax.f32 %v659, %v644
      %v668 = vmax.f32 %v660, %v648
      %v669 = vmax.f32 %v661, %v650
      %v670 = vmax.f32 %v662, %v652
      %v671 = vmax.f32 %v663, %v654
      %672 = vst [vmem:[#allocation3] sm:$0xff] %v664
      %673 = vst [vmem:[#allocation3 + $0x8] sm:$0xff] %v665
      %674 = vst [vmem:[#allocation3 + $0x10] sm:$0xff] %v666
      %675 = vst [vmem:[#allocation3 + $0x18] sm:$0xff] %v667
      %676 = vst [vmem:[#allocation3 + $0x20] sm:$0xff] %v668
      %677 = vst [vmem:[#allocation3 + $0x28] sm:$0xff] %v669
      %678 = vst [vmem:[#allocation3 + $0x30] sm:$0xff] %v670
      %679 = vst [vmem:[#allocation3 + $0x38] sm:$0xff] %v671
      %v680 = vld [vmem:[#allocation4] sm:$0x3]
      %v681 = vadd.f32 %v638, %v642
      %v682 = vadd.f32 %v681, %v648
      %v683 = vadd.f32 %v682, %v652
      %v684 = vrot.slane %v683, 4
      %v685 = vadd.f32 %v683, %v684
      %v686 = vrot.slane %v685, 2
      %v687 = vadd.f32 %v685, %v686
      %v688 = vrot.slane %v687, 1
      %v689 = vadd.f32 %v687, %v688
      %v690 = vadd.f32 %v640, %v644
      %v691 = vadd.f32 %v690, %v650
      %v692 = vadd.f32 %v691, %v654
      %v693 = vrot.slane %v692, 4
      %v694 = vadd.f32 %v692, %v693
      %v695 = vrot.slane %v694, 2
      %v696 = vadd.f32 %v694, %v695
      %v697 = vrot.slane %v696, 1
      %v698 = vadd.f32 %v696, %v697
      %v701 = vcombine.low %v689, %v698
      %v703 = vunpack.c.l.s4 1966171168
      %v704 = vunpack.c.0.s8 %v703
      %v705 = vlaneseq
      %v706 = vshrl.u32 %v705, 7
      %v707 = vsub.s32 %v704, %v706
      %v708 = vrot.slane %v701, %v707
      %v710 = vunpack.c.l.s4 1966171168
      %v711 = vunpack.c.0.s8 %v710
      %v712 = vlaneseq
      %v713 = vshrl.u32 %v712, 7
      %v714 = vsub.s32 %v711, %v713
      %v715 = vrot.slane %v708, %v714
      %v717 = vadd.f32 %v680, %v715
      %v718 = vlaneseq
      %vm719 = vcmp.ge.s32.totalorder %v718, 0
      %vm720 = vcmp.lt.s32.totalorder %v718, 256
      %vm721 = vmand %vm719, %vm720
      %722 = vst.msk [vmem:[#allocation4] sm:$0x3] %vm721, %v717
      %v723 = vld [vmem:[#allocation5] sm:$0x3]
      %v724 = vmul.f32 %v638, %v638
      %v725 = vmul.f32 %v640, %v640
      %v726 = vmul.f32 %v642, %v642
      %v727 = vmul.f32 %v644, %v644
      %v728 = vmul.f32 %v648, %v648
      %v729 = vmul.f32 %v650, %v650
      %v730 = vmul.f32 %v652, %v652
      %v731 = vmul.f32 %v654, %v654
      %v732 = vadd.f32 %v724, %v726
      %v733 = vadd.f32 %v732, %v728
      %v734 = vadd.f32 %v733, %v730
      %v735 = vrot.slane %v734, 4
      %v736 = vadd.f32 %v734, %v735
      %v737 = vrot.slane %v736, 2
      %v738 = vadd.f32 %v736, %v737
      %v739 = vrot.slane %v738, 1
      %v740 = vadd.f32 %v738, %v739
      %v741 = vadd.f32 %v725, %v727
      %v742 = vadd.f32 %v741, %v729
      %v743 = vadd.f32 %v742, %v731
      %v744 = vrot.slane %v743, 4
      %v745 = vadd.f32 %v743, %v744
      %v746 = vrot.slane %v745, 2
      %v747 = vadd.f32 %v745, %v746
      %v748 = vrot.slane %v747, 1
      %v749 = vadd.f32 %v747, %v748
      %v752 = vcombine.low %v740, %v749
      %v754 = vunpack.c.l.s4 1966171168
      %v755 = vunpack.c.0.s8 %v754
      %v756 = vlaneseq
      %v757 = vshrl.u32 %v756, 7
      %v758 = vsub.s32 %v755, %v757
      %v759 = vrot.slane %v752, %v758
      %v761 = vunpack.c.l.s4 1966171168
      %v762 = vunpack.c.0.s8 %v761
      %v763 = vlaneseq
      %v764 = vshrl.u32 %v763, 7
      %v765 = vsub.s32 %v762, %v764
      %v766 = vrot.slane %v759, %v765
      %v768 = vadd.f32 %v723, %v766
      %769 = vst.msk [vmem:[#allocation5] sm:$0x3] %vm721, %v768
      %p770 = scmp.eq.s32.totalorder %s22, 3
      // Predicated region
      $region41: #{point_gen_forward.24} parent=35 // pred_check
        %p771 = pneg %p770
      $region42: #{point_gen_forward.24} parent=35 // pred_check_branch
        %773 = sbr.rel (%p771) target = $region44
      $region43: #{point_gen_forward.24} parent=35 // pred_region
        %v774 = vld [vmem:[#allocation3] sm:$0xff]
        %v775 = vld [vmem:[#allocation3 + $0x8] sm:$0xff]
        %v776 = vld [vmem:[#allocation3 + $0x10] sm:$0xff]
        %v777 = vld [vmem:[#allocation3 + $0x18] sm:$0xff]
        %v778 = vld [vmem:[#allocation3 + $0x20] sm:$0xff]
        %v779 = vld [vmem:[#allocation3 + $0x28] sm:$0xff]
        %v780 = vld [vmem:[#allocation3 + $0x30] sm:$0xff]
        %v781 = vld [vmem:[#allocation3 + $0x38] sm:$0xff]
        %782 = vst [vmem:[%s284] sm:$0xff] %v774
        %783 = vst [vmem:[%s284 + $0x8] sm:$0xff] %v775
        %784 = vst [vmem:[%s284 + $0x10] sm:$0xff] %v776
        %785 = vst [vmem:[%s284 + $0x18] sm:$0xff] %v777
        %786 = vst [vmem:[%s284 + $0x20] sm:$0xff] %v778
        %787 = vst [vmem:[%s284 + $0x28] sm:$0xff] %v779
        %788 = vst [vmem:[%s284 + $0x30] sm:$0xff] %v780
        %789 = vst [vmem:[%s284 + $0x38] sm:$0xff] %v781
        %v790 = vld [vmem:[#allocation4] sm:$0x3]
        %791 = vst.msk [vmem:[%s290] ss:$2 sm:$0x3] %vm721, %v790
        %v792 = vld [vmem:[#allocation5] sm:$0x3]
        %s793 = scalar_lea.vmem %s290, 1
        %794 = vst.msk [vmem:[%s793] ss:$2 sm:$0x3] %vm721, %v792
      $region44: #{point_gen_forward.24} parent=35 // pred_fallthru
        _
      %s795 = smul.u32 4, %s21
      %p796 = scmp.lt.s32.totalorder %s795, 3
      %s797 = scalar_select %p796, %s795, 3
      %s798 = smul.addr %s797, 2
      %s799 = smul.addr %s798, 8
      %s800 = scalar_lea.vmem %s4, %s799
      %p801 = scmp.lt.s32.totalorder %s21, 0
      %s802 = scalar_select %p801, %s21, 0
      %s803 = smul.addr %s802, 2
      %s804 = smul.addr %s803, 2
      %s805 = scalar_lea.vmem %s5, %s804
      // Predicated region
      $region45: #{point_gen_forward.24} parent=35 // pred_check
        %p806 = pneg %p143
      $region46: #{point_gen_forward.24} parent=35 // pred_check_branch
        %808 = sbr.rel (%p806) target = $region48
      $region47: #{point_gen_forward.24} parent=35 // pred_region
        %s809 = smul.u32 4, %s21
      $region48: #{point_gen_forward.24} parent=35 // pred_fallthru
        _
      // Predicated region
      $region49: #{point_gen_forward.24} parent=35 // pred_check
        %p810 = pneg %p169
      $region50: #{point_gen_forward.24} parent=35 // pred_check_branch
        %812 = sbr.rel (%p810) target = $region52
      $region51: #{point_gen_forward.24} parent=35 // pred_region
        _
      $region52: #{point_gen_forward.24} parent=35 // pred_fallthru
        _
      // Predicated region
      $region53: #{point_gen_forward.24} parent=35 // pred_check
        %p813 = pneg %p143
      $region54: #{point_gen_forward.24} parent=35 // pred_check_branch
        %815 = sbr.rel (%p813) target = $region56
      $region55: #{point_gen_forward.24} parent=35 // pred_region
        %s816 = smul.u32 4, %s21
        %p817 = scmp.lt.s32.totalorder %s816, 3
        %s818 = scalar_select %p817, %s816, 3
        %s819 = smul.addr %s818, 2
        %s820 = smul.addr %s819, 8
        %s821 = scalar_lea.vmem %s4, %s820
      $region56: #{point_gen_forward.24} parent=35 // pred_fallthru
        _
      // Predicated region
      $region57: #{point_gen_forward.24} parent=35 // pred_check
        %p822 = pneg %p169
      $region58: #{point_gen_forward.24} parent=35 // pred_check_branch
        %824 = sbr.rel (%p822) target = $region60
      $region59: #{point_gen_forward.24} parent=35 // pred_region
        %p825 = scmp.lt.s32.totalorder %s21, 0
        %s826 = scalar_select %p825, %s21, 0
        %s827 = smul.addr %s826, 2
        %s828 = smul.addr %s827, 2
        %s829 = scalar_lea.vmem %s5, %s828
      $region60: #{point_gen_forward.24} parent=35 // pred_fallthru
        _
    $region36: #{point_gen_forward.24} parent=5 // pred_fallthru
      _
    %p830 = scmp.le.s32.totalorder 2, %s12
    // Predicated region
    $region61: #{point_gen_forward.24} parent=5 // pred_check
      %p831 = pneg %p830
    $region62: #{point_gen_forward.24} parent=5 // pred_check_branch
      %833 = sbr.rel (%p831) target = $region64
    $region63: #{point_gen_forward.24} parent=5 // pred_region
      %s834 = ssub.s32 %s12, 2
    $region64: #{point_gen_forward.24} parent=5 // pred_fallthru
      _
  $region6: #{point_gen_forward.24} parent=0 // loop_footer
    %s16 = sadd.s32 1, %s12
  $region7: #{point_gen_forward.24} parent=0 // loop_footer_branch
    %11 = sbr.rel target = $region3
  $region8: #{point_gen_forward.24} parent=0 // loop_exit
    _

// kernel: point_gen_forward.26
$region0: #{point_gen_forward.26}
  #allocation0 [shape = 'u32[]', space=smem, size = 0x4, offset = 0x4, fixed_abs, tag = 'smem constant byte address 0x4 - core index']
  #allocation1 [shape = 'u32[144,128]{1,0:T(1,128)}', space=vmem, size = 0x12000, scoped, tag = 'internal scratch']
  %s0 = inlined_call_operand.vmem [shape: bf16[2,16,64], index: 0, kind: input, shape index: {}]
  %s1 = inlined_call_operand.vmem [shape: bf16[2,16,64], index: 1, kind: input, shape index: {}]
  %s2 = inlined_call_operand.vmem [shape: bf16[2,16,128], index: 2, kind: input, shape index: {}]
  %s3 = inlined_call_operand.vmem [shape: bf16[2,16,256], index: 3, kind: input, shape index: {}]
  %s4 = inlined_call_operand.vmem [shape: bf16[64,32], index: 4, kind: input, shape index: {}]
  %s5 = inlined_call_operand.vmem [shape: bf16[64,32], index: 5, kind: input, shape index: {}]
  %s6 = inlined_call_operand.vmem [shape: bf16[128,32], index: 6, kind: input, shape index: {}]
  %s7 = inlined_call_operand.vmem [shape: bf16[256,32], index: 7, kind: input, shape index: {}]
  %s8 = inlined_call_operand.vmem [shape: f32[2,1,1,32], index: 8, kind: output, shape index: {0}]
  %s9 = inlined_call_operand.vmem [shape: f32[2,1,2,32], index: 9, kind: output, shape index: {1}]
  %10 = xla_tuple %s8, %s9
  %s11 = sld [smem:[#allocation0]]
  $region73: #{point_gen_forward.26} parent=0
    _
  %s13 = ssub.s32 1, %s11
  %s14 = scalar_select 0, %s13, %s11
  loop: start=0, step=1, limit=4
  $region2: #{point_gen_forward.26} parent=0 // loop_pre_header
    _
  $region3: #{point_gen_forward.26} parent=0 // loop_header
    %s16 = sphi 0, %s20
    %p17 = scmp.ge.s32.totalorder %s16, 4
    %s23 = sphi 0, %s35
    %s24 = sphi 0, %s31
    %s25 = sphi 0, %s23
    %s26 = sphi 0, %s24
    %s27 = sphi 0, %s25
    %s28 = sphi 0, %s26
    %s40 = sphi 0, %s42
    %s43 = sphi 0, %s40
    %s44 = sphi 0, %s43
    %s60 = sphi 0, %s44
    %s68 = sphi 0, %s70
    %s71 = sphi 0, %s68
    %s72 = sphi 0, %s71
    %s88 = sphi 0, %s72
    %s96 = sphi 0, %s98
    %s99 = sphi 0, %s96
    %s100 = sphi 0, %s99
    %s116 = sphi 0, %s100
    %s124 = sphi 0, %s126
    %s127 = sphi 0, %s124
    %s128 = sphi 0, %s127
    %s144 = sphi 0, %s128
    %s148 = sphi 0, %s148
    %s150 = sphi 0, %s148
    %s151 = sphi 0, %s150
    %s165 = sphi 0, %s151
    %s169 = sphi 0, %s169
    %s171 = sphi 0, %s169
    %s172 = sphi 0, %s171
    %s186 = sphi 0, %s172
    %s190 = sphi 0, %s190
    %s192 = sphi 0, %s190
    %s193 = sphi 0, %s192
    %s207 = sphi 0, %s193
    %s211 = sphi 0, %s211
    %s213 = sphi 0, %s211
    %s214 = sphi 0, %s213
    %s228 = sphi 0, %s214
    %s236 = sphi 0, %s238
    %s239 = sphi 0, %s236
    %s240 = sphi 0, %s239
    %s256 = sphi 0, %s240
    %s264 = sphi 0, %s266
    %s267 = sphi 0, %s264
    %s268 = sphi 0, %s267
    %s284 = sphi 0, %s268
  $region4: #{point_gen_forward.26} parent=0 // loop_header_branch
    %19 = sbr.rel (%p17) target = $region8
  $region5: #{point_gen_forward.26} parent=0 // loop_body
    %s21 = ssub.s32 %s16, 1
    %s22 = ssub.s32 %s16, 2
    %s29 = sadd.s32 1, %s24
    %p30 = scmp.ge.s32.totalorder %s29, 1
    %s31 = scalar_select %p30, 0, %s29
    %s32 = sadd.s32 1, %s23
    %s33 = scalar_select %p30, %s32, %s23
    %p34 = scmp.ge.s32.totalorder %s33, 2
    %s35 = scalar_select %p34, 0, %s33
    %s36 = ssub.s32 %s23, %s35
    %s37 = ssub.s32 %s24, %s31
    %s38 = sor.u32 %s36, %s37
    %p39 = scmp.eq.s32.totalorder %s38, 0
    %s41 = sadd.s32 %s40, 1
    %s42 = scalar_select %p39, %s40, %s41
    %p45 = pneg %p39
    %p46 = scmp.eq.s32.totalorder %s16, 1
    %p47 = por %p45, %p46
    %p48 = scmp.ne.s32.totalorder %s40, %s43
    %p49 = scmp.eq.s32.totalorder %s16, 0
    %p50 = por %p48, %p49
    %p51 = scmp.ne.s32.totalorder %s40, %s43
    %p52 = scmp.eq.s32.totalorder %s21, 1
    %p53 = por %p51, %p52
    %p54 = scmp.ne.s32.totalorder %s43, %s44
    %p55 = scmp.eq.s32.totalorder %s21, 0
    %p56 = por %p54, %p55
    %p57 = scmp.ne.s32.totalorder %s43, %s44
    %p58 = scmp.eq.s32.totalorder %s22, 1
    %p59 = por %p57, %p58
    %p61 = scmp.ne.s32.totalorder %s44, %s60
    %p62 = scmp.eq.s32.totalorder %s22, 0
    %p63 = por %p61, %p62
    %s64 = ssub.s32 %s23, %s35
    %s65 = ssub.s32 %s24, %s31
    %s66 = sor.u32 %s64, %s65
    %p67 = scmp.eq.s32.totalorder %s66, 0
    %s69 = sadd.s32 %s68, 1
    %s70 = scalar_select %p67, %s68, %s69
    %p73 = pneg %p67
    %p74 = scmp.eq.s32.totalorder %s16, 1
    %p75 = por %p73, %p74
    %p76 = scmp.ne.s32.totalorder %s68, %s71
    %p77 = scmp.eq.s32.totalorder %s16, 0
    %p78 = por %p76, %p77
    %p79 = scmp.ne.s32.totalorder %s68, %s71
    %p80 = scmp.eq.s32.totalorder %s21, 1
    %p81 = por %p79, %p80
    %p82 = scmp.ne.s32.totalorder %s71, %s72
    %p83 = scmp.eq.s32.totalorder %s21, 0
    %p84 = por %p82, %p83
    %p85 = scmp.ne.s32.totalorder %s71, %s72
    %p86 = scmp.eq.s32.totalorder %s22, 1
    %p87 = por %p85, %p86
    %p89 = scmp.ne.s32.totalorder %s72, %s88
    %p90 = scmp.eq.s32.totalorder %s22, 0
    %p91 = por %p89, %p90
    %s92 = ssub.s32 %s23, %s35
    %s93 = ssub.s32 %s24, %s31
    %s94 = sor.u32 %s92, %s93
    %p95 = scmp.eq.s32.totalorder %s94, 0
    %s97 = sadd.s32 %s96, 1
    %s98 = scalar_select %p95, %s96, %s97
    %p101 = pneg %p95
    %p102 = scmp.eq.s32.totalorder %s16, 1
    %p103 = por %p101, %p102
    %p104 = scmp.ne.s32.totalorder %s96, %s99
    %p105 = scmp.eq.s32.totalorder %s16, 0
    %p106 = por %p104, %p105
    %p107 = scmp.ne.s32.totalorder %s96, %s99
    %p108 = scmp.eq.s32.totalorder %s21, 1
    %p109 = por %p107, %p108
    %p110 = scmp.ne.s32.totalorder %s99, %s100
    %p111 = scmp.eq.s32.totalorder %s21, 0
    %p112 = por %p110, %p111
    %p113 = scmp.ne.s32.totalorder %s99, %s100
    %p114 = scmp.eq.s32.totalorder %s22, 1
    %p115 = por %p113, %p114
    %p117 = scmp.ne.s32.totalorder %s100, %s116
    %p118 = scmp.eq.s32.totalorder %s22, 0
    %p119 = por %p117, %p118
    %s120 = ssub.s32 %s23, %s35
    %s121 = ssub.s32 %s24, %s31
    %s122 = sor.u32 %s120, %s121
    %p123 = scmp.eq.s32.totalorder %s122, 0
    %s125 = sadd.s32 %s124, 1
    %s126 = scalar_select %p123, %s124, %s125
    %p129 = pneg %p123
    %p130 = scmp.eq.s32.totalorder %s16, 1
    %p131 = por %p129, %p130
    %p132 = scmp.ne.s32.totalorder %s124, %s127
    %p133 = scmp.eq.s32.totalorder %s16, 0
    %p134 = por %p132, %p133
    %p135 = scmp.ne.s32.totalorder %s124, %s127
    %p136 = scmp.eq.s32.totalorder %s21, 1
    %p137 = por %p135, %p136
    %p138 = scmp.ne.s32.totalorder %s127, %s128
    %p139 = scmp.eq.s32.totalorder %s21, 0
    %p140 = por %p138, %p139
    %p141 = scmp.ne.s32.totalorder %s127, %s128
    %p142 = scmp.eq.s32.totalorder %s22, 1
    %p143 = por %p141, %p142
    %p145 = scmp.ne.s32.totalorder %s128, %s144
    %p146 = scmp.eq.s32.totalorder %s22, 0
    %p147 = por %p145, %p146
    %s149 = sadd.s32 %s148, 1
    %p152 = scmp.eq.s32.totalorder %s16, 1
    %p153 = scmp.ne.s32.totalorder %s148, %s150
    %p154 = scmp.eq.s32.totalorder %s16, 0
    %p155 = por %p153, %p154
    %p156 = scmp.ne.s32.totalorder %s148, %s150
    %p157 = scmp.eq.s32.totalorder %s21, 1
    %p158 = por %p156, %p157
    %p159 = scmp.ne.s32.totalorder %s150, %s151
    %p160 = scmp.eq.s32.totalorder %s21, 0
    %p161 = por %p159, %p160
    %p162 = scmp.ne.s32.totalorder %s150, %s151
    %p163 = scmp.eq.s32.totalorder %s22, 1
    %p164 = por %p162, %p163
    %p166 = scmp.ne.s32.totalorder %s151, %s165
    %p167 = scmp.eq.s32.totalorder %s22, 0
    %p168 = por %p166, %p167
    %s170 = sadd.s32 %s169, 1
    %p173 = scmp.eq.s32.totalorder %s16, 1
    %p174 = scmp.ne.s32.totalorder %s169, %s171
    %p175 = scmp.eq.s32.totalorder %s16, 0
    %p176 = por %p174, %p175
    %p177 = scmp.ne.s32.totalorder %s169, %s171
    %p178 = scmp.eq.s32.totalorder %s21, 1
    %p179 = por %p177, %p178
    %p180 = scmp.ne.s32.totalorder %s171, %s172
    %p181 = scmp.eq.s32.totalorder %s21, 0
    %p182 = por %p180, %p181
    %p183 = scmp.ne.s32.totalorder %s171, %s172
    %p184 = scmp.eq.s32.totalorder %s22, 1
    %p185 = por %p183, %p184
    %p187 = scmp.ne.s32.totalorder %s172, %s186
    %p188 = scmp.eq.s32.totalorder %s22, 0
    %p189 = por %p187, %p188
    %s191 = sadd.s32 %s190, 1
    %p194 = scmp.eq.s32.totalorder %s16, 1
    %p195 = scmp.ne.s32.totalorder %s190, %s192
    %p196 = scmp.eq.s32.totalorder %s16, 0
    %p197 = por %p195, %p196
    %p198 = scmp.ne.s32.totalorder %s190, %s192
    %p199 = scmp.eq.s32.totalorder %s21, 1
    %p200 = por %p198, %p199
    %p201 = scmp.ne.s32.totalorder %s192, %s193
    %p202 = scmp.eq.s32.totalorder %s21, 0
    %p203 = por %p201, %p202
    %p204 = scmp.ne.s32.totalorder %s192, %s193
    %p205 = scmp.eq.s32.totalorder %s22, 1
    %p206 = por %p204, %p205
    %p208 = scmp.ne.s32.totalorder %s193, %s207
    %p209 = scmp.eq.s32.totalorder %s22, 0
    %p210 = por %p208, %p209
    %s212 = sadd.s32 %s211, 1
    %p215 = scmp.eq.s32.totalorder %s16, 1
    %p216 = scmp.ne.s32.totalorder %s211, %s213
    %p217 = scmp.eq.s32.totalorder %s16, 0
    %p218 = por %p216, %p217
    %p219 = scmp.ne.s32.totalorder %s211, %s213
    %p220 = scmp.eq.s32.totalorder %s21, 1
    %p221 = por %p219, %p220
    %p222 = scmp.ne.s32.totalorder %s213, %s214
    %p223 = scmp.eq.s32.totalorder %s21, 0
    %p224 = por %p222, %p223
    %p225 = scmp.ne.s32.totalorder %s213, %s214
    %p226 = scmp.eq.s32.totalorder %s22, 1
    %p227 = por %p225, %p226
    %p229 = scmp.ne.s32.totalorder %s214, %s228
    %p230 = scmp.eq.s32.totalorder %s22, 0
    %p231 = por %p229, %p230
    %s232 = ssub.s32 %s23, %s35
    %s233 = ssub.s32 %s24, %s31
    %s234 = sor.u32 %s232, %s233
    %p235 = scmp.eq.s32.totalorder %s234, 0
    %s237 = sadd.s32 %s236, 1
    %s238 = scalar_select %p235, %s236, %s237
    %p241 = pneg %p235
    %p242 = scmp.eq.s32.totalorder %s16, 1
    %p243 = por %p241, %p242
    %p244 = scmp.ne.s32.totalorder %s236, %s239
    %p245 = scmp.eq.s32.totalorder %s16, 0
    %p246 = por %p244, %p245
    %p247 = scmp.ne.s32.totalorder %s236, %s239
    %p248 = scmp.eq.s32.totalorder %s21, 1
    %p249 = por %p247, %p248
    %p250 = scmp.ne.s32.totalorder %s239, %s240
    %p251 = scmp.eq.s32.totalorder %s21, 0
    %p252 = por %p250, %p251
    %p253 = scmp.ne.s32.totalorder %s239, %s240
    %p254 = scmp.eq.s32.totalorder %s22, 1
    %p255 = por %p253, %p254
    %p257 = scmp.ne.s32.totalorder %s240, %s256
    %p258 = scmp.eq.s32.totalorder %s22, 0
    %p259 = por %p257, %p258
    %s260 = ssub.s32 %s23, %s35
    %s261 = ssub.s32 %s24, %s31
    %s262 = sor.u32 %s260, %s261
    %p263 = scmp.eq.s32.totalorder %s262, 0
    %s265 = sadd.s32 %s264, 1
    %s266 = scalar_select %p263, %s264, %s265
    %p269 = pneg %p263
    %p270 = scmp.eq.s32.totalorder %s16, 1
    %p271 = por %p269, %p270
    %p272 = scmp.ne.s32.totalorder %s264, %s267
    %p273 = scmp.eq.s32.totalorder %s16, 0
    %p274 = por %p272, %p273
    %p275 = scmp.ne.s32.totalorder %s264, %s267
    %p276 = scmp.eq.s32.totalorder %s21, 1
    %p277 = por %p275, %p276
    %p278 = scmp.ne.s32.totalorder %s267, %s268
    %p279 = scmp.eq.s32.totalorder %s21, 0
    %p280 = por %p278, %p279
    %p281 = scmp.ne.s32.totalorder %s267, %s268
    %p282 = scmp.eq.s32.totalorder %s22, 1
    %p283 = por %p281, %p282
    %p285 = scmp.ne.s32.totalorder %s268, %s284
    %p286 = scmp.eq.s32.totalorder %s22, 0
    %p287 = por %p285, %p286
    %p288 = scmp.le.s32.totalorder 1, %s16
    %p289 = scmp.lt.s32.totalorder %s16, 3
    %p290 = pnand %p288, %p289
    %p291 = pneg %p290
    // Predicated region
    $region9: #{point_gen_forward.26} parent=5 // pred_check
      _
    $region10: #{point_gen_forward.26} parent=5 // pred_check_branch
      %293 = sbr.rel (%p290) target = $region12
    $region11: #{point_gen_forward.26} parent=5 // pred_region
      %s294 = ssub.s32 %s16, 1
      // Predicated region
      $region13: #{point_gen_forward.26} parent=11 // pred_check
        %p295 = pneg %p161
      $region14: #{point_gen_forward.26} parent=11 // pred_check_branch
        %297 = sbr.rel (%p295) target = $region16
      $region15: #{point_gen_forward.26} parent=11 // pred_region
        _
      $region16: #{point_gen_forward.26} parent=11 // pred_fallthru
        _
      // Predicated region
      $region17: #{point_gen_forward.26} parent=11 // pred_check
        %p298 = pneg %p182
      $region18: #{point_gen_forward.26} parent=11 // pred_check_branch
        %300 = sbr.rel (%p298) target = $region20
      $region19: #{point_gen_forward.26} parent=11 // pred_region
        _
      $region20: #{point_gen_forward.26} parent=11 // pred_fallthru
        _
      // Predicated region
      $region21: #{point_gen_forward.26} parent=11 // pred_check
        %p301 = pneg %p203
      $region22: #{point_gen_forward.26} parent=11 // pred_check_branch
        %303 = sbr.rel (%p301) target = $region24
      $region23: #{point_gen_forward.26} parent=11 // pred_region
        _
      $region24: #{point_gen_forward.26} parent=11 // pred_fallthru
        _
      // Predicated region
      $region25: #{point_gen_forward.26} parent=11 // pred_check
        %p304 = pneg %p224
      $region26: #{point_gen_forward.26} parent=11 // pred_check_branch
        %306 = sbr.rel (%p304) target = $region28
      $region27: #{point_gen_forward.26} parent=11 // pred_region
        _
      $region28: #{point_gen_forward.26} parent=11 // pred_fallthru
        _
    $region12: #{point_gen_forward.26} parent=5 // pred_fallthru
      _
    %p307 = scmp.lt.s32.totalorder %s16, 2
    // Predicated region
    $region29: #{point_gen_forward.26} parent=5 // pred_check
      %p308 = pneg %p307
    $region30: #{point_gen_forward.26} parent=5 // pred_check_branch
      %310 = sbr.rel (%p308) target = $region32
    $region31: #{point_gen_forward.26} parent=5 // pred_region
      // Predicated region
      $region33: #{point_gen_forward.26} parent=31 // pred_check
        %p311 = pneg %p50
      $region34: #{point_gen_forward.26} parent=31 // pred_check_branch
        %313 = sbr.rel (%p311) target = $region36
      $region35: #{point_gen_forward.26} parent=31 // pred_region
        %s314 = smul.u32 2, %s24
        %p315 = scmp.lt.s32.totalorder %s23, 1
        %s316 = scalar_select %p315, %s23, 1
        %p317 = scmp.lt.s32.totalorder %s314, 1
        %s318 = scalar_select %p317, %s314, 1
        %s319 = smul.addr %s316, 2
        %s320 = sadd.s32 %s318, %s319
        %s321 = smul.addr %s320, 4
        %s322 = scalar_lea.vmem %s0, %s321
        %s323 = smul.u32 2, %s24
      $region36: #{point_gen_forward.26} parent=31 // pred_fallthru
        _
      // Predicated region
      $region37: #{point_gen_forward.26} parent=31 // pred_check
        %p324 = pneg %p78
      $region38: #{point_gen_forward.26} parent=31 // pred_check_branch
        %326 = sbr.rel (%p324) target = $region40
      $region39: #{point_gen_forward.26} parent=31 // pred_region
        %s327 = smul.u32 2, %s24
        %p328 = scmp.lt.s32.totalorder %s23, 1
        %s329 = scalar_select %p328, %s23, 1
        %p330 = scmp.lt.s32.totalorder %s327, 1
        %s331 = scalar_select %p330, %s327, 1
        %s332 = smul.addr %s329, 2
        %s333 = sadd.s32 %s331, %s332
        %s334 = smul.addr %s333, 4
        %s335 = scalar_lea.vmem %s1, %s334
        %s336 = smul.u32 2, %s24
      $region40: #{point_gen_forward.26} parent=31 // pred_fallthru
        _
      // Predicated region
      $region41: #{point_gen_forward.26} parent=31 // pred_check
        %p337 = pneg %p106
      $region42: #{point_gen_forward.26} parent=31 // pred_check_branch
        %339 = sbr.rel (%p337) target = $region44
      $region43: #{point_gen_forward.26} parent=31 // pred_region
        %s340 = smul.u32 2, %s24
        %p341 = scmp.lt.s32.totalorder %s23, 1
        %s342 = scalar_select %p341, %s23, 1
        %p343 = scmp.lt.s32.totalorder %s340, 1
        %s344 = scalar_select %p343, %s340, 1
        %s345 = smul.addr %s342, 2
        %s346 = sadd.s32 %s344, %s345
        %s347 = smul.addr %s346, 4
        %s348 = scalar_lea.vmem %s2, %s347
        %s349 = smul.u32 2, %s24
      $region44: #{point_gen_forward.26} parent=31 // pred_fallthru
        _
      // Predicated region
      $region45: #{point_gen_forward.26} parent=31 // pred_check
        %p350 = pneg %p134
      $region46: #{point_gen_forward.26} parent=31 // pred_check_branch
        %352 = sbr.rel (%p350) target = $region48
      $region47: #{point_gen_forward.26} parent=31 // pred_region
        %s353 = smul.u32 2, %s24
        %p354 = scmp.lt.s32.totalorder %s23, 1
        %s355 = scalar_select %p354, %s23, 1
        %p356 = scmp.lt.s32.totalorder %s353, 1
        %s357 = scalar_select %p356, %s353, 1
        %s358 = smul.addr %s357, 2
        %s359 = smul.addr %s355, 4
        %s360 = sadd.s32 %s358, %s359
        %s361 = smul.addr %s360, 4
        %s362 = scalar_lea.vmem %s3, %s361
        %s363 = smul.u32 2, %s24
      $region48: #{point_gen_forward.26} parent=31 // pred_fallthru
        _
    $region32: #{point_gen_forward.26} parent=5 // pred_fallthru
      _
    %p364 = scmp.le.s32.totalorder 1, %s16
    %p365 = scmp.lt.s32.totalorder %s16, 3
    %p366 = pnand %p364, %p365
    %p367 = pneg %p366
    // Predicated region
    $region49: #{point_gen_forward.26} parent=5 // pred_check
      _
    $region50: #{point_gen_forward.26} parent=5 // pred_check_branch
      %369 = sbr.rel (%p366) target = $region52
    $region51: #{point_gen_forward.26} parent=5 // pred_region
      %s370 = ssub.s32 %s16, 1
      %s371 = smul.u32 2, %s26
      %p372 = scmp.lt.s32.totalorder %s25, 1
      %s373 = scalar_select %p372, %s25, 1
      %p374 = scmp.lt.s32.totalorder %s371, 1
      %s375 = scalar_select %p374, %s371, 1
      %s376 = smul.addr %s373, 2
      %s377 = sadd.s32 %s375, %s376
      %s378 = smul.addr %s377, 4
      %s379 = scalar_lea.vmem %s0, %s378
      %p380 = pneg %p56
      %p381 = pneg %p53
      %s382 = smul.u32 2, %s26
      %p383 = scmp.lt.s32.totalorder %s25, 1
      %s384 = scalar_select %p383, %s25, 1
      %p385 = scmp.lt.s32.totalorder %s382, 1
      %s386 = scalar_select %p385, %s382, 1
      %s387 = smul.addr %s384, 2
      %s388 = sadd.s32 %s386, %s387
      %s389 = smul.addr %s388, 4
      %s390 = scalar_lea.vmem %s1, %s389
      %p391 = pneg %p84
      %p392 = pneg %p81
      %s393 = smul.u32 2, %s26
      %p394 = scmp.lt.s32.totalorder %s25, 1
      %s395 = scalar_select %p394, %s25, 1
      %p396 = scmp.lt.s32.totalorder %s393, 1
      %s397 = scalar_select %p396, %s393, 1
      %s398 = smul.addr %s395, 2
      %s399 = sadd.s32 %s397, %s398
      %s400 = smul.addr %s399, 4
      %s401 = scalar_lea.vmem %s2, %s400
      %p402 = pneg %p112
      %p403 = pneg %p109
      %s404 = smul.u32 2, %s26
      %p405 = scmp.lt.s32.totalorder %s25, 1
      %s406 = scalar_select %p405, %s25, 1
      %p407 = scmp.lt.s32.totalorder %s404, 1
      %s408 = scalar_select %p407, %s404, 1
      %s409 = smul.addr %s408, 2
      %s410 = smul.addr %s406, 4
      %s411 = sadd.s32 %s409, %s410
      %s412 = smul.addr %s411, 4
      %s413 = scalar_lea.vmem %s3, %s412
      %p414 = pneg %p140
      %p415 = pneg %p137
      %p416 = pneg %p161
      %p417 = pneg %p158
      %p418 = pneg %p182
      %p419 = pneg %p179
      %p420 = pneg %p203
      %p421 = pneg %p200
      %p422 = pneg %p224
      %p423 = pneg %p221
      %p424 = pneg %p252
      %p425 = pneg %p249
      %p426 = scmp.lt.s32.totalorder %s25, 1
      %s427 = scalar_select %p426, %s25, 1
      %p428 = scmp.lt.s32.totalorder %s26, 0
      %s429 = scalar_select %p428, %s26, 0
      %s430 = sadd.s32 %s429, %s427
      %s431 = scalar_lea.vmem %s8, %s430
      %p432 = pneg %p280
      %p433 = pneg %p277
      %p434 = scmp.lt.s32.totalorder %s25, 1
      %s435 = scalar_select %p434, %s25, 1
      %p436 = scmp.lt.s32.totalorder %s26, 0
      %s437 = scalar_select %p436, %s26, 0
      %s438 = sadd.s32 %s437, %s435
      %s439 = smul.addr %s438, 2
      %s440 = scalar_lea.vmem %s9, %s439
      %s441 = smul.u32 2, %s26
      %p442 = scmp.lt.s32.totalorder %s25, 1
      %s443 = scalar_select %p442, %s25, 1
      %p444 = scmp.lt.s32.totalorder %s441, 1
      %s445 = scalar_select %p444, %s441, 1
      %s446 = smul.addr %s443, 2
      %s447 = sadd.s32 %s445, %s446
      %s448 = smul.addr %s447, 4
      %s449 = scalar_lea.vmem %s0, %s448
      %s450 = smul.u32 2, %s26
      %s451 = smul.u32 2, %s26
      %p452 = scmp.lt.s32.totalorder %s25, 1
      %s453 = scalar_select %p452, %s25, 1
      %p454 = scmp.lt.s32.totalorder %s451, 1
      %s455 = scalar_select %p454, %s451, 1
      %s456 = smul.addr %s453, 2
      %s457 = sadd.s32 %s455, %s456
      %s458 = smul.addr %s457, 4
      %s459 = scalar_lea.vmem %s1, %s458
      %s460 = smul.u32 2, %s26
      %s461 = smul.u32 2, %s26
      %p462 = scmp.lt.s32.totalorder %s25, 1
      %s463 = scalar_select %p462, %s25, 1
      %p464 = scmp.lt.s32.totalorder %s461, 1
      %s465 = scalar_select %p464, %s461, 1
      %s466 = smul.addr %s463, 2
      %s467 = sadd.s32 %s465, %s466
      %s468 = smul.addr %s467, 4
      %s469 = scalar_lea.vmem %s2, %s468
      %s470 = smul.u32 2, %s26
      %s471 = smul.u32 2, %s26
      %p472 = scmp.lt.s32.totalorder %s25, 1
      %s473 = scalar_select %p472, %s25, 1
      %p474 = scmp.lt.s32.totalorder %s471, 1
      %s475 = scalar_select %p474, %s471, 1
      %s476 = smul.addr %s475, 2
      %s477 = smul.addr %s473, 4
      %s478 = sadd.s32 %s476, %s477
      %s479 = smul.addr %s478, 4
      %s480 = scalar_lea.vmem %s3, %s479
      %s481 = smul.u32 2, %s26
      %p482 = scmp.lt.s32.totalorder %s25, 1
      %s483 = scalar_select %p482, %s25, 1
      %p484 = scmp.lt.s32.totalorder %s26, 0
      %s485 = scalar_select %p484, %s26, 0
      %s486 = sadd.s32 %s485, %s483
      %s487 = scalar_lea.vmem %s8, %s486
      %p488 = scmp.lt.s32.totalorder %s25, 1
      %s489 = scalar_select %p488, %s25, 1
      %p490 = scmp.lt.s32.totalorder %s26, 0
      %s491 = scalar_select %p490, %s26, 0
      %s492 = sadd.s32 %s491, %s489
      %s493 = smul.addr %s492, 2
      %s494 = scalar_lea.vmem %s9, %s493
      %v496 = vld [vmem:[%s449] sm:$0xf]
      %v497 = vld [vmem:[%s449 + $0x4] sm:$0xf]
      %v498 = vld [vmem:[%s4] sm:$0xf]
      %v499 = vld [vmem:[%s4 + $0x4] sm:$0xf]
      %v500 = vld [vmem:[%s4 + $0x8] sm:$0xf]
      %v501 = vld [vmem:[%s4 + $0xc] sm:$0xf]
      %v502 = vld [vmem:[%s4 + $0x10] sm:$0xf]
      %v503 = vld [vmem:[%s4 + $0x14] sm:$0xf]
      %v504 = vld [vmem:[%s4 + $0x18] sm:$0xf]
      %v505 = vld [vmem:[%s4 + $0x1c] sm:$0xf]
      %v506 = vld [vmem:[%s459] sm:$0xf]
      %v507 = vld [vmem:[%s459 + $0x4] sm:$0xf]
      %v508 = vld [vmem:[%s5] sm:$0xf]
      %v509 = vld [vmem:[%s5 + $0x4] sm:$0xf]
      %v510 = vld [vmem:[%s5 + $0x8] sm:$0xf]
      %v511 = vld [vmem:[%s5 + $0xc] sm:$0xf]
      %v512 = vld [vmem:[%s5 + $0x10] sm:$0xf]
      %v513 = vld [vmem:[%s5 + $0x14] sm:$0xf]
      %v514 = vld [vmem:[%s5 + $0x18] sm:$0xf]
      %v515 = vld [vmem:[%s5 + $0x1c] sm:$0xf]
      %v518 = vunpack.c.l.b16 %v506
      %v519 = vunpack.c.l.b16 %v507
      %v520 = vpack.c.b16 %v519, %v518
      %v529 = vunpack.c.l.b16 %v508
      %v530 = vunpack.c.l.b16 %v509
      %v531 = vunpack.c.l.b16 %v510
      %v532 = vunpack.c.l.b16 %v511
      %v533 = vunpack.c.l.b16 %v512
      %v534 = vunpack.c.l.b16 %v513
      %v535 = vunpack.c.l.b16 %v514
      %v536 = vunpack.c.l.b16 %v515
      %v537 = vpack.c.b16 %v530, %v529
      %v538 = vpack.c.b16 %v532, %v531
      %v539 = vpack.c.b16 %v534, %v533
      %v540 = vpack.c.b16 %v536, %v535
      %vm545 = vcmask 523264
      %v547 = vsel %vm545, %v520, 0
      %549 = vmatprep.subr.bf16.mxu0 0
      %550 = vmatpush1.bf16.msra.mxu0 %v537
      %551 = vmatprep.subr.bf16.mxu0 0
      %552 = vmatpush1.bf16.msra.mxu0 %v538
      %553 = vmatprep.subr.bf16.mxu0 0
      %554 = vmatpush1.bf16.msra.mxu0 %v539
      %555 = vmatprep.subr.bf16.mxu0 0
      %556 = vmatpush1.bf16.msra.mxu0 %v540
      %557 = vmatprep.subr.bf16.mxu0 0
      %558 = vmatpush1.bf16.msra.mxu0 0
      %559 = vmatprep.subr.bf16.mxu0 0
      %560 = vmatpush1.bf16.msra.mxu0 0
      %561 = vmatprep.subr.bf16.mxu0 0
      %562 = vmatpush1.bf16.msra.mxu0 0
      %563 = vmatprep.subr.bf16.mxu0 0
      %564 = vmatpush1.bf16.msra.mxu0 0
      %565 = vmatprep.subr.bf16.mxu0 0
      %566 = vmatpush1.bf16.msra.mxu0 0
      %567 = vmatprep.subr.bf16.mxu0 0
      %568 = vmatpush1.bf16.msra.mxu0 0
      %569 = vmatprep.subr.bf16.mxu0 0
      %570 = vmatpush1.bf16.msra.mxu0 0
      %571 = vmatprep.subr.bf16.mxu0 0
      %572 = vmatpush1.bf16.msra.mxu0 0
      %573 = vmatprep.subr.bf16.mxu0 0
      %574 = vmatpush1.bf16.msra.mxu0 0
      %575 = vmatprep.subr.bf16.mxu0 0
      %576 = vmatpush1.bf16.msra.mxu0 0
      %577 = vmatprep.subr.bf16.mxu0 0
      %578 = vmatpush1.bf16.msra.mxu0 0
      %579 = vmatprep.subr.bf16.mxu0 0
      %580 = vmatpush1.bf16.msra.mxu0 0
      %581 = vmatprep.mubr.bf16.mxu0 0
      %582 = vmatmul.mubr.bf16.gmra.mrb[0].mxu0 %v547
      %v583 = vpop.f32.mrb[0].mxu0
      %v584 = vadd.f32 0.0, %v583
      %v585 = vpop.f32.mrb[0].mxu0
      %v586 = vpop.f32.mrb[0].mxu0
      %v587 = vadd.f32 0.0, %v586
      %v588 = vpop.f32.mrb[0].mxu0
      %589 = vdwg.mxu0
      %v592 = vunpack.c.l.b16 %v496
      %v593 = vunpack.c.l.b16 %v497
      %v594 = vpack.c.b16 %v593, %v592
      %v603 = vunpack.c.l.b16 %v498
      %v604 = vunpack.c.l.b16 %v499
      %v605 = vunpack.c.l.b16 %v500
      %v606 = vunpack.c.l.b16 %v501
      %v607 = vunpack.c.l.b16 %v502
      %v608 = vunpack.c.l.b16 %v503
      %v609 = vunpack.c.l.b16 %v504
      %v610 = vunpack.c.l.b16 %v505
      %v611 = vpack.c.b16 %v604, %v603
      %v612 = vpack.c.b16 %v606, %v605
      %v613 = vpack.c.b16 %v608, %v607
      %v614 = vpack.c.b16 %v610, %v609
      %v620 = vsel %vm545, %v594, 0
      %622 = vmatprep.subr.bf16.mxu0 0
      %623 = vmatpush1.bf16.msra.mxu0 %v611
      %624 = vmatprep.subr.bf16.mxu0 0
      %625 = vmatpush1.bf16.msra.mxu0 %v612
      %626 = vmatprep.subr.bf16.mxu0 0
      %627 = vmatpush1.bf16.msra.mxu0 %v613
      %628 = vmatprep.subr.bf16.mxu0 0
      %629 = vmatpush1.bf16.msra.mxu0 %v614
      %630 = vmatprep.subr.bf16.mxu0 0
      %631 = vmatpush1.bf16.msra.mxu0 0
      %632 = vmatprep.subr.bf16.mxu0 0
      %633 = vmatpush1.bf16.msra.mxu0 0
      %634 = vmatprep.subr.bf16.mxu0 0
      %635 = vmatpush1.bf16.msra.mxu0 0
      %636 = vmatprep.subr.bf16.mxu0 0
      %637 = vmatpush1.bf16.msra.mxu0 0
      %638 = vmatprep.subr.bf16.mxu0 0
      %639 = vmatpush1.bf16.msra.mxu0 0
      %640 = vmatprep.subr.bf16.mxu0 0
      %641 = vmatpush1.bf16.msra.mxu0 0
      %642 = vmatprep.subr.bf16.mxu0 0
      %643 = vmatpush1.bf16.msra.mxu0 0
      %644 = vmatprep.subr.bf16.mxu0 0
      %645 = vmatpush1.bf16.msra.mxu0 0
      %646 = vmatprep.subr.bf16.mxu0 0
      %647 = vmatpush1.bf16.msra.mxu0 0
      %648 = vmatprep.subr.bf16.mxu0 0
      %649 = vmatpush1.bf16.msra.mxu0 0
      %650 = vmatprep.subr.bf16.mxu0 0
      %651 = vmatpush1.bf16.msra.mxu0 0
      %652 = vmatprep.subr.bf16.mxu0 0
      %653 = vmatpush1.bf16.msra.mxu0 0
      %654 = vmatprep.mubr.bf16.mxu0 0
      %655 = vmatmul.mubr.bf16.gmra.mrb[0].mxu0 %v620
      %v656 = vpop.f32.mrb[0].mxu0
      %v657 = vadd.f32 %v584, %v656
      %v658 = vpop.f32.mrb[0].mxu0
      %v659 = vpop.f32.mrb[0].mxu0
      %v660 = vadd.f32 %v587, %v659
      %v661 = vpop.f32.mrb[0].mxu0
      %662 = vdwg.mxu0
      %v663 = vld [vmem:[%s469] sm:$0xf]
      %v664 = vld [vmem:[%s469 + $0x4] sm:$0xf]
      %v665 = vld [vmem:[%s6] sm:$0xf]
      %v666 = vld [vmem:[%s6 + $0x4] sm:$0xf]
      %v667 = vld [vmem:[%s6 + $0x8] sm:$0xf]
      %v668 = vld [vmem:[%s6 + $0xc] sm:$0xf]
      %v669 = vld [vmem:[%s6 + $0x10] sm:$0xf]
      %v670 = vld [vmem:[%s6 + $0x14] sm:$0xf]
      %v671 = vld [vmem:[%s6 + $0x18] sm:$0xf]
      %v672 = vld [vmem:[%s6 + $0x1c] sm:$0xf]
      %v673 = vld [vmem:[%s6 + $0x20] sm:$0xf]
      %v674 = vld [vmem:[%s6 + $0x24] sm:$0xf]
      %v675 = vld [vmem:[%s6 + $0x28] sm:$0xf]
      %v676 = vld [vmem:[%s6 + $0x2c] sm:$0xf]
      %v677 = vld [vmem:[%s6 + $0x30] sm:$0xf]
      %v678 = vld [vmem:[%s6 + $0x34] sm:$0xf]
      %v679 = vld [vmem:[%s6 + $0x38] sm:$0xf]
      %v680 = vld [vmem:[%s6 + $0x3c] sm:$0xf]
      %v683 = vunpack.c.l.b16 %v663
      %v684 = vunpack.c.l.b16 %v664
      %v685 = vpack.c.b16 %v684, %v683
      %v703 = vunpack.c.l.b16 %v665
      %v704 = vunpack.c.l.b16 %v666
      %v705 = vunpack.c.l.b16 %v667
      %v706 = vunpack.c.l.b16 %v668
      %v707 = vunpack.c.l.b16 %v669
      %v708 = vunpack.c.l.b16 %v670
      %v709 = vunpack.c.l.b16 %v671
      %v710 = vunpack.c.l.b16 %v672
      %v711 = vunpack.c.l.b16 %v673
      %v712 = vunpack.c.l.b16 %v674
      %v713 = vunpack.c.l.b16 %v675
      %v714 = vunpack.c.l.b16 %v676
      %v715 = vunpack.c.l.b16 %v677
      %v716 = vunpack.c.l.b16 %v678
      %v717 = vunpack.c.l.b16 %v679
      %v718 = vunpack.c.l.b16 %v680
      %v719 = vpack.c.b16 %v704, %v703
      %v720 = vpack.c.b16 %v706, %v705
      %v721 = vpack.c.b16 %v708, %v707
      %v722 = vpack.c.b16 %v710, %v709
      %v723 = vpack.c.b16 %v712, %v711
      %v724 = vpack.c.b16 %v714, %v713
      %v725 = vpack.c.b16 %v716, %v715
      %v726 = vpack.c.b16 %v718, %v717
      %735 = vmatprep.subr.bf16.mxu0 0
      %736 = vmatpush1.bf16.msra.mxu0 %v719
      %737 = vmatprep.subr.bf16.mxu0 0
      %738 = vmatpush1.bf16.msra.mxu0 %v720
      %739 = vmatprep.subr.bf16.mxu0 0
      %740 = vmatpush1.bf16.msra.mxu0 %v721
      %741 = vmatprep.subr.bf16.mxu0 0
      %742 = vmatpush1.bf16.msra.mxu0 %v722
      %743 = vmatprep.subr.bf16.mxu0 0
      %744 = vmatpush1.bf16.msra.mxu0 %v723
      %745 = vmatprep.subr.bf16.mxu0 0
      %746 = vmatpush1.bf16.msra.mxu0 %v724
      %747 = vmatprep.subr.bf16.mxu0 0
      %748 = vmatpush1.bf16.msra.mxu0 %v725
      %749 = vmatprep.subr.bf16.mxu0 0
      %750 = vmatpush1.bf16.msra.mxu0 %v726
      %751 = vmatprep.subr.bf16.mxu0 0
      %752 = vmatpush1.bf16.msra.mxu0 0
      %753 = vmatprep.subr.bf16.mxu0 0
      %754 = vmatpush1.bf16.msra.mxu0 0
      %755 = vmatprep.subr.bf16.mxu0 0
      %756 = vmatpush1.bf16.msra.mxu0 0
      %757 = vmatprep.subr.bf16.mxu0 0
      %758 = vmatpush1.bf16.msra.mxu0 0
      %759 = vmatprep.subr.bf16.mxu0 0
      %760 = vmatpush1.bf16.msra.mxu0 0
      %761 = vmatprep.subr.bf16.mxu0 0
      %762 = vmatpush1.bf16.msra.mxu0 0
      %763 = vmatprep.subr.bf16.mxu0 0
      %764 = vmatpush1.bf16.msra.mxu0 0
      %765 = vmatprep.subr.bf16.mxu0 0
      %766 = vmatpush1.bf16.msra.mxu0 0
      %767 = vmatprep.mubr.bf16.mxu0 0
      %768 = vmatmul.mubr.bf16.gmra.mrb[0].mxu0 %v685
      %v769 = vpop.f32.mrb[0].mxu0
      %v770 = vadd.f32 0.0, %v769
      %v771 = vpop.f32.mrb[0].mxu0
      %v772 = vpop.f32.mrb[0].mxu0
      %v773 = vadd.f32 0.0, %v772
      %v774 = vpop.f32.mrb[0].mxu0
      %775 = vdwg.mxu0
      %v776 = vadd.f32 %v657, %v770
      %v777 = vadd.f32 %v660, %v773
      %v778 = vld [vmem:[%s480] sm:$0xff]
      %v779 = vld [vmem:[%s480 + $0x8] sm:$0xff]
      %v780 = vld [vmem:[%s7] sm:$0xf]
      %v781 = vld [vmem:[%s7 + $0x4] sm:$0xf]
      %v782 = vld [vmem:[%s7 + $0x8] sm:$0xf]
      %v783 = vld [vmem:[%s7 + $0xc] sm:$0xf]
      %v784 = vld [vmem:[%s7 + $0x10] sm:$0xf]
      %v785 = vld [vmem:[%s7 + $0x14] sm:$0xf]
      %v786 = vld [vmem:[%s7 + $0x18] sm:$0xf]
      %v787 = vld [vmem:[%s7 + $0x1c] sm:$0xf]
      %v788 = vld [vmem:[%s7 + $0x20] sm:$0xf]
      %v789 = vld [vmem:[%s7 + $0x24] sm:$0xf]
      %v790 = vld [vmem:[%s7 + $0x28] sm:$0xf]
      %v791 = vld [vmem:[%s7 + $0x2c] sm:$0xf]
      %v792 = vld [vmem:[%s7 + $0x30] sm:$0xf]
      %v793 = vld [vmem:[%s7 + $0x34] sm:$0xf]
      %v794 = vld [vmem:[%s7 + $0x38] sm:$0xf]
      %v795 = vld [vmem:[%s7 + $0x3c] sm:$0xf]
      %v796 = vld [vmem:[%s7 + $0x40] sm:$0xf]
      %v797 = vld [vmem:[%s7 + $0x44] sm:$0xf]
      %v798 = vld [vmem:[%s7 + $0x48] sm:$0xf]
      %v799 = vld [vmem:[%s7 + $0x4c] sm:$0xf]
      %v800 = vld [vmem:[%s7 + $0x50] sm:$0xf]
      %v801 = vld [vmem:[%s7 + $0x54] sm:$0xf]
      %v802 = vld [vmem:[%s7 + $0x58] sm:$0xf]
      %v803 = vld [vmem:[%s7 + $0x5c] sm:$0xf]
      %v804 = vld [vmem:[%s7 + $0x60] sm:$0xf]
      %v805 = vld [vmem:[%s7 + $0x64] sm:$0xf]
      %v806 = vld [vmem:[%s7 + $0x68] sm:$0xf]
      %v807 = vld [vmem:[%s7 + $0x6c] sm:$0xf]
      %v808 = vld [vmem:[%s7 + $0x70] sm:$0xf]
      %v809 = vld [vmem:[%s7 + $0x74] sm:$0xf]
      %v810 = vld [vmem:[%s7 + $0x78] sm:$0xf]
      %v811 = vld [vmem:[%s7 + $0x7c] sm:$0xf]
      %v814 = vunpack.c.l.b16 %v778
      %v815 = vunpack.c.h.b16 %v778
      %v816 = vunpack.c.l.b16 %v779
      %v817 = vunpack.c.h.b16 %v779
      %v818 = vpack.c.b16 %v816, %v814
      %v819 = vpack.c.b16 %v817, %v815
      %v854 = vunpack.c.l.b16 %v780
      %v855 = vunpack.c.l.b16 %v781
      %v856 = vunpack.c.l.b16 %v782
      %v857 = vunpack.c.l.b16 %v783
      %v858 = vunpack.c.l.b16 %v784
      %v859 = vunpack.c.l.b16 %v785
      %v860 = vunpack.c.l.b16 %v786
      %v861 = vunpack.c.l.b16 %v787
      %v862 = vunpack.c.l.b16 %v788
      %v863 = vunpack.c.l.b16 %v789
      %v864 = vunpack.c.l.b16 %v790
      %v865 = vunpack.c.l.b16 %v791
      %v866 = vunpack.c.l.b16 %v792
      %v867 = vunpack.c.l.b16 %v793
      %v868 = vunpack.c.l.b16 %v794
      %v869 = vunpack.c.l.b16 %v795
      %v870 = vunpack.c.l.b16 %v796
      %v871 = vunpack.c.l.b16 %v797
      %v872 = vunpack.c.l.b16 %v798
      %v873 = vunpack.c.l.b16 %v799
      %v874 = vunpack.c.l.b16 %v800
      %v875 = vunpack.c.l.b16 %v801
      %v876 = vunpack.c.l.b16 %v802
      %v877 = vunpack.c.l.b16 %v803
      %v878 = vunpack.c.l.b16 %v804
      %v879 = vunpack.c.l.b16 %v805
      %v880 = vunpack.c.l.b16 %v806
      %v881 = vunpack.c.l.b16 %v807
      %v882 = vunpack.c.l.b16 %v808
      %v883 = vunpack.c.l.b16 %v809
      %v884 = vunpack.c.l.b16 %v810
      %v885 = vunpack.c.l.b16 %v811
      %v886 = vpack.c.b16 %v855, %v854
      %v887 = vpack.c.b16 %v857, %v856
      %v888 = vpack.c.b16 %v859, %v858
      %v889 = vpack.c.b16 %v861, %v860
      %v890 = vpack.c.b16 %v863, %v862
      %v891 = vpack.c.b16 %v865, %v864
      %v892 = vpack.c.b16 %v867, %v866
      %v893 = vpack.c.b16 %v869, %v868
      %v894 = vpack.c.b16 %v871, %v870
      %v895 = vpack.c.b16 %v873, %v872
      %v896 = vpack.c.b16 %v875, %v874
      %v897 = vpack.c.b16 %v877, %v876
      %v898 = vpack.c.b16 %v879, %v878
      %v899 = vpack.c.b16 %v881, %v880
      %v900 = vpack.c.b16 %v883, %v882
      %v901 = vpack.c.b16 %v885, %v884
      %918 = vmatprep.subr.bf16.mxu0 0
      %919 = vmatpush1.bf16.msra.mxu0 %v886
      %920 = vmatprep.subr.bf16.mxu0 0
      %921 = vmatpush1.bf16.msra.mxu0 %v887
      %922 = vmatprep.subr.bf16.mxu0 0
      %923 = vmatpush1.bf16.msra.mxu0 %v888
      %924 = vmatprep.subr.bf16.mxu0 0
      %925 = vmatpush1.bf16.msra.mxu0 %v889
      %926 = vmatprep.subr.bf16.mxu0 0
      %927 = vmatpush1.bf16.msra.mxu0 %v890
      %928 = vmatprep.subr.bf16.mxu0 0
      %929 = vmatpush1.bf16.msra.mxu0 %v891
      %930 = vmatprep.subr.bf16.mxu0 0
      %931 = vmatpush1.bf16.msra.mxu0 %v892
      %932 = vmatprep.subr.bf16.mxu0 0
      %933 = vmatpush1.bf16.msra.mxu0 %v893
      %934 = vmatprep.subr.bf16.mxu0 0
      %935 = vmatpush1.bf16.msra.mxu0 %v894
      %936 = vmatprep.subr.bf16.mxu0 0
      %937 = vmatpush1.bf16.msra.mxu0 %v895
      %938 = vmatprep.subr.bf16.mxu0 0
      %939 = vmatpush1.bf16.msra.mxu0 %v896
      %940 = vmatprep.subr.bf16.mxu0 0
      %941 = vmatpush1.bf16.msra.mxu0 %v897
      %942 = vmatprep.subr.bf16.mxu0 0
      %943 = vmatpush1.bf16.msra.mxu0 %v898
      %944 = vmatprep.subr.bf16.mxu0 0
      %945 = vmatpush1.bf16.msra.mxu0 %v899
      %946 = vmatprep.subr.bf16.mxu0 0
      %947 = vmatpush1.bf16.msra.mxu0 %v900
      %948 = vmatprep.subr.bf16.mxu0 0
      %949 = vmatpush1.bf16.msra.mxu0 %v901
      %950 = vmatprep.mubr.bf16.mxu0 %v819
      %951 = vmatmul.mubr.bf16.gmra.mrb[0].mxu0 %v818
      %v952 = vpop.f32.mrb[0].mxu0
      %v953 = vadd.f32 0.0, %v952
      %v954 = vpop.f32.mrb[0].mxu0
      %v955 = vpop.f32.mrb[0].mxu0
      %v956 = vadd.f32 0.0, %v955
      %v957 = vpop.f32.mrb[0].mxu0
      %958 = vdwg.mxu0
      %v959 = vadd.f32 %v776, %v953
      %v960 = vadd.f32 %v777, %v956
      %vm961 = vcmask 261120
      %v962 = vsel %vm961, %v959, -inf
      %v963 = vsel %vm961, %v960, -inf
      %v964 = vmax.f32 %v962, %v963
      %v965 = vrot.slane %v964, 4
      %v966 = vmax.f32 %v964, %v965
      %v967 = vrot.slane %v966, 2
      %v968 = vmax.f32 %v966, %v967
      %v969 = vrot.slane %v968, 1
      %v970 = vmax.f32 %v968, %v969
      %vm971 = vcmask 253952
      %972 = vst.msk [vmem:[%s487] sm:$0x1] %vm971, %v970
      %v973 = vsel %vm961, %v959, 0.0
      %v974 = vsel %vm961, %v960, 0.0
      %v975 = vadd.f32 %v973, %v974
      %v976 = vrot.slane %v975, 4
      %v977 = vadd.f32 %v975, %v976
      %v978 = vrot.slane %v977, 2
      %v979 = vadd.f32 %v977, %v978
      %v980 = vrot.slane %v979, 1
      %v981 = vadd.f32 %v979, %v980
      %982 = vst.msk [vmem:[%s494] sm:$0x1] %vm971, %v981
      %v983 = vmul.f32 %v959, %v959
      %v984 = vmul.f32 %v960, %v960
      %v985 = vsel %vm961, %v983, 0.0
      %v986 = vsel %vm961, %v984, 0.0
      %v987 = vadd.f32 %v985, %v986
      %v988 = vrot.slane %v987, 4
      %v989 = vadd.f32 %v987, %v988
      %v990 = vrot.slane %v989, 2
      %v991 = vadd.f32 %v989, %v990
      %v992 = vrot.slane %v991, 1
      %v993 = vadd.f32 %v991, %v992
      %994 = vst.msk [vmem:[%s494 + $0x1] sm:$0x1] %vm971, %v993
      %p995 = scmp.lt.s32.totalorder %s25, 1
      %s996 = scalar_select %p995, %s25, 1
      %p997 = scmp.lt.s32.totalorder %s26, 0
      %s998 = scalar_select %p997, %s26, 0
      %s999 = sadd.s32 %s998, %s996
      %s1000 = scalar_lea.vmem %s8, %s999
      %p1001 = scmp.lt.s32.totalorder %s25, 1
      %s1002 = scalar_select %p1001, %s25, 1
      %p1003 = scmp.lt.s32.totalorder %s26, 0
      %s1004 = scalar_select %p1003, %s26, 0
      %s1005 = sadd.s32 %s1004, %s1002
      %s1006 = smul.addr %s1005, 2
      %s1007 = scalar_lea.vmem %s9, %s1006
      // Predicated region
      $region53: #{point_gen_forward.26} parent=51 // pred_check
        %p1008 = pneg %p249
      $region54: #{point_gen_forward.26} parent=51 // pred_check_branch
        %1010 = sbr.rel (%p1008) target = $region56
      $region55: #{point_gen_forward.26} parent=51 // pred_region
        _
      $region56: #{point_gen_forward.26} parent=51 // pred_fallthru
        _
      // Predicated region
      $region57: #{point_gen_forward.26} parent=51 // pred_check
        %p1011 = pneg %p277
      $region58: #{point_gen_forward.26} parent=51 // pred_check_branch
        %1013 = sbr.rel (%p1011) target = $region60
      $region59: #{point_gen_forward.26} parent=51 // pred_region
        _
      $region60: #{point_gen_forward.26} parent=51 // pred_fallthru
        _
    $region52: #{point_gen_forward.26} parent=5 // pred_fallthru
      _
    %p1014 = scmp.le.s32.totalorder 2, %s16
    // Predicated region
    $region61: #{point_gen_forward.26} parent=5 // pred_check
      %p1015 = pneg %p1014
    $region62: #{point_gen_forward.26} parent=5 // pred_check_branch
      %1017 = sbr.rel (%p1015) target = $region64
    $region63: #{point_gen_forward.26} parent=5 // pred_region
      %s1018 = ssub.s32 %s16, 2
      // Predicated region
      $region65: #{point_gen_forward.26} parent=63 // pred_check
        %p1019 = pneg %p255
      $region66: #{point_gen_forward.26} parent=63 // pred_check_branch
        %1021 = sbr.rel (%p1019) target = $region68
      $region67: #{point_gen_forward.26} parent=63 // pred_region
        %p1022 = scmp.lt.s32.totalorder %s27, 1
        %s1023 = scalar_select %p1022, %s27, 1
        %p1024 = scmp.lt.s32.totalorder %s28, 0
        %s1025 = scalar_select %p1024, %s28, 0
        %s1026 = sadd.s32 %s1025, %s1023
        %s1027 = scalar_lea.vmem %s8, %s1026
      $region68: #{point_gen_forward.26} parent=63 // pred_fallthru
        _
      // Predicated region
      $region69: #{point_gen_forward.26} parent=63 // pred_check
        %p1028 = pneg %p283
      $region70: #{point_gen_forward.26} parent=63 // pred_check_branch
        %1030 = sbr.rel (%p1028) target = $region72
      $region71: #{point_gen_forward.26} parent=63 // pred_region
        %p1031 = scmp.lt.s32.totalorder %s27, 1
        %s1032 = scalar_select %p1031, %s27, 1
        %p1033 = scmp.lt.s32.totalorder %s28, 0
        %s1034 = scalar_select %p1033, %s28, 0
        %s1035 = sadd.s32 %s1034, %s1032
        %s1036 = smul.addr %s1035, 2
        %s1037 = scalar_lea.vmem %s9, %s1036
      $region72: #{point_gen_forward.26} parent=63 // pred_fallthru
        _
    $region64: #{point_gen_forward.26} parent=5 // pred_fallthru
      _
  $region6: #{point_gen_forward.26} parent=0 // loop_footer
    %s20 = sadd.s32 1, %s16
  $region7: #{point_gen_forward.26} parent=0 // loop_footer_branch
    %15 = sbr.rel target = $region3
  $region8: #{point_gen_forward.26} parent=0 // loop_exit
    _

// kernel: point_gen_forward.27
$region0: #{point_gen_forward.27}
  #allocation0 [shape = 'u32[]', space=smem, size = 0x4, offset = 0x4, fixed_abs, tag = 'smem constant byte address 0x4 - core index']
  #allocation1 [shape = 'u32[144,128]{1,0:T(1,128)}', space=vmem, size = 0x12000, scoped, tag = 'internal scratch']
  %s0 = inlined_call_operand.vmem [shape: f32[2,32], index: 0, kind: input, shape index: {}]
  %s1 = inlined_call_operand.vmem [shape: f32[1,32], index: 1, kind: input, shape index: {}]
  %s2 = inlined_call_operand.vmem [shape: f32[1,32], index: 2, kind: input, shape index: {}]
  %s3 = inlined_call_operand.vmem [shape: bf16[32,256], index: 3, kind: input, shape index: {}]
  %s4 = inlined_call_operand.vmem [shape: f32[1,256], index: 4, kind: input, shape index: {}]
  %s5 = inlined_call_operand.vmem [shape: bf16[256,512], index: 5, kind: input, shape index: {}]
  %s6 = inlined_call_operand.vmem [shape: f32[1,512], index: 6, kind: input, shape index: {}]
  %s7 = inlined_call_operand.vmem [shape: bf16[512,16], index: 7, kind: input, shape index: {}]
  %s8 = inlined_call_operand.vmem [shape: f32[1,16], index: 8, kind: input, shape index: {}]
  %s9 = inlined_call_operand.hbm [shape: f32[2,16], index: 9, kind: output, shape index: {}]
  %s10 = sld [smem:[#allocation0]]
  $region46: #{point_gen_forward.27} parent=0
    _
  %s12 = ssub.s32 1, %s10
  %s13 = scalar_select 0, %s12, %s10
  $region1: #{point_gen_forward.27} parent=0
    #allocation2 [shape = 'u8[1024]{0}', space=vmem, size = 0x400, scoped, tag = 'output window, operand 0, single buffered']
    #allocation3 [shape = 's32[1]{0}', space=sflag, size = 0x4, scoped, tag = 'scoped memory for point_gen_forward.27']
    %14 = vsyncpa [#allocation3], 0
    // Predicated region
    $region2: #{point_gen_forward.27} parent=1 // pred_check
      _
    $region3: #{point_gen_forward.27} parent=1 // pred_check_branch
      %16 = sbr.rel (0) target = $region5
    $region4: #{point_gen_forward.27} parent=1 // pred_region
      _
    $region5: #{point_gen_forward.27} parent=1 // pred_fallthru
      _
    // Predicated region
    $region6: #{point_gen_forward.27} parent=1 // pred_check
      _
    $region7: #{point_gen_forward.27} parent=1 // pred_check_branch
      %18 = sbr.rel (0) target = $region9
    $region8: #{point_gen_forward.27} parent=1 // pred_region
      _
    $region9: #{point_gen_forward.27} parent=1 // pred_fallthru
      _
    // Predicated region
    $region10: #{point_gen_forward.27} parent=1 // pred_check
      _
    $region11: #{point_gen_forward.27} parent=1 // pred_check_branch
      %20 = sbr.rel (0) target = $region13
    $region12: #{point_gen_forward.27} parent=1 // pred_region
      _
    $region13: #{point_gen_forward.27} parent=1 // pred_fallthru
      _
    // Predicated region
    $region14: #{point_gen_forward.27} parent=1 // pred_check
      _
    $region15: #{point_gen_forward.27} parent=1 // pred_check_branch
      %22 = sbr.rel (0) target = $region17
    $region16: #{point_gen_forward.27} parent=1 // pred_region
      _
    $region17: #{point_gen_forward.27} parent=1 // pred_fallthru
      _
    // Predicated region
    $region18: #{point_gen_forward.27} parent=1 // pred_check
      _
    $region19: #{point_gen_forward.27} parent=1 // pred_check_branch
      %24 = sbr.rel (0) target = $region21
    $region20: #{point_gen_forward.27} parent=1 // pred_region
      _
    $region21: #{point_gen_forward.27} parent=1 // pred_fallthru
      _
    // Predicated region
    $region22: #{point_gen_forward.27} parent=1 // pred_check
      _
    $region23: #{point_gen_forward.27} parent=1 // pred_check_branch
      %26 = sbr.rel (0) target = $region25
    $region24: #{point_gen_forward.27} parent=1 // pred_region
      _
    $region25: #{point_gen_forward.27} parent=1 // pred_fallthru
      _
    // Predicated region
    $region26: #{point_gen_forward.27} parent=1 // pred_check
      _
    $region27: #{point_gen_forward.27} parent=1 // pred_check_branch
      %28 = sbr.rel (0) target = $region29
    $region28: #{point_gen_forward.27} parent=1 // pred_region
      _
    $region29: #{point_gen_forward.27} parent=1 // pred_fallthru
      _
    // Predicated region
    $region30: #{point_gen_forward.27} parent=1 // pred_check
      _
    $region31: #{point_gen_forward.27} parent=1 // pred_check_branch
      %30 = sbr.rel (0) target = $region33
    $region32: #{point_gen_forward.27} parent=1 // pred_region
      _
    $region33: #{point_gen_forward.27} parent=1 // pred_fallthru
      _
    // Predicated region
    $region34: #{point_gen_forward.27} parent=1 // pred_check
      _
    $region35: #{point_gen_forward.27} parent=1 // pred_check_branch
      %32 = sbr.rel (0) target = $region37
    $region36: #{point_gen_forward.27} parent=1 // pred_region
      _
    $region37: #{point_gen_forward.27} parent=1 // pred_fallthru
      _
    %v34 = vld [vmem:[%s0] sm:$0x3]
    %v35 = vld [vmem:[%s1] sm:$0x1]
    %v37 = vlaneseq
    %v38 = vshrl.u32 %v37, 7
    %v39 = vsub.s32 0, %v38
    %v40 = vrot.slane %v35, %v39
    %v42 = vmul.f32 %v34, %v40
    %v43 = vld [vmem:[%s2] sm:$0x1]
    %v45 = vlaneseq
    %v46 = vshrl.u32 %v45, 7
    %v47 = vsub.s32 0, %v46
    %v48 = vrot.slane %v43, %v47
    %v50 = vadd.f32 %v42, %v48
    %vm51 = vcmp.gt.f32.partialorder %v50, 0.0
    %v52 = vmul.f32 %v50, 0.2
    %v53 = vsel %vm51, %v50, %v52
    %v54 = vpack.c.bf16 %v53, %v53
    %v55 = vld [vmem:[%s3] sm:$0xff]
    %v56 = vld [vmem:[%s3 + $0x8] sm:$0xff]
    %v57 = vld [vmem:[%s3 + $0x10] sm:$0xff]
    %v58 = vld [vmem:[%s3 + $0x18] sm:$0xff]
    %v59 = vld [vmem:[%s4] sm:$0x3]
    %v61 = vlaneseq
    %v62 = vshrl.u32 %v61, 7
    %v63 = vsub.s32 0, %v62
    %v64 = vrot.slane %v59, %v63
    %v65 = vlaneseq
    %v66 = vshrl.u32 %v65, 7
    %v67 = vsub.s32 1, %v66
    %v68 = vrot.slane %v59, %v67
    %v75 = vunpack.c.l.b16 %v55
    %v76 = vunpack.c.h.b16 %v55
    %v77 = vunpack.c.l.b16 %v56
    %v78 = vunpack.c.h.b16 %v56
    %v79 = vunpack.c.l.b16 %v57
    %v80 = vunpack.c.h.b16 %v57
    %v81 = vunpack.c.l.b16 %v58
    %v82 = vunpack.c.h.b16 %v58
    %v83 = vpack.c.b16 %v77, %v75
    %v84 = vpack.c.b16 %v78, %v76
    %v85 = vpack.c.b16 %v81, %v79
    %v86 = vpack.c.b16 %v82, %v80
    %vm91 = vcmask 261120
    %v93 = vsel %vm91, %v54, 0
    %95 = vmatprep.subr.bf16.mxu0 %v84
    %96 = vmatpush1.bf16.msra.mxu0 %v83
    %97 = vmatprep.subr.bf16.mxu0 %v86
    %98 = vmatpush1.bf16.msra.mxu0 %v85
    %99 = vmatprep.subr.bf16.mxu0 0
    %100 = vmatpush1.bf16.msra.mxu0 0
    %101 = vmatprep.subr.bf16.mxu0 0
    %102 = vmatpush1.bf16.msra.mxu0 0
    %103 = vmatprep.subr.bf16.mxu0 0
    %104 = vmatpush1.bf16.msra.mxu0 0
    %105 = vmatprep.subr.bf16.mxu0 0
    %106 = vmatpush1.bf16.msra.mxu0 0
    %107 = vmatprep.subr.bf16.mxu0 0
    %108 = vmatpush1.bf16.msra.mxu0 0
    %109 = vmatprep.subr.bf16.mxu0 0
    %110 = vmatpush1.bf16.msra.mxu0 0
    %111 = vmatprep.subr.bf16.mxu0 0
    %112 = vmatpush1.bf16.msra.mxu0 0
    %113 = vmatprep.subr.bf16.mxu0 0
    %114 = vmatpush1.bf16.msra.mxu0 0
    %115 = vmatprep.subr.bf16.mxu0 0
    %116 = vmatpush1.bf16.msra.mxu0 0
    %117 = vmatprep.subr.bf16.mxu0 0
    %118 = vmatpush1.bf16.msra.mxu0 0
    %119 = vmatprep.subr.bf16.mxu0 0
    %120 = vmatpush1.bf16.msra.mxu0 0
    %121 = vmatprep.subr.bf16.mxu0 0
    %122 = vmatpush1.bf16.msra.mxu0 0
    %123 = vmatprep.subr.bf16.mxu0 0
    %124 = vmatpush1.bf16.msra.mxu0 0
    %125 = vmatprep.subr.bf16.mxu0 0
    %126 = vmatpush1.bf16.msra.mxu0 0
    %127 = vmatprep.mubr.bf16.mxu0 0
    %128 = vmatmul.mubr.bf16.gmra.mrb[0].mxu0 %v93
    %v129 = vpop.f32.mrb[0].mxu0
    %v130 = vadd.f32 %v64, %v129
    %v131 = vpop.f32.mrb[0].mxu0
    %v132 = vadd.f32 %v68, %v131
    %v133 = vpop.f32.mrb[0].mxu0
    %v134 = vpop.f32.mrb[0].mxu0
    %135 = vdwg.mxu0
    %v136 = vmax.f32 %v130, 0.0
    %v137 = vmax.f32 %v132, 0.0
    %v138 = vpack.c.bf16 %v136, %v136
    %v139 = vpack.c.bf16 %v137, %v137
    %v140 = vld [vmem:[%s5] sm:$0xff]
    %v141 = vld [vmem:[%s5 + $0x8] sm:$0xff]
    %v142 = vld [vmem:[%s5 + $0x10] sm:$0xff]
    %v143 = vld [vmem:[%s5 + $0x18] sm:$0xff]
    %v144 = vld [vmem:[%s5 + $0x20] sm:$0xff]
    %v145 = vld [vmem:[%s5 + $0x28] sm:$0xff]
    %v146 = vld [vmem:[%s5 + $0x30] sm:$0xff]
    %v147 = vld [vmem:[%s5 + $0x38] sm:$0xff]
    %v148 = vld [vmem:[%s5 + $0x40] sm:$0xff]
    %v149 = vld [vmem:[%s5 + $0x48] sm:$0xff]
    %v150 = vld [vmem:[%s5 + $0x50] sm:$0xff]
    %v151 = vld [vmem:[%s5 + $0x58] sm:$0xff]
    %v152 = vld [vmem:[%s5 + $0x60] sm:$0xff]
    %v153 = vld [vmem:[%s5 + $0x68] sm:$0xff]
    %v154 = vld [vmem:[%s5 + $0x70] sm:$0xff]
    %v155 = vld [vmem:[%s5 + $0x78] sm:$0xff]
    %v156 = vld [vmem:[%s5 + $0x80] sm:$0xff]
    %v157 = vld [vmem:[%s5 + $0x88] sm:$0xff]
    %v158 = vld [vmem:[%s5 + $0x90] sm:$0xff]
    %v159 = vld [vmem:[%s5 + $0x98] sm:$0xff]
    %v160 = vld [vmem:[%s5 + $0xa0] sm:$0xff]
    %v161 = vld [vmem:[%s5 + $0xa8] sm:$0xff]
    %v162 = vld [vmem:[%s5 + $0xb0] sm:$0xff]
    %v163 = vld [vmem:[%s5 + $0xb8] sm:$0xff]
    %v164 = vld [vmem:[%s5 + $0xc0] sm:$0xff]
    %v165 = vld [vmem:[%s5 + $0xc8] sm:$0xff]
    %v166 = vld [vmem:[%s5 + $0xd0] sm:$0xff]
    %v167 = vld [vmem:[%s5 + $0xd8] sm:$0xff]
    %v168 = vld [vmem:[%s5 + $0xe0] sm:$0xff]
    %v169 = vld [vmem:[%s5 + $0xe8] sm:$0xff]
    %v170 = vld [vmem:[%s5 + $0xf0] sm:$0xff]
    %v171 = vld [vmem:[%s5 + $0xf8] sm:$0xff]
    %v172 = vld [vmem:[%s5 + $0x100] sm:$0xff]
    %v173 = vld [vmem:[%s5 + $0x108] sm:$0xff]
    %v174 = vld [vmem:[%s5 + $0x110] sm:$0xff]
    %v175 = vld [vmem:[%s5 + $0x118] sm:$0xff]
    %v176 = vld [vmem:[%s5 + $0x120] sm:$0xff]
    %v177 = vld [vmem:[%s5 + $0x128] sm:$0xff]
    %v178 = vld [vmem:[%s5 + $0x130] sm:$0xff]
    %v179 = vld [vmem:[%s5 + $0x138] sm:$0xff]
    %v180 = vld [vmem:[%s5 + $0x140] sm:$0xff]
    %v181 = vld [vmem:[%s5 + $0x148] sm:$0xff]
    %v182 = vld [vmem:[%s5 + $0x150] sm:$0xff]
    %v183 = vld [vmem:[%s5 + $0x158] sm:$0xff]
    %v184 = vld [vmem:[%s5 + $0x160] sm:$0xff]
    %v185 = vld [vmem:[%s5 + $0x168] sm:$0xff]
    %v186 = vld [vmem:[%s5 + $0x170] sm:$0xff]
    %v187 = vld [vmem:[%s5 + $0x178] sm:$0xff]
    %v188 = vld [vmem:[%s5 + $0x180] sm:$0xff]
    %v189 = vld [vmem:[%s5 + $0x188] sm:$0xff]
    %v190 = vld [vmem:[%s5 + $0x190] sm:$0xff]
    %v191 = vld [vmem:[%s5 + $0x198] sm:$0xff]
    %v192 = vld [vmem:[%s5 + $0x1a0] sm:$0xff]
    %v193 = vld [vmem:[%s5 + $0x1a8] sm:$0xff]
    %v194 = vld [vmem:[%s5 + $0x1b0] sm:$0xff]
    %v195 = vld [vmem:[%s5 + $0x1b8] sm:$0xff]
    %v196 = vld [vmem:[%s5 + $0x1c0] sm:$0xff]
    %v197 = vld [vmem:[%s5 + $0x1c8] sm:$0xff]
    %v198 = vld [vmem:[%s5 + $0x1d0] sm:$0xff]
    %v199 = vld [vmem:[%s5 + $0x1d8] sm:$0xff]
    %v200 = vld [vmem:[%s5 + $0x1e0] sm:$0xff]
    %v201 = vld [vmem:[%s5 + $0x1e8] sm:$0xff]
    %v202 = vld [vmem:[%s5 + $0x1f0] sm:$0xff]
    %v203 = vld [vmem:[%s5 + $0x1f8] sm:$0xff]
    %v204 = vld [vmem:[%s6] sm:$0xf]
    %v206 = vlaneseq
    %v207 = vshrl.u32 %v206, 7
    %v208 = vsub.s32 0, %v207
    %v209 = vrot.slane %v204, %v208
    %v210 = vlaneseq
    %v211 = vshrl.u32 %v210, 7
    %v212 = vsub.s32 1, %v211
    %v213 = vrot.slane %v204, %v212
    %v214 = vlaneseq
    %v215 = vshrl.u32 %v214, 7
    %v216 = vsub.s32 2, %v215
    %v217 = vrot.slane %v204, %v216
    %v218 = vlaneseq
    %v219 = vshrl.u32 %v218, 7
    %v220 = vsub.s32 3, %v219
    %v221 = vrot.slane %v204, %v220
    %v290 = vunpack.c.l.b16 %v140
    %v291 = vunpack.c.h.b16 %v140
    %v292 = vunpack.c.l.b16 %v141
    %v293 = vunpack.c.h.b16 %v141
    %v294 = vunpack.c.l.b16 %v142
    %v295 = vunpack.c.h.b16 %v142
    %v296 = vunpack.c.l.b16 %v143
    %v297 = vunpack.c.h.b16 %v143
    %v298 = vunpack.c.l.b16 %v144
    %v299 = vunpack.c.h.b16 %v144
    %v300 = vunpack.c.l.b16 %v145
    %v301 = vunpack.c.h.b16 %v145
    %v302 = vunpack.c.l.b16 %v146
    %v303 = vunpack.c.h.b16 %v146
    %v304 = vunpack.c.l.b16 %v147
    %v305 = vunpack.c.h.b16 %v147
    %v306 = vunpack.c.l.b16 %v148
    %v307 = vunpack.c.h.b16 %v148
    %v308 = vunpack.c.l.b16 %v149
    %v309 = vunpack.c.h.b16 %v149
    %v310 = vunpack.c.l.b16 %v150
    %v311 = vunpack.c.h.b16 %v150
    %v312 = vunpack.c.l.b16 %v151
    %v313 = vunpack.c.h.b16 %v151
    %v314 = vunpack.c.l.b16 %v152
    %v315 = vunpack.c.h.b16 %v152
    %v316 = vunpack.c.l.b16 %v153
    %v317 = vunpack.c.h.b16 %v153
    %v318 = vunpack.c.l.b16 %v154
    %v319 = vunpack.c.h.b16 %v154
    %v320 = vunpack.c.l.b16 %v155
    %v321 = vunpack.c.h.b16 %v155
    %v322 = vunpack.c.l.b16 %v156
    %v323 = vunpack.c.h.b16 %v156
    %v324 = vunpack.c.l.b16 %v157
    %v325 = vunpack.c.h.b16 %v157
    %v326 = vunpack.c.l.b16 %v158
    %v327 = vunpack.c.h.b16 %v158
    %v328 = vunpack.c.l.b16 %v159
    %v329 = vunpack.c.h.b16 %v159
    %v330 = vunpack.c.l.b16 %v160
    %v331 = vunpack.c.h.b16 %v160
    %v332 = vunpack.c.l.b16 %v161
    %v333 = vunpack.c.h.b16 %v161
    %v334 = vunpack.c.l.b16 %v162
    %v335 = vunpack.c.h.b16 %v162
    %v336 = vunpack.c.l.b16 %v163
    %v337 = vunpack.c.h.b16 %v163
    %v338 = vunpack.c.l.b16 %v164
    %v339 = vunpack.c.h.b16 %v164
    %v340 = vunpack.c.l.b16 %v165
    %v341 = vunpack.c.h.b16 %v165
    %v342 = vunpack.c.l.b16 %v166
    %v343 = vunpack.c.h.b16 %v166
    %v344 = vunpack.c.l.b16 %v167
    %v345 = vunpack.c.h.b16 %v167
    %v346 = vunpack.c.l.b16 %v168
    %v347 = vunpack.c.h.b16 %v168
    %v348 = vunpack.c.l.b16 %v169
    %v349 = vunpack.c.h.b16 %v169
    %v350 = vunpack.c.l.b16 %v170
    %v351 = vunpack.c.h.b16 %v170
    %v352 = vunpack.c.l.b16 %v171
    %v353 = vunpack.c.h.b16 %v171
    %v354 = vunpack.c.l.b16 %v172
    %v355 = vunpack.c.h.b16 %v172
    %v356 = vunpack.c.l.b16 %v173
    %v357 = vunpack.c.h.b16 %v173
    %v358 = vunpack.c.l.b16 %v174
    %v359 = vunpack.c.h.b16 %v174
    %v360 = vunpack.c.l.b16 %v175
    %v361 = vunpack.c.h.b16 %v175
    %v362 = vunpack.c.l.b16 %v176
    %v363 = vunpack.c.h.b16 %v176
    %v364 = vunpack.c.l.b16 %v177
    %v365 = vunpack.c.h.b16 %v177
    %v366 = vunpack.c.l.b16 %v178
    %v367 = vunpack.c.h.b16 %v178
    %v368 = vunpack.c.l.b16 %v179
    %v369 = vunpack.c.h.b16 %v179
    %v370 = vunpack.c.l.b16 %v180
    %v371 = vunpack.c.h.b16 %v180
    %v372 = vunpack.c.l.b16 %v181
    %v373 = vunpack.c.h.b16 %v181
    %v374 = vunpack.c.l.b16 %v182
    %v375 = vunpack.c.h.b16 %v182
    %v376 = vunpack.c.l.b16 %v183
    %v377 = vunpack.c.h.b16 %v183
    %v378 = vunpack.c.l.b16 %v184
    %v379 = vunpack.c.h.b16 %v184
    %v380 = vunpack.c.l.b16 %v185
    %v381 = vunpack.c.h.b16 %v185
    %v382 = vunpack.c.l.b16 %v186
    %v383 = vunpack.c.h.b16 %v186
    %v384 = vunpack.c.l.b16 %v187
    %v385 = vunpack.c.h.b16 %v187
    %v386 = vunpack.c.l.b16 %v188
    %v387 = vunpack.c.h.b16 %v188
    %v388 = vunpack.c.l.b16 %v189
    %v389 = vunpack.c.h.b16 %v189
    %v390 = vunpack.c.l.b16 %v190
    %v391 = vunpack.c.h.b16 %v190
    %v392 = vunpack.c.l.b16 %v191
    %v393 = vunpack.c.h.b16 %v191
    %v394 = vunpack.c.l.b16 %v192
    %v395 = vunpack.c.h.b16 %v192
    %v396 = vunpack.c.l.b16 %v193
    %v397 = vunpack.c.h.b16 %v193
    %v398 = vunpack.c.l.b16 %v194
    %v399 = vunpack.c.h.b16 %v194
    %v400 = vunpack.c.l.b16 %v195
    %v401 = vunpack.c.h.b16 %v195
    %v402 = vunpack.c.l.b16 %v196
    %v403 = vunpack.c.h.b16 %v196
    %v404 = vunpack.c.l.b16 %v197
    %v405 = vunpack.c.h.b16 %v197
    %v406 = vunpack.c.l.b16 %v198
    %v407 = vunpack.c.h.b16 %v198
    %v408 = vunpack.c.l.b16 %v199
    %v409 = vunpack.c.h.b16 %v199
    %v410 = vunpack.c.l.b16 %v200
    %v411 = vunpack.c.h.b16 %v200
    %v412 = vunpack.c.l.b16 %v201
    %v413 = vunpack.c.h.b16 %v201
    %v414 = vunpack.c.l.b16 %v202
    %v415 = vunpack.c.h.b16 %v202
    %v416 = vunpack.c.l.b16 %v203
    %v417 = vunpack.c.h.b16 %v203
    %v418 = vpack.c.b16 %v294, %v290
    %v419 = vpack.c.b16 %v295, %v291
    %v420 = vpack.c.b16 %v296, %v292
    %v421 = vpack.c.b16 %v297, %v293
    %v422 = vpack.c.b16 %v302, %v298
    %v423 = vpack.c.b16 %v303, %v299
    %v424 = vpack.c.b16 %v304, %v300
    %v425 = vpack.c.b16 %v305, %v301
    %v426 = vpack.c.b16 %v310, %v306
    %v427 = vpack.c.b16 %v311, %v307
    %v428 = vpack.c.b16 %v312, %v308
    %v429 = vpack.c.b16 %v313, %v309
    %v430 = vpack.c.b16 %v318, %v314
    %v431 = vpack.c.b16 %v319, %v315
    %v432 = vpack.c.b16 %v320, %v316
    %v433 = vpack.c.b16 %v321, %v317
    %v434 = vpack.c.b16 %v326, %v322
    %v435 = vpack.c.b16 %v327, %v323
    %v436 = vpack.c.b16 %v328, %v324
    %v437 = vpack.c.b16 %v329, %v325
    %v438 = vpack.c.b16 %v334, %v330
    %v439 = vpack.c.b16 %v335, %v331
    %v440 = vpack.c.b16 %v336, %v332
    %v441 = vpack.c.b16 %v337, %v333
    %v442 = vpack.c.b16 %v342, %v338
    %v443 = vpack.c.b16 %v343, %v339
    %v444 = vpack.c.b16 %v344, %v340
    %v445 = vpack.c.b16 %v345, %v341
    %v446 = vpack.c.b16 %v350, %v346
    %v447 = vpack.c.b16 %v351, %v347
    %v448 = vpack.c.b16 %v352, %v348
    %v449 = vpack.c.b16 %v353, %v349
    %v450 = vpack.c.b16 %v358, %v354
    %v451 = vpack.c.b16 %v359, %v355
    %v452 = vpack.c.b16 %v360, %v356
    %v453 = vpack.c.b16 %v361, %v357
    %v454 = vpack.c.b16 %v366, %v362
    %v455 = vpack.c.b16 %v367, %v363
    %v456 = vpack.c.b16 %v368, %v364
    %v457 = vpack.c.b16 %v369, %v365
    %v458 = vpack.c.b16 %v374, %v370
    %v459 = vpack.c.b16 %v375, %v371
    %v460 = vpack.c.b16 %v376, %v372
    %v461 = vpack.c.b16 %v377, %v373
    %v462 = vpack.c.b16 %v382, %v378
    %v463 = vpack.c.b16 %v383, %v379
    %v464 = vpack.c.b16 %v384, %v380
    %v465 = vpack.c.b16 %v385, %v381
    %v466 = vpack.c.b16 %v390, %v386
    %v467 = vpack.c.b16 %v391, %v387
    %v468 = vpack.c.b16 %v392, %v388
    %v469 = vpack.c.b16 %v393, %v389
    %v470 = vpack.c.b16 %v398, %v394
    %v471 = vpack.c.b16 %v399, %v395
    %v472 = vpack.c.b16 %v400, %v396
    %v473 = vpack.c.b16 %v401, %v397
    %v474 = vpack.c.b16 %v406, %v402
    %v475 = vpack.c.b16 %v407, %v403
    %v476 = vpack.c.b16 %v408, %v404
    %v477 = vpack.c.b16 %v409, %v405
    %v478 = vpack.c.b16 %v414, %v410
    %v479 = vpack.c.b16 %v415, %v411
    %v480 = vpack.c.b16 %v416, %v412
    %v481 = vpack.c.b16 %v417, %v413
    %546 = vmatprep.subr.bf16.mxu0 %v419
    %547 = vmatpush1.bf16.msra.mxu0 %v418
    %548 = vmatprep.subr.bf16.mxu0 %v423
    %549 = vmatpush1.bf16.msra.mxu0 %v422
    %550 = vmatprep.subr.bf16.mxu0 %v427
    %551 = vmatpush1.bf16.msra.mxu0 %v426
    %552 = vmatprep.subr.bf16.mxu0 %v431
    %553 = vmatpush1.bf16.msra.mxu0 %v430
    %554 = vmatprep.subr.bf16.mxu0 %v435
    %555 = vmatpush1.bf16.msra.mxu0 %v434
    %556 = vmatprep.subr.bf16.mxu0 %v439
    %557 = vmatpush1.bf16.msra.mxu0 %v438
    %558 = vmatprep.subr.bf16.mxu0 %v443
    %559 = vmatpush1.bf16.msra.mxu0 %v442
    %560 = vmatprep.subr.bf16.mxu0 %v447
    %561 = vmatpush1.bf16.msra.mxu0 %v446
    %562 = vmatprep.subr.bf16.mxu0 %v451
    %563 = vmatpush1.bf16.msra.mxu0 %v450
    %564 = vmatprep.subr.bf16.mxu0 %v455
    %565 = vmatpush1.bf16.msra.mxu0 %v454
    %566 = vmatprep.subr.bf16.mxu0 %v459
    %567 = vmatpush1.bf16.msra.mxu0 %v458
    %568 = vmatprep.subr.bf16.mxu0 %v463
    %569 = vmatpush1.bf16.msra.mxu0 %v462
    %570 = vmatprep.subr.bf16.mxu0 %v467
    %571 = vmatpush1.bf16.msra.mxu0 %v466
    %572 = vmatprep.subr.bf16.mxu0 %v471
    %573 = vmatpush1.bf16.msra.mxu0 %v470
    %574 = vmatprep.subr.bf16.mxu0 %v475
    %575 = vmatpush1.bf16.msra.mxu0 %v474
    %576 = vmatprep.subr.bf16.mxu0 %v479
    %577 = vmatpush1.bf16.msra.mxu0 %v478
    %578 = vmatprep.mubr.bf16.mxu0 %v139
    %579 = vmatmul.mubr.bf16.gmra.mrb[0].mxu0 %v138
    %v580 = vpop.f32.mrb[0].mxu0
    %v581 = vadd.f32 %v209, %v580
    %v582 = vpop.f32.mrb[0].mxu0
    %v583 = vadd.f32 %v213, %v582
    %v584 = vpop.f32.mrb[0].mxu0
    %v585 = vpop.f32.mrb[0].mxu0
    %586 = vdwg.mxu0
    %587 = vmatprep.subr.bf16.mxu0 %v421
    %588 = vmatpush1.bf16.msra.mxu0 %v420
    %589 = vmatprep.subr.bf16.mxu0 %v425
    %590 = vmatpush1.bf16.msra.mxu0 %v424
    %591 = vmatprep.subr.bf16.mxu0 %v429
    %592 = vmatpush1.bf16.msra.mxu0 %v428
    %593 = vmatprep.subr.bf16.mxu0 %v433
    %594 = vmatpush1.bf16.msra.mxu0 %v432
    %595 = vmatprep.subr.bf16.mxu0 %v437
    %596 = vmatpush1.bf16.msra.mxu0 %v436
    %597 = vmatprep.subr.bf16.mxu0 %v441
    %598 = vmatpush1.bf16.msra.mxu0 %v440
    %599 = vmatprep.subr.bf16.mxu0 %v445
    %600 = vmatpush1.bf16.msra.mxu0 %v444
    %601 = vmatprep.subr.bf16.mxu0 %v449
    %602 = vmatpush1.bf16.msra.mxu0 %v448
    %603 = vmatprep.subr.bf16.mxu0 %v453
    %604 = vmatpush1.bf16.msra.mxu0 %v452
    %605 = vmatprep.subr.bf16.mxu0 %v457
    %606 = vmatpush1.bf16.msra.mxu0 %v456
    %607 = vmatprep.subr.bf16.mxu0 %v461
    %608 = vmatpush1.bf16.msra.mxu0 %v460
    %609 = vmatprep.subr.bf16.mxu0 %v465
    %610 = vmatpush1.bf16.msra.mxu0 %v464
    %611 = vmatprep.subr.bf16.mxu0 %v469
    %612 = vmatpush1.bf16.msra.mxu0 %v468
    %613 = vmatprep.subr.bf16.mxu0 %v473
    %614 = vmatpush1.bf16.msra.mxu0 %v472
    %615 = vmatprep.subr.bf16.mxu0 %v477
    %616 = vmatpush1.bf16.msra.mxu0 %v476
    %617 = vmatprep.subr.bf16.mxu0 %v481
    %618 = vmatpush1.bf16.msra.mxu0 %v480
    %619 = vmatprep.mubr.bf16.mxu0 %v139
    %620 = vmatmul.mubr.bf16.gmra.mrb[0].mxu0 %v138
    %v621 = vpop.f32.mrb[0].mxu0
    %v622 = vadd.f32 %v217, %v621
    %v623 = vpop.f32.mrb[0].mxu0
    %v624 = vadd.f32 %v221, %v623
    %v625 = vpop.f32.mrb[0].mxu0
    %v626 = vpop.f32.mrb[0].mxu0
    %627 = vdwg.mxu0
    %v628 = vmax.f32 %v581, 0.0
    %v629 = vmax.f32 %v583, 0.0
    %v630 = vmax.f32 %v622, 0.0
    %v631 = vmax.f32 %v624, 0.0
    %v632 = vpack.c.bf16 %v628, %v628
    %v633 = vpack.c.bf16 %v629, %v629
    %v634 = vpack.c.bf16 %v630, %v630
    %v635 = vpack.c.bf16 %v631, %v631
    %v636 = vld [vmem:[%s7] sm:$0xf]
    %v637 = vld [vmem:[%s7 + $0x4] sm:$0xf]
    %v638 = vld [vmem:[%s7 + $0x8] sm:$0xf]
    %v639 = vld [vmem:[%s7 + $0xc] sm:$0xf]
    %v640 = vld [vmem:[%s7 + $0x10] sm:$0xf]
    %v641 = vld [vmem:[%s7 + $0x14] sm:$0xf]
    %v642 = vld [vmem:[%s7 + $0x18] sm:$0xf]
    %v643 = vld [vmem:[%s7 + $0x1c] sm:$0xf]
    %v644 = vld [vmem:[%s7 + $0x20] sm:$0xf]
    %v645 = vld [vmem:[%s7 + $0x24] sm:$0xf]
    %v646 = vld [vmem:[%s7 + $0x28] sm:$0xf]
    %v647 = vld [vmem:[%s7 + $0x2c] sm:$0xf]
    %v648 = vld [vmem:[%s7 + $0x30] sm:$0xf]
    %v649 = vld [vmem:[%s7 + $0x34] sm:$0xf]
    %v650 = vld [vmem:[%s7 + $0x38] sm:$0xf]
    %v651 = vld [vmem:[%s7 + $0x3c] sm:$0xf]
    %v652 = vld [vmem:[%s7 + $0x40] sm:$0xf]
    %v653 = vld [vmem:[%s7 + $0x44] sm:$0xf]
    %v654 = vld [vmem:[%s7 + $0x48] sm:$0xf]
    %v655 = vld [vmem:[%s7 + $0x4c] sm:$0xf]
    %v656 = vld [vmem:[%s7 + $0x50] sm:$0xf]
    %v657 = vld [vmem:[%s7 + $0x54] sm:$0xf]
    %v658 = vld [vmem:[%s7 + $0x58] sm:$0xf]
    %v659 = vld [vmem:[%s7 + $0x5c] sm:$0xf]
    %v660 = vld [vmem:[%s7 + $0x60] sm:$0xf]
    %v661 = vld [vmem:[%s7 + $0x64] sm:$0xf]
    %v662 = vld [vmem:[%s7 + $0x68] sm:$0xf]
    %v663 = vld [vmem:[%s7 + $0x6c] sm:$0xf]
    %v664 = vld [vmem:[%s7 + $0x70] sm:$0xf]
    %v665 = vld [vmem:[%s7 + $0x74] sm:$0xf]
    %v666 = vld [vmem:[%s7 + $0x78] sm:$0xf]
    %v667 = vld [vmem:[%s7 + $0x7c] sm:$0xf]
    %v668 = vld [vmem:[%s7 + $0x80] sm:$0xf]
    %v669 = vld [vmem:[%s7 + $0x84] sm:$0xf]
    %v670 = vld [vmem:[%s7 + $0x88] sm:$0xf]
    %v671 = vld [vmem:[%s7 + $0x8c] sm:$0xf]
    %v672 = vld [vmem:[%s7 + $0x90] sm:$0xf]
    %v673 = vld [vmem:[%s7 + $0x94] sm:$0xf]
    %v674 = vld [vmem:[%s7 + $0x98] sm:$0xf]
    %v675 = vld [vmem:[%s7 + $0x9c] sm:$0xf]
    %v676 = vld [vmem:[%s7 + $0xa0] sm:$0xf]
    %v677 = vld [vmem:[%s7 + $0xa4] sm:$0xf]
    %v678 = vld [vmem:[%s7 + $0xa8] sm:$0xf]
    %v679 = vld [vmem:[%s7 + $0xac] sm:$0xf]
    %v680 = vld [vmem:[%s7 + $0xb0] sm:$0xf]
    %v681 = vld [vmem:[%s7 + $0xb4] sm:$0xf]
    %v682 = vld [vmem:[%s7 + $0xb8] sm:$0xf]
    %v683 = vld [vmem:[%s7 + $0xbc] sm:$0xf]
    %v684 = vld [vmem:[%s7 + $0xc0] sm:$0xf]
    %v685 = vld [vmem:[%s7 + $0xc4] sm:$0xf]
    %v686 = vld [vmem:[%s7 + $0xc8] sm:$0xf]
    %v687 = vld [vmem:[%s7 + $0xcc] sm:$0xf]
    %v688 = vld [vmem:[%s7 + $0xd0] sm:$0xf]
    %v689 = vld [vmem:[%s7 + $0xd4] sm:$0xf]
    %v690 = vld [vmem:[%s7 + $0xd8] sm:$0xf]
    %v691 = vld [vmem:[%s7 + $0xdc] sm:$0xf]
    %v692 = vld [vmem:[%s7 + $0xe0] sm:$0xf]
    %v693 = vld [vmem:[%s7 + $0xe4] sm:$0xf]
    %v694 = vld [vmem:[%s7 + $0xe8] sm:$0xf]
    %v695 = vld [vmem:[%s7 + $0xec] sm:$0xf]
    %v696 = vld [vmem:[%s7 + $0xf0] sm:$0xf]
    %v697 = vld [vmem:[%s7 + $0xf4] sm:$0xf]
    %v698 = vld [vmem:[%s7 + $0xf8] sm:$0xf]
    %v699 = vld [vmem:[%s7 + $0xfc] sm:$0xf]
    %v700 = vld [vmem:[%s8] sm:$0x1]
    %v702 = vlaneseq
    %v703 = vshrl.u32 %v702, 7
    %v704 = vsub.s32 0, %v703
    %v705 = vrot.slane %v700, %v704
    %v771 = vunpack.c.l.b16 %v636
    %v772 = vunpack.c.l.b16 %v637
    %v773 = vunpack.c.l.b16 %v638
    %v774 = vunpack.c.l.b16 %v639
    %v775 = vunpack.c.l.b16 %v640
    %v776 = vunpack.c.l.b16 %v641
    %v777 = vunpack.c.l.b16 %v642
    %v778 = vunpack.c.l.b16 %v643
    %v779 = vunpack.c.l.b16 %v644
    %v780 = vunpack.c.l.b16 %v645
    %v781 = vunpack.c.l.b16 %v646
    %v782 = vunpack.c.l.b16 %v647
    %v783 = vunpack.c.l.b16 %v648
    %v784 = vunpack.c.l.b16 %v649
    %v785 = vunpack.c.l.b16 %v650
    %v786 = vunpack.c.l.b16 %v651
    %v787 = vunpack.c.l.b16 %v652
    %v788 = vunpack.c.l.b16 %v653
    %v789 = vunpack.c.l.b16 %v654
    %v790 = vunpack.c.l.b16 %v655
    %v791 = vunpack.c.l.b16 %v656
    %v792 = vunpack.c.l.b16 %v657
    %v793 = vunpack.c.l.b16 %v658
    %v794 = vunpack.c.l.b16 %v659
    %v795 = vunpack.c.l.b16 %v660
    %v796 = vunpack.c.l.b16 %v661
    %v797 = vunpack.c.l.b16 %v662
    %v798 = vunpack.c.l.b16 %v663
    %v799 = vunpack.c.l.b16 %v664
    %v800 = vunpack.c.l.b16 %v665
    %v801 = vunpack.c.l.b16 %v666
    %v802 = vunpack.c.l.b16 %v667
    %v803 = vunpack.c.l.b16 %v668
    %v804 = vunpack.c.l.b16 %v669
    %v805 = vunpack.c.l.b16 %v670
    %v806 = vunpack.c.l.b16 %v671
    %v807 = vunpack.c.l.b16 %v672
    %v808 = vunpack.c.l.b16 %v673
    %v809 = vunpack.c.l.b16 %v674
    %v810 = vunpack.c.l.b16 %v675
    %v811 = vunpack.c.l.b16 %v676
    %v812 = vunpack.c.l.b16 %v677
    %v813 = vunpack.c.l.b16 %v678
    %v814 = vunpack.c.l.b16 %v679
    %v815 = vunpack.c.l.b16 %v680
    %v816 = vunpack.c.l.b16 %v681
    %v817 = vunpack.c.l.b16 %v682
    %v818 = vunpack.c.l.b16 %v683
    %v819 = vunpack.c.l.b16 %v684
    %v820 = vunpack.c.l.b16 %v685
    %v821 = vunpack.c.l.b16 %v686
    %v822 = vunpack.c.l.b16 %v687
    %v823 = vunpack.c.l.b16 %v688
    %v824 = vunpack.c.l.b16 %v689
    %v825 = vunpack.c.l.b16 %v690
    %v826 = vunpack.c.l.b16 %v691
    %v827 = vunpack.c.l.b16 %v692
    %v828 = vunpack.c.l.b16 %v693
    %v829 = vunpack.c.l.b16 %v694
    %v830 = vunpack.c.l.b16 %v695
    %v831 = vunpack.c.l.b16 %v696
    %v832 = vunpack.c.l.b16 %v697
    %v833 = vunpack.c.l.b16 %v698
    %v834 = vunpack.c.l.b16 %v699
    %v835 = vpack.c.b16 %v772, %v771
    %v836 = vpack.c.b16 %v774, %v773
    %v837 = vpack.c.b16 %v776, %v775
    %v838 = vpack.c.b16 %v778, %v777
    %v839 = vpack.c.b16 %v780, %v779
    %v840 = vpack.c.b16 %v782, %v781
    %v841 = vpack.c.b16 %v784, %v783
    %v842 = vpack.c.b16 %v786, %v785
    %v843 = vpack.c.b16 %v788, %v787
    %v844 = vpack.c.b16 %v790, %v789
    %v845 = vpack.c.b16 %v792, %v791
    %v846 = vpack.c.b16 %v794, %v793
    %v847 = vpack.c.b16 %v796, %v795
    %v848 = vpack.c.b16 %v798, %v797
    %v849 = vpack.c.b16 %v800, %v799
    %v850 = vpack.c.b16 %v802, %v801
    %v851 = vpack.c.b16 %v804, %v803
    %v852 = vpack.c.b16 %v806, %v805
    %v853 = vpack.c.b16 %v808, %v807
    %v854 = vpack.c.b16 %v810, %v809
    %v855 = vpack.c.b16 %v812, %v811
    %v856 = vpack.c.b16 %v814, %v813
    %v857 = vpack.c.b16 %v816, %v815
    %v858 = vpack.c.b16 %v818, %v817
    %v859 = vpack.c.b16 %v820, %v819
    %v860 = vpack.c.b16 %v822, %v821
    %v861 = vpack.c.b16 %v824, %v823
    %v862 = vpack.c.b16 %v826, %v825
    %v863 = vpack.c.b16 %v828, %v827
    %v864 = vpack.c.b16 %v830, %v829
    %v865 = vpack.c.b16 %v832, %v831
    %v866 = vpack.c.b16 %v834, %v833
    %899 = vmatprep.subr.bf16.mxu0 0
    %900 = vmatpush1.bf16.msra.mxu0 %v835
    %901 = vmatprep.subr.bf16.mxu0 0
    %902 = vmatpush1.bf16.msra.mxu0 %v836
    %903 = vmatprep.subr.bf16.mxu0 0
    %904 = vmatpush1.bf16.msra.mxu0 %v837
    %905 = vmatprep.subr.bf16.mxu0 0
    %906 = vmatpush1.bf16.msra.mxu0 %v838
    %907 = vmatprep.subr.bf16.mxu0 0
    %908 = vmatpush1.bf16.msra.mxu0 %v839
    %909 = vmatprep.subr.bf16.mxu0 0
    %910 = vmatpush1.bf16.msra.mxu0 %v840
    %911 = vmatprep.subr.bf16.mxu0 0
    %912 = vmatpush1.bf16.msra.mxu0 %v841
    %913 = vmatprep.subr.bf16.mxu0 0
    %914 = vmatpush1.bf16.msra.mxu0 %v842
    %915 = vmatprep.subr.bf16.mxu0 0
    %916 = vmatpush1.bf16.msra.mxu0 %v843
    %917 = vmatprep.subr.bf16.mxu0 0
    %918 = vmatpush1.bf16.msra.mxu0 %v844
    %919 = vmatprep.subr.bf16.mxu0 0
    %920 = vmatpush1.bf16.msra.mxu0 %v845
    %921 = vmatprep.subr.bf16.mxu0 0
    %922 = vmatpush1.bf16.msra.mxu0 %v846
    %923 = vmatprep.subr.bf16.mxu0 0
    %924 = vmatpush1.bf16.msra.mxu0 %v847
    %925 = vmatprep.subr.bf16.mxu0 0
    %926 = vmatpush1.bf16.msra.mxu0 %v848
    %927 = vmatprep.subr.bf16.mxu0 0
    %928 = vmatpush1.bf16.msra.mxu0 %v849
    %929 = vmatprep.subr.bf16.mxu0 0
    %930 = vmatpush1.bf16.msra.mxu0 %v850
    %931 = vmatprep.mubr.bf16.mxu0 %v633
    %932 = vmatmul.mubr.bf16.gmra.mrb[0].mxu0 %v632
    %v933 = vpop.f32.mrb[0].mxu0
    %v934 = vadd.f32 %v705, %v933
    %v935 = vpop.f32.mrb[0].mxu0
    %v936 = vpop.f32.mrb[0].mxu0
    %v937 = vpop.f32.mrb[0].mxu0
    %938 = vdwg.mxu0
    %939 = vmatprep.subr.bf16.mxu0 0
    %940 = vmatpush1.bf16.msra.mxu0 %v851
    %941 = vmatprep.subr.bf16.mxu0 0
    %942 = vmatpush1.bf16.msra.mxu0 %v852
    %943 = vmatprep.subr.bf16.mxu0 0
    %944 = vmatpush1.bf16.msra.mxu0 %v853
    %945 = vmatprep.subr.bf16.mxu0 0
    %946 = vmatpush1.bf16.msra.mxu0 %v854
    %947 = vmatprep.subr.bf16.mxu0 0
    %948 = vmatpush1.bf16.msra.mxu0 %v855
    %949 = vmatprep.subr.bf16.mxu0 0
    %950 = vmatpush1.bf16.msra.mxu0 %v856
    %951 = vmatprep.subr.bf16.mxu0 0
    %952 = vmatpush1.bf16.msra.mxu0 %v857
    %953 = vmatprep.subr.bf16.mxu0 0
    %954 = vmatpush1.bf16.msra.mxu0 %v858
    %955 = vmatprep.subr.bf16.mxu0 0
    %956 = vmatpush1.bf16.msra.mxu0 %v859
    %957 = vmatprep.subr.bf16.mxu0 0
    %958 = vmatpush1.bf16.msra.mxu0 %v860
    %959 = vmatprep.subr.bf16.mxu0 0
    %960 = vmatpush1.bf16.msra.mxu0 %v861
    %961 = vmatprep.subr.bf16.mxu0 0
    %962 = vmatpush1.bf16.msra.mxu0 %v862
    %963 = vmatprep.subr.bf16.mxu0 0
    %964 = vmatpush1.bf16.msra.mxu0 %v863
    %965 = vmatprep.subr.bf16.mxu0 0
    %966 = vmatpush1.bf16.msra.mxu0 %v864
    %967 = vmatprep.subr.bf16.mxu0 0
    %968 = vmatpush1.bf16.msra.mxu0 %v865
    %969 = vmatprep.subr.bf16.mxu0 0
    %970 = vmatpush1.bf16.msra.mxu0 %v866
    %971 = vmatprep.mubr.bf16.mxu0 %v635
    %972 = vmatmul.mubr.bf16.gmra.mrb[0].mxu0 %v634
    %v973 = vpop.f32.mrb[0].mxu0
    %v974 = vadd.f32 %v934, %v973
    %v975 = vpop.f32.mrb[0].mxu0
    %v976 = vpop.f32.mrb[0].mxu0
    %v977 = vpop.f32.mrb[0].mxu0
    %978 = vdwg.mxu0
    %vm979 = vcmask 123904
    %980 = vst.msk [vmem:[#allocation2] sm:$0x3] %vm979, %v974
    // Predicated region
    $region38: #{point_gen_forward.27} parent=1 // pred_check
      _
    $region39: #{point_gen_forward.27} parent=1 // pred_check_branch
      %982 = sbr.rel (0) target = $region41
    $region40: #{point_gen_forward.27} parent=1 // pred_region
      %s984 = ssub.s32 32, 32
      %985 = vsyncadd [#allocation3], %s984
      %s987 = sshll.u32 [#allocation2], 4
      %s988 = int_to_ptr.vmem [resolvable:$true] %s987
      %990 = dma.vmem_to_hbm [thread:$0]  %s988, 32, %s9, [#allocation3]
    $region41: #{point_gen_forward.27} parent=1 // pred_fallthru
      _
    // Predicated region
    $region42: #{point_gen_forward.27} parent=1 // pred_check
      _
    $region43: #{point_gen_forward.27} parent=1 // pred_check_branch
      %992 = sbr.rel (0) target = $region45
    $region44: #{point_gen_forward.27} parent=1 // pred_region
      %993 = dma.done [#allocation3], 32
    $region45: #{point_gen_forward.27} parent=1 // pred_fallthru
      _
    %994 = vsyncpa [#allocation3], 1

</llo_original>
